<compile_context>
chip_gen: v5e
topology: v5e:2x2
jax: 0.10.0
libtpu: 0.0.40
codegen_flags: <defaults>
</compile_context>

<pallas_src>
import numpy as np
import jax
import jax.numpy as jnp
from jax.experimental import pallas as pl
from jax.experimental.pallas import tpu as pltpu


_W_KEYS = ("k10", "b11", "k20", "b21",
           "kc1", "bc1t", "kcf", "bcft",
           "b2c", "b2t",
           "bb", "bsm",
           "e", "rh", "kc4", "b4t",
           "wdu1", "bdu1", "wdu2", "bdu2",
           "km", "bmt")


# ----------------------------------------------------------------------------
# Bilinear interpolation matrix (PyTorch F.interpolate, align_corners=False).
# ----------------------------------------------------------------------------
def _interp_matrix(out_size, in_size):
    m = np.zeros((out_size, in_size), np.float32)
    if in_size == 1:
        m[:, 0] = 1.0
        return m
    scale = in_size / out_size
    for i in range(out_size):
        src = max((i + 0.5) * scale - 0.5, 0.0)
        i0 = min(int(np.floor(src)), in_size - 1)
        i1 = min(i0 + 1, in_size - 1)
        lam = src - i0
        m[i, i0] += 1.0 - lam
        m[i, i1] += lam
    return m


# ----------------------------------------------------------------------------
# Host-side weight preprocessing: block-diagonal / banded matrices.
# NOTE: layout hard-codes NHWC channel-fastest flattening (lane = w*C + c),
# matching x.reshape(N, H, W*C) in the wrapper.
# ----------------------------------------------------------------------------
def prepare_params(params, H, W, C):
    f = C // 4
    Ho2 = (H - 3) // 2 + 1          # ESA conv2 output height (stride 2, valid)
    Wo2 = (W - 3) // 2 + 1
    Hp = (Ho2 - 7) // 3 + 1         # pooled height (k=7, stride=3)
    Wp = (Wo2 - 7) // 3 + 1

    p = {k: np.asarray(jax.device_get(v), np.float32) for k, v in params.items()}
    eye_w = np.eye(W, dtype=np.float32)
    bf16 = jnp.bfloat16

    def kron_w(w):                  # 1x1 conv (cin,cout) -> (W*cin, W*cout)
        return np.kron(eye_w, w)

    def band3(w, wd):               # (1,3)/3x3-row conv, zero pad 1 along W
        cin, cout = w.shape[1], w.shape[2]
        b = np.zeros((wd * cin, wd * cout), np.float32)
        for wo in range(wd):
            for kw in range(3):
                wi = wo + kw - 1
                if 0 <= wi < wd:
                    b[wi * cin:(wi + 1) * cin, wo * cout:(wo + 1) * cout] = w[kw]
        return b

    def conv2_cols(w_kh, wd, wo_n):  # 3-tap, stride 2, no padding along W
        cin, cout = w_kh.shape[1], w_kh.shape[2]
        b = np.zeros((wd * cin, wo_n * cout), np.float32)
        for wo in range(wo_n):
            for kw in range(3):
                wi = 2 * wo + kw
                b[wi * cin:(wi + 1) * cin, wo * cout:(wo + 1) * cout] = w_kh[kw]
        return b

    def tile_bias(b, n):
        return np.tile(b, n).reshape(1, -1).astype(np.float32)

    out = {}
    # separable trunk convs (no bias)
    out["k10"] = jnp.asarray(np.stack([kron_w(p["c1r0_w"][kh]) for kh in range(3)]), bf16)
    out["b11"] = jnp.asarray(band3(p["c1r1_w"], W), bf16)
    out["k20"] = jnp.asarray(np.stack([kron_w(p["c2r0_w"][kh]) for kh in range(3)]), bf16)
    out["b21"] = jnp.asarray(band3(p["c2r1_w"], W), bf16)
    # ESA 1x1 convs
    out["kc1"] = jnp.asarray(kron_w(p["esa_conv1_w"]), bf16)
    out["bc1t"] = jnp.asarray(tile_bias(p["esa_conv1_b"], W))
    out["kcf"] = jnp.asarray(kron_w(p["esa_convf_w"]), bf16)
    out["bcft"] = jnp.asarray(tile_bias(p["esa_convf_b"], W))
    # ESA conv2 (3x3, stride 2, valid): strided column bands (rows via pl.ds)
    out["b2c"] = jnp.asarray(np.stack([conv2_cols(p["esa_conv2_w"][kh], W, Wo2)
                                       for kh in range(3)]), bf16)
    out["b2t"] = jnp.asarray(tile_bias(p["esa_conv2_b"], Wo2))
    # ESA small 3x3 convs at (Hp, Wp): K-fused over the 3 row taps
    bb = []
    for name in ("esa_convmax_w", "esa_conv3_w", "esa_conv3__w"):
        w = p[name]
        bb.append(np.concatenate([band3(w[kh], Wp) for kh in range(3)], axis=0))
    out["bb"] = jnp.asarray(np.stack(bb), bf16)          # (3, 3*Wp*f, Wp*f)
    out["bsm"] = jnp.asarray(np.stack([tile_bias(p["esa_convmax_b"], Wp)[0],
                                       tile_bias(p["esa_conv3_b"], Wp)[0],
                                       tile_bias(p["esa_conv3__b"], Wp)[0]]))
    # bilinear upsample matrices
    rh = _interp_matrix(H, Hp)
    rw = _interp_matrix(W, Wp)
    out["e"] = jnp.asarray(np.kron(rw.T.copy(), np.eye(f, dtype=np.float32)), bf16)
    out["rh"] = jnp.asarray(rh, bf16)
    # ESA conv4
    out["kc4"] = jnp.asarray(kron_w(p["esa_conv4_w"]), bf16)
    out["b4t"] = jnp.asarray(tile_bias(p["esa_conv4_b"], W))
    # CCA tiny gate (kept f32)
    out["wdu1"] = jnp.asarray(p["cca_w1"])
    out["bdu1"] = jnp.asarray(p["cca_b1"].reshape(1, -1))
    out["wdu2"] = jnp.asarray(p["cca_w2"])
    out["bdu2"] = jnp.asarray(p["cca_b2"].reshape(1, -1))
    # merge (1x1 on concat) split into esa / cca halves
    out["km"] = jnp.asarray(np.stack([kron_w(p["merge_w"][:C]),
                                      kron_w(p["merge_w"][C:])]), bf16)
    out["bmt"] = jnp.asarray(tile_bias(p["merge_b"], W))
    return out


# ----------------------------------------------------------------------------
# Small in-kernel helpers (lane-group reduce / lane tiling, no MXU, no reshape)
# ----------------------------------------------------------------------------
def _group_sum(v, groups, gsize):
    """Sum a (rows, groups*gsize) value over its lane groups -> (rows, gsize)."""
    n = groups
    while n > 1:
        half = n // 2
        s = v[:, :half * gsize] + v[:, half * gsize:2 * half * gsize]
        if n & 1:
            tail = v[:, 2 * half * gsize:n * gsize]
            if half == 1:
                s = s + tail
            else:
                s = jnp.concatenate([s[:, :gsize] + tail, s[:, gsize:]], axis=1)
        v, n = s, half
    return v


def _tile_lanes(v, reps):
    """Tile a (rows, L) value `reps` times along lanes via doubling concats."""
    pieces = []
    cur, n = v, reps
    while n > 0:
        if n & 1:
            pieces.append(cur)
        n >>= 1
        if n:
            cur = jnp.concatenate([cur, cur], axis=1)
    out = pieces[0]
    for piece in pieces[1:]:
        out = jnp.concatenate([out, piece], axis=1)
    return out


# ----------------------------------------------------------------------------
# Fused kernel.
# ----------------------------------------------------------------------------
def _build_kernel(H, W, C):
    f = C // 4
    WC = W * C
    Ho2 = (H - 3) // 2 + 1
    Wo2 = (W - 3) // 2 + 1
    Hp = (Ho2 - 7) // 3 + 1
    Wp = (Wo2 - 7) // 3 + 1
    HW = H * W
    f32 = jnp.float32
    bf16 = jnp.bfloat16

    def kernel(x_ref,
               k10_ref, b11_ref, k20_ref, b21_ref,
               kc1_ref, bc1t_ref, kcf_ref, bcft_ref,
               b2c_ref, b2t_ref,
               bb_ref, bsm_ref,
               e_ref, rh_ref, kc4_ref, b4t_ref,
               wdu1_ref, bdu1_ref, wdu2_ref, bdu2_ref,
               km_ref, bmt_ref,
               o_ref,
               c1scr_ref):
        x = x_ref[...]                                       # (H, W*C) f32
        zrow = jnp.zeros((1, WC), bf16)

        def sep_conv(inp, k0_ref, band_ref):
            """(3,1) conv (pad 1 in H) then (1,3) conv (pad folded into band)."""
            # cast once, slice the casted padded slab for the 3 row taps
            slab = jnp.concatenate([zrow, inp.astype(bf16), zrow], axis=0)   # (H+2, WC)
            acc = jnp.dot(slab[0:H], k0_ref[0], preferred_element_type=f32)
            acc = acc + jnp.dot(slab[1:H + 1], k0_ref[1], preferred_element_type=f32)
            acc = acc + jnp.dot(slab[2:H + 2], k0_ref[2], preferred_element_type=f32)
            return jnp.dot(acc.astype(bf16), band_ref[...],
                           preferred_element_type=f32)       # (H, W*C)

        out1 = sep_conv(x, k10_ref, b11_ref)
        out2 = sep_conv(jnp.maximum(out1, 0.0), k20_ref, b21_ref)            # (H, W*C)

        # -------------------------- ESA --------------------------
        c1_ = jnp.dot(out2.astype(bf16), kc1_ref[...],
                      preferred_element_type=f32) + bc1t_ref[...]            # (H, W*f)
        cf = jnp.dot(c1_.astype(bf16), kcf_ref[...],
                     preferred_element_type=f32) + bcft_ref[...]             # (H, W*f)

        # conv2: 3x3, stride 2, valid — strided row reads (no sel matmuls)
        c1scr_ref[...] = c1_
        c1s = None
        for kh in range(3):
            rows = c1scr_ref[pl.ds(kh, Ho2, stride=2), :]                    # (Ho2, W*f)
            part = jnp.dot(rows.astype(bf16), b2c_ref[kh],
                           preferred_element_type=f32)
            c1s = part if c1s is None else c1s + part
        c1s = c1s + b2t_ref[...]                                             # (Ho2, Wo2*f)

        # 7x7 / stride-3 max pool — vectorized window maxes on register values
        nr = Ho2 - 6
        rwin = c1s[0:nr]
        for kh in range(1, 7):
            rwin = jnp.maximum(rwin, c1s[kh:kh + nr])
        rp = jnp.concatenate([rwin[3 * i:3 * i + 1] for i in range(Hp)],
                             axis=0)                                         # (Hp, Wo2*f)
        ncg = Wo2 - 6
        cwin = rp[:, 0:f * ncg]
        for kw in range(1, 7):
            cwin = jnp.maximum(cwin, rp[:, f * kw:f * (kw + ncg)])
        pooled = jnp.concatenate([cwin[:, 3 * j * f:(3 * j + 1) * f]
                                  for j in range(Wp)], axis=1)               # (Hp, Wp*f)

        # conv_max (relu) -> conv3 (relu) -> conv3_  (3x3, pad 1):
        # each conv is ONE fused matmul over the K-concatenated row taps.
        zrow_s = jnp.zeros((1, Wp * f), f32)
        feat = pooled
        for ci in range(3):
            padded = jnp.concatenate([zrow_s, feat, zrow_s], axis=0)         # (Hp+2, Wp*f)
            kat = jnp.concatenate([padded[0:Hp], padded[1:Hp + 1],
                                   padded[2:Hp + 2]], axis=1)                # (Hp, 3*Wp*f)
            acc = jnp.dot(kat.astype(bf16), bb_ref[ci],
                          preferred_element_type=f32) + bsm_ref[pl.ds(ci, 1), :]
            feat = jnp.maximum(acc, 0.0) if ci < 2 else acc
        c3 = feat                                                            # (Hp, Wp*f)

        # bilinear upsample to (H, W) as two bf16 matmuls
        c3w = jnp.dot(c3.astype(bf16), e_ref[...],
                      preferred_element_type=f32)                            # (Hp, W*f)
        c3up = jnp.dot(rh_ref[...], c3w.astype(bf16),
                       preferred_element_type=f32)                           # (H, W*f)

        c4 = jnp.dot((c3up + cf).astype(bf16), kc4_ref[...],
                     preferred_element_type=f32) + b4t_ref[...]              # (H, W*C)
        esa_out = out2 * jax.nn.sigmoid(c4)

        # ---------------- CCA (all f32, VPU/XLU only, no MXU) ----------------
        # population variance, no epsilon — matches PyTorch stdv_channels
        inv_hw = 1.0 / float(HW)
        rowsum = jnp.sum(out2, axis=0, keepdims=True)                        # (1, W*C)
        mean_c = _group_sum(rowsum, W, C) * inv_hw                           # (1, C)
        mean_t = _tile_lanes(mean_c, W)                                      # (1, W*C)
        diff = out2 - mean_t
        var_c = _group_sum(jnp.sum(diff * diff, axis=0, keepdims=True),
                           W, C) * inv_hw                                    # (1, C)
        y = jnp.sqrt(var_c) + mean_c
        h1 = jnp.maximum(
            jnp.dot(y, wdu1_ref[...], preferred_element_type=f32) + bdu1_ref[...],
            0.0)
        gch = jax.nn.sigmoid(
            jnp.dot(h1, wdu2_ref[...], preferred_element_type=f32) + bdu2_ref[...])
        cca_out = out2 * _tile_lanes(gch, W)

        # --------------- merge (1x1 on concat) + residual ---------------
        merged = (jnp.dot(esa_out.astype(bf16), km_ref[0],
                          preferred_element_type=f32)
                  + jnp.dot(cca_out.astype(bf16), km_ref[1],
                            preferred_element_type=f32)
                  + bmt_ref[...])
        o_ref[...] = x + merged

    return kernel


# ----------------------------------------------------------------------------
# Wrapper: one fused pallas_call over the batch.
# ----------------------------------------------------------------------------
def block_forward(prep, x):
    N, H, W, C = x.shape
    f = C // 4
    WC = W * C

    weights = [prep[k] for k in _W_KEYS]
    kernel = _build_kernel(H, W, C)

    def const_spec(a):
        nd = a.ndim
        return pl.BlockSpec(a.shape, lambda n, _nd=nd: (0,) * _nd)

    # VMEM budget from actual buffer sizes: weights (assume double-buffered),
    # double-buffered in/out batch blocks, scratch; 1.5x headroom + 2 MiB.
    weight_bytes = sum(int(a.size) * a.dtype.itemsize for a in weights)
    io_bytes = 2 * 2 * H * WC * 4
    scratch_bytes = H * (W * f) * 4
    vmem_limit = int(1.5 * (2 * weight_bytes + io_bytes + scratch_bytes)) + (2 << 20)
    vmem_limit = min(vmem_limit, 64 * 1024 * 1024)

    x_fw = x.reshape(N, H, WC)                       # lane-dense (H, W*C) slabs
    out_fw = pl.pallas_call(
        kernel,
        out_shape=jax.ShapeDtypeStruct((N, H, WC), jnp.float32),
        grid=(N,),
        in_specs=[pl.BlockSpec((None, H, WC), lambda n: (n, 0, 0))]
                 + [const_spec(a) for a in weights],
        out_specs=pl.BlockSpec((None, H, WC), lambda n: (n, 0, 0)),
        scratch_shapes=[
            pltpu.VMEM((H, W * f), jnp.float32),     # c1_ for strided row reads
        ],
        compiler_params=pltpu.CompilerParams(
            dimension_semantics=("parallel",),
            vmem_limit_bytes=vmem_limit),
    )(x_fw, *weights)
    return out_fw.reshape(N, H, W, C)


# ----------------------------------------------------------------------------
# Deterministic parameter init (shapes mirror the PyTorch module).
# ----------------------------------------------------------------------------
def init_params(key, C):
    f = C // 4
    mid = max(C // 16, 1)
    ks = jax.random.split(key, 24)

    def w_init(k, shape, fan_in):
        return jax.random.normal(k, shape, jnp.float32) * (1.0 / np.sqrt(fan_in))

    def b_init(k, shape):
        return jax.random.normal(k, shape, jnp.float32) * 0.05

    p = {}
    p["c1r0_w"] = w_init(ks[0], (3, C, C // 2), 3 * C)
    p["c1r1_w"] = w_init(ks[1], (3, C // 2, C), 3 * (C // 2))
    p["c2r0_w"] = w_init(ks[2], (3, C, C // 2), 3 * C)
    p["c2r1_w"] = w_init(ks[3], (3, C // 2, C), 3 * (C // 2))
    p["esa_conv1_w"] = w_init(ks[4], (C, f), C);        p["esa_conv1_b"] = b_init(ks[5], (f,))
    p["esa_convf_w"] = w_init(ks[6], (f, f), f);        p["esa_convf_b"] = b_init(ks[7], (f,))
    p["esa_convmax_w"] = w_init(ks[8], (3, 3, f, f), 9 * f); p["esa_convmax_b"] = b_init(ks[9], (f,))
    p["esa_conv2_w"] = w_init(ks[10], (3, 3, f, f), 9 * f);  p["esa_conv2_b"] = b_init(ks[11], (f,))
    p["esa_conv3_w"] = w_init(ks[12], (3, 3, f, f), 9 * f);  p["esa_conv3_b"] = b_init(ks[13], (f,))
    p["esa_conv3__w"] = w_init(ks[14], (3, 3, f, f), 9 * f); p["esa_conv3__b"] = b_init(ks[15], (f,))
    p["esa_conv4_w"] = w_init(ks[16], (f, C), f);       p["esa_conv4_b"] = b_init(ks[17], (C,))
    p["cca_w1"] = w_init(ks[18], (C, mid), C);          p["cca_b1"] = b_init(ks[19], (mid,))
    p["cca_w2"] = w_init(ks[20], (mid, C), mid);        p["cca_b2"] = b_init(ks[21], (C,))
    p["merge_w"] = w_init(ks[22], (2 * C, C), 2 * C);   p["merge_b"] = b_init(ks[23], (C,))
    return p


if __name__ == "__main__":
    key = jax.random.PRNGKey(0)
    k_param, k_x = jax.random.split(key)

    # NHWC input; the PyTorch-equivalent NCHW input is (2, 16, 32, 32).
    N, H, W, C = 2, 32, 32, 16
    raw_params = init_params(k_param, C)
    prep = prepare_params(raw_params, H, W, C)
    x = jax.random.normal(k_x, (N, H, W, C), jnp.float32)

    fwd = jax.jit(block_forward)
    out = jax.block_until_ready(fwd(prep, x))

    assert out.shape == (N, H, W, C), out.shape
    assert bool(jnp.all(jnp.isfinite(out)))
    print("KERNEL_OK")
</pallas_src>

<mosaic_0001>
module attributes {stable_mosaic.version = 11 : i64} {
  func.func @kernel(%arg0: i32, %arg1: memref<1x32x512xf32, #tpu.memory_space<vmem>>, %arg2: memref<3x512x256xbf16, #tpu.memory_space<vmem>>, %arg3: memref<256x512xbf16, #tpu.memory_space<vmem>>, %arg4: memref<3x512x256xbf16, #tpu.memory_space<vmem>>, %arg5: memref<256x512xbf16, #tpu.memory_space<vmem>>, %arg6: memref<512x128xbf16, #tpu.memory_space<vmem>>, %arg7: memref<1x128xf32, #tpu.memory_space<vmem>>, %arg8: memref<128x128xbf16, #tpu.memory_space<vmem>>, %arg9: memref<1x128xf32, #tpu.memory_space<vmem>>, %arg10: memref<3x128x60xbf16, #tpu.memory_space<vmem>>, %arg11: memref<1x60xf32, #tpu.memory_space<vmem>>, %arg12: memref<3x36x12xbf16, #tpu.memory_space<vmem>>, %arg13: memref<3x12xf32, #tpu.memory_space<vmem>>, %arg14: memref<12x128xbf16, #tpu.memory_space<vmem>>, %arg15: memref<32x3xbf16, #tpu.memory_space<vmem>>, %arg16: memref<128x512xbf16, #tpu.memory_space<vmem>>, %arg17: memref<1x512xf32, #tpu.memory_space<vmem>>, %arg18: memref<16x1xf32, #tpu.memory_space<vmem>>, %arg19: memref<1x1xf32, #tpu.memory_space<vmem>>, %arg20: memref<1x16xf32, #tpu.memory_space<vmem>>, %arg21: memref<1x16xf32, #tpu.memory_space<vmem>>, %arg22: memref<2x512x512xbf16, #tpu.memory_space<vmem>>, %arg23: memref<1x512xf32, #tpu.memory_space<vmem>>, %arg24: memref<1x32x512xf32, #tpu.memory_space<vmem>>, %arg25: memref<32x128xf32, #tpu.memory_space<vmem>>) attributes {dimension_semantics = [#tpu.dimension_semantics<parallel>], iteration_bounds = array<i64: 2>, scalar_prefetch = 0 : i64, scratch_operands = 1 : i64, tpu.core_type = #tpu.core_type<tc>, window_params = [{transform_indices = @transform_0, window_bounds = array<i64: 1, 32, 512>}, {pipeline_mode = #tpu.pipeline_mode<synchronous>, transform_indices = @transform_1, window_bounds = array<i64: 3, 512, 256>}, {pipeline_mode = #tpu.pipeline_mode<synchronous>, transform_indices = @transform_2, window_bounds = array<i64: 256, 512>}, {pipeline_mode = #tpu.pipeline_mode<synchronous>, transform_indices = @transform_3, window_bounds = array<i64: 3, 512, 256>}, {pipeline_mode = #tpu.pipeline_mode<synchronous>, transform_indices = @transform_4, window_bounds = array<i64: 256, 512>}, {pipeline_mode = #tpu.pipeline_mode<synchronous>, transform_indices = @transform_5, window_bounds = array<i64: 512, 128>}, {pipeline_mode = #tpu.pipeline_mode<synchronous>, transform_indices = @transform_6, window_bounds = array<i64: 1, 128>}, {pipeline_mode = #tpu.pipeline_mode<synchronous>, transform_indices = @transform_7, window_bounds = array<i64: 128, 128>}, {pipeline_mode = #tpu.pipeline_mode<synchronous>, transform_indices = @transform_8, window_bounds = array<i64: 1, 128>}, {pipeline_mode = #tpu.pipeline_mode<synchronous>, transform_indices = @transform_9, window_bounds = array<i64: 3, 128, 60>}, {pipeline_mode = #tpu.pipeline_mode<synchronous>, transform_indices = @transform_10, window_bounds = array<i64: 1, 60>}, {pipeline_mode = #tpu.pipeline_mode<synchronous>, transform_indices = @transform_11, window_bounds = array<i64: 3, 36, 12>}, {pipeline_mode = #tpu.pipeline_mode<synchronous>, transform_indices = @transform_12, window_bounds = array<i64: 3, 12>}, {pipeline_mode = #tpu.pipeline_mode<synchronous>, transform_indices = @transform_13, window_bounds = array<i64: 12, 128>}, {pipeline_mode = #tpu.pipeline_mode<synchronous>, transform_indices = @transform_14, window_bounds = array<i64: 32, 3>}, {pipeline_mode = #tpu.pipeline_mode<synchronous>, transform_indices = @transform_15, window_bounds = array<i64: 128, 512>}, {pipeline_mode = #tpu.pipeline_mode<synchronous>, transform_indices = @transform_16, window_bounds = array<i64: 1, 512>}, {pipeline_mode = #tpu.pipeline_mode<synchronous>, transform_indices = @transform_17, window_bounds = array<i64: 16, 1>}, {pipeline_mode = #tpu.pipeline_mode<synchronous>, transform_indices = @transform_18, window_bounds = array<i64: 1, 1>}, {pipeline_mode = #tpu.pipeline_mode<synchronous>, transform_indices = @transform_19, window_bounds = array<i64: 1, 16>}, {pipeline_mode = #tpu.pipeline_mode<synchronous>, transform_indices = @transform_20, window_bounds = array<i64: 1, 16>}, {pipeline_mode = #tpu.pipeline_mode<synchronous>, transform_indices = @transform_21, window_bounds = array<i64: 2, 512, 512>}, {pipeline_mode = #tpu.pipeline_mode<synchronous>, transform_indices = @transform_22, window_bounds = array<i64: 1, 512>}, {transform_indices = @transform_23, window_bounds = array<i64: 1, 32, 512>}]} {
    %c0 = arith.constant 0 : index
    %c0_0 = arith.constant 0 : index
    %c0_1 = arith.constant 0 : index
    %0 = vector.load %arg1[%c0, %c0_0, %c0_1] : memref<1x32x512xf32, #tpu.memory_space<vmem>>, vector<1x32x512xf32>
    %1 = vector.shape_cast %0 : vector<1x32x512xf32> to vector<32x512xf32>
    %cst = arith.constant 0.000000e+00 : bf16
    %2 = vector.broadcast %cst : bf16 to vector<1x512xbf16>
    %3 = arith.truncf %1 : vector<32x512xf32> to vector<32x512xbf16>
    %4 = tpu.concatenate %2, %3, %2 in 0 : vector<1x512xbf16>, vector<32x512xbf16>, vector<1x512xbf16> -> vector<34x512xbf16>
    %5 = vector.extract_strided_slice %4 {offsets = [0, 0], sizes = [32, 512], strides = [1, 1]} : vector<34x512xbf16> to vector<32x512xbf16>
    %c0_2 = arith.constant 0 : index
    %c0_3 = arith.constant 0 : index
    %c0_4 = arith.constant 0 : index
    %6 = vector.load %arg2[%c0_2, %c0_3, %c0_4] : memref<3x512x256xbf16, #tpu.memory_space<vmem>>, vector<1x512x256xbf16>
    %7 = vector.shape_cast %6 : vector<1x512x256xbf16> to vector<512x256xbf16>
    %cst_5 = arith.constant dense<0.000000e+00> : vector<32x256xf32>
    %8 = tpu.matmul %5, %7, %cst_5 {dimension_numbers = #tpu.dot_dimension_numbers<[1], [0], [0], [1], [0, 0, 1, 1], [], []>} : vector<32x512xbf16>, vector<512x256xbf16>, vector<32x256xf32> -> vector<32x256xf32>
    %9 = vector.extract_strided_slice %4 {offsets = [1, 0], sizes = [32, 512], strides = [1, 1]} : vector<34x512xbf16> to vector<32x512xbf16>
    %c1 = arith.constant 1 : index
    %c0_6 = arith.constant 0 : index
    %c0_7 = arith.constant 0 : index
    %10 = vector.load %arg2[%c1, %c0_6, %c0_7] : memref<3x512x256xbf16, #tpu.memory_space<vmem>>, vector<1x512x256xbf16>
    %11 = vector.shape_cast %10 : vector<1x512x256xbf16> to vector<512x256xbf16>
    %cst_8 = arith.constant dense<0.000000e+00> : vector<32x256xf32>
    %12 = tpu.matmul %9, %11, %cst_8 {dimension_numbers = #tpu.dot_dimension_numbers<[1], [0], [0], [1], [0, 0, 1, 1], [], []>} : vector<32x512xbf16>, vector<512x256xbf16>, vector<32x256xf32> -> vector<32x256xf32>
    %13 = arith.addf %8, %12 : vector<32x256xf32>
    %14 = vector.extract_strided_slice %4 {offsets = [2, 0], sizes = [32, 512], strides = [1, 1]} : vector<34x512xbf16> to vector<32x512xbf16>
    %c2 = arith.constant 2 : index
    %c0_9 = arith.constant 0 : index
    %c0_10 = arith.constant 0 : index
    %15 = vector.load %arg2[%c2, %c0_9, %c0_10] : memref<3x512x256xbf16, #tpu.memory_space<vmem>>, vector<1x512x256xbf16>
    %16 = vector.shape_cast %15 : vector<1x512x256xbf16> to vector<512x256xbf16>
    %cst_11 = arith.constant dense<0.000000e+00> : vector<32x256xf32>
    %17 = tpu.matmul %14, %16, %cst_11 {dimension_numbers = #tpu.dot_dimension_numbers<[1], [0], [0], [1], [0, 0, 1, 1], [], []>} : vector<32x512xbf16>, vector<512x256xbf16>, vector<32x256xf32> -> vector<32x256xf32>
    %18 = arith.addf %13, %17 : vector<32x256xf32>
    %19 = arith.truncf %18 : vector<32x256xf32> to vector<32x256xbf16>
    %c0_12 = arith.constant 0 : index
    %c0_13 = arith.constant 0 : index
    %20 = vector.load %arg3[%c0_12, %c0_13] : memref<256x512xbf16, #tpu.memory_space<vmem>>, vector<256x512xbf16>
    %cst_14 = arith.constant dense<0.000000e+00> : vector<32x512xf32>
    %21 = tpu.matmul %19, %20, %cst_14 {dimension_numbers = #tpu.dot_dimension_numbers<[1], [0], [0], [1], [0, 0, 1, 1], [], []>} : vector<32x256xbf16>, vector<256x512xbf16>, vector<32x512xf32> -> vector<32x512xf32>
    %cst_15 = arith.constant 0.000000e+00 : f32
    %22 = vector.broadcast %cst_15 : f32 to vector<32x512xf32>
    %23 = arith.maximumf %21, %22 : vector<32x512xf32>
    %24 = arith.truncf %23 : vector<32x512xf32> to vector<32x512xbf16>
    %25 = tpu.concatenate %2, %24, %2 in 0 : vector<1x512xbf16>, vector<32x512xbf16>, vector<1x512xbf16> -> vector<34x512xbf16>
    %26 = vector.extract_strided_slice %25 {offsets = [0, 0], sizes = [32, 512], strides = [1, 1]} : vector<34x512xbf16> to vector<32x512xbf16>
    %c0_16 = arith.constant 0 : index
    %c0_17 = arith.constant 0 : index
    %c0_18 = arith.constant 0 : index
    %27 = vector.load %arg4[%c0_16, %c0_17, %c0_18] : memref<3x512x256xbf16, #tpu.memory_space<vmem>>, vector<1x512x256xbf16>
    %28 = vector.shape_cast %27 : vector<1x512x256xbf16> to vector<512x256xbf16>
    %cst_19 = arith.constant dense<0.000000e+00> : vector<32x256xf32>
    %29 = tpu.matmul %26, %28, %cst_19 {dimension_numbers = #tpu.dot_dimension_numbers<[1], [0], [0], [1], [0, 0, 1, 1], [], []>} : vector<32x512xbf16>, vector<512x256xbf16>, vector<32x256xf32> -> vector<32x256xf32>
    %30 = vector.extract_strided_slice %25 {offsets = [1, 0], sizes = [32, 512], strides = [1, 1]} : vector<34x512xbf16> to vector<32x512xbf16>
    %c1_20 = arith.constant 1 : index
    %c0_21 = arith.constant 0 : index
    %c0_22 = arith.constant 0 : index
    %31 = vector.load %arg4[%c1_20, %c0_21, %c0_22] : memref<3x512x256xbf16, #tpu.memory_space<vmem>>, vector<1x512x256xbf16>
    %32 = vector.shape_cast %31 : vector<1x512x256xbf16> to vector<512x256xbf16>
    %cst_23 = arith.constant dense<0.000000e+00> : vector<32x256xf32>
    %33 = tpu.matmul %30, %32, %cst_23 {dimension_numbers = #tpu.dot_dimension_numbers<[1], [0], [0], [1], [0, 0, 1, 1], [], []>} : vector<32x512xbf16>, vector<512x256xbf16>, vector<32x256xf32> -> vector<32x256xf32>
    %34 = arith.addf %29, %33 : vector<32x256xf32>
    %35 = vector.extract_strided_slice %25 {offsets = [2, 0], sizes = [32, 512], strides = [1, 1]} : vector<34x512xbf16> to vector<32x512xbf16>
    %c2_24 = arith.constant 2 : index
    %c0_25 = arith.constant 0 : index
    %c0_26 = arith.constant 0 : index
    %36 = vector.load %arg4[%c2_24, %c0_25, %c0_26] : memref<3x512x256xbf16, #tpu.memory_space<vmem>>, vector<1x512x256xbf16>
    %37 = vector.shape_cast %36 : vector<1x512x256xbf16> to vector<512x256xbf16>
    %cst_27 = arith.constant dense<0.000000e+00> : vector<32x256xf32>
    %38 = tpu.matmul %35, %37, %cst_27 {dimension_numbers = #tpu.dot_dimension_numbers<[1], [0], [0], [1], [0, 0, 1, 1], [], []>} : vector<32x512xbf16>, vector<512x256xbf16>, vector<32x256xf32> -> vector<32x256xf32>
    %39 = arith.addf %34, %38 : vector<32x256xf32>
    %40 = arith.truncf %39 : vector<32x256xf32> to vector<32x256xbf16>
    %c0_28 = arith.constant 0 : index
    %c0_29 = arith.constant 0 : index
    %41 = vector.load %arg5[%c0_28, %c0_29] : memref<256x512xbf16, #tpu.memory_space<vmem>>, vector<256x512xbf16>
    %cst_30 = arith.constant dense<0.000000e+00> : vector<32x512xf32>
    %42 = tpu.matmul %40, %41, %cst_30 {dimension_numbers = #tpu.dot_dimension_numbers<[1], [0], [0], [1], [0, 0, 1, 1], [], []>} : vector<32x256xbf16>, vector<256x512xbf16>, vector<32x512xf32> -> vector<32x512xf32>
    %43 = arith.truncf %42 : vector<32x512xf32> to vector<32x512xbf16>
    %c0_31 = arith.constant 0 : index
    %c0_32 = arith.constant 0 : index
    %44 = vector.load %arg6[%c0_31, %c0_32] : memref<512x128xbf16, #tpu.memory_space<vmem>>, vector<512x128xbf16>
    %cst_33 = arith.constant dense<0.000000e+00> : vector<32x128xf32>
    %45 = tpu.matmul %43, %44, %cst_33 {dimension_numbers = #tpu.dot_dimension_numbers<[1], [0], [0], [1], [0, 0, 1, 1], [], []>} : vector<32x512xbf16>, vector<512x128xbf16>, vector<32x128xf32> -> vector<32x128xf32>
    %c0_34 = arith.constant 0 : index
    %c0_35 = arith.constant 0 : index
    %46 = vector.load %arg7[%c0_34, %c0_35] : memref<1x128xf32, #tpu.memory_space<vmem>>, vector<1x128xf32>
    %47 = vector.broadcast %46 : vector<1x128xf32> to vector<32x128xf32>
    %48 = arith.addf %45, %47 : vector<32x128xf32>
    %49 = arith.truncf %48 : vector<32x128xf32> to vector<32x128xbf16>
    %c0_36 = arith.constant 0 : index
    %c0_37 = arith.constant 0 : index
    %50 = vector.load %arg8[%c0_36, %c0_37] : memref<128x128xbf16, #tpu.memory_space<vmem>>, vector<128x128xbf16>
    %cst_38 = arith.constant dense<0.000000e+00> : vector<32x128xf32>
    %51 = tpu.matmul %49, %50, %cst_38 {dimension_numbers = #tpu.dot_dimension_numbers<[1], [0], [0], [1], [0, 0, 1, 1], [], []>} : vector<32x128xbf16>, vector<128x128xbf16>, vector<32x128xf32> -> vector<32x128xf32>
    %c0_39 = arith.constant 0 : index
    %c0_40 = arith.constant 0 : index
    %52 = vector.load %arg9[%c0_39, %c0_40] : memref<1x128xf32, #tpu.memory_space<vmem>>, vector<1x128xf32>
    %53 = vector.broadcast %52 : vector<1x128xf32> to vector<32x128xf32>
    %54 = arith.addf %51, %53 : vector<32x128xf32>
    %c0_41 = arith.constant 0 : index
    %c0_42 = arith.constant 0 : index
    %55 = vector.load %arg25[%c0_41, %c0_42] : memref<32x128xf32, #tpu.memory_space<vmem>>, vector<32x128xf32>
    tpu.vector_store %arg25[%c0_41, %c0_42], %48 {strides = array<i32>} : memref<32x128xf32, #tpu.memory_space<vmem>>, vector<32x128xf32>,
    %c0_43 = arith.constant 0 : index
    %c0_44 = arith.constant 0 : index
    %56 = tpu.strided_load %arg25[%c0_43, %c0_44] {strides = array<i32: 2, 1>} : memref<32x128xf32, #tpu.memory_space<vmem>>, vector<15x128xf32>
    %57 = arith.truncf %56 : vector<15x128xf32> to vector<15x128xbf16>
    %c0_45 = arith.constant 0 : index
    %c0_46 = arith.constant 0 : index
    %c0_47 = arith.constant 0 : index
    %58 = vector.load %arg10[%c0_45, %c0_46, %c0_47] : memref<3x128x60xbf16, #tpu.memory_space<vmem>>, vector<1x128x60xbf16>
    %59 = vector.shape_cast %58 : vector<1x128x60xbf16> to vector<128x60xbf16>
    %cst_48 = arith.constant dense<0.000000e+00> : vector<15x60xf32>
    %60 = tpu.matmul %57, %59, %cst_48 {dimension_numbers = #tpu.dot_dimension_numbers<[1], [0], [0], [1], [0, 0, 1, 1], [], []>} : vector<15x128xbf16>, vector<128x60xbf16>, vector<15x60xf32> -> vector<15x60xf32>
    %c1_49 = arith.constant 1 : index
    %c0_50 = arith.constant 0 : index
    %61 = tpu.strided_load %arg25[%c1_49, %c0_50] {strides = array<i32: 2, 1>} : memref<32x128xf32, #tpu.memory_space<vmem>>, vector<15x128xf32>
    %62 = arith.truncf %61 : vector<15x128xf32> to vector<15x128xbf16>
    %c1_51 = arith.constant 1 : index
    %c0_52 = arith.constant 0 : index
    %c0_53 = arith.constant 0 : index
    %63 = vector.load %arg10[%c1_51, %c0_52, %c0_53] : memref<3x128x60xbf16, #tpu.memory_space<vmem>>, vector<1x128x60xbf16>
    %64 = vector.shape_cast %63 : vector<1x128x60xbf16> to vector<128x60xbf16>
    %cst_54 = arith.constant dense<0.000000e+00> : vector<15x60xf32>
    %65 = tpu.matmul %62, %64, %cst_54 {dimension_numbers = #tpu.dot_dimension_numbers<[1], [0], [0], [1], [0, 0, 1, 1], [], []>} : vector<15x128xbf16>, vector<128x60xbf16>, vector<15x60xf32> -> vector<15x60xf32>
    %66 = arith.addf %60, %65 : vector<15x60xf32>
    %c2_55 = arith.constant 2 : index
    %c0_56 = arith.constant 0 : index
    %67 = tpu.strided_load %arg25[%c2_55, %c0_56] {strides = array<i32: 2, 1>} : memref<32x128xf32, #tpu.memory_space<vmem>>, vector<15x128xf32>
    %68 = arith.truncf %67 : vector<15x128xf32> to vector<15x128xbf16>
    %c2_57 = arith.constant 2 : index
    %c0_58 = arith.constant 0 : index
    %c0_59 = arith.constant 0 : index
    %69 = vector.load %arg10[%c2_57, %c0_58, %c0_59] : memref<3x128x60xbf16, #tpu.memory_space<vmem>>, vector<1x128x60xbf16>
    %70 = vector.shape_cast %69 : vector<1x128x60xbf16> to vector<128x60xbf16>
    %cst_60 = arith.constant dense<0.000000e+00> : vector<15x60xf32>
    %71 = tpu.matmul %68, %70, %cst_60 {dimension_numbers = #tpu.dot_dimension_numbers<[1], [0], [0], [1], [0, 0, 1, 1], [], []>} : vector<15x128xbf16>, vector<128x60xbf16>, vector<15x60xf32> -> vector<15x60xf32>
    %72 = arith.addf %66, %71 : vector<15x60xf32>
    %c0_61 = arith.constant 0 : index
    %c0_62 = arith.constant 0 : index
    %73 = vector.load %arg11[%c0_61, %c0_62] : memref<1x60xf32, #tpu.memory_space<vmem>>, vector<1x60xf32>
    %74 = vector.broadcast %73 : vector<1x60xf32> to vector<15x60xf32>
    %75 = arith.addf %72, %74 : vector<15x60xf32>
    %76 = vector.extract_strided_slice %75 {offsets = [0, 0], sizes = [9, 60], strides = [1, 1]} : vector<15x60xf32> to vector<9x60xf32>
    %77 = vector.extract_strided_slice %75 {offsets = [1, 0], sizes = [9, 60], strides = [1, 1]} : vector<15x60xf32> to vector<9x60xf32>
    %78 = arith.maximumf %76, %77 : vector<9x60xf32>
    %79 = vector.extract_strided_slice %75 {offsets = [2, 0], sizes = [9, 60], strides = [1, 1]} : vector<15x60xf32> to vector<9x60xf32>
    %80 = arith.maximumf %78, %79 : vector<9x60xf32>
    %81 = vector.extract_strided_slice %75 {offsets = [3, 0], sizes = [9, 60], strides = [1, 1]} : vector<15x60xf32> to vector<9x60xf32>
    %82 = arith.maximumf %80, %81 : vector<9x60xf32>
    %83 = vector.extract_strided_slice %75 {offsets = [4, 0], sizes = [9, 60], strides = [1, 1]} : vector<15x60xf32> to vector<9x60xf32>
    %84 = arith.maximumf %82, %83 : vector<9x60xf32>
    %85 = vector.extract_strided_slice %75 {offsets = [5, 0], sizes = [9, 60], strides = [1, 1]} : vector<15x60xf32> to vector<9x60xf32>
    %86 = arith.maximumf %84, %85 : vector<9x60xf32>
    %87 = vector.extract_strided_slice %75 {offsets = [6, 0], sizes = [9, 60], strides = [1, 1]} : vector<15x60xf32> to vector<9x60xf32>
    %88 = arith.maximumf %86, %87 : vector<9x60xf32>
    %89 = vector.extract_strided_slice %88 {offsets = [0, 0], sizes = [1, 60], strides = [1, 1]} : vector<9x60xf32> to vector<1x60xf32>
    %90 = vector.extract_strided_slice %88 {offsets = [3, 0], sizes = [1, 60], strides = [1, 1]} : vector<9x60xf32> to vector<1x60xf32>
    %91 = vector.extract_strided_slice %88 {offsets = [6, 0], sizes = [1, 60], strides = [1, 1]} : vector<9x60xf32> to vector<1x60xf32>
    %92 = tpu.concatenate %89, %90, %91 in 0 : vector<1x60xf32>, vector<1x60xf32>, vector<1x60xf32> -> vector<3x60xf32>
    %93 = vector.extract_strided_slice %92 {offsets = [0, 0], sizes = [3, 36], strides = [1, 1]} : vector<3x60xf32> to vector<3x36xf32>
    %94 = vector.extract_strided_slice %92 {offsets = [0, 4], sizes = [3, 36], strides = [1, 1]} : vector<3x60xf32> to vector<3x36xf32>
    %95 = arith.maximumf %93, %94 : vector<3x36xf32>
    %96 = vector.extract_strided_slice %92 {offsets = [0, 8], sizes = [3, 36], strides = [1, 1]} : vector<3x60xf32> to vector<3x36xf32>
    %97 = arith.maximumf %95, %96 : vector<3x36xf32>
    %98 = vector.extract_strided_slice %92 {offsets = [0, 12], sizes = [3, 36], strides = [1, 1]} : vector<3x60xf32> to vector<3x36xf32>
    %99 = arith.maximumf %97, %98 : vector<3x36xf32>
    %100 = vector.extract_strided_slice %92 {offsets = [0, 16], sizes = [3, 36], strides = [1, 1]} : vector<3x60xf32> to vector<3x36xf32>
    %101 = arith.maximumf %99, %100 : vector<3x36xf32>
    %102 = vector.extract_strided_slice %92 {offsets = [0, 20], sizes = [3, 36], strides = [1, 1]} : vector<3x60xf32> to vector<3x36xf32>
    %103 = arith.maximumf %101, %102 : vector<3x36xf32>
    %104 = vector.extract_strided_slice %92 {offsets = [0, 24], sizes = [3, 36], strides = [1, 1]} : vector<3x60xf32> to vector<3x36xf32>
    %105 = arith.maximumf %103, %104 : vector<3x36xf32>
    %106 = vector.extract_strided_slice %105 {offsets = [0, 0], sizes = [3, 4], strides = [1, 1]} : vector<3x36xf32> to vector<3x4xf32>
    %107 = vector.extract_strided_slice %105 {offsets = [0, 12], sizes = [3, 4], strides = [1, 1]} : vector<3x36xf32> to vector<3x4xf32>
    %108 = vector.extract_strided_slice %105 {offsets = [0, 24], sizes = [3, 4], strides = [1, 1]} : vector<3x36xf32> to vector<3x4xf32>
    %109 = tpu.concatenate %106, %107, %108 in 1 : vector<3x4xf32>, vector<3x4xf32>, vector<3x4xf32> -> vector<3x12xf32>
    %cst_63 = arith.constant 0.000000e+00 : f32
    %110 = vector.broadcast %cst_63 : f32 to vector<1x12xf32>
    %111 = tpu.concatenate %110, %109, %110 in 0 : vector<1x12xf32>, vector<3x12xf32>, vector<1x12xf32> -> vector<5x12xf32>
    %112 = vector.extract_strided_slice %111 {offsets = [0, 0], sizes = [3, 12], strides = [1, 1]} : vector<5x12xf32> to vector<3x12xf32>
    %113 = vector.extract_strided_slice %111 {offsets = [1, 0], sizes = [3, 12], strides = [1, 1]} : vector<5x12xf32> to vector<3x12xf32>
    %114 = vector.extract_strided_slice %111 {offsets = [2, 0], sizes = [3, 12], strides = [1, 1]} : vector<5x12xf32> to vector<3x12xf32>
    %115 = tpu.concatenate %112, %113, %114 in 1 : vector<3x12xf32>, vector<3x12xf32>, vector<3x12xf32> -> vector<3x36xf32>
    %116 = arith.truncf %115 : vector<3x36xf32> to vector<3x36xbf16>
    %c0_64 = arith.constant 0 : index
    %c0_65 = arith.constant 0 : index
    %c0_66 = arith.constant 0 : index
    %117 = vector.load %arg12[%c0_64, %c0_65, %c0_66] : memref<3x36x12xbf16, #tpu.memory_space<vmem>>, vector<1x36x12xbf16>
    %118 = vector.shape_cast %117 : vector<1x36x12xbf16> to vector<36x12xbf16>
    %cst_67 = arith.constant dense<0.000000e+00> : vector<3x12xf32>
    %119 = tpu.matmul %116, %118, %cst_67 {dimension_numbers = #tpu.dot_dimension_numbers<[1], [0], [0], [1], [0, 0, 1, 1], [], []>} : vector<3x36xbf16>, vector<36x12xbf16>, vector<3x12xf32> -> vector<3x12xf32>
    %c0_68 = arith.constant 0 : index
    %c0_69 = arith.constant 0 : index
    %120 = vector.load %arg13[%c0_68, %c0_69] : memref<3x12xf32, #tpu.memory_space<vmem>>, vector<1x12xf32>
    %121 = vector.broadcast %120 : vector<1x12xf32> to vector<3x12xf32>
    %122 = arith.addf %119, %121 : vector<3x12xf32>
    %cst_70 = arith.constant 0.000000e+00 : f32
    %123 = vector.broadcast %cst_70 : f32 to vector<3x12xf32>
    %124 = arith.maximumf %122, %123 : vector<3x12xf32>
    %125 = tpu.concatenate %110, %124, %110 in 0 : vector<1x12xf32>, vector<3x12xf32>, vector<1x12xf32> -> vector<5x12xf32>
    %126 = vector.extract_strided_slice %125 {offsets = [0, 0], sizes = [3, 12], strides = [1, 1]} : vector<5x12xf32> to vector<3x12xf32>
    %127 = vector.extract_strided_slice %125 {offsets = [1, 0], sizes = [3, 12], strides = [1, 1]} : vector<5x12xf32> to vector<3x12xf32>
    %128 = vector.extract_strided_slice %125 {offsets = [2, 0], sizes = [3, 12], strides = [1, 1]} : vector<5x12xf32> to vector<3x12xf32>
    %129 = tpu.concatenate %126, %127, %128 in 1 : vector<3x12xf32>, vector<3x12xf32>, vector<3x12xf32> -> vector<3x36xf32>
    %130 = arith.truncf %129 : vector<3x36xf32> to vector<3x36xbf16>
    %c1_71 = arith.constant 1 : index
    %c0_72 = arith.constant 0 : index
    %c0_73 = arith.constant 0 : index
    %131 = vector.load %arg12[%c1_71, %c0_72, %c0_73] : memref<3x36x12xbf16, #tpu.memory_space<vmem>>, vector<1x36x12xbf16>
    %132 = vector.shape_cast %131 : vector<1x36x12xbf16> to vector<36x12xbf16>
    %cst_74 = arith.constant dense<0.000000e+00> : vector<3x12xf32>
    %133 = tpu.matmul %130, %132, %cst_74 {dimension_numbers = #tpu.dot_dimension_numbers<[1], [0], [0], [1], [0, 0, 1, 1], [], []>} : vector<3x36xbf16>, vector<36x12xbf16>, vector<3x12xf32> -> vector<3x12xf32>
    %c1_75 = arith.constant 1 : index
    %c0_76 = arith.constant 0 : index
    %134 = vector.load %arg13[%c1_75, %c0_76] : memref<3x12xf32, #tpu.memory_space<vmem>>, vector<1x12xf32>
    %135 = vector.broadcast %134 : vector<1x12xf32> to vector<3x12xf32>
    %136 = arith.addf %133, %135 : vector<3x12xf32>
    %cst_77 = arith.constant 0.000000e+00 : f32
    %137 = vector.broadcast %cst_77 : f32 to vector<3x12xf32>
    %138 = arith.maximumf %136, %137 : vector<3x12xf32>
    %139 = tpu.concatenate %110, %138, %110 in 0 : vector<1x12xf32>, vector<3x12xf32>, vector<1x12xf32> -> vector<5x12xf32>
    %140 = vector.extract_strided_slice %139 {offsets = [0, 0], sizes = [3, 12], strides = [1, 1]} : vector<5x12xf32> to vector<3x12xf32>
    %141 = vector.extract_strided_slice %139 {offsets = [1, 0], sizes = [3, 12], strides = [1, 1]} : vector<5x12xf32> to vector<3x12xf32>
    %142 = vector.extract_strided_slice %139 {offsets = [2, 0], sizes = [3, 12], strides = [1, 1]} : vector<5x12xf32> to vector<3x12xf32>
    %143 = tpu.concatenate %140, %141, %142 in 1 : vector<3x12xf32>, vector<3x12xf32>, vector<3x12xf32> -> vector<3x36xf32>
    %144 = arith.truncf %143 : vector<3x36xf32> to vector<3x36xbf16>
    %c2_78 = arith.constant 2 : index
    %c0_79 = arith.constant 0 : index
    %c0_80 = arith.constant 0 : index
    %145 = vector.load %arg12[%c2_78, %c0_79, %c0_80] : memref<3x36x12xbf16, #tpu.memory_space<vmem>>, vector<1x36x12xbf16>
    %146 = vector.shape_cast %145 : vector<1x36x12xbf16> to vector<36x12xbf16>
    %cst_81 = arith.constant dense<0.000000e+00> : vector<3x12xf32>
    %147 = tpu.matmul %144, %146, %cst_81 {dimension_numbers = #tpu.dot_dimension_numbers<[1], [0], [0], [1], [0, 0, 1, 1], [], []>} : vector<3x36xbf16>, vector<36x12xbf16>, vector<3x12xf32> -> vector<3x12xf32>
    %c2_82 = arith.constant 2 : index
    %c0_83 = arith.constant 0 : index
    %148 = vector.load %arg13[%c2_82, %c0_83] : memref<3x12xf32, #tpu.memory_space<vmem>>, vector<1x12xf32>
    %149 = vector.broadcast %148 : vector<1x12xf32> to vector<3x12xf32>
    %150 = arith.addf %147, %149 : vector<3x12xf32>
    %151 = arith.truncf %150 : vector<3x12xf32> to vector<3x12xbf16>
    %c0_84 = arith.constant 0 : index
    %c0_85 = arith.constant 0 : index
    %152 = vector.load %arg14[%c0_84, %c0_85] : memref<12x128xbf16, #tpu.memory_space<vmem>>, vector<12x128xbf16>
    %cst_86 = arith.constant dense<0.000000e+00> : vector<3x128xf32>
    %153 = tpu.matmul %151, %152, %cst_86 {dimension_numbers = #tpu.dot_dimension_numbers<[1], [0], [0], [1], [0, 0, 1, 1], [], []>} : vector<3x12xbf16>, vector<12x128xbf16>, vector<3x128xf32> -> vector<3x128xf32>
    %c0_87 = arith.constant 0 : index
    %c0_88 = arith.constant 0 : index
    %154 = vector.load %arg15[%c0_87, %c0_88] : memref<32x3xbf16, #tpu.memory_space<vmem>>, vector<32x3xbf16>
    %155 = arith.truncf %153 : vector<3x128xf32> to vector<3x128xbf16>
    %cst_89 = arith.constant dense<0.000000e+00> : vector<32x128xf32>
    %156 = tpu.matmul %154, %155, %cst_89 {dimension_numbers = #tpu.dot_dimension_numbers<[1], [0], [0], [1], [0, 0, 1, 1], [], []>} : vector<32x3xbf16>, vector<3x128xbf16>, vector<32x128xf32> -> vector<32x128xf32>
    %157 = arith.addf %156, %54 : vector<32x128xf32>
    %158 = arith.truncf %157 : vector<32x128xf32> to vector<32x128xbf16>
    %c0_90 = arith.constant 0 : index
    %c0_91 = arith.constant 0 : index
    %159 = vector.load %arg16[%c0_90, %c0_91] : memref<128x512xbf16, #tpu.memory_space<vmem>>, vector<128x512xbf16>
    %cst_92 = arith.constant dense<0.000000e+00> : vector<32x512xf32>
    %160 = tpu.matmul %158, %159, %cst_92 {dimension_numbers = #tpu.dot_dimension_numbers<[1], [0], [0], [1], [0, 0, 1, 1], [], []>} : vector<32x128xbf16>, vector<128x512xbf16>, vector<32x512xf32> -> vector<32x512xf32>
    %c0_93 = arith.constant 0 : index
    %c0_94 = arith.constant 0 : index
    %161 = vector.load %arg17[%c0_93, %c0_94] : memref<1x512xf32, #tpu.memory_space<vmem>>, vector<1x512xf32>
    %162 = vector.broadcast %161 : vector<1x512xf32> to vector<32x512xf32>
    %163 = arith.addf %160, %162 : vector<32x512xf32>
    %164 = arith.negf %163 : vector<32x512xf32>
    %165 = math.exp %164 : vector<32x512xf32>
    %cst_95 = arith.constant 1.000000e+00 : f32
    %166 = vector.broadcast %cst_95 : f32 to vector<32x512xf32>
    %167 = arith.addf %166, %165 : vector<32x512xf32>
    %168 = arith.divf %166, %167 : vector<32x512xf32>
    %169 = arith.mulf %42, %168 : vector<32x512xf32>
    %cst_96 = arith.constant dense<0.000000e+00> : vector<512xf32>
    %170 = vector.multi_reduction <add>, %42, %cst_96 [0] : vector<32x512xf32> to vector<512xf32>
    %171 = vector.shape_cast %170 : vector<512xf32> to vector<1x512xf32>
    %172 = vector.extract_strided_slice %171 {offsets = [0, 0], sizes = [1, 256], strides = [1, 1]} : vector<1x512xf32> to vector<1x256xf32>
    %173 = vector.extract_strided_slice %171 {offsets = [0, 256], sizes = [1, 256], strides = [1, 1]} : vector<1x512xf32> to vector<1x256xf32>
    %174 = arith.addf %172, %173 : vector<1x256xf32>
    %175 = vector.extract_strided_slice %174 {offsets = [0, 0], sizes = [1, 128], strides = [1, 1]} : vector<1x256xf32> to vector<1x128xf32>
    %176 = vector.extract_strided_slice %174 {offsets = [0, 128], sizes = [1, 128], strides = [1, 1]} : vector<1x256xf32> to vector<1x128xf32>
    %177 = arith.addf %175, %176 : vector<1x128xf32>
    %178 = vector.extract_strided_slice %177 {offsets = [0, 0], sizes = [1, 64], strides = [1, 1]} : vector<1x128xf32> to vector<1x64xf32>
    %179 = vector.extract_strided_slice %177 {offsets = [0, 64], sizes = [1, 64], strides = [1, 1]} : vector<1x128xf32> to vector<1x64xf32>
    %180 = arith.addf %178, %179 : vector<1x64xf32>
    %181 = vector.extract_strided_slice %180 {offsets = [0, 0], sizes = [1, 32], strides = [1, 1]} : vector<1x64xf32> to vector<1x32xf32>
    %182 = vector.extract_strided_slice %180 {offsets = [0, 32], sizes = [1, 32], strides = [1, 1]} : vector<1x64xf32> to vector<1x32xf32>
    %183 = arith.addf %181, %182 : vector<1x32xf32>
    %184 = vector.extract_strided_slice %183 {offsets = [0, 0], sizes = [1, 16], strides = [1, 1]} : vector<1x32xf32> to vector<1x16xf32>
    %185 = vector.extract_strided_slice %183 {offsets = [0, 16], sizes = [1, 16], strides = [1, 1]} : vector<1x32xf32> to vector<1x16xf32>
    %186 = arith.addf %184, %185 : vector<1x16xf32>
    %cst_97 = arith.constant 9.765625E-4 : f32
    %187 = vector.broadcast %cst_97 : f32 to vector<1x16xf32>
    %188 = arith.mulf %186, %187 : vector<1x16xf32>
    %189 = tpu.concatenate %188, %188 in 1 : vector<1x16xf32>, vector<1x16xf32> -> vector<1x32xf32>
    %190 = tpu.concatenate %189, %189 in 1 : vector<1x32xf32>, vector<1x32xf32> -> vector<1x64xf32>
    %191 = tpu.concatenate %190, %190 in 1 : vector<1x64xf32>, vector<1x64xf32> -> vector<1x128xf32>
    %192 = tpu.concatenate %191, %191 in 1 : vector<1x128xf32>, vector<1x128xf32> -> vector<1x256xf32>
    %193 = tpu.concatenate %192, %192 in 1 : vector<1x256xf32>, vector<1x256xf32> -> vector<1x512xf32>
    %194 = vector.broadcast %193 : vector<1x512xf32> to vector<32x512xf32>
    %195 = arith.subf %42, %194 : vector<32x512xf32>
    %196 = arith.mulf %195, %195 : vector<32x512xf32>
    %cst_98 = arith.constant dense<0.000000e+00> : vector<512xf32>
    %197 = vector.multi_reduction <add>, %196, %cst_98 [0] : vector<32x512xf32> to vector<512xf32>
    %198 = vector.shape_cast %197 : vector<512xf32> to vector<1x512xf32>
    %199 = vector.extract_strided_slice %198 {offsets = [0, 0], sizes = [1, 256], strides = [1, 1]} : vector<1x512xf32> to vector<1x256xf32>
    %200 = vector.extract_strided_slice %198 {offsets = [0, 256], sizes = [1, 256], strides = [1, 1]} : vector<1x512xf32> to vector<1x256xf32>
    %201 = arith.addf %199, %200 : vector<1x256xf32>
    %202 = vector.extract_strided_slice %201 {offsets = [0, 0], sizes = [1, 128], strides = [1, 1]} : vector<1x256xf32> to vector<1x128xf32>
    %203 = vector.extract_strided_slice %201 {offsets = [0, 128], sizes = [1, 128], strides = [1, 1]} : vector<1x256xf32> to vector<1x128xf32>
    %204 = arith.addf %202, %203 : vector<1x128xf32>
    %205 = vector.extract_strided_slice %204 {offsets = [0, 0], sizes = [1, 64], strides = [1, 1]} : vector<1x128xf32> to vector<1x64xf32>
    %206 = vector.extract_strided_slice %204 {offsets = [0, 64], sizes = [1, 64], strides = [1, 1]} : vector<1x128xf32> to vector<1x64xf32>
    %207 = arith.addf %205, %206 : vector<1x64xf32>
    %208 = vector.extract_strided_slice %207 {offsets = [0, 0], sizes = [1, 32], strides = [1, 1]} : vector<1x64xf32> to vector<1x32xf32>
    %209 = vector.extract_strided_slice %207 {offsets = [0, 32], sizes = [1, 32], strides = [1, 1]} : vector<1x64xf32> to vector<1x32xf32>
    %210 = arith.addf %208, %209 : vector<1x32xf32>
    %211 = vector.extract_strided_slice %210 {offsets = [0, 0], sizes = [1, 16], strides = [1, 1]} : vector<1x32xf32> to vector<1x16xf32>
    %212 = vector.extract_strided_slice %210 {offsets = [0, 16], sizes = [1, 16], strides = [1, 1]} : vector<1x32xf32> to vector<1x16xf32>
    %213 = arith.addf %211, %212 : vector<1x16xf32>
    %cst_99 = arith.constant 9.765625E-4 : f32
    %214 = vector.broadcast %cst_99 : f32 to vector<1x16xf32>
    %215 = arith.mulf %213, %214 : vector<1x16xf32>
    %216 = math.sqrt %215 : vector<1x16xf32>
    %217 = arith.addf %216, %188 : vector<1x16xf32>
    %c0_100 = arith.constant 0 : index
    %c0_101 = arith.constant 0 : index
    %218 = vector.load %arg18[%c0_100, %c0_101] : memref<16x1xf32, #tpu.memory_space<vmem>>, vector<16x1xf32>
    %cst_102 = arith.constant dense<0.000000e+00> : vector<1x1xf32>
    %219 = tpu.matmul %217, %218, %cst_102 {dimension_numbers = #tpu.dot_dimension_numbers<[1], [0], [0], [1], [0, 0, 1, 1], [], []>} : vector<1x16xf32>, vector<16x1xf32>, vector<1x1xf32> -> vector<1x1xf32>
    %c0_103 = arith.constant 0 : index
    %c0_104 = arith.constant 0 : index
    %220 = vector.load %arg19[%c0_103, %c0_104] : memref<1x1xf32, #tpu.memory_space<vmem>>, vector<1x1xf32>
    %221 = arith.addf %219, %220 : vector<1x1xf32>
    %cst_105 = arith.constant 0.000000e+00 : f32
    %222 = vector.broadcast %cst_105 : f32 to vector<1x1xf32>
    %223 = arith.maximumf %221, %222 : vector<1x1xf32>
    %c0_106 = arith.constant 0 : index
    %c0_107 = arith.constant 0 : index
    %224 = vector.load %arg20[%c0_106, %c0_107] : memref<1x16xf32, #tpu.memory_space<vmem>>, vector<1x16xf32>
    %cst_108 = arith.constant dense<0.000000e+00> : vector<1x16xf32>
    %225 = tpu.matmul %223, %224, %cst_108 {dimension_numbers = #tpu.dot_dimension_numbers<[1], [0], [0], [1], [0, 0, 1, 1], [], []>} : vector<1x1xf32>, vector<1x16xf32>, vector<1x16xf32> -> vector<1x16xf32>
    %c0_109 = arith.constant 0 : index
    %c0_110 = arith.constant 0 : index
    %226 = vector.load %arg21[%c0_109, %c0_110] : memref<1x16xf32, #tpu.memory_space<vmem>>, vector<1x16xf32>
    %227 = arith.addf %225, %226 : vector<1x16xf32>
    %228 = arith.negf %227 : vector<1x16xf32>
    %229 = math.exp %228 : vector<1x16xf32>
    %cst_111 = arith.constant 1.000000e+00 : f32
    %230 = vector.broadcast %cst_111 : f32 to vector<1x16xf32>
    %231 = arith.addf %230, %229 : vector<1x16xf32>
    %232 = arith.divf %230, %231 : vector<1x16xf32>
    %233 = tpu.concatenate %232, %232 in 1 : vector<1x16xf32>, vector<1x16xf32> -> vector<1x32xf32>
    %234 = tpu.concatenate %233, %233 in 1 : vector<1x32xf32>, vector<1x32xf32> -> vector<1x64xf32>
    %235 = tpu.concatenate %234, %234 in 1 : vector<1x64xf32>, vector<1x64xf32> -> vector<1x128xf32>
    %236 = tpu.concatenate %235, %235 in 1 : vector<1x128xf32>, vector<1x128xf32> -> vector<1x256xf32>
    %237 = tpu.concatenate %236, %236 in 1 : vector<1x256xf32>, vector<1x256xf32> -> vector<1x512xf32>
    %238 = vector.broadcast %237 : vector<1x512xf32> to vector<32x512xf32>
    %239 = arith.mulf %42, %238 : vector<32x512xf32>
    %240 = arith.truncf %169 : vector<32x512xf32> to vector<32x512xbf16>
    %c0_112 = arith.constant 0 : index
    %c0_113 = arith.constant 0 : index
    %c0_114 = arith.constant 0 : index
    %241 = vector.load %arg22[%c0_112, %c0_113, %c0_114] : memref<2x512x512xbf16, #tpu.memory_space<vmem>>, vector<1x512x512xbf16>
    %242 = vector.shape_cast %241 : vector<1x512x512xbf16> to vector<512x512xbf16>
    %cst_115 = arith.constant dense<0.000000e+00> : vector<32x512xf32>
    %243 = tpu.matmul %240, %242, %cst_115 {dimension_numbers = #tpu.dot_dimension_numbers<[1], [0], [0], [1], [0, 0, 1, 1], [], []>} : vector<32x512xbf16>, vector<512x512xbf16>, vector<32x512xf32> -> vector<32x512xf32>
    %244 = arith.truncf %239 : vector<32x512xf32> to vector<32x512xbf16>
    %c1_116 = arith.constant 1 : index
    %c0_117 = arith.constant 0 : index
    %c0_118 = arith.constant 0 : index
    %245 = vector.load %arg22[%c1_116, %c0_117, %c0_118] : memref<2x512x512xbf16, #tpu.memory_space<vmem>>, vector<1x512x512xbf16>
    %246 = vector.shape_cast %245 : vector<1x512x512xbf16> to vector<512x512xbf16>
    %cst_119 = arith.constant dense<0.000000e+00> : vector<32x512xf32>
    %247 = tpu.matmul %244, %246, %cst_119 {dimension_numbers = #tpu.dot_dimension_numbers<[1], [0], [0], [1], [0, 0, 1, 1], [], []>} : vector<32x512xbf16>, vector<512x512xbf16>, vector<32x512xf32> -> vector<32x512xf32>
    %248 = arith.addf %243, %247 : vector<32x512xf32>
    %c0_120 = arith.constant 0 : index
    %c0_121 = arith.constant 0 : index
    %249 = vector.load %arg23[%c0_120, %c0_121] : memref<1x512xf32, #tpu.memory_space<vmem>>, vector<1x512xf32>
    %250 = vector.broadcast %249 : vector<1x512xf32> to vector<32x512xf32>
    %251 = arith.addf %248, %250 : vector<32x512xf32>
    %252 = arith.addf %1, %251 : vector<32x512xf32>
    %c0_122 = arith.constant 0 : index
    %c0_123 = arith.constant 0 : index
    %c0_124 = arith.constant 0 : index
    %253 = vector.load %arg24[%c0_122, %c0_123, %c0_124] : memref<1x32x512xf32, #tpu.memory_space<vmem>>, vector<1x32x512xf32>
    %254 = vector.shape_cast %253 : vector<1x32x512xf32> to vector<32x512xf32>
    %255 = vector.shape_cast %252 : vector<32x512xf32> to vector<1x32x512xf32>
    tpu.vector_store %arg24[%c0_122, %c0_123, %c0_124], %255 {strides = array<i32>} : memref<1x32x512xf32, #tpu.memory_space<vmem>>, vector<1x32x512xf32>,
    return
  }
  func.func @transform_0(%arg0: i32) -> (i32, i32, i32) {
    %c0_i32 = arith.constant 0 : i32
    %c0_i32_0 = arith.constant 0 : i32
    %c0_i32_1 = arith.constant 0 : i32
    return %arg0, %c0_i32, %c0_i32_0 : i32, i32, i32
  }
  func.func @transform_1(%arg0: i32) -> (i32, i32, i32) {
    %c0_i32 = arith.constant 0 : i32
    %c0_i32_0 = arith.constant 0 : i32
    %c0_i32_1 = arith.constant 0 : i32
    %c0_i32_2 = arith.constant 0 : i32
    return %c0_i32, %c0_i32_0, %c0_i32_1 : i32, i32, i32
  }
  func.func @transform_2(%arg0: i32) -> (i32, i32) {
    %c0_i32 = arith.constant 0 : i32
    %c0_i32_0 = arith.constant 0 : i32
    %c0_i32_1 = arith.constant 0 : i32
    return %c0_i32, %c0_i32_0 : i32, i32
  }
  func.func @transform_3(%arg0: i32) -> (i32, i32, i32) {
    %c0_i32 = arith.constant 0 : i32
    %c0_i32_0 = arith.constant 0 : i32
    %c0_i32_1 = arith.constant 0 : i32
    %c0_i32_2 = arith.constant 0 : i32
    return %c0_i32, %c0_i32_0, %c0_i32_1 : i32, i32, i32
  }
  func.func @transform_4(%arg0: i32) -> (i32, i32) {
    %c0_i32 = arith.constant 0 : i32
    %c0_i32_0 = arith.constant 0 : i32
    %c0_i32_1 = arith.constant 0 : i32
    return %c0_i32, %c0_i32_0 : i32, i32
  }
  func.func @transform_5(%arg0: i32) -> (i32, i32) {
    %c0_i32 = arith.constant 0 : i32
    %c0_i32_0 = arith.constant 0 : i32
    %c0_i32_1 = arith.constant 0 : i32
    return %c0_i32, %c0_i32_0 : i32, i32
  }
  func.func @transform_6(%arg0: i32) -> (i32, i32) {
    %c0_i32 = arith.constant 0 : i32
    %c0_i32_0 = arith.constant 0 : i32
    %c0_i32_1 = arith.constant 0 : i32
    return %c0_i32, %c0_i32_0 : i32, i32
  }
  func.func @transform_7(%arg0: i32) -> (i32, i32) {
    %c0_i32 = arith.constant 0 : i32
    %c0_i32_0 = arith.constant 0 : i32
    %c0_i32_1 = arith.constant 0 : i32
    return %c0_i32, %c0_i32_0 : i32, i32
  }
  func.func @transform_8(%arg0: i32) -> (i32, i32) {
    %c0_i32 = arith.constant 0 : i32
    %c0_i32_0 = arith.constant 0 : i32
    %c0_i32_1 = arith.constant 0 : i32
    return %c0_i32, %c0_i32_0 : i32, i32
  }
  func.func @transform_9(%arg0: i32) -> (i32, i32, i32) {
    %c0_i32 = arith.constant 0 : i32
    %c0_i32_0 = arith.constant 0 : i32
    %c0_i32_1 = arith.constant 0 : i32
    %c0_i32_2 = arith.constant 0 : i32
    return %c0_i32, %c0_i32_0, %c0_i32_1 : i32, i32, i32
  }
  func.func @transform_10(%arg0: i32) -> (i32, i32) {
    %c0_i32 = arith.constant 0 : i32
    %c0_i32_0 = arith.constant 0 : i32
    %c0_i32_1 = arith.constant 0 : i32
    return %c0_i32, %c0_i32_0 : i32, i32
  }
  func.func @transform_11(%arg0: i32) -> (i32, i32, i32) {
    %c0_i32 = arith.constant 0 : i32
    %c0_i32_0 = arith.constant 0 : i32
    %c0_i32_1 = arith.constant 0 : i32
    %c0_i32_2 = arith.constant 0 : i32
    return %c0_i32, %c0_i32_0, %c0_i32_1 : i32, i32, i32
  }
  func.func @transform_12(%arg0: i32) -> (i32, i32) {
    %c0_i32 = arith.constant 0 : i32
    %c0_i32_0 = arith.constant 0 : i32
    %c0_i32_1 = arith.constant 0 : i32
    return %c0_i32, %c0_i32_0 : i32, i32
  }
  func.func @transform_13(%arg0: i32) -> (i32, i32) {
    %c0_i32 = arith.constant 0 : i32
    %c0_i32_0 = arith.constant 0 : i32
    %c0_i32_1 = arith.constant 0 : i32
    return %c0_i32, %c0_i32_0 : i32, i32
  }
  func.func @transform_14(%arg0: i32) -> (i32, i32) {
    %c0_i32 = arith.constant 0 : i32
    %c0_i32_0 = arith.constant 0 : i32
    %c0_i32_1 = arith.constant 0 : i32
    return %c0_i32, %c0_i32_0 : i32, i32
  }
  func.func @transform_15(%arg0: i32) -> (i32, i32) {
    %c0_i32 = arith.constant 0 : i32
    %c0_i32_0 = arith.constant 0 : i32
    %c0_i32_1 = arith.constant 0 : i32
    return %c0_i32, %c0_i32_0 : i32, i32
  }
  func.func @transform_16(%arg0: i32) -> (i32, i32) {
    %c0_i32 = arith.constant 0 : i32
    %c0_i32_0 = arith.constant 0 : i32
    %c0_i32_1 = arith.constant 0 : i32
    return %c0_i32, %c0_i32_0 : i32, i32
  }
  func.func @transform_17(%arg0: i32) -> (i32, i32) {
    %c0_i32 = arith.constant 0 : i32
    %c0_i32_0 = arith.constant 0 : i32
    %c0_i32_1 = arith.constant 0 : i32
    return %c0_i32, %c0_i32_0 : i32, i32
  }
  func.func @transform_18(%arg0: i32) -> (i32, i32) {
    %c0_i32 = arith.constant 0 : i32
    %c0_i32_0 = arith.constant 0 : i32
    %c0_i32_1 = arith.constant 0 : i32
    return %c0_i32, %c0_i32_0 : i32, i32
  }
  func.func @transform_19(%arg0: i32) -> (i32, i32) {
    %c0_i32 = arith.constant 0 : i32
    %c0_i32_0 = arith.constant 0 : i32
    %c0_i32_1 = arith.constant 0 : i32
    return %c0_i32, %c0_i32_0 : i32, i32
  }
  func.func @transform_20(%arg0: i32) -> (i32, i32) {
    %c0_i32 = arith.constant 0 : i32
    %c0_i32_0 = arith.constant 0 : i32
    %c0_i32_1 = arith.constant 0 : i32
    return %c0_i32, %c0_i32_0 : i32, i32
  }
  func.func @transform_21(%arg0: i32) -> (i32, i32, i32) {
    %c0_i32 = arith.constant 0 : i32
    %c0_i32_0 = arith.constant 0 : i32
    %c0_i32_1 = arith.constant 0 : i32
    %c0_i32_2 = arith.constant 0 : i32
    return %c0_i32, %c0_i32_0, %c0_i32_1 : i32, i32, i32
  }
  func.func @transform_22(%arg0: i32) -> (i32, i32) {
    %c0_i32 = arith.constant 0 : i32
    %c0_i32_0 = arith.constant 0 : i32
    %c0_i32_1 = arith.constant 0 : i32
    return %c0_i32, %c0_i32_0 : i32, i32
  }
  func.func @transform_23(%arg0: i32) -> (i32, i32, i32) {
    %c0_i32 = arith.constant 0 : i32
    %c0_i32_0 = arith.constant 0 : i32
    %c0_i32_1 = arith.constant 0 : i32
    return %arg0, %c0_i32, %c0_i32_0 : i32, i32, i32
  }
}

</mosaic_0001>

<llo_original>
// kernel: block_forward.1
$region0: #{block_forward.1}
  #allocation0 [shape = 'u32[]', space=smem, size = 0x4, offset = 0x4, fixed_abs, tag = 'smem constant byte address 0x4 - core index']
  #allocation1 [shape = 'u32[72,128]{1,0:T(1,128)}', space=vmem, size = 0x9000, scoped, tag = 'internal scratch']
  #allocation2 [shape = 'f32[32,128]{1,0:T(8,128)}', space=vmem, size = 0x4000, scoped, tag = 'scratch operand']
  #allocation3 [shape = 'f32[1,1]{1,0:T(1,128)S(1)}', space=vmem, size = 0x200, scoped, tag = 'scoped memory for block_forward.1']
  %s0 = inlined_call_operand.vmem [shape: f32[2,32,512], index: 0, kind: input, shape index: {}]
  %s1 = inlined_call_operand.vmem [shape: bf16[3,512,256], index: 1, kind: input, shape index: {}]
  %s2 = inlined_call_operand.hbm [shape: bf16[256,512], index: 2, kind: input, shape index: {}]
  %s3 = inlined_call_operand.hbm [shape: bf16[3,512,256], index: 3, kind: input, shape index: {}]
  %s4 = inlined_call_operand.hbm [shape: bf16[256,512], index: 4, kind: input, shape index: {}]
  %s5 = inlined_call_operand.hbm [shape: bf16[512,128], index: 5, kind: input, shape index: {}]
  %s6 = inlined_call_operand.vmem [shape: f32[1,128], index: 6, kind: input, shape index: {}]
  %s7 = inlined_call_operand.hbm [shape: bf16[128,128], index: 7, kind: input, shape index: {}]
  %s8 = inlined_call_operand.vmem [shape: f32[1,128], index: 8, kind: input, shape index: {}]
  %s9 = inlined_call_operand.vmem [shape: bf16[3,128,60], index: 9, kind: input, shape index: {}]
  %s10 = inlined_call_operand.vmem [shape: f32[1,60], index: 10, kind: input, shape index: {}]
  %s11 = inlined_call_operand.vmem [shape: bf16[3,36,12], index: 11, kind: input, shape index: {}]
  %s12 = inlined_call_operand.vmem [shape: f32[3,12], index: 12, kind: input, shape index: {}]
  %s13 = inlined_call_operand.vmem [shape: bf16[12,128], index: 13, kind: input, shape index: {}]
  %s14 = inlined_call_operand.vmem [shape: bf16[32,3], index: 14, kind: input, shape index: {}]
  %s15 = inlined_call_operand.hbm [shape: bf16[128,512], index: 15, kind: input, shape index: {}]
  %s16 = inlined_call_operand.vmem [shape: f32[1,512], index: 16, kind: input, shape index: {}]
  %s17 = inlined_call_operand.vmem [shape: f32[16,1], index: 17, kind: input, shape index: {}]
  %s18 = inlined_call_operand.<no memory space> [shape: f32[1,1], index: 18, kind: input, shape index: {}]
  %s19 = inlined_call_operand.vmem [shape: f32[1,16], index: 19, kind: input, shape index: {}]
  %s20 = inlined_call_operand.vmem [shape: f32[1,16], index: 20, kind: input, shape index: {}]
  %s21 = inlined_call_operand.vmem [shape: bf16[2,512,512], index: 21, kind: input, shape index: {}]
  %s22 = inlined_call_operand.vmem [shape: f32[1,512], index: 22, kind: input, shape index: {}]
  %s23 = inlined_call_operand.vmem [shape: f32[2,32,512], index: 23, kind: output, shape index: {}]
  %s24 = sld [smem:[#allocation0]]
  $region149: #{block_forward.1} parent=0
    _
  %s26 = ssub.s32 1, %s24
  %s27 = scalar_select 0, %s26, %s24
  %v28 = vstv %s18
  %29 = vst [vmem:[#allocation3] sm:$0x1] %v28
  $region1: #{block_forward.1} parent=0
    #allocation4 [shape = 'u8[262144]{0}', space=vmem, size = 0x40000, scoped, tag = 'input window, operand 2, single buffered']
    #allocation5 [shape = 's32[2]{0}', space=sflag, size = 0x8, scoped, tag = 'scoped memory for block_forward.1']
    #allocation6 [shape = 'u8[786432]{0}', space=vmem, size = 0xc0000, scoped, tag = 'input window, operand 3, single buffered']
    #allocation7 [shape = 's32[1]{0}', space=sflag, size = 0x4, scoped, tag = 'scoped memory for block_forward.1']
    #allocation8 [shape = 'u8[262144]{0}', space=vmem, size = 0x40000, scoped, tag = 'input window, operand 4, single buffered']
    #allocation9 [shape = 'u8[131072]{0}', space=vmem, size = 0x20000, scoped, tag = 'input window, operand 5, single buffered']
    #allocation10 [shape = 's32[1]{0}', space=sflag, size = 0x4, scoped, tag = 'scoped memory for block_forward.1']
    #allocation11 [shape = 'u8[32768]{0}', space=vmem, size = 0x8000, scoped, tag = 'input window, operand 7, single buffered']
    #allocation12 [shape = 'u8[131072]{0}', space=vmem, size = 0x20000, scoped, tag = 'input window, operand 15, single buffered']
    #allocation13 [shape = 's32[1]{0}', space=sflag, size = 0x4, scoped, tag = 'scoped memory for block_forward.1']
    %30 = vsyncpa [#allocation5], 0
    %31 = vsyncpa [#allocation7], 0
    %32 = vsyncpa [#allocation10], 0
    %33 = vsyncpa [#allocation13], 0
    loop: start=0, step=1, limit=4
    $region2: #{block_forward.1} parent=1 // loop_pre_header
      _
    $region3: #{block_forward.1} parent=1 // loop_header
      %s35 = sphi 0, %s39
      %p36 = scmp.ge.s32.totalorder %s35, 4
      %s45 = sphi 0, %s47
      %s48 = sphi 0, %s45
      %s49 = sphi 0, %s48
      %s65 = sphi 0, %s49
      %s69 = sphi 0, %s69
      %s71 = sphi 0, %s69
      %s72 = sphi 0, %s71
      %s86 = sphi 0, %s72
      %s90 = sphi 0, %s90
      %s92 = sphi 0, %s90
      %s93 = sphi 0, %s92
      %s107 = sphi 0, %s93
      %s111 = sphi 0, %s111
      %s113 = sphi 0, %s111
      %s114 = sphi 0, %s113
      %s128 = sphi 0, %s114
      %s132 = sphi 0, %s132
      %s134 = sphi 0, %s132
      %s135 = sphi 0, %s134
      %s149 = sphi 0, %s135
      %s153 = sphi 0, %s153
      %s155 = sphi 0, %s153
      %s156 = sphi 0, %s155
      %s170 = sphi 0, %s156
      %s174 = sphi 0, %s174
      %s176 = sphi 0, %s174
      %s177 = sphi 0, %s176
      %s191 = sphi 0, %s177
      %s195 = sphi 0, %s195
      %s197 = sphi 0, %s195
      %s198 = sphi 0, %s197
      %s212 = sphi 0, %s198
      %s216 = sphi 0, %s216
      %s218 = sphi 0, %s216
      %s219 = sphi 0, %s218
      %s233 = sphi 0, %s219
      %s237 = sphi 0, %s237
      %s239 = sphi 0, %s237
      %s240 = sphi 0, %s239
      %s254 = sphi 0, %s240
      %s258 = sphi 0, %s258
      %s260 = sphi 0, %s258
      %s261 = sphi 0, %s260
      %s275 = sphi 0, %s261
      %s279 = sphi 0, %s279
      %s281 = sphi 0, %s279
      %s282 = sphi 0, %s281
      %s296 = sphi 0, %s282
      %s300 = sphi 0, %s300
      %s302 = sphi 0, %s300
      %s303 = sphi 0, %s302
      %s317 = sphi 0, %s303
      %s321 = sphi 0, %s321
      %s323 = sphi 0, %s321
      %s324 = sphi 0, %s323
      %s338 = sphi 0, %s324
      %s342 = sphi 0, %s342
      %s344 = sphi 0, %s342
      %s345 = sphi 0, %s344
      %s359 = sphi 0, %s345
      %s363 = sphi 0, %s363
      %s365 = sphi 0, %s363
      %s366 = sphi 0, %s365
      %s380 = sphi 0, %s366
      %s384 = sphi 0, %s384
      %s386 = sphi 0, %s384
      %s387 = sphi 0, %s386
      %s401 = sphi 0, %s387
      %s405 = sphi 0, %s405
      %s407 = sphi 0, %s405
      %s408 = sphi 0, %s407
      %s422 = sphi 0, %s408
      %s426 = sphi 0, %s426
      %s428 = sphi 0, %s426
      %s429 = sphi 0, %s428
      %s443 = sphi 0, %s429
      %s447 = sphi 0, %s447
      %s449 = sphi 0, %s447
      %s450 = sphi 0, %s449
      %s464 = sphi 0, %s450
      %s468 = sphi 0, %s468
      %s470 = sphi 0, %s468
      %s471 = sphi 0, %s470
      %s485 = sphi 0, %s471
      %s489 = sphi 0, %s489
      %s491 = sphi 0, %s489
      %s492 = sphi 0, %s491
      %s506 = sphi 0, %s492
      %s510 = sphi 0, %s510
      %s512 = sphi 0, %s510
      %s513 = sphi 0, %s512
      %s527 = sphi 0, %s513
      %s533 = sphi 0, %s535
      %s536 = sphi 0, %s533
      %s537 = sphi 0, %s536
      %s553 = sphi 0, %s537
    $region4: #{block_forward.1} parent=1 // loop_header_branch
      %38 = sbr.rel (%p36) target = $region8
    $region5: #{block_forward.1} parent=1 // loop_body
      %s40 = ssub.s32 %s35, 1
      %s41 = ssub.s32 %s35, 2
      %s42 = sadd.s32 %s35, 1
      %s43 = ssub.s32 %s35, %s42
      %p44 = scmp.eq.s32.totalorder %s43, 0
      %s46 = sadd.s32 %s45, 1
      %s47 = scalar_select %p44, %s45, %s46
      %p50 = pneg %p44
      %p51 = scmp.eq.s32.totalorder %s35, 1
      %p52 = por %p50, %p51
      %p53 = scmp.ne.s32.totalorder %s45, %s48
      %p54 = scmp.eq.s32.totalorder %s35, 0
      %p55 = por %p53, %p54
      %p56 = scmp.ne.s32.totalorder %s45, %s48
      %p57 = scmp.eq.s32.totalorder %s40, 1
      %p58 = por %p56, %p57
      %p59 = scmp.ne.s32.totalorder %s48, %s49
      %p60 = scmp.eq.s32.totalorder %s40, 0
      %p61 = por %p59, %p60
      %p62 = scmp.ne.s32.totalorder %s48, %s49
      %p63 = scmp.eq.s32.totalorder %s41, 1
      %p64 = por %p62, %p63
      %p66 = scmp.ne.s32.totalorder %s49, %s65
      %p67 = scmp.eq.s32.totalorder %s41, 0
      %p68 = por %p66, %p67
      %s70 = sadd.s32 %s69, 1
      %p73 = scmp.eq.s32.totalorder %s35, 1
      %p74 = scmp.ne.s32.totalorder %s69, %s71
      %p75 = scmp.eq.s32.totalorder %s35, 0
      %p76 = por %p74, %p75
      %p77 = scmp.ne.s32.totalorder %s69, %s71
      %p78 = scmp.eq.s32.totalorder %s40, 1
      %p79 = por %p77, %p78
      %p80 = scmp.ne.s32.totalorder %s71, %s72
      %p81 = scmp.eq.s32.totalorder %s40, 0
      %p82 = por %p80, %p81
      %p83 = scmp.ne.s32.totalorder %s71, %s72
      %p84 = scmp.eq.s32.totalorder %s41, 1
      %p85 = por %p83, %p84
      %p87 = scmp.ne.s32.totalorder %s72, %s86
      %p88 = scmp.eq.s32.totalorder %s41, 0
      %p89 = por %p87, %p88
      %s91 = sadd.s32 %s90, 1
      %p94 = scmp.eq.s32.totalorder %s35, 1
      %p95 = scmp.ne.s32.totalorder %s90, %s92
      %p96 = scmp.eq.s32.totalorder %s35, 0
      %p97 = por %p95, %p96
      %p98 = scmp.ne.s32.totalorder %s90, %s92
      %p99 = scmp.eq.s32.totalorder %s40, 1
      %p100 = por %p98, %p99
      %p101 = scmp.ne.s32.totalorder %s92, %s93
      %p102 = scmp.eq.s32.totalorder %s40, 0
      %p103 = por %p101, %p102
      %p104 = scmp.ne.s32.totalorder %s92, %s93
      %p105 = scmp.eq.s32.totalorder %s41, 1
      %p106 = por %p104, %p105
      %p108 = scmp.ne.s32.totalorder %s93, %s107
      %p109 = scmp.eq.s32.totalorder %s41, 0
      %p110 = por %p108, %p109
      %s112 = sadd.s32 %s111, 1
      %p115 = scmp.eq.s32.totalorder %s35, 1
      %p116 = scmp.ne.s32.totalorder %s111, %s113
      %p117 = scmp.eq.s32.totalorder %s35, 0
      %p118 = por %p116, %p117
      %p119 = scmp.ne.s32.totalorder %s111, %s113
      %p120 = scmp.eq.s32.totalorder %s40, 1
      %p121 = por %p119, %p120
      %p122 = scmp.ne.s32.totalorder %s113, %s114
      %p123 = scmp.eq.s32.totalorder %s40, 0
      %p124 = por %p122, %p123
      %p125 = scmp.ne.s32.totalorder %s113, %s114
      %p126 = scmp.eq.s32.totalorder %s41, 1
      %p127 = por %p125, %p126
      %p129 = scmp.ne.s32.totalorder %s114, %s128
      %p130 = scmp.eq.s32.totalorder %s41, 0
      %p131 = por %p129, %p130
      %s133 = sadd.s32 %s132, 1
      %p136 = scmp.eq.s32.totalorder %s35, 1
      %p137 = scmp.ne.s32.totalorder %s132, %s134
      %p138 = scmp.eq.s32.totalorder %s35, 0
      %p139 = por %p137, %p138
      %p140 = scmp.ne.s32.totalorder %s132, %s134
      %p141 = scmp.eq.s32.totalorder %s40, 1
      %p142 = por %p140, %p141
      %p143 = scmp.ne.s32.totalorder %s134, %s135
      %p144 = scmp.eq.s32.totalorder %s40, 0
      %p145 = por %p143, %p144
      %p146 = scmp.ne.s32.totalorder %s134, %s135
      %p147 = scmp.eq.s32.totalorder %s41, 1
      %p148 = por %p146, %p147
      %p150 = scmp.ne.s32.totalorder %s135, %s149
      %p151 = scmp.eq.s32.totalorder %s41, 0
      %p152 = por %p150, %p151
      %s154 = sadd.s32 %s153, 1
      %p157 = scmp.eq.s32.totalorder %s35, 1
      %p158 = scmp.ne.s32.totalorder %s153, %s155
      %p159 = scmp.eq.s32.totalorder %s35, 0
      %p160 = por %p158, %p159
      %p161 = scmp.ne.s32.totalorder %s153, %s155
      %p162 = scmp.eq.s32.totalorder %s40, 1
      %p163 = por %p161, %p162
      %p164 = scmp.ne.s32.totalorder %s155, %s156
      %p165 = scmp.eq.s32.totalorder %s40, 0
      %p166 = por %p164, %p165
      %p167 = scmp.ne.s32.totalorder %s155, %s156
      %p168 = scmp.eq.s32.totalorder %s41, 1
      %p169 = por %p167, %p168
      %p171 = scmp.ne.s32.totalorder %s156, %s170
      %p172 = scmp.eq.s32.totalorder %s41, 0
      %p173 = por %p171, %p172
      %s175 = sadd.s32 %s174, 1
      %p178 = scmp.eq.s32.totalorder %s35, 1
      %p179 = scmp.ne.s32.totalorder %s174, %s176
      %p180 = scmp.eq.s32.totalorder %s35, 0
      %p181 = por %p179, %p180
      %p182 = scmp.ne.s32.totalorder %s174, %s176
      %p183 = scmp.eq.s32.totalorder %s40, 1
      %p184 = por %p182, %p183
      %p185 = scmp.ne.s32.totalorder %s176, %s177
      %p186 = scmp.eq.s32.totalorder %s40, 0
      %p187 = por %p185, %p186
      %p188 = scmp.ne.s32.totalorder %s176, %s177
      %p189 = scmp.eq.s32.totalorder %s41, 1
      %p190 = por %p188, %p189
      %p192 = scmp.ne.s32.totalorder %s177, %s191
      %p193 = scmp.eq.s32.totalorder %s41, 0
      %p194 = por %p192, %p193
      %s196 = sadd.s32 %s195, 1
      %p199 = scmp.eq.s32.totalorder %s35, 1
      %p200 = scmp.ne.s32.totalorder %s195, %s197
      %p201 = scmp.eq.s32.totalorder %s35, 0
      %p202 = por %p200, %p201
      %p203 = scmp.ne.s32.totalorder %s195, %s197
      %p204 = scmp.eq.s32.totalorder %s40, 1
      %p205 = por %p203, %p204
      %p206 = scmp.ne.s32.totalorder %s197, %s198
      %p207 = scmp.eq.s32.totalorder %s40, 0
      %p208 = por %p206, %p207
      %p209 = scmp.ne.s32.totalorder %s197, %s198
      %p210 = scmp.eq.s32.totalorder %s41, 1
      %p211 = por %p209, %p210
      %p213 = scmp.ne.s32.totalorder %s198, %s212
      %p214 = scmp.eq.s32.totalorder %s41, 0
      %p215 = por %p213, %p214
      %s217 = sadd.s32 %s216, 1
      %p220 = scmp.eq.s32.totalorder %s35, 1
      %p221 = scmp.ne.s32.totalorder %s216, %s218
      %p222 = scmp.eq.s32.totalorder %s35, 0
      %p223 = por %p221, %p222
      %p224 = scmp.ne.s32.totalorder %s216, %s218
      %p225 = scmp.eq.s32.totalorder %s40, 1
      %p226 = por %p224, %p225
      %p227 = scmp.ne.s32.totalorder %s218, %s219
      %p228 = scmp.eq.s32.totalorder %s40, 0
      %p229 = por %p227, %p228
      %p230 = scmp.ne.s32.totalorder %s218, %s219
      %p231 = scmp.eq.s32.totalorder %s41, 1
      %p232 = por %p230, %p231
      %p234 = scmp.ne.s32.totalorder %s219, %s233
      %p235 = scmp.eq.s32.totalorder %s41, 0
      %p236 = por %p234, %p235
      %s238 = sadd.s32 %s237, 1
      %p241 = scmp.eq.s32.totalorder %s35, 1
      %p242 = scmp.ne.s32.totalorder %s237, %s239
      %p243 = scmp.eq.s32.totalorder %s35, 0
      %p244 = por %p242, %p243
      %p245 = scmp.ne.s32.totalorder %s237, %s239
      %p246 = scmp.eq.s32.totalorder %s40, 1
      %p247 = por %p245, %p246
      %p248 = scmp.ne.s32.totalorder %s239, %s240
      %p249 = scmp.eq.s32.totalorder %s40, 0
      %p250 = por %p248, %p249
      %p251 = scmp.ne.s32.totalorder %s239, %s240
      %p252 = scmp.eq.s32.totalorder %s41, 1
      %p253 = por %p251, %p252
      %p255 = scmp.ne.s32.totalorder %s240, %s254
      %p256 = scmp.eq.s32.totalorder %s41, 0
      %p257 = por %p255, %p256
      %s259 = sadd.s32 %s258, 1
      %p262 = scmp.eq.s32.totalorder %s35, 1
      %p263 = scmp.ne.s32.totalorder %s258, %s260
      %p264 = scmp.eq.s32.totalorder %s35, 0
      %p265 = por %p263, %p264
      %p266 = scmp.ne.s32.totalorder %s258, %s260
      %p267 = scmp.eq.s32.totalorder %s40, 1
      %p268 = por %p266, %p267
      %p269 = scmp.ne.s32.totalorder %s260, %s261
      %p270 = scmp.eq.s32.totalorder %s40, 0
      %p271 = por %p269, %p270
      %p272 = scmp.ne.s32.totalorder %s260, %s261
      %p273 = scmp.eq.s32.totalorder %s41, 1
      %p274 = por %p272, %p273
      %p276 = scmp.ne.s32.totalorder %s261, %s275
      %p277 = scmp.eq.s32.totalorder %s41, 0
      %p278 = por %p276, %p277
      %s280 = sadd.s32 %s279, 1
      %p283 = scmp.eq.s32.totalorder %s35, 1
      %p284 = scmp.ne.s32.totalorder %s279, %s281
      %p285 = scmp.eq.s32.totalorder %s35, 0
      %p286 = por %p284, %p285
      %p287 = scmp.ne.s32.totalorder %s279, %s281
      %p288 = scmp.eq.s32.totalorder %s40, 1
      %p289 = por %p287, %p288
      %p290 = scmp.ne.s32.totalorder %s281, %s282
      %p291 = scmp.eq.s32.totalorder %s40, 0
      %p292 = por %p290, %p291
      %p293 = scmp.ne.s32.totalorder %s281, %s282
      %p294 = scmp.eq.s32.totalorder %s41, 1
      %p295 = por %p293, %p294
      %p297 = scmp.ne.s32.totalorder %s282, %s296
      %p298 = scmp.eq.s32.totalorder %s41, 0
      %p299 = por %p297, %p298
      %s301 = sadd.s32 %s300, 1
      %p304 = scmp.eq.s32.totalorder %s35, 1
      %p305 = scmp.ne.s32.totalorder %s300, %s302
      %p306 = scmp.eq.s32.totalorder %s35, 0
      %p307 = por %p305, %p306
      %p308 = scmp.ne.s32.totalorder %s300, %s302
      %p309 = scmp.eq.s32.totalorder %s40, 1
      %p310 = por %p308, %p309
      %p311 = scmp.ne.s32.totalorder %s302, %s303
      %p312 = scmp.eq.s32.totalorder %s40, 0
      %p313 = por %p311, %p312
      %p314 = scmp.ne.s32.totalorder %s302, %s303
      %p315 = scmp.eq.s32.totalorder %s41, 1
      %p316 = por %p314, %p315
      %p318 = scmp.ne.s32.totalorder %s303, %s317
      %p319 = scmp.eq.s32.totalorder %s41, 0
      %p320 = por %p318, %p319
      %s322 = sadd.s32 %s321, 1
      %p325 = scmp.eq.s32.totalorder %s35, 1
      %p326 = scmp.ne.s32.totalorder %s321, %s323
      %p327 = scmp.eq.s32.totalorder %s35, 0
      %p328 = por %p326, %p327
      %p329 = scmp.ne.s32.totalorder %s321, %s323
      %p330 = scmp.eq.s32.totalorder %s40, 1
      %p331 = por %p329, %p330
      %p332 = scmp.ne.s32.totalorder %s323, %s324
      %p333 = scmp.eq.s32.totalorder %s40, 0
      %p334 = por %p332, %p333
      %p335 = scmp.ne.s32.totalorder %s323, %s324
      %p336 = scmp.eq.s32.totalorder %s41, 1
      %p337 = por %p335, %p336
      %p339 = scmp.ne.s32.totalorder %s324, %s338
      %p340 = scmp.eq.s32.totalorder %s41, 0
      %p341 = por %p339, %p340
      %s343 = sadd.s32 %s342, 1
      %p346 = scmp.eq.s32.totalorder %s35, 1
      %p347 = scmp.ne.s32.totalorder %s342, %s344
      %p348 = scmp.eq.s32.totalorder %s35, 0
      %p349 = por %p347, %p348
      %p350 = scmp.ne.s32.totalorder %s342, %s344
      %p351 = scmp.eq.s32.totalorder %s40, 1
      %p352 = por %p350, %p351
      %p353 = scmp.ne.s32.totalorder %s344, %s345
      %p354 = scmp.eq.s32.totalorder %s40, 0
      %p355 = por %p353, %p354
      %p356 = scmp.ne.s32.totalorder %s344, %s345
      %p357 = scmp.eq.s32.totalorder %s41, 1
      %p358 = por %p356, %p357
      %p360 = scmp.ne.s32.totalorder %s345, %s359
      %p361 = scmp.eq.s32.totalorder %s41, 0
      %p362 = por %p360, %p361
      %s364 = sadd.s32 %s363, 1
      %p367 = scmp.eq.s32.totalorder %s35, 1
      %p368 = scmp.ne.s32.totalorder %s363, %s365
      %p369 = scmp.eq.s32.totalorder %s35, 0
      %p370 = por %p368, %p369
      %p371 = scmp.ne.s32.totalorder %s363, %s365
      %p372 = scmp.eq.s32.totalorder %s40, 1
      %p373 = por %p371, %p372
      %p374 = scmp.ne.s32.totalorder %s365, %s366
      %p375 = scmp.eq.s32.totalorder %s40, 0
      %p376 = por %p374, %p375
      %p377 = scmp.ne.s32.totalorder %s365, %s366
      %p378 = scmp.eq.s32.totalorder %s41, 1
      %p379 = por %p377, %p378
      %p381 = scmp.ne.s32.totalorder %s366, %s380
      %p382 = scmp.eq.s32.totalorder %s41, 0
      %p383 = por %p381, %p382
      %s385 = sadd.s32 %s384, 1
      %p388 = scmp.eq.s32.totalorder %s35, 1
      %p389 = scmp.ne.s32.totalorder %s384, %s386
      %p390 = scmp.eq.s32.totalorder %s35, 0
      %p391 = por %p389, %p390
      %p392 = scmp.ne.s32.totalorder %s384, %s386
      %p393 = scmp.eq.s32.totalorder %s40, 1
      %p394 = por %p392, %p393
      %p395 = scmp.ne.s32.totalorder %s386, %s387
      %p396 = scmp.eq.s32.totalorder %s40, 0
      %p397 = por %p395, %p396
      %p398 = scmp.ne.s32.totalorder %s386, %s387
      %p399 = scmp.eq.s32.totalorder %s41, 1
      %p400 = por %p398, %p399
      %p402 = scmp.ne.s32.totalorder %s387, %s401
      %p403 = scmp.eq.s32.totalorder %s41, 0
      %p404 = por %p402, %p403
      %s406 = sadd.s32 %s405, 1
      %p409 = scmp.eq.s32.totalorder %s35, 1
      %p410 = scmp.ne.s32.totalorder %s405, %s407
      %p411 = scmp.eq.s32.totalorder %s35, 0
      %p412 = por %p410, %p411
      %p413 = scmp.ne.s32.totalorder %s405, %s407
      %p414 = scmp.eq.s32.totalorder %s40, 1
      %p415 = por %p413, %p414
      %p416 = scmp.ne.s32.totalorder %s407, %s408
      %p417 = scmp.eq.s32.totalorder %s40, 0
      %p418 = por %p416, %p417
      %p419 = scmp.ne.s32.totalorder %s407, %s408
      %p420 = scmp.eq.s32.totalorder %s41, 1
      %p421 = por %p419, %p420
      %p423 = scmp.ne.s32.totalorder %s408, %s422
      %p424 = scmp.eq.s32.totalorder %s41, 0
      %p425 = por %p423, %p424
      %s427 = sadd.s32 %s426, 1
      %p430 = scmp.eq.s32.totalorder %s35, 1
      %p431 = scmp.ne.s32.totalorder %s426, %s428
      %p432 = scmp.eq.s32.totalorder %s35, 0
      %p433 = por %p431, %p432
      %p434 = scmp.ne.s32.totalorder %s426, %s428
      %p435 = scmp.eq.s32.totalorder %s40, 1
      %p436 = por %p434, %p435
      %p437 = scmp.ne.s32.totalorder %s428, %s429
      %p438 = scmp.eq.s32.totalorder %s40, 0
      %p439 = por %p437, %p438
      %p440 = scmp.ne.s32.totalorder %s428, %s429
      %p441 = scmp.eq.s32.totalorder %s41, 1
      %p442 = por %p440, %p441
      %p444 = scmp.ne.s32.totalorder %s429, %s443
      %p445 = scmp.eq.s32.totalorder %s41, 0
      %p446 = por %p444, %p445
      %s448 = sadd.s32 %s447, 1
      %p451 = scmp.eq.s32.totalorder %s35, 1
      %p452 = scmp.ne.s32.totalorder %s447, %s449
      %p453 = scmp.eq.s32.totalorder %s35, 0
      %p454 = por %p452, %p453
      %p455 = scmp.ne.s32.totalorder %s447, %s449
      %p456 = scmp.eq.s32.totalorder %s40, 1
      %p457 = por %p455, %p456
      %p458 = scmp.ne.s32.totalorder %s449, %s450
      %p459 = scmp.eq.s32.totalorder %s40, 0
      %p460 = por %p458, %p459
      %p461 = scmp.ne.s32.totalorder %s449, %s450
      %p462 = scmp.eq.s32.totalorder %s41, 1
      %p463 = por %p461, %p462
      %p465 = scmp.ne.s32.totalorder %s450, %s464
      %p466 = scmp.eq.s32.totalorder %s41, 0
      %p467 = por %p465, %p466
      %s469 = sadd.s32 %s468, 1
      %p472 = scmp.eq.s32.totalorder %s35, 1
      %p473 = scmp.ne.s32.totalorder %s468, %s470
      %p474 = scmp.eq.s32.totalorder %s35, 0
      %p475 = por %p473, %p474
      %p476 = scmp.ne.s32.totalorder %s468, %s470
      %p477 = scmp.eq.s32.totalorder %s40, 1
      %p478 = por %p476, %p477
      %p479 = scmp.ne.s32.totalorder %s470, %s471
      %p480 = scmp.eq.s32.totalorder %s40, 0
      %p481 = por %p479, %p480
      %p482 = scmp.ne.s32.totalorder %s470, %s471
      %p483 = scmp.eq.s32.totalorder %s41, 1
      %p484 = por %p482, %p483
      %p486 = scmp.ne.s32.totalorder %s471, %s485
      %p487 = scmp.eq.s32.totalorder %s41, 0
      %p488 = por %p486, %p487
      %s490 = sadd.s32 %s489, 1
      %p493 = scmp.eq.s32.totalorder %s35, 1
      %p494 = scmp.ne.s32.totalorder %s489, %s491
      %p495 = scmp.eq.s32.totalorder %s35, 0
      %p496 = por %p494, %p495
      %p497 = scmp.ne.s32.totalorder %s489, %s491
      %p498 = scmp.eq.s32.totalorder %s40, 1
      %p499 = por %p497, %p498
      %p500 = scmp.ne.s32.totalorder %s491, %s492
      %p501 = scmp.eq.s32.totalorder %s40, 0
      %p502 = por %p500, %p501
      %p503 = scmp.ne.s32.totalorder %s491, %s492
      %p504 = scmp.eq.s32.totalorder %s41, 1
      %p505 = por %p503, %p504
      %p507 = scmp.ne.s32.totalorder %s492, %s506
      %p508 = scmp.eq.s32.totalorder %s41, 0
      %p509 = por %p507, %p508
      %s511 = sadd.s32 %s510, 1
      %p514 = scmp.eq.s32.totalorder %s35, 1
      %p515 = scmp.ne.s32.totalorder %s510, %s512
      %p516 = scmp.eq.s32.totalorder %s35, 0
      %p517 = por %p515, %p516
      %p518 = scmp.ne.s32.totalorder %s510, %s512
      %p519 = scmp.eq.s32.totalorder %s40, 1
      %p520 = por %p518, %p519
      %p521 = scmp.ne.s32.totalorder %s512, %s513
      %p522 = scmp.eq.s32.totalorder %s40, 0
      %p523 = por %p521, %p522
      %p524 = scmp.ne.s32.totalorder %s512, %s513
      %p525 = scmp.eq.s32.totalorder %s41, 1
      %p526 = por %p524, %p525
      %p528 = scmp.ne.s32.totalorder %s513, %s527
      %p529 = scmp.eq.s32.totalorder %s41, 0
      %p530 = por %p528, %p529
      %s531 = ssub.s32 %s35, %s42
      %p532 = scmp.eq.s32.totalorder %s531, 0
      %s534 = sadd.s32 %s533, 1
      %s535 = scalar_select %p532, %s533, %s534
      %p538 = pneg %p532
      %p539 = scmp.eq.s32.totalorder %s35, 1
      %p540 = por %p538, %p539
      %p541 = scmp.ne.s32.totalorder %s533, %s536
      %p542 = scmp.eq.s32.totalorder %s35, 0
      %p543 = por %p541, %p542
      %p544 = scmp.ne.s32.totalorder %s533, %s536
      %p545 = scmp.eq.s32.totalorder %s40, 1
      %p546 = por %p544, %p545
      %p547 = scmp.ne.s32.totalorder %s536, %s537
      %p548 = scmp.eq.s32.totalorder %s40, 0
      %p549 = por %p547, %p548
      %p550 = scmp.ne.s32.totalorder %s536, %s537
      %p551 = scmp.eq.s32.totalorder %s41, 1
      %p552 = por %p550, %p551
      %p554 = scmp.ne.s32.totalorder %s537, %s553
      %p555 = scmp.eq.s32.totalorder %s41, 0
      %p556 = por %p554, %p555
      %p557 = scmp.le.s32.totalorder 1, %s35
      %p558 = scmp.lt.s32.totalorder %s35, 3
      %p559 = pnand %p557, %p558
      %p560 = pneg %p559
      // Predicated region
      $region9: #{block_forward.1} parent=5 // pred_check
        _
      $region10: #{block_forward.1} parent=5 // pred_check_branch
        %562 = sbr.rel (%p559) target = $region12
      $region11: #{block_forward.1} parent=5 // pred_region
        %s563 = ssub.s32 %s35, 1
        // Predicated region
        $region13: #{block_forward.1} parent=11 // pred_check
          %p564 = pneg %p82
        $region14: #{block_forward.1} parent=11 // pred_check_branch
          %566 = sbr.rel (%p564) target = $region16
        $region15: #{block_forward.1} parent=11 // pred_region
          _
        $region16: #{block_forward.1} parent=11 // pred_fallthru
          _
        // Predicated region
        $region17: #{block_forward.1} parent=11 // pred_check
          %p567 = pneg %p103
        $region18: #{block_forward.1} parent=11 // pred_check_branch
          %569 = sbr.rel (%p567) target = $region20
        $region19: #{block_forward.1} parent=11 // pred_region
          %571 = vsyncadd [#allocation5], 0
          %s572 = sshll.u32 %s2, 4
          %s573 = int_to_ptr.hbm [resolvable:$true] %s572
          %s574 = sshll.u32 [#allocation4], 4
          %s575 = int_to_ptr.vmem [resolvable:$true] %s574
          %580 = dma.hbm_to_vmem [thread:$0]  %s573, 8192, %s575, [#allocation5], 256, 256, 16
        $region20: #{block_forward.1} parent=11 // pred_fallthru
          _
        // Predicated region
        $region21: #{block_forward.1} parent=11 // pred_check
          %p581 = pneg %p124
        $region22: #{block_forward.1} parent=11 // pred_check_branch
          %583 = sbr.rel (%p581) target = $region24
        $region23: #{block_forward.1} parent=11 // pred_region
          %585 = vsyncadd [#allocation7], 0
          %s586 = sshll.u32 %s3, 4
          %s587 = int_to_ptr.hbm [resolvable:$true] %s586
          %s588 = sshll.u32 [#allocation6], 4
          %s589 = int_to_ptr.vmem [resolvable:$true] %s588
          %594 = dma.hbm_to_vmem [thread:$0]  %s587, 24576, %s589, [#allocation7], 128, 128, 8
        $region24: #{block_forward.1} parent=11 // pred_fallthru
          _
        // Predicated region
        $region25: #{block_forward.1} parent=11 // pred_check
          %p595 = pneg %p145
        $region26: #{block_forward.1} parent=11 // pred_check_branch
          %597 = sbr.rel (%p595) target = $region28
        $region27: #{block_forward.1} parent=11 // pred_region
          %599 = vsyncadd [#allocation7], 0
          %s600 = sshll.u32 %s4, 4
          %s601 = int_to_ptr.hbm [resolvable:$true] %s600
          %s602 = sshll.u32 [#allocation8], 4
          %s603 = int_to_ptr.vmem [resolvable:$true] %s602
          %608 = dma.hbm_to_vmem [thread:$0]  %s601, 8192, %s603, [#allocation7], 256, 256, 16
        $region28: #{block_forward.1} parent=11 // pred_fallthru
          _
        // Predicated region
        $region29: #{block_forward.1} parent=11 // pred_check
          %p609 = pneg %p166
        $region30: #{block_forward.1} parent=11 // pred_check_branch
          %611 = sbr.rel (%p609) target = $region32
        $region31: #{block_forward.1} parent=11 // pred_region
          %613 = vsyncadd [#allocation10], 0
          %s614 = sshll.u32 %s5, 4
          %s615 = int_to_ptr.hbm [resolvable:$true] %s614
          %s616 = sshll.u32 [#allocation9], 4
          %s617 = int_to_ptr.vmem [resolvable:$true] %s616
          %622 = dma.hbm_to_vmem [thread:$0]  %s615, 4096, %s617, [#allocation10], 64, 64, 4
        $region32: #{block_forward.1} parent=11 // pred_fallthru
          _
        // Predicated region
        $region33: #{block_forward.1} parent=11 // pred_check
          %p623 = pneg %p187
        $region34: #{block_forward.1} parent=11 // pred_check_branch
          %625 = sbr.rel (%p623) target = $region36
        $region35: #{block_forward.1} parent=11 // pred_region
          _
        $region36: #{block_forward.1} parent=11 // pred_fallthru
          _
        // Predicated region
        $region37: #{block_forward.1} parent=11 // pred_check
          %p626 = pneg %p208
        $region38: #{block_forward.1} parent=11 // pred_check_branch
          %628 = sbr.rel (%p626) target = $region40
        $region39: #{block_forward.1} parent=11 // pred_region
          %630 = vsyncadd [#allocation10], 0
          %s631 = sshll.u32 %s7, 4
          %s632 = int_to_ptr.hbm [resolvable:$true] %s631
          %s633 = sshll.u32 [#allocation11], 4
          %s634 = int_to_ptr.vmem [resolvable:$true] %s633
          %639 = dma.hbm_to_vmem [thread:$0]  %s632, 1024, %s634, [#allocation10], 64, 64, 4
        $region40: #{block_forward.1} parent=11 // pred_fallthru
          _
        // Predicated region
        $region41: #{block_forward.1} parent=11 // pred_check
          %p640 = pneg %p229
        $region42: #{block_forward.1} parent=11 // pred_check_branch
          %642 = sbr.rel (%p640) target = $region44
        $region43: #{block_forward.1} parent=11 // pred_region
          _
        $region44: #{block_forward.1} parent=11 // pred_fallthru
          _
        // Predicated region
        $region45: #{block_forward.1} parent=11 // pred_check
          %p643 = pneg %p250
        $region46: #{block_forward.1} parent=11 // pred_check_branch
          %645 = sbr.rel (%p643) target = $region48
        $region47: #{block_forward.1} parent=11 // pred_region
          _
        $region48: #{block_forward.1} parent=11 // pred_fallthru
          _
        // Predicated region
        $region49: #{block_forward.1} parent=11 // pred_check
          %p646 = pneg %p271
        $region50: #{block_forward.1} parent=11 // pred_check_branch
          %648 = sbr.rel (%p646) target = $region52
        $region51: #{block_forward.1} parent=11 // pred_region
          _
        $region52: #{block_forward.1} parent=11 // pred_fallthru
          _
        // Predicated region
        $region53: #{block_forward.1} parent=11 // pred_check
          %p649 = pneg %p292
        $region54: #{block_forward.1} parent=11 // pred_check_branch
          %651 = sbr.rel (%p649) target = $region56
        $region55: #{block_forward.1} parent=11 // pred_region
          _
        $region56: #{block_forward.1} parent=11 // pred_fallthru
          _
        // Predicated region
        $region57: #{block_forward.1} parent=11 // pred_check
          %p652 = pneg %p313
        $region58: #{block_forward.1} parent=11 // pred_check_branch
          %654 = sbr.rel (%p652) target = $region60
        $region59: #{block_forward.1} parent=11 // pred_region
          _
        $region60: #{block_forward.1} parent=11 // pred_fallthru
          _
        // Predicated region
        $region61: #{block_forward.1} parent=11 // pred_check
          %p655 = pneg %p334
        $region62: #{block_forward.1} parent=11 // pred_check_branch
          %657 = sbr.rel (%p655) target = $region64
        $region63: #{block_forward.1} parent=11 // pred_region
          _
        $region64: #{block_forward.1} parent=11 // pred_fallthru
          _
        // Predicated region
        $region65: #{block_forward.1} parent=11 // pred_check
          %p658 = pneg %p355
        $region66: #{block_forward.1} parent=11 // pred_check_branch
          %660 = sbr.rel (%p658) target = $region68
        $region67: #{block_forward.1} parent=11 // pred_region
          _
        $region68: #{block_forward.1} parent=11 // pred_fallthru
          _
        // Predicated region
        $region69: #{block_forward.1} parent=11 // pred_check
          %p661 = pneg %p376
        $region70: #{block_forward.1} parent=11 // pred_check_branch
          %663 = sbr.rel (%p661) target = $region72
        $region71: #{block_forward.1} parent=11 // pred_region
          %665 = vsyncadd [#allocation13], 0
          %s666 = sshll.u32 %s15, 4
          %s667 = int_to_ptr.hbm [resolvable:$true] %s666
          %s668 = sshll.u32 [#allocation12], 4
          %s669 = int_to_ptr.vmem [resolvable:$true] %s668
          %674 = dma.hbm_to_vmem [thread:$0]  %s667, 4096, %s669, [#allocation13], 256, 256, 16
        $region72: #{block_forward.1} parent=11 // pred_fallthru
          _
        // Predicated region
        $region73: #{block_forward.1} parent=11 // pred_check
          %p675 = pneg %p397
        $region74: #{block_forward.1} parent=11 // pred_check_branch
          %677 = sbr.rel (%p675) target = $region76
        $region75: #{block_forward.1} parent=11 // pred_region
          _
        $region76: #{block_forward.1} parent=11 // pred_fallthru
          _
        // Predicated region
        $region77: #{block_forward.1} parent=11 // pred_check
          %p678 = pneg %p418
        $region78: #{block_forward.1} parent=11 // pred_check_branch
          %680 = sbr.rel (%p678) target = $region80
        $region79: #{block_forward.1} parent=11 // pred_region
          _
        $region80: #{block_forward.1} parent=11 // pred_fallthru
          _
        // Predicated region
        $region81: #{block_forward.1} parent=11 // pred_check
          %p681 = pneg %p439
        $region82: #{block_forward.1} parent=11 // pred_check_branch
          %683 = sbr.rel (%p681) target = $region84
        $region83: #{block_forward.1} parent=11 // pred_region
          _
        $region84: #{block_forward.1} parent=11 // pred_fallthru
          _
        // Predicated region
        $region85: #{block_forward.1} parent=11 // pred_check
          %p684 = pneg %p460
        $region86: #{block_forward.1} parent=11 // pred_check_branch
          %686 = sbr.rel (%p684) target = $region88
        $region87: #{block_forward.1} parent=11 // pred_region
          _
        $region88: #{block_forward.1} parent=11 // pred_fallthru
          _
        // Predicated region
        $region89: #{block_forward.1} parent=11 // pred_check
          %p687 = pneg %p481
        $region90: #{block_forward.1} parent=11 // pred_check_branch
          %689 = sbr.rel (%p687) target = $region92
        $region91: #{block_forward.1} parent=11 // pred_region
          _
        $region92: #{block_forward.1} parent=11 // pred_fallthru
          _
        // Predicated region
        $region93: #{block_forward.1} parent=11 // pred_check
          %p690 = pneg %p502
        $region94: #{block_forward.1} parent=11 // pred_check_branch
          %692 = sbr.rel (%p690) target = $region96
        $region95: #{block_forward.1} parent=11 // pred_region
          _
        $region96: #{block_forward.1} parent=11 // pred_fallthru
          _
        // Predicated region
        $region97: #{block_forward.1} parent=11 // pred_check
          %p693 = pneg %p523
        $region98: #{block_forward.1} parent=11 // pred_check_branch
          %695 = sbr.rel (%p693) target = $region100
        $region99: #{block_forward.1} parent=11 // pred_region
          _
        $region100: #{block_forward.1} parent=11 // pred_fallthru
          _
      $region12: #{block_forward.1} parent=5 // pred_fallthru
        _
      %p696 = scmp.lt.s32.totalorder %s35, 2
      // Predicated region
      $region101: #{block_forward.1} parent=5 // pred_check
        %p697 = pneg %p696
      $region102: #{block_forward.1} parent=5 // pred_check_branch
        %699 = sbr.rel (%p697) target = $region104
      $region103: #{block_forward.1} parent=5 // pred_region
        // Predicated region
        $region105: #{block_forward.1} parent=103 // pred_check
          %p700 = pneg %p55
        $region106: #{block_forward.1} parent=103 // pred_check_branch
          %702 = sbr.rel (%p700) target = $region108
        $region107: #{block_forward.1} parent=103 // pred_region
          %p703 = scmp.lt.s32.totalorder %s35, 1
          %s704 = scalar_select %p703, %s35, 1
          %s705 = smul.addr %s704, 16
          %s706 = smul.addr %s705, 8
          %s707 = scalar_lea.vmem %s0, %s706
        $region108: #{block_forward.1} parent=103 // pred_fallthru
          _
      $region104: #{block_forward.1} parent=5 // pred_fallthru
        _
      %p708 = scmp.le.s32.totalorder 1, %s35
      %p709 = scmp.lt.s32.totalorder %s35, 3
      %p710 = pnand %p708, %p709
      %p711 = pneg %p710
      // Predicated region
      $region109: #{block_forward.1} parent=5 // pred_check
        _
      $region110: #{block_forward.1} parent=5 // pred_check_branch
        %713 = sbr.rel (%p710) target = $region112
      $region111: #{block_forward.1} parent=5 // pred_region
        %s714 = ssub.s32 %s35, 1
        // Predicated region
        $region113: #{block_forward.1} parent=111 // pred_check
          %p715 = pneg %p103
        $region114: #{block_forward.1} parent=111 // pred_check_branch
          %717 = sbr.rel (%p715) target = $region116
        $region115: #{block_forward.1} parent=111 // pred_region
          %719 = dma.done [#allocation5], 8192
        $region116: #{block_forward.1} parent=111 // pred_fallthru
          _
        // Predicated region
        $region117: #{block_forward.1} parent=111 // pred_check
          %p720 = pneg %p124
        $region118: #{block_forward.1} parent=111 // pred_check_branch
          %722 = sbr.rel (%p720) target = $region120
        $region119: #{block_forward.1} parent=111 // pred_region
          %724 = dma.done [#allocation7], 24576
        $region120: #{block_forward.1} parent=111 // pred_fallthru
          _
        // Predicated region
        $region121: #{block_forward.1} parent=111 // pred_check
          %p725 = pneg %p145
        $region122: #{block_forward.1} parent=111 // pred_check_branch
          %727 = sbr.rel (%p725) target = $region124
        $region123: #{block_forward.1} parent=111 // pred_region
          %729 = dma.done [#allocation7], 8192
        $region124: #{block_forward.1} parent=111 // pred_fallthru
          _
        // Predicated region
        $region125: #{block_forward.1} parent=111 // pred_check
          %p730 = pneg %p166
        $region126: #{block_forward.1} parent=111 // pred_check_branch
          %732 = sbr.rel (%p730) target = $region128
        $region127: #{block_forward.1} parent=111 // pred_region
          %734 = dma.done [#allocation10], 4096
        $region128: #{block_forward.1} parent=111 // pred_fallthru
          _
        // Predicated region
        $region129: #{block_forward.1} parent=111 // pred_check
          %p735 = pneg %p208
        $region130: #{block_forward.1} parent=111 // pred_check_branch
          %737 = sbr.rel (%p735) target = $region132
        $region131: #{block_forward.1} parent=111 // pred_region
          %739 = dma.done [#allocation10], 1024
        $region132: #{block_forward.1} parent=111 // pred_fallthru
          _
        // Predicated region
        $region133: #{block_forward.1} parent=111 // pred_check
          %p740 = pneg %p376
        $region134: #{block_forward.1} parent=111 // pred_check_branch
          %742 = sbr.rel (%p740) target = $region136
        $region135: #{block_forward.1} parent=111 // pred_region
          %744 = dma.done [#allocation13], 4096
        $region136: #{block_forward.1} parent=111 // pred_fallthru
          _
        %p745 = scmp.lt.s32.totalorder %s40, 1
        %s746 = scalar_select %p745, %s40, 1
        %s747 = smul.addr %s746, 16
        %s748 = smul.addr %s747, 8
        %s749 = scalar_lea.vmem %s0, %s748
        %p750 = pneg %p61
        %p751 = pneg %p58
        %p752 = pneg %p82
        %p753 = pneg %p79
        %p754 = pneg %p103
        %p755 = pneg %p100
        %p756 = pneg %p124
        %p757 = pneg %p121
        %p758 = pneg %p145
        %p759 = pneg %p142
        %p760 = pneg %p166
        %p761 = pneg %p163
        %p762 = pneg %p187
        %p763 = pneg %p184
        %p764 = pneg %p208
        %p765 = pneg %p205
        %p766 = pneg %p229
        %p767 = pneg %p226
        %p768 = pneg %p250
        %p769 = pneg %p247
        %p770 = pneg %p271
        %p771 = pneg %p268
        %p772 = pneg %p292
        %p773 = pneg %p289
        %p774 = pneg %p313
        %p775 = pneg %p310
        %p776 = pneg %p334
        %p777 = pneg %p331
        %p778 = pneg %p355
        %p779 = pneg %p352
        %p780 = pneg %p376
        %p781 = pneg %p373
        %p782 = pneg %p397
        %p783 = pneg %p394
        %p784 = pneg %p418
        %p785 = pneg %p415
        %p786 = pneg %p439
        %p787 = pneg %p436
        %p788 = pneg %p460
        %p789 = pneg %p457
        %p790 = pneg %p481
        %p791 = pneg %p478
        %p792 = pneg %p502
        %p793 = pneg %p499
        %p794 = pneg %p523
        %p795 = pneg %p520
        %p796 = pneg %p549
        %p797 = pneg %p546
        %p798 = scmp.lt.s32.totalorder %s40, 1
        %s799 = scalar_select %p798, %s40, 1
        %s800 = smul.addr %s799, 16
        %s801 = smul.addr %s800, 8
        %s802 = scalar_lea.vmem %s23, %s801
        %p803 = scmp.lt.s32.totalorder %s40, 1
        %s804 = scalar_select %p803, %s40, 1
        %s805 = smul.addr %s804, 16
        %s806 = smul.addr %s805, 8
        %s807 = scalar_lea.vmem %s0, %s806
        %p808 = scmp.lt.s32.totalorder %s40, 1
        %s809 = scalar_select %p808, %s40, 1
        %s810 = smul.addr %s809, 16
        %s811 = smul.addr %s810, 8
        %s812 = scalar_lea.vmem %s23, %s811
        %v814 = vld [vmem:[%s807] sm:$0xff]
        %v815 = vld [vmem:[%s807 + $0x8] sm:$0xff]
        %v816 = vld [vmem:[%s807 + $0x10] sm:$0xff]
        %v817 = vld [vmem:[%s807 + $0x18] sm:$0xff]
        %v818 = vld [vmem:[%s807 + $0x20] sm:$0xff]
        %v819 = vld [vmem:[%s807 + $0x28] sm:$0xff]
        %v820 = vld [vmem:[%s807 + $0x30] sm:$0xff]
        %v821 = vld [vmem:[%s807 + $0x38] sm:$0xff]
        %v822 = vld [vmem:[%s807 + $0x40] sm:$0xff]
        %v823 = vld [vmem:[%s807 + $0x48] sm:$0xff]
        %v824 = vld [vmem:[%s807 + $0x50] sm:$0xff]
        %v825 = vld [vmem:[%s807 + $0x58] sm:$0xff]
        %v826 = vld [vmem:[%s807 + $0x60] sm:$0xff]
        %v827 = vld [vmem:[%s807 + $0x68] sm:$0xff]
        %v828 = vld [vmem:[%s807 + $0x70] sm:$0xff]
        %v829 = vld [vmem:[%s807 + $0x78] sm:$0xff]
        %v830 = vpack.c.bf16 %v815, %v814
        %v831 = vpack.c.bf16 %v817, %v816
        %v832 = vpack.c.bf16 %v819, %v818
        %v833 = vpack.c.bf16 %v821, %v820
        %v834 = vpack.c.bf16 %v823, %v822
        %v835 = vpack.c.bf16 %v825, %v824
        %v836 = vpack.c.bf16 %v827, %v826
        %v837 = vpack.c.bf16 %v829, %v828
        %v846 = vunpack.c.l.b16 %v830
        %v847 = vunpack.c.h.b16 %v830
        %v848 = vunpack.c.l.b16 %v831
        %v849 = vunpack.c.h.b16 %v831
        %v850 = vunpack.c.l.b16 %v832
        %v851 = vunpack.c.h.b16 %v832
        %v852 = vunpack.c.l.b16 %v833
        %v853 = vunpack.c.h.b16 %v833
        %v854 = vunpack.c.l.b16 %v834
        %v855 = vunpack.c.h.b16 %v834
        %v856 = vunpack.c.l.b16 %v835
        %v857 = vunpack.c.h.b16 %v835
        %v858 = vunpack.c.l.b16 %v836
        %v859 = vunpack.c.h.b16 %v836
        %v860 = vunpack.c.l.b16 %v837
        %v861 = vunpack.c.h.b16 %v837
        %v862 = vpack.c.b16 %v850, %v846
        %v863 = vpack.c.b16 %v851, %v847
        %v864 = vpack.c.b16 %v852, %v848
        %v865 = vpack.c.b16 %v853, %v849
        %v866 = vpack.c.b16 %v858, %v854
        %v867 = vpack.c.b16 %v859, %v855
        %v868 = vpack.c.b16 %v860, %v856
        %v869 = vpack.c.b16 %v861, %v857
        %vm870 = vsmask.f32 256
        %v872 = vshrl.u32 %v862, 16
        %v874 = vrot.slane %v872, 7
        %v875 = vshll.u32 %v862, 16
        %v877 = vor.u32 %v874, %v875
        %v879 = vshrl.u32 %v863, 16
        %v881 = vrot.slane %v879, 7
        %v882 = vshll.u32 %v863, 16
        %v884 = vor.u32 %v881, %v882
        %v886 = vshrl.u32 %v864, 16
        %v888 = vrot.slane %v886, 7
        %v889 = vshll.u32 %v864, 16
        %v891 = vor.u32 %v888, %v889
        %v893 = vshrl.u32 %v865, 16
        %v895 = vrot.slane %v893, 7
        %v896 = vshll.u32 %v865, 16
        %v898 = vor.u32 %v895, %v896
        %v900 = vshrl.u32 %v866, 16
        %v902 = vrot.slane %v900, 7
        %v903 = vshll.u32 %v866, 16
        %v905 = vor.u32 %v902, %v903
        %v906 = vsel %vm870, %v874, %v905
        %v908 = vshrl.u32 %v867, 16
        %v910 = vrot.slane %v908, 7
        %v911 = vshll.u32 %v867, 16
        %v913 = vor.u32 %v910, %v911
        %v914 = vsel %vm870, %v881, %v913
        %v916 = vshrl.u32 %v868, 16
        %v918 = vrot.slane %v916, 7
        %v919 = vshll.u32 %v868, 16
        %v921 = vor.u32 %v918, %v919
        %v922 = vsel %vm870, %v888, %v921
        %v924 = vshrl.u32 %v869, 16
        %v926 = vrot.slane %v924, 7
        %v927 = vshll.u32 %v869, 16
        %v929 = vor.u32 %v926, %v927
        %v930 = vsel %vm870, %v895, %v929
        %vm943 = vcmask 1040384
        %vm944 = vmand %vm943, %vm870
        %v945 = vsel %vm944, 0, %v877
        %v946 = vsel %vm944, 0, %v884
        %v947 = vsel %vm944, 0, %v891
        %v948 = vsel %vm944, 0, %v898
        %v949 = vsel %vm944, %v902, 0
        %v950 = vsel %vm944, %v910, 0
        %v951 = vsel %vm944, %v918, 0
        %v952 = vsel %vm944, %v926, 0
        %v953 = vld [vmem:[%s1] sm:$0xff]
        %v954 = vld [vmem:[%s1 + $0x8] sm:$0xff]
        %v955 = vld [vmem:[%s1 + $0x10] sm:$0xff]
        %v956 = vld [vmem:[%s1 + $0x18] sm:$0xff]
        %v957 = vld [vmem:[%s1 + $0x20] sm:$0xff]
        %v958 = vld [vmem:[%s1 + $0x28] sm:$0xff]
        %v959 = vld [vmem:[%s1 + $0x30] sm:$0xff]
        %v960 = vld [vmem:[%s1 + $0x38] sm:$0xff]
        %v961 = vld [vmem:[%s1 + $0x40] sm:$0xff]
        %v962 = vld [vmem:[%s1 + $0x48] sm:$0xff]
        %v963 = vld [vmem:[%s1 + $0x50] sm:$0xff]
        %v964 = vld [vmem:[%s1 + $0x58] sm:$0xff]
        %v965 = vld [vmem:[%s1 + $0x60] sm:$0xff]
        %v966 = vld [vmem:[%s1 + $0x68] sm:$0xff]
        %v967 = vld [vmem:[%s1 + $0x70] sm:$0xff]
        %v968 = vld [vmem:[%s1 + $0x78] sm:$0xff]
        %v969 = vld [vmem:[%s1 + $0x80] sm:$0xff]
        %v970 = vld [vmem:[%s1 + $0x88] sm:$0xff]
        %v971 = vld [vmem:[%s1 + $0x90] sm:$0xff]
        %v972 = vld [vmem:[%s1 + $0x98] sm:$0xff]
        %v973 = vld [vmem:[%s1 + $0xa0] sm:$0xff]
        %v974 = vld [vmem:[%s1 + $0xa8] sm:$0xff]
        %v975 = vld [vmem:[%s1 + $0xb0] sm:$0xff]
        %v976 = vld [vmem:[%s1 + $0xb8] sm:$0xff]
        %v977 = vld [vmem:[%s1 + $0xc0] sm:$0xff]
        %v978 = vld [vmem:[%s1 + $0xc8] sm:$0xff]
        %v979 = vld [vmem:[%s1 + $0xd0] sm:$0xff]
        %v980 = vld [vmem:[%s1 + $0xd8] sm:$0xff]
        %v981 = vld [vmem:[%s1 + $0xe0] sm:$0xff]
        %v982 = vld [vmem:[%s1 + $0xe8] sm:$0xff]
        %v983 = vld [vmem:[%s1 + $0xf0] sm:$0xff]
        %v984 = vld [vmem:[%s1 + $0xf8] sm:$0xff]
        %v985 = vld [vmem:[%s1 + $0x100] sm:$0xff]
        %v986 = vld [vmem:[%s1 + $0x108] sm:$0xff]
        %v987 = vld [vmem:[%s1 + $0x110] sm:$0xff]
        %v988 = vld [vmem:[%s1 + $0x118] sm:$0xff]
        %v989 = vld [vmem:[%s1 + $0x120] sm:$0xff]
        %v990 = vld [vmem:[%s1 + $0x128] sm:$0xff]
        %v991 = vld [vmem:[%s1 + $0x130] sm:$0xff]
        %v992 = vld [vmem:[%s1 + $0x138] sm:$0xff]
        %v993 = vld [vmem:[%s1 + $0x140] sm:$0xff]
        %v994 = vld [vmem:[%s1 + $0x148] sm:$0xff]
        %v995 = vld [vmem:[%s1 + $0x150] sm:$0xff]
        %v996 = vld [vmem:[%s1 + $0x158] sm:$0xff]
        %v997 = vld [vmem:[%s1 + $0x160] sm:$0xff]
        %v998 = vld [vmem:[%s1 + $0x168] sm:$0xff]
        %v999 = vld [vmem:[%s1 + $0x170] sm:$0xff]
        %v1000 = vld [vmem:[%s1 + $0x178] sm:$0xff]
        %v1001 = vld [vmem:[%s1 + $0x180] sm:$0xff]
        %v1002 = vld [vmem:[%s1 + $0x188] sm:$0xff]
        %v1003 = vld [vmem:[%s1 + $0x190] sm:$0xff]
        %v1004 = vld [vmem:[%s1 + $0x198] sm:$0xff]
        %v1005 = vld [vmem:[%s1 + $0x1a0] sm:$0xff]
        %v1006 = vld [vmem:[%s1 + $0x1a8] sm:$0xff]
        %v1007 = vld [vmem:[%s1 + $0x1b0] sm:$0xff]
        %v1008 = vld [vmem:[%s1 + $0x1b8] sm:$0xff]
        %v1009 = vld [vmem:[%s1 + $0x1c0] sm:$0xff]
        %v1010 = vld [vmem:[%s1 + $0x1c8] sm:$0xff]
        %v1011 = vld [vmem:[%s1 + $0x1d0] sm:$0xff]
        %v1012 = vld [vmem:[%s1 + $0x1d8] sm:$0xff]
        %v1013 = vld [vmem:[%s1 + $0x1e0] sm:$0xff]
        %v1014 = vld [vmem:[%s1 + $0x1e8] sm:$0xff]
        %v1015 = vld [vmem:[%s1 + $0x1f0] sm:$0xff]
        %v1016 = vld [vmem:[%s1 + $0x1f8] sm:$0xff]
        %s1017 = scalar_lea.vmem %s1, 512
        %v1018 = vld [vmem:[%s1017] sm:$0xff]
        %v1019 = vld [vmem:[%s1017 + $0x8] sm:$0xff]
        %v1020 = vld [vmem:[%s1017 + $0x10] sm:$0xff]
        %v1021 = vld [vmem:[%s1017 + $0x18] sm:$0xff]
        %v1022 = vld [vmem:[%s1017 + $0x20] sm:$0xff]
        %v1023 = vld [vmem:[%s1017 + $0x28] sm:$0xff]
        %v1024 = vld [vmem:[%s1017 + $0x30] sm:$0xff]
        %v1025 = vld [vmem:[%s1017 + $0x38] sm:$0xff]
        %v1026 = vld [vmem:[%s1017 + $0x40] sm:$0xff]
        %v1027 = vld [vmem:[%s1017 + $0x48] sm:$0xff]
        %v1028 = vld [vmem:[%s1017 + $0x50] sm:$0xff]
        %v1029 = vld [vmem:[%s1017 + $0x58] sm:$0xff]
        %v1030 = vld [vmem:[%s1017 + $0x60] sm:$0xff]
        %v1031 = vld [vmem:[%s1017 + $0x68] sm:$0xff]
        %v1032 = vld [vmem:[%s1017 + $0x70] sm:$0xff]
        %v1033 = vld [vmem:[%s1017 + $0x78] sm:$0xff]
        %v1034 = vld [vmem:[%s1017 + $0x80] sm:$0xff]
        %v1035 = vld [vmem:[%s1017 + $0x88] sm:$0xff]
        %v1036 = vld [vmem:[%s1017 + $0x90] sm:$0xff]
        %v1037 = vld [vmem:[%s1017 + $0x98] sm:$0xff]
        %v1038 = vld [vmem:[%s1017 + $0xa0] sm:$0xff]
        %v1039 = vld [vmem:[%s1017 + $0xa8] sm:$0xff]
        %v1040 = vld [vmem:[%s1017 + $0xb0] sm:$0xff]
        %v1041 = vld [vmem:[%s1017 + $0xb8] sm:$0xff]
        %v1042 = vld [vmem:[%s1017 + $0xc0] sm:$0xff]
        %v1043 = vld [vmem:[%s1017 + $0xc8] sm:$0xff]
        %v1044 = vld [vmem:[%s1017 + $0xd0] sm:$0xff]
        %v1045 = vld [vmem:[%s1017 + $0xd8] sm:$0xff]
        %v1046 = vld [vmem:[%s1017 + $0xe0] sm:$0xff]
        %v1047 = vld [vmem:[%s1017 + $0xe8] sm:$0xff]
        %v1048 = vld [vmem:[%s1017 + $0xf0] sm:$0xff]
        %v1049 = vld [vmem:[%s1017 + $0xf8] sm:$0xff]
        %v1050 = vld [vmem:[%s1017 + $0x100] sm:$0xff]
        %v1051 = vld [vmem:[%s1017 + $0x108] sm:$0xff]
        %v1052 = vld [vmem:[%s1017 + $0x110] sm:$0xff]
        %v1053 = vld [vmem:[%s1017 + $0x118] sm:$0xff]
        %v1054 = vld [vmem:[%s1017 + $0x120] sm:$0xff]
        %v1055 = vld [vmem:[%s1017 + $0x128] sm:$0xff]
        %v1056 = vld [vmem:[%s1017 + $0x130] sm:$0xff]
        %v1057 = vld [vmem:[%s1017 + $0x138] sm:$0xff]
        %v1058 = vld [vmem:[%s1017 + $0x140] sm:$0xff]
        %v1059 = vld [vmem:[%s1017 + $0x148] sm:$0xff]
        %v1060 = vld [vmem:[%s1017 + $0x150] sm:$0xff]
        %v1061 = vld [vmem:[%s1017 + $0x158] sm:$0xff]
        %v1062 = vld [vmem:[%s1017 + $0x160] sm:$0xff]
        %v1063 = vld [vmem:[%s1017 + $0x168] sm:$0xff]
        %v1064 = vld [vmem:[%s1017 + $0x170] sm:$0xff]
        %v1065 = vld [vmem:[%s1017 + $0x178] sm:$0xff]
        %v1066 = vld [vmem:[%s1017 + $0x180] sm:$0xff]
        %v1067 = vld [vmem:[%s1017 + $0x188] sm:$0xff]
        %v1068 = vld [vmem:[%s1017 + $0x190] sm:$0xff]
        %v1069 = vld [vmem:[%s1017 + $0x198] sm:$0xff]
        %v1070 = vld [vmem:[%s1017 + $0x1a0] sm:$0xff]
        %v1071 = vld [vmem:[%s1017 + $0x1a8] sm:$0xff]
        %v1072 = vld [vmem:[%s1017 + $0x1b0] sm:$0xff]
        %v1073 = vld [vmem:[%s1017 + $0x1b8] sm:$0xff]
        %v1074 = vld [vmem:[%s1017 + $0x1c0] sm:$0xff]
        %v1075 = vld [vmem:[%s1017 + $0x1c8] sm:$0xff]
        %v1076 = vld [vmem:[%s1017 + $0x1d0] sm:$0xff]
        %v1077 = vld [vmem:[%s1017 + $0x1d8] sm:$0xff]
        %v1078 = vld [vmem:[%s1017 + $0x1e0] sm:$0xff]
        %v1079 = vld [vmem:[%s1017 + $0x1e8] sm:$0xff]
        %v1080 = vld [vmem:[%s1017 + $0x1f0] sm:$0xff]
        %v1081 = vld [vmem:[%s1017 + $0x1f8] sm:$0xff]
        %vm1082 = vsmask.f32 7424
        %v1084 = vshrl.u32 %v945, 16
        %v1086 = vshll.u32 %v945, 16
        %v1088 = vrot.slane %v1086, 1
        %v1089 = vor.u32 %v1084, %v1088
        %v1091 = vshll.u32 %v906, 16
        %v1093 = vrot.slane %v1091, 1
        %v1094 = vsel %vm1082, %v1089, %v1093
        %v1096 = vshrl.u32 %v946, 16
        %v1098 = vshll.u32 %v946, 16
        %v1100 = vrot.slane %v1098, 1
        %v1101 = vor.u32 %v1096, %v1100
        %v1103 = vshll.u32 %v914, 16
        %v1105 = vrot.slane %v1103, 1
        %v1106 = vsel %vm1082, %v1101, %v1105
        %v1108 = vshrl.u32 %v947, 16
        %v1110 = vshll.u32 %v947, 16
        %v1112 = vrot.slane %v1110, 1
        %v1113 = vor.u32 %v1108, %v1112
        %v1115 = vshll.u32 %v922, 16
        %v1117 = vrot.slane %v1115, 1
        %v1118 = vsel %vm1082, %v1113, %v1117
        %v1120 = vshrl.u32 %v948, 16
        %v1122 = vshll.u32 %v948, 16
        %v1124 = vrot.slane %v1122, 1
        %v1125 = vor.u32 %v1120, %v1124
        %v1127 = vshll.u32 %v930, 16
        %v1129 = vrot.slane %v1127, 1
        %v1130 = vsel %vm1082, %v1125, %v1129
        %v1131 = vshrl.u32 %v906, 16
        %v1133 = vor.u32 %v1131, %v1093
        %v1135 = vshll.u32 %v949, 16
        %v1137 = vrot.slane %v1135, 1
        %v1138 = vsel %vm1082, %v1133, %v1137
        %v1139 = vshrl.u32 %v914, 16
        %v1141 = vor.u32 %v1139, %v1105
        %v1143 = vshll.u32 %v950, 16
        %v1145 = vrot.slane %v1143, 1
        %v1146 = vsel %vm1082, %v1141, %v1145
        %v1147 = vshrl.u32 %v922, 16
        %v1149 = vor.u32 %v1147, %v1117
        %v1151 = vshll.u32 %v951, 16
        %v1153 = vrot.slane %v1151, 1
        %v1154 = vsel %vm1082, %v1149, %v1153
        %v1155 = vshrl.u32 %v930, 16
        %v1157 = vor.u32 %v1155, %v1129
        %v1159 = vshll.u32 %v952, 16
        %v1161 = vrot.slane %v1159, 1
        %v1162 = vsel %vm1082, %v1157, %v1161
        %v1235 = vunpack.c.l.b16 %v1018
        %v1236 = vunpack.c.h.b16 %v1018
        %v1237 = vunpack.c.l.b16 %v1019
        %v1238 = vunpack.c.h.b16 %v1019
        %v1239 = vunpack.c.l.b16 %v1020
        %v1240 = vunpack.c.h.b16 %v1020
        %v1241 = vunpack.c.l.b16 %v1021
        %v1242 = vunpack.c.h.b16 %v1021
        %v1243 = vunpack.c.l.b16 %v1022
        %v1244 = vunpack.c.h.b16 %v1022
        %v1245 = vunpack.c.l.b16 %v1023
        %v1246 = vunpack.c.h.b16 %v1023
        %v1247 = vunpack.c.l.b16 %v1024
        %v1248 = vunpack.c.h.b16 %v1024
        %v1249 = vunpack.c.l.b16 %v1025
        %v1250 = vunpack.c.h.b16 %v1025
        %v1251 = vunpack.c.l.b16 %v1026
        %v1252 = vunpack.c.h.b16 %v1026
        %v1253 = vunpack.c.l.b16 %v1027
        %v1254 = vunpack.c.h.b16 %v1027
        %v1255 = vunpack.c.l.b16 %v1028
        %v1256 = vunpack.c.h.b16 %v1028
        %v1257 = vunpack.c.l.b16 %v1029
        %v1258 = vunpack.c.h.b16 %v1029
        %v1259 = vunpack.c.l.b16 %v1030
        %v1260 = vunpack.c.h.b16 %v1030
        %v1261 = vunpack.c.l.b16 %v1031
        %v1262 = vunpack.c.h.b16 %v1031
        %v1263 = vunpack.c.l.b16 %v1032
        %v1264 = vunpack.c.h.b16 %v1032
        %v1265 = vunpack.c.l.b16 %v1033
        %v1266 = vunpack.c.h.b16 %v1033
        %v1267 = vunpack.c.l.b16 %v1034
        %v1268 = vunpack.c.h.b16 %v1034
        %v1269 = vunpack.c.l.b16 %v1035
        %v1270 = vunpack.c.h.b16 %v1035
        %v1271 = vunpack.c.l.b16 %v1036
        %v1272 = vunpack.c.h.b16 %v1036
        %v1273 = vunpack.c.l.b16 %v1037
        %v1274 = vunpack.c.h.b16 %v1037
        %v1275 = vunpack.c.l.b16 %v1038
        %v1276 = vunpack.c.h.b16 %v1038
        %v1277 = vunpack.c.l.b16 %v1039
        %v1278 = vunpack.c.h.b16 %v1039
        %v1279 = vunpack.c.l.b16 %v1040
        %v1280 = vunpack.c.h.b16 %v1040
        %v1281 = vunpack.c.l.b16 %v1041
        %v1282 = vunpack.c.h.b16 %v1041
        %v1283 = vunpack.c.l.b16 %v1042
        %v1284 = vunpack.c.h.b16 %v1042
        %v1285 = vunpack.c.l.b16 %v1043
        %v1286 = vunpack.c.h.b16 %v1043
        %v1287 = vunpack.c.l.b16 %v1044
        %v1288 = vunpack.c.h.b16 %v1044
        %v1289 = vunpack.c.l.b16 %v1045
        %v1290 = vunpack.c.h.b16 %v1045
        %v1291 = vunpack.c.l.b16 %v1046
        %v1292 = vunpack.c.h.b16 %v1046
        %v1293 = vunpack.c.l.b16 %v1047
        %v1294 = vunpack.c.h.b16 %v1047
        %v1295 = vunpack.c.l.b16 %v1048
        %v1296 = vunpack.c.h.b16 %v1048
        %v1297 = vunpack.c.l.b16 %v1049
        %v1298 = vunpack.c.h.b16 %v1049
        %v1299 = vunpack.c.l.b16 %v1050
        %v1300 = vunpack.c.h.b16 %v1050
        %v1301 = vunpack.c.l.b16 %v1051
        %v1302 = vunpack.c.h.b16 %v1051
        %v1303 = vunpack.c.l.b16 %v1052
        %v1304 = vunpack.c.h.b16 %v1052
        %v1305 = vunpack.c.l.b16 %v1053
        %v1306 = vunpack.c.h.b16 %v1053
        %v1307 = vunpack.c.l.b16 %v1054
        %v1308 = vunpack.c.h.b16 %v1054
        %v1309 = vunpack.c.l.b16 %v1055
        %v1310 = vunpack.c.h.b16 %v1055
        %v1311 = vunpack.c.l.b16 %v1056
        %v1312 = vunpack.c.h.b16 %v1056
        %v1313 = vunpack.c.l.b16 %v1057
        %v1314 = vunpack.c.h.b16 %v1057
        %v1315 = vunpack.c.l.b16 %v1058
        %v1316 = vunpack.c.h.b16 %v1058
        %v1317 = vunpack.c.l.b16 %v1059
        %v1318 = vunpack.c.h.b16 %v1059
        %v1319 = vunpack.c.l.b16 %v1060
        %v1320 = vunpack.c.h.b16 %v1060
        %v1321 = vunpack.c.l.b16 %v1061
        %v1322 = vunpack.c.h.b16 %v1061
        %v1323 = vunpack.c.l.b16 %v1062
        %v1324 = vunpack.c.h.b16 %v1062
        %v1325 = vunpack.c.l.b16 %v1063
        %v1326 = vunpack.c.h.b16 %v1063
        %v1327 = vunpack.c.l.b16 %v1064
        %v1328 = vunpack.c.h.b16 %v1064
        %v1329 = vunpack.c.l.b16 %v1065
        %v1330 = vunpack.c.h.b16 %v1065
        %v1331 = vunpack.c.l.b16 %v1066
        %v1332 = vunpack.c.h.b16 %v1066
        %v1333 = vunpack.c.l.b16 %v1067
        %v1334 = vunpack.c.h.b16 %v1067
        %v1335 = vunpack.c.l.b16 %v1068
        %v1336 = vunpack.c.h.b16 %v1068
        %v1337 = vunpack.c.l.b16 %v1069
        %v1338 = vunpack.c.h.b16 %v1069
        %v1339 = vunpack.c.l.b16 %v1070
        %v1340 = vunpack.c.h.b16 %v1070
        %v1341 = vunpack.c.l.b16 %v1071
        %v1342 = vunpack.c.h.b16 %v1071
        %v1343 = vunpack.c.l.b16 %v1072
        %v1344 = vunpack.c.h.b16 %v1072
        %v1345 = vunpack.c.l.b16 %v1073
        %v1346 = vunpack.c.h.b16 %v1073
        %v1347 = vunpack.c.l.b16 %v1074
        %v1348 = vunpack.c.h.b16 %v1074
        %v1349 = vunpack.c.l.b16 %v1075
        %v1350 = vunpack.c.h.b16 %v1075
        %v1351 = vunpack.c.l.b16 %v1076
        %v1352 = vunpack.c.h.b16 %v1076
        %v1353 = vunpack.c.l.b16 %v1077
        %v1354 = vunpack.c.h.b16 %v1077
        %v1355 = vunpack.c.l.b16 %v1078
        %v1356 = vunpack.c.h.b16 %v1078
        %v1357 = vunpack.c.l.b16 %v1079
        %v1358 = vunpack.c.h.b16 %v1079
        %v1359 = vunpack.c.l.b16 %v1080
        %v1360 = vunpack.c.h.b16 %v1080
        %v1361 = vunpack.c.l.b16 %v1081
        %v1362 = vunpack.c.h.b16 %v1081
        %v1363 = vpack.c.b16 %v1237, %v1235
        %v1364 = vpack.c.b16 %v1238, %v1236
        %v1365 = vpack.c.b16 %v1241, %v1239
        %v1366 = vpack.c.b16 %v1242, %v1240
        %v1367 = vpack.c.b16 %v1245, %v1243
        %v1368 = vpack.c.b16 %v1246, %v1244
        %v1369 = vpack.c.b16 %v1249, %v1247
        %v1370 = vpack.c.b16 %v1250, %v1248
        %v1371 = vpack.c.b16 %v1253, %v1251
        %v1372 = vpack.c.b16 %v1254, %v1252
        %v1373 = vpack.c.b16 %v1257, %v1255
        %v1374 = vpack.c.b16 %v1258, %v1256
        %v1375 = vpack.c.b16 %v1261, %v1259
        %v1376 = vpack.c.b16 %v1262, %v1260
        %v1377 = vpack.c.b16 %v1265, %v1263
        %v1378 = vpack.c.b16 %v1266, %v1264
        %v1379 = vpack.c.b16 %v1269, %v1267
        %v1380 = vpack.c.b16 %v1270, %v1268
        %v1381 = vpack.c.b16 %v1273, %v1271
        %v1382 = vpack.c.b16 %v1274, %v1272
        %v1383 = vpack.c.b16 %v1277, %v1275
        %v1384 = vpack.c.b16 %v1278, %v1276
        %v1385 = vpack.c.b16 %v1281, %v1279
        %v1386 = vpack.c.b16 %v1282, %v1280
        %v1387 = vpack.c.b16 %v1285, %v1283
        %v1388 = vpack.c.b16 %v1286, %v1284
        %v1389 = vpack.c.b16 %v1289, %v1287
        %v1390 = vpack.c.b16 %v1290, %v1288
        %v1391 = vpack.c.b16 %v1293, %v1291
        %v1392 = vpack.c.b16 %v1294, %v1292
        %v1393 = vpack.c.b16 %v1297, %v1295
        %v1394 = vpack.c.b16 %v1298, %v1296
        %v1395 = vpack.c.b16 %v1301, %v1299
        %v1396 = vpack.c.b16 %v1302, %v1300
        %v1397 = vpack.c.b16 %v1305, %v1303
        %v1398 = vpack.c.b16 %v1306, %v1304
        %v1399 = vpack.c.b16 %v1309, %v1307
        %v1400 = vpack.c.b16 %v1310, %v1308
        %v1401 = vpack.c.b16 %v1313, %v1311
        %v1402 = vpack.c.b16 %v1314, %v1312
        %v1403 = vpack.c.b16 %v1317, %v1315
        %v1404 = vpack.c.b16 %v1318, %v1316
        %v1405 = vpack.c.b16 %v1321, %v1319
        %v1406 = vpack.c.b16 %v1322, %v1320
        %v1407 = vpack.c.b16 %v1325, %v1323
        %v1408 = vpack.c.b16 %v1326, %v1324
        %v1409 = vpack.c.b16 %v1329, %v1327
        %v1410 = vpack.c.b16 %v1330, %v1328
        %v1411 = vpack.c.b16 %v1333, %v1331
        %v1412 = vpack.c.b16 %v1334, %v1332
        %v1413 = vpack.c.b16 %v1337, %v1335
        %v1414 = vpack.c.b16 %v1338, %v1336
        %v1415 = vpack.c.b16 %v1341, %v1339
        %v1416 = vpack.c.b16 %v1342, %v1340
        %v1417 = vpack.c.b16 %v1345, %v1343
        %v1418 = vpack.c.b16 %v1346, %v1344
        %v1419 = vpack.c.b16 %v1349, %v1347
        %v1420 = vpack.c.b16 %v1350, %v1348
        %v1421 = vpack.c.b16 %v1353, %v1351
        %v1422 = vpack.c.b16 %v1354, %v1352
        %v1423 = vpack.c.b16 %v1357, %v1355
        %v1424 = vpack.c.b16 %v1358, %v1356
        %v1425 = vpack.c.b16 %v1361, %v1359
        %v1426 = vpack.c.b16 %v1362, %v1360
        %1491 = vmatpush.bf16.msra.mxu0 %v1377
        %1492 = vmatpush.bf16.msra.mxu0 %v1375
        %1493 = vmatpush.bf16.msra.mxu0 %v1373
        %1494 = vmatpush.bf16.msra.mxu0 %v1371
        %1495 = vmatpush.bf16.msra.mxu0 %v1369
        %1496 = vmatpush.bf16.msra.mxu0 %v1367
        %1497 = vmatpush.bf16.msra.mxu0 %v1365
        %1498 = vmatpush.bf16.msra.mxu0 %v1363
        %1499 = vmatmul.bf16.gmra.mxu0 %v1094
        %v1500 = vpop.f32.mrf.mxu0
        %v1501 = vadd.f32 0.0, %v1500
        %v1502 = vpop.f32.mrf.mxu0
        %v1503 = vadd.f32 0.0, %v1502
        %1504 = vmatmul.bf16.gmra.mxu0 %v1138
        %v1505 = vpop.f32.mrf.mxu0
        %v1506 = vadd.f32 0.0, %v1505
        %v1507 = vpop.f32.mrf.mxu0
        %v1508 = vadd.f32 0.0, %v1507
        %1509 = vdwg.mxu0
        %1510 = vmatpush.bf16.msra.mxu0 %v1393
        %1511 = vmatpush.bf16.msra.mxu0 %v1391
        %1512 = vmatpush.bf16.msra.mxu0 %v1389
        %1513 = vmatpush.bf16.msra.mxu0 %v1387
        %1514 = vmatpush.bf16.msra.mxu0 %v1385
        %1515 = vmatpush.bf16.msra.mxu0 %v1383
        %1516 = vmatpush.bf16.msra.mxu0 %v1381
        %1517 = vmatpush.bf16.msra.mxu0 %v1379
        %1518 = vmatmul.bf16.gmra.mxu0 %v1106
        %v1519 = vpop.f32.mrf.mxu0
        %v1520 = vadd.f32 %v1501, %v1519
        %v1521 = vpop.f32.mrf.mxu0
        %v1522 = vadd.f32 %v1503, %v1521
        %1523 = vmatmul.bf16.gmra.mxu0 %v1146
        %v1524 = vpop.f32.mrf.mxu0
        %v1525 = vadd.f32 %v1506, %v1524
        %v1526 = vpop.f32.mrf.mxu0
        %v1527 = vadd.f32 %v1508, %v1526
        %1528 = vdwg.mxu0
        %1529 = vmatpush.bf16.msra.mxu0 %v1409
        %1530 = vmatpush.bf16.msra.mxu0 %v1407
        %1531 = vmatpush.bf16.msra.mxu0 %v1405
        %1532 = vmatpush.bf16.msra.mxu0 %v1403
        %1533 = vmatpush.bf16.msra.mxu0 %v1401
        %1534 = vmatpush.bf16.msra.mxu0 %v1399
        %1535 = vmatpush.bf16.msra.mxu0 %v1397
        %1536 = vmatpush.bf16.msra.mxu0 %v1395
        %1537 = vmatmul.bf16.gmra.mxu0 %v1118
        %v1538 = vpop.f32.mrf.mxu0
        %v1539 = vadd.f32 %v1520, %v1538
        %v1540 = vpop.f32.mrf.mxu0
        %v1541 = vadd.f32 %v1522, %v1540
        %1542 = vmatmul.bf16.gmra.mxu0 %v1154
        %v1543 = vpop.f32.mrf.mxu0
        %v1544 = vadd.f32 %v1525, %v1543
        %v1545 = vpop.f32.mrf.mxu0
        %v1546 = vadd.f32 %v1527, %v1545
        %1547 = vdwg.mxu0
        %1548 = vmatpush.bf16.msra.mxu0 %v1425
        %1549 = vmatpush.bf16.msra.mxu0 %v1423
        %1550 = vmatpush.bf16.msra.mxu0 %v1421
        %1551 = vmatpush.bf16.msra.mxu0 %v1419
        %1552 = vmatpush.bf16.msra.mxu0 %v1417
        %1553 = vmatpush.bf16.msra.mxu0 %v1415
        %1554 = vmatpush.bf16.msra.mxu0 %v1413
        %1555 = vmatpush.bf16.msra.mxu0 %v1411
        %1556 = vmatmul.bf16.gmra.mxu0 %v1130
        %v1557 = vpop.f32.mrf.mxu0
        %v1558 = vadd.f32 %v1539, %v1557
        %v1559 = vpop.f32.mrf.mxu0
        %v1560 = vadd.f32 %v1541, %v1559
        %1561 = vmatmul.bf16.gmra.mxu0 %v1162
        %v1562 = vpop.f32.mrf.mxu0
        %v1563 = vadd.f32 %v1544, %v1562
        %v1564 = vpop.f32.mrf.mxu0
        %v1565 = vadd.f32 %v1546, %v1564
        %1566 = vdwg.mxu0
        %1567 = vmatpush.bf16.msra.mxu0 %v1378
        %1568 = vmatpush.bf16.msra.mxu0 %v1376
        %1569 = vmatpush.bf16.msra.mxu0 %v1374
        %1570 = vmatpush.bf16.msra.mxu0 %v1372
        %1571 = vmatpush.bf16.msra.mxu0 %v1370
        %1572 = vmatpush.bf16.msra.mxu0 %v1368
        %1573 = vmatpush.bf16.msra.mxu0 %v1366
        %1574 = vmatpush.bf16.msra.mxu0 %v1364
        %1575 = vmatmul.bf16.gmra.mxu0 %v1094
        %v1576 = vpop.f32.mrf.mxu0
        %v1577 = vadd.f32 0.0, %v1576
        %v1578 = vpop.f32.mrf.mxu0
        %v1579 = vadd.f32 0.0, %v1578
        %1580 = vmatmul.bf16.gmra.mxu0 %v1138
        %v1581 = vpop.f32.mrf.mxu0
        %v1582 = vadd.f32 0.0, %v1581
        %v1583 = vpop.f32.mrf.mxu0
        %v1584 = vadd.f32 0.0, %v1583
        %1585 = vdwg.mxu0
        %1586 = vmatpush.bf16.msra.mxu0 %v1394
        %1587 = vmatpush.bf16.msra.mxu0 %v1392
        %1588 = vmatpush.bf16.msra.mxu0 %v1390
        %1589 = vmatpush.bf16.msra.mxu0 %v1388
        %1590 = vmatpush.bf16.msra.mxu0 %v1386
        %1591 = vmatpush.bf16.msra.mxu0 %v1384
        %1592 = vmatpush.bf16.msra.mxu0 %v1382
        %1593 = vmatpush.bf16.msra.mxu0 %v1380
        %1594 = vmatmul.bf16.gmra.mxu0 %v1106
        %v1595 = vpop.f32.mrf.mxu0
        %v1596 = vadd.f32 %v1577, %v1595
        %v1597 = vpop.f32.mrf.mxu0
        %v1598 = vadd.f32 %v1579, %v1597
        %1599 = vmatmul.bf16.gmra.mxu0 %v1146
        %v1600 = vpop.f32.mrf.mxu0
        %v1601 = vadd.f32 %v1582, %v1600
        %v1602 = vpop.f32.mrf.mxu0
        %v1603 = vadd.f32 %v1584, %v1602
        %1604 = vdwg.mxu0
        %1605 = vmatpush.bf16.msra.mxu0 %v1410
        %1606 = vmatpush.bf16.msra.mxu0 %v1408
        %1607 = vmatpush.bf16.msra.mxu0 %v1406
        %1608 = vmatpush.bf16.msra.mxu0 %v1404
        %1609 = vmatpush.bf16.msra.mxu0 %v1402
        %1610 = vmatpush.bf16.msra.mxu0 %v1400
        %1611 = vmatpush.bf16.msra.mxu0 %v1398
        %1612 = vmatpush.bf16.msra.mxu0 %v1396
        %1613 = vmatmul.bf16.gmra.mxu0 %v1118
        %v1614 = vpop.f32.mrf.mxu0
        %v1615 = vadd.f32 %v1596, %v1614
        %v1616 = vpop.f32.mrf.mxu0
        %v1617 = vadd.f32 %v1598, %v1616
        %1618 = vmatmul.bf16.gmra.mxu0 %v1154
        %v1619 = vpop.f32.mrf.mxu0
        %v1620 = vadd.f32 %v1601, %v1619
        %v1621 = vpop.f32.mrf.mxu0
        %v1622 = vadd.f32 %v1603, %v1621
        %1623 = vdwg.mxu0
        %1624 = vmatpush.bf16.msra.mxu0 %v1426
        %1625 = vmatpush.bf16.msra.mxu0 %v1424
        %1626 = vmatpush.bf16.msra.mxu0 %v1422
        %1627 = vmatpush.bf16.msra.mxu0 %v1420
        %1628 = vmatpush.bf16.msra.mxu0 %v1418
        %1629 = vmatpush.bf16.msra.mxu0 %v1416
        %1630 = vmatpush.bf16.msra.mxu0 %v1414
        %1631 = vmatpush.bf16.msra.mxu0 %v1412
        %1632 = vmatmul.bf16.gmra.mxu0 %v1130
        %v1633 = vpop.f32.mrf.mxu0
        %v1634 = vadd.f32 %v1615, %v1633
        %v1635 = vpop.f32.mrf.mxu0
        %v1636 = vadd.f32 %v1617, %v1635
        %1637 = vmatmul.bf16.gmra.mxu0 %v1162
        %v1638 = vpop.f32.mrf.mxu0
        %v1639 = vadd.f32 %v1620, %v1638
        %v1640 = vpop.f32.mrf.mxu0
        %v1641 = vadd.f32 %v1622, %v1640
        %1642 = vdwg.mxu0
        %v1707 = vunpack.c.l.b16 %v953
        %v1708 = vunpack.c.h.b16 %v953
        %v1709 = vunpack.c.l.b16 %v954
        %v1710 = vunpack.c.h.b16 %v954
        %v1711 = vunpack.c.l.b16 %v955
        %v1712 = vunpack.c.h.b16 %v955
        %v1713 = vunpack.c.l.b16 %v956
        %v1714 = vunpack.c.h.b16 %v956
        %v1715 = vunpack.c.l.b16 %v957
        %v1716 = vunpack.c.h.b16 %v957
        %v1717 = vunpack.c.l.b16 %v958
        %v1718 = vunpack.c.h.b16 %v958
        %v1719 = vunpack.c.l.b16 %v959
        %v1720 = vunpack.c.h.b16 %v959
        %v1721 = vunpack.c.l.b16 %v960
        %v1722 = vunpack.c.h.b16 %v960
        %v1723 = vunpack.c.l.b16 %v961
        %v1724 = vunpack.c.h.b16 %v961
        %v1725 = vunpack.c.l.b16 %v962
        %v1726 = vunpack.c.h.b16 %v962
        %v1727 = vunpack.c.l.b16 %v963
        %v1728 = vunpack.c.h.b16 %v963
        %v1729 = vunpack.c.l.b16 %v964
        %v1730 = vunpack.c.h.b16 %v964
        %v1731 = vunpack.c.l.b16 %v965
        %v1732 = vunpack.c.h.b16 %v965
        %v1733 = vunpack.c.l.b16 %v966
        %v1734 = vunpack.c.h.b16 %v966
        %v1735 = vunpack.c.l.b16 %v967
        %v1736 = vunpack.c.h.b16 %v967
        %v1737 = vunpack.c.l.b16 %v968
        %v1738 = vunpack.c.h.b16 %v968
        %v1739 = vunpack.c.l.b16 %v969
        %v1740 = vunpack.c.h.b16 %v969
        %v1741 = vunpack.c.l.b16 %v970
        %v1742 = vunpack.c.h.b16 %v970
        %v1743 = vunpack.c.l.b16 %v971
        %v1744 = vunpack.c.h.b16 %v971
        %v1745 = vunpack.c.l.b16 %v972
        %v1746 = vunpack.c.h.b16 %v972
        %v1747 = vunpack.c.l.b16 %v973
        %v1748 = vunpack.c.h.b16 %v973
        %v1749 = vunpack.c.l.b16 %v974
        %v1750 = vunpack.c.h.b16 %v974
        %v1751 = vunpack.c.l.b16 %v975
        %v1752 = vunpack.c.h.b16 %v975
        %v1753 = vunpack.c.l.b16 %v976
        %v1754 = vunpack.c.h.b16 %v976
        %v1755 = vunpack.c.l.b16 %v977
        %v1756 = vunpack.c.h.b16 %v977
        %v1757 = vunpack.c.l.b16 %v978
        %v1758 = vunpack.c.h.b16 %v978
        %v1759 = vunpack.c.l.b16 %v979
        %v1760 = vunpack.c.h.b16 %v979
        %v1761 = vunpack.c.l.b16 %v980
        %v1762 = vunpack.c.h.b16 %v980
        %v1763 = vunpack.c.l.b16 %v981
        %v1764 = vunpack.c.h.b16 %v981
        %v1765 = vunpack.c.l.b16 %v982
        %v1766 = vunpack.c.h.b16 %v982
        %v1767 = vunpack.c.l.b16 %v983
        %v1768 = vunpack.c.h.b16 %v983
        %v1769 = vunpack.c.l.b16 %v984
        %v1770 = vunpack.c.h.b16 %v984
        %v1771 = vunpack.c.l.b16 %v985
        %v1772 = vunpack.c.h.b16 %v985
        %v1773 = vunpack.c.l.b16 %v986
        %v1774 = vunpack.c.h.b16 %v986
        %v1775 = vunpack.c.l.b16 %v987
        %v1776 = vunpack.c.h.b16 %v987
        %v1777 = vunpack.c.l.b16 %v988
        %v1778 = vunpack.c.h.b16 %v988
        %v1779 = vunpack.c.l.b16 %v989
        %v1780 = vunpack.c.h.b16 %v989
        %v1781 = vunpack.c.l.b16 %v990
        %v1782 = vunpack.c.h.b16 %v990
        %v1783 = vunpack.c.l.b16 %v991
        %v1784 = vunpack.c.h.b16 %v991
        %v1785 = vunpack.c.l.b16 %v992
        %v1786 = vunpack.c.h.b16 %v992
        %v1787 = vunpack.c.l.b16 %v993
        %v1788 = vunpack.c.h.b16 %v993
        %v1789 = vunpack.c.l.b16 %v994
        %v1790 = vunpack.c.h.b16 %v994
        %v1791 = vunpack.c.l.b16 %v995
        %v1792 = vunpack.c.h.b16 %v995
        %v1793 = vunpack.c.l.b16 %v996
        %v1794 = vunpack.c.h.b16 %v996
        %v1795 = vunpack.c.l.b16 %v997
        %v1796 = vunpack.c.h.b16 %v997
        %v1797 = vunpack.c.l.b16 %v998
        %v1798 = vunpack.c.h.b16 %v998
        %v1799 = vunpack.c.l.b16 %v999
        %v1800 = vunpack.c.h.b16 %v999
        %v1801 = vunpack.c.l.b16 %v1000
        %v1802 = vunpack.c.h.b16 %v1000
        %v1803 = vunpack.c.l.b16 %v1001
        %v1804 = vunpack.c.h.b16 %v1001
        %v1805 = vunpack.c.l.b16 %v1002
        %v1806 = vunpack.c.h.b16 %v1002
        %v1807 = vunpack.c.l.b16 %v1003
        %v1808 = vunpack.c.h.b16 %v1003
        %v1809 = vunpack.c.l.b16 %v1004
        %v1810 = vunpack.c.h.b16 %v1004
        %v1811 = vunpack.c.l.b16 %v1005
        %v1812 = vunpack.c.h.b16 %v1005
        %v1813 = vunpack.c.l.b16 %v1006
        %v1814 = vunpack.c.h.b16 %v1006
        %v1815 = vunpack.c.l.b16 %v1007
        %v1816 = vunpack.c.h.b16 %v1007
        %v1817 = vunpack.c.l.b16 %v1008
        %v1818 = vunpack.c.h.b16 %v1008
        %v1819 = vunpack.c.l.b16 %v1009
        %v1820 = vunpack.c.h.b16 %v1009
        %v1821 = vunpack.c.l.b16 %v1010
        %v1822 = vunpack.c.h.b16 %v1010
        %v1823 = vunpack.c.l.b16 %v1011
        %v1824 = vunpack.c.h.b16 %v1011
        %v1825 = vunpack.c.l.b16 %v1012
        %v1826 = vunpack.c.h.b16 %v1012
        %v1827 = vunpack.c.l.b16 %v1013
        %v1828 = vunpack.c.h.b16 %v1013
        %v1829 = vunpack.c.l.b16 %v1014
        %v1830 = vunpack.c.h.b16 %v1014
        %v1831 = vunpack.c.l.b16 %v1015
        %v1832 = vunpack.c.h.b16 %v1015
        %v1833 = vunpack.c.l.b16 %v1016
        %v1834 = vunpack.c.h.b16 %v1016
        %v1835 = vpack.c.b16 %v1709, %v1707
        %v1836 = vpack.c.b16 %v1710, %v1708
        %v1837 = vpack.c.b16 %v1713, %v1711
        %v1838 = vpack.c.b16 %v1714, %v1712
        %v1839 = vpack.c.b16 %v1717, %v1715
        %v1840 = vpack.c.b16 %v1718, %v1716
        %v1841 = vpack.c.b16 %v1721, %v1719
        %v1842 = vpack.c.b16 %v1722, %v1720
        %v1843 = vpack.c.b16 %v1725, %v1723
        %v1844 = vpack.c.b16 %v1726, %v1724
        %v1845 = vpack.c.b16 %v1729, %v1727
        %v1846 = vpack.c.b16 %v1730, %v1728
        %v1847 = vpack.c.b16 %v1733, %v1731
        %v1848 = vpack.c.b16 %v1734, %v1732
        %v1849 = vpack.c.b16 %v1737, %v1735
        %v1850 = vpack.c.b16 %v1738, %v1736
        %v1851 = vpack.c.b16 %v1741, %v1739
        %v1852 = vpack.c.b16 %v1742, %v1740
        %v1853 = vpack.c.b16 %v1745, %v1743
        %v1854 = vpack.c.b16 %v1746, %v1744
        %v1855 = vpack.c.b16 %v1749, %v1747
        %v1856 = vpack.c.b16 %v1750, %v1748
        %v1857 = vpack.c.b16 %v1753, %v1751
        %v1858 = vpack.c.b16 %v1754, %v1752
        %v1859 = vpack.c.b16 %v1757, %v1755
        %v1860 = vpack.c.b16 %v1758, %v1756
        %v1861 = vpack.c.b16 %v1761, %v1759
        %v1862 = vpack.c.b16 %v1762, %v1760
        %v1863 = vpack.c.b16 %v1765, %v1763
        %v1864 = vpack.c.b16 %v1766, %v1764
        %v1865 = vpack.c.b16 %v1769, %v1767
        %v1866 = vpack.c.b16 %v1770, %v1768
        %v1867 = vpack.c.b16 %v1773, %v1771
        %v1868 = vpack.c.b16 %v1774, %v1772
        %v1869 = vpack.c.b16 %v1777, %v1775
        %v1870 = vpack.c.b16 %v1778, %v1776
        %v1871 = vpack.c.b16 %v1781, %v1779
        %v1872 = vpack.c.b16 %v1782, %v1780
        %v1873 = vpack.c.b16 %v1785, %v1783
        %v1874 = vpack.c.b16 %v1786, %v1784
        %v1875 = vpack.c.b16 %v1789, %v1787
        %v1876 = vpack.c.b16 %v1790, %v1788
        %v1877 = vpack.c.b16 %v1793, %v1791
        %v1878 = vpack.c.b16 %v1794, %v1792
        %v1879 = vpack.c.b16 %v1797, %v1795
        %v1880 = vpack.c.b16 %v1798, %v1796
        %v1881 = vpack.c.b16 %v1801, %v1799
        %v1882 = vpack.c.b16 %v1802, %v1800
        %v1883 = vpack.c.b16 %v1805, %v1803
        %v1884 = vpack.c.b16 %v1806, %v1804
        %v1885 = vpack.c.b16 %v1809, %v1807
        %v1886 = vpack.c.b16 %v1810, %v1808
        %v1887 = vpack.c.b16 %v1813, %v1811
        %v1888 = vpack.c.b16 %v1814, %v1812
        %v1889 = vpack.c.b16 %v1817, %v1815
        %v1890 = vpack.c.b16 %v1818, %v1816
        %v1891 = vpack.c.b16 %v1821, %v1819
        %v1892 = vpack.c.b16 %v1822, %v1820
        %v1893 = vpack.c.b16 %v1825, %v1823
        %v1894 = vpack.c.b16 %v1826, %v1824
        %v1895 = vpack.c.b16 %v1829, %v1827
        %v1896 = vpack.c.b16 %v1830, %v1828
        %v1897 = vpack.c.b16 %v1833, %v1831
        %v1898 = vpack.c.b16 %v1834, %v1832
        %1963 = vmatpush.bf16.msra.mxu0 %v1849
        %1964 = vmatpush.bf16.msra.mxu0 %v1847
        %1965 = vmatpush.bf16.msra.mxu0 %v1845
        %1966 = vmatpush.bf16.msra.mxu0 %v1843
        %1967 = vmatpush.bf16.msra.mxu0 %v1841
        %1968 = vmatpush.bf16.msra.mxu0 %v1839
        %1969 = vmatpush.bf16.msra.mxu0 %v1837
        %1970 = vmatpush.bf16.msra.mxu0 %v1835
        %1971 = vmatmul.bf16.gmra.mxu0 %v945
        %v1972 = vpop.f32.mrf.mxu0
        %v1973 = vadd.f32 %v1558, %v1972
        %v1974 = vpop.f32.mrf.mxu0
        %v1975 = vadd.f32 %v1560, %v1974
        %1976 = vmatmul.bf16.gmra.mxu0 %v906
        %v1977 = vpop.f32.mrf.mxu0
        %v1978 = vadd.f32 %v1563, %v1977
        %v1979 = vpop.f32.mrf.mxu0
        %v1980 = vadd.f32 %v1565, %v1979
        %1981 = vdwg.mxu0
        %1982 = vmatpush.bf16.msra.mxu0 %v1865
        %1983 = vmatpush.bf16.msra.mxu0 %v1863
        %1984 = vmatpush.bf16.msra.mxu0 %v1861
        %1985 = vmatpush.bf16.msra.mxu0 %v1859
        %1986 = vmatpush.bf16.msra.mxu0 %v1857
        %1987 = vmatpush.bf16.msra.mxu0 %v1855
        %1988 = vmatpush.bf16.msra.mxu0 %v1853
        %1989 = vmatpush.bf16.msra.mxu0 %v1851
        %1990 = vmatmul.bf16.gmra.mxu0 %v946
        %v1991 = vpop.f32.mrf.mxu0
        %v1992 = vadd.f32 %v1973, %v1991
        %v1993 = vpop.f32.mrf.mxu0
        %v1994 = vadd.f32 %v1975, %v1993
        %1995 = vmatmul.bf16.gmra.mxu0 %v914
        %v1996 = vpop.f32.mrf.mxu0
        %v1997 = vadd.f32 %v1978, %v1996
        %v1998 = vpop.f32.mrf.mxu0
        %v1999 = vadd.f32 %v1980, %v1998
        %2000 = vdwg.mxu0
        %2001 = vmatpush.bf16.msra.mxu0 %v1881
        %2002 = vmatpush.bf16.msra.mxu0 %v1879
        %2003 = vmatpush.bf16.msra.mxu0 %v1877
        %2004 = vmatpush.bf16.msra.mxu0 %v1875
        %2005 = vmatpush.bf16.msra.mxu0 %v1873
        %2006 = vmatpush.bf16.msra.mxu0 %v1871
        %2007 = vmatpush.bf16.msra.mxu0 %v1869
        %2008 = vmatpush.bf16.msra.mxu0 %v1867
        %2009 = vmatmul.bf16.gmra.mxu0 %v947
        %v2010 = vpop.f32.mrf.mxu0
        %v2011 = vadd.f32 %v1992, %v2010
        %v2012 = vpop.f32.mrf.mxu0
        %v2013 = vadd.f32 %v1994, %v2012
        %2014 = vmatmul.bf16.gmra.mxu0 %v922
        %v2015 = vpop.f32.mrf.mxu0
        %v2016 = vadd.f32 %v1997, %v2015
        %v2017 = vpop.f32.mrf.mxu0
        %v2018 = vadd.f32 %v1999, %v2017
        %2019 = vdwg.mxu0
        %2020 = vmatpush.bf16.msra.mxu0 %v1897
        %2021 = vmatpush.bf16.msra.mxu0 %v1895
        %2022 = vmatpush.bf16.msra.mxu0 %v1893
        %2023 = vmatpush.bf16.msra.mxu0 %v1891
        %2024 = vmatpush.bf16.msra.mxu0 %v1889
        %2025 = vmatpush.bf16.msra.mxu0 %v1887
        %2026 = vmatpush.bf16.msra.mxu0 %v1885
        %2027 = vmatpush.bf16.msra.mxu0 %v1883
        %2028 = vmatmul.bf16.gmra.mxu0 %v948
        %v2029 = vpop.f32.mrf.mxu0
        %v2030 = vadd.f32 %v2011, %v2029
        %v2031 = vpop.f32.mrf.mxu0
        %v2032 = vadd.f32 %v2013, %v2031
        %2033 = vmatmul.bf16.gmra.mxu0 %v930
        %v2034 = vpop.f32.mrf.mxu0
        %v2035 = vadd.f32 %v2016, %v2034
        %v2036 = vpop.f32.mrf.mxu0
        %v2037 = vadd.f32 %v2018, %v2036
        %2038 = vdwg.mxu0
        %2039 = vmatpush.bf16.msra.mxu0 %v1850
        %2040 = vmatpush.bf16.msra.mxu0 %v1848
        %2041 = vmatpush.bf16.msra.mxu0 %v1846
        %2042 = vmatpush.bf16.msra.mxu0 %v1844
        %2043 = vmatpush.bf16.msra.mxu0 %v1842
        %2044 = vmatpush.bf16.msra.mxu0 %v1840
        %2045 = vmatpush.bf16.msra.mxu0 %v1838
        %2046 = vmatpush.bf16.msra.mxu0 %v1836
        %2047 = vmatmul.bf16.gmra.mxu0 %v945
        %v2048 = vpop.f32.mrf.mxu0
        %v2049 = vadd.f32 %v1634, %v2048
        %v2050 = vpop.f32.mrf.mxu0
        %v2051 = vadd.f32 %v1636, %v2050
        %2052 = vmatmul.bf16.gmra.mxu0 %v906
        %v2053 = vpop.f32.mrf.mxu0
        %v2054 = vadd.f32 %v1639, %v2053
        %v2055 = vpop.f32.mrf.mxu0
        %v2056 = vadd.f32 %v1641, %v2055
        %2057 = vdwg.mxu0
        %2058 = vmatpush.bf16.msra.mxu0 %v1866
        %2059 = vmatpush.bf16.msra.mxu0 %v1864
        %2060 = vmatpush.bf16.msra.mxu0 %v1862
        %2061 = vmatpush.bf16.msra.mxu0 %v1860
        %2062 = vmatpush.bf16.msra.mxu0 %v1858
        %2063 = vmatpush.bf16.msra.mxu0 %v1856
        %2064 = vmatpush.bf16.msra.mxu0 %v1854
        %2065 = vmatpush.bf16.msra.mxu0 %v1852
        %2066 = vmatmul.bf16.gmra.mxu0 %v946
        %v2067 = vpop.f32.mrf.mxu0
        %v2068 = vadd.f32 %v2049, %v2067
        %v2069 = vpop.f32.mrf.mxu0
        %v2070 = vadd.f32 %v2051, %v2069
        %2071 = vmatmul.bf16.gmra.mxu0 %v914
        %v2072 = vpop.f32.mrf.mxu0
        %v2073 = vadd.f32 %v2054, %v2072
        %v2074 = vpop.f32.mrf.mxu0
        %v2075 = vadd.f32 %v2056, %v2074
        %2076 = vdwg.mxu0
        %2077 = vmatpush.bf16.msra.mxu0 %v1882
        %2078 = vmatpush.bf16.msra.mxu0 %v1880
        %2079 = vmatpush.bf16.msra.mxu0 %v1878
        %2080 = vmatpush.bf16.msra.mxu0 %v1876
        %2081 = vmatpush.bf16.msra.mxu0 %v1874
        %2082 = vmatpush.bf16.msra.mxu0 %v1872
        %2083 = vmatpush.bf16.msra.mxu0 %v1870
        %2084 = vmatpush.bf16.msra.mxu0 %v1868
        %2085 = vmatmul.bf16.gmra.mxu0 %v947
        %v2086 = vpop.f32.mrf.mxu0
        %v2087 = vadd.f32 %v2068, %v2086
        %v2088 = vpop.f32.mrf.mxu0
        %v2089 = vadd.f32 %v2070, %v2088
        %2090 = vmatmul.bf16.gmra.mxu0 %v922
        %v2091 = vpop.f32.mrf.mxu0
        %v2092 = vadd.f32 %v2073, %v2091
        %v2093 = vpop.f32.mrf.mxu0
        %v2094 = vadd.f32 %v2075, %v2093
        %2095 = vdwg.mxu0
        %2096 = vmatpush.bf16.msra.mxu0 %v1898
        %2097 = vmatpush.bf16.msra.mxu0 %v1896
        %2098 = vmatpush.bf16.msra.mxu0 %v1894
        %2099 = vmatpush.bf16.msra.mxu0 %v1892
        %2100 = vmatpush.bf16.msra.mxu0 %v1890
        %2101 = vmatpush.bf16.msra.mxu0 %v1888
        %2102 = vmatpush.bf16.msra.mxu0 %v1886
        %2103 = vmatpush.bf16.msra.mxu0 %v1884
        %2104 = vmatmul.bf16.gmra.mxu0 %v948
        %v2105 = vpop.f32.mrf.mxu0
        %v2106 = vadd.f32 %v2087, %v2105
        %v2107 = vpop.f32.mrf.mxu0
        %v2108 = vadd.f32 %v2089, %v2107
        %2109 = vmatmul.bf16.gmra.mxu0 %v930
        %v2110 = vpop.f32.mrf.mxu0
        %v2111 = vadd.f32 %v2092, %v2110
        %v2112 = vpop.f32.mrf.mxu0
        %v2113 = vadd.f32 %v2094, %v2112
        %2114 = vdwg.mxu0
        %s2115 = scalar_lea.vmem %s1, 1024
        %v2116 = vld [vmem:[%s2115] sm:$0xff]
        %v2117 = vld [vmem:[%s2115 + $0x8] sm:$0xff]
        %v2118 = vld [vmem:[%s2115 + $0x10] sm:$0xff]
        %v2119 = vld [vmem:[%s2115 + $0x18] sm:$0xff]
        %v2120 = vld [vmem:[%s2115 + $0x20] sm:$0xff]
        %v2121 = vld [vmem:[%s2115 + $0x28] sm:$0xff]
        %v2122 = vld [vmem:[%s2115 + $0x30] sm:$0xff]
        %v2123 = vld [vmem:[%s2115 + $0x38] sm:$0xff]
        %v2124 = vld [vmem:[%s2115 + $0x40] sm:$0xff]
        %v2125 = vld [vmem:[%s2115 + $0x48] sm:$0xff]
        %v2126 = vld [vmem:[%s2115 + $0x50] sm:$0xff]
        %v2127 = vld [vmem:[%s2115 + $0x58] sm:$0xff]
        %v2128 = vld [vmem:[%s2115 + $0x60] sm:$0xff]
        %v2129 = vld [vmem:[%s2115 + $0x68] sm:$0xff]
        %v2130 = vld [vmem:[%s2115 + $0x70] sm:$0xff]
        %v2131 = vld [vmem:[%s2115 + $0x78] sm:$0xff]
        %v2132 = vld [vmem:[%s2115 + $0x80] sm:$0xff]
        %v2133 = vld [vmem:[%s2115 + $0x88] sm:$0xff]
        %v2134 = vld [vmem:[%s2115 + $0x90] sm:$0xff]
        %v2135 = vld [vmem:[%s2115 + $0x98] sm:$0xff]
        %v2136 = vld [vmem:[%s2115 + $0xa0] sm:$0xff]
        %v2137 = vld [vmem:[%s2115 + $0xa8] sm:$0xff]
        %v2138 = vld [vmem:[%s2115 + $0xb0] sm:$0xff]
        %v2139 = vld [vmem:[%s2115 + $0xb8] sm:$0xff]
        %v2140 = vld [vmem:[%s2115 + $0xc0] sm:$0xff]
        %v2141 = vld [vmem:[%s2115 + $0xc8] sm:$0xff]
        %v2142 = vld [vmem:[%s2115 + $0xd0] sm:$0xff]
        %v2143 = vld [vmem:[%s2115 + $0xd8] sm:$0xff]
        %v2144 = vld [vmem:[%s2115 + $0xe0] sm:$0xff]
        %v2145 = vld [vmem:[%s2115 + $0xe8] sm:$0xff]
        %v2146 = vld [vmem:[%s2115 + $0xf0] sm:$0xff]
        %v2147 = vld [vmem:[%s2115 + $0xf8] sm:$0xff]
        %v2148 = vld [vmem:[%s2115 + $0x100] sm:$0xff]
        %v2149 = vld [vmem:[%s2115 + $0x108] sm:$0xff]
        %v2150 = vld [vmem:[%s2115 + $0x110] sm:$0xff]
        %v2151 = vld [vmem:[%s2115 + $0x118] sm:$0xff]
        %v2152 = vld [vmem:[%s2115 + $0x120] sm:$0xff]
        %v2153 = vld [vmem:[%s2115 + $0x128] sm:$0xff]
        %v2154 = vld [vmem:[%s2115 + $0x130] sm:$0xff]
        %v2155 = vld [vmem:[%s2115 + $0x138] sm:$0xff]
        %v2156 = vld [vmem:[%s2115 + $0x140] sm:$0xff]
        %v2157 = vld [vmem:[%s2115 + $0x148] sm:$0xff]
        %v2158 = vld [vmem:[%s2115 + $0x150] sm:$0xff]
        %v2159 = vld [vmem:[%s2115 + $0x158] sm:$0xff]
        %v2160 = vld [vmem:[%s2115 + $0x160] sm:$0xff]
        %v2161 = vld [vmem:[%s2115 + $0x168] sm:$0xff]
        %v2162 = vld [vmem:[%s2115 + $0x170] sm:$0xff]
        %v2163 = vld [vmem:[%s2115 + $0x178] sm:$0xff]
        %v2164 = vld [vmem:[%s2115 + $0x180] sm:$0xff]
        %v2165 = vld [vmem:[%s2115 + $0x188] sm:$0xff]
        %v2166 = vld [vmem:[%s2115 + $0x190] sm:$0xff]
        %v2167 = vld [vmem:[%s2115 + $0x198] sm:$0xff]
        %v2168 = vld [vmem:[%s2115 + $0x1a0] sm:$0xff]
        %v2169 = vld [vmem:[%s2115 + $0x1a8] sm:$0xff]
        %v2170 = vld [vmem:[%s2115 + $0x1b0] sm:$0xff]
        %v2171 = vld [vmem:[%s2115 + $0x1b8] sm:$0xff]
        %v2172 = vld [vmem:[%s2115 + $0x1c0] sm:$0xff]
        %v2173 = vld [vmem:[%s2115 + $0x1c8] sm:$0xff]
        %v2174 = vld [vmem:[%s2115 + $0x1d0] sm:$0xff]
        %v2175 = vld [vmem:[%s2115 + $0x1d8] sm:$0xff]
        %v2176 = vld [vmem:[%s2115 + $0x1e0] sm:$0xff]
        %v2177 = vld [vmem:[%s2115 + $0x1e8] sm:$0xff]
        %v2178 = vld [vmem:[%s2115 + $0x1f0] sm:$0xff]
        %v2179 = vld [vmem:[%s2115 + $0x1f8] sm:$0xff]
        %vm2188 = vcmask 1046528
        %v2189 = vrot.slane %v945, 1
        %v2190 = vrot.slane %v906, 1
        %v2191 = vsel %vm2188, %v2189, %v2190
        %v2192 = vrot.slane %v946, 1
        %v2193 = vrot.slane %v914, 1
        %v2194 = vsel %vm2188, %v2192, %v2193
        %v2195 = vrot.slane %v947, 1
        %v2196 = vrot.slane %v922, 1
        %v2197 = vsel %vm2188, %v2195, %v2196
        %v2198 = vrot.slane %v948, 1
        %v2199 = vrot.slane %v930, 1
        %v2200 = vsel %vm2188, %v2198, %v2199
        %v2201 = vrot.slane %v949, 1
        %v2202 = vsel %vm2188, %v2190, %v2201
        %v2203 = vrot.slane %v950, 1
        %v2204 = vsel %vm2188, %v2193, %v2203
        %v2205 = vrot.slane %v951, 1
        %v2206 = vsel %vm2188, %v2196, %v2205
        %v2207 = vrot.slane %v952, 1
        %v2208 = vsel %vm2188, %v2199, %v2207
        %v2281 = vunpack.c.l.b16 %v2116
        %v2282 = vunpack.c.h.b16 %v2116
        %v2283 = vunpack.c.l.b16 %v2117
        %v2284 = vunpack.c.h.b16 %v2117
        %v2285 = vunpack.c.l.b16 %v2118
        %v2286 = vunpack.c.h.b16 %v2118
        %v2287 = vunpack.c.l.b16 %v2119
        %v2288 = vunpack.c.h.b16 %v2119
        %v2289 = vunpack.c.l.b16 %v2120
        %v2290 = vunpack.c.h.b16 %v2120
        %v2291 = vunpack.c.l.b16 %v2121
        %v2292 = vunpack.c.h.b16 %v2121
        %v2293 = vunpack.c.l.b16 %v2122
        %v2294 = vunpack.c.h.b16 %v2122
        %v2295 = vunpack.c.l.b16 %v2123
        %v2296 = vunpack.c.h.b16 %v2123
        %v2297 = vunpack.c.l.b16 %v2124
        %v2298 = vunpack.c.h.b16 %v2124
        %v2299 = vunpack.c.l.b16 %v2125
        %v2300 = vunpack.c.h.b16 %v2125
        %v2301 = vunpack.c.l.b16 %v2126
        %v2302 = vunpack.c.h.b16 %v2126
        %v2303 = vunpack.c.l.b16 %v2127
        %v2304 = vunpack.c.h.b16 %v2127
        %v2305 = vunpack.c.l.b16 %v2128
        %v2306 = vunpack.c.h.b16 %v2128
        %v2307 = vunpack.c.l.b16 %v2129
        %v2308 = vunpack.c.h.b16 %v2129
        %v2309 = vunpack.c.l.b16 %v2130
        %v2310 = vunpack.c.h.b16 %v2130
        %v2311 = vunpack.c.l.b16 %v2131
        %v2312 = vunpack.c.h.b16 %v2131
        %v2313 = vunpack.c.l.b16 %v2132
        %v2314 = vunpack.c.h.b16 %v2132
        %v2315 = vunpack.c.l.b16 %v2133
        %v2316 = vunpack.c.h.b16 %v2133
        %v2317 = vunpack.c.l.b16 %v2134
        %v2318 = vunpack.c.h.b16 %v2134
        %v2319 = vunpack.c.l.b16 %v2135
        %v2320 = vunpack.c.h.b16 %v2135
        %v2321 = vunpack.c.l.b16 %v2136
        %v2322 = vunpack.c.h.b16 %v2136
        %v2323 = vunpack.c.l.b16 %v2137
        %v2324 = vunpack.c.h.b16 %v2137
        %v2325 = vunpack.c.l.b16 %v2138
        %v2326 = vunpack.c.h.b16 %v2138
        %v2327 = vunpack.c.l.b16 %v2139
        %v2328 = vunpack.c.h.b16 %v2139
        %v2329 = vunpack.c.l.b16 %v2140
        %v2330 = vunpack.c.h.b16 %v2140
        %v2331 = vunpack.c.l.b16 %v2141
        %v2332 = vunpack.c.h.b16 %v2141
        %v2333 = vunpack.c.l.b16 %v2142
        %v2334 = vunpack.c.h.b16 %v2142
        %v2335 = vunpack.c.l.b16 %v2143
        %v2336 = vunpack.c.h.b16 %v2143
        %v2337 = vunpack.c.l.b16 %v2144
        %v2338 = vunpack.c.h.b16 %v2144
        %v2339 = vunpack.c.l.b16 %v2145
        %v2340 = vunpack.c.h.b16 %v2145
        %v2341 = vunpack.c.l.b16 %v2146
        %v2342 = vunpack.c.h.b16 %v2146
        %v2343 = vunpack.c.l.b16 %v2147
        %v2344 = vunpack.c.h.b16 %v2147
        %v2345 = vunpack.c.l.b16 %v2148
        %v2346 = vunpack.c.h.b16 %v2148
        %v2347 = vunpack.c.l.b16 %v2149
        %v2348 = vunpack.c.h.b16 %v2149
        %v2349 = vunpack.c.l.b16 %v2150
        %v2350 = vunpack.c.h.b16 %v2150
        %v2351 = vunpack.c.l.b16 %v2151
        %v2352 = vunpack.c.h.b16 %v2151
        %v2353 = vunpack.c.l.b16 %v2152
        %v2354 = vunpack.c.h.b16 %v2152
        %v2355 = vunpack.c.l.b16 %v2153
        %v2356 = vunpack.c.h.b16 %v2153
        %v2357 = vunpack.c.l.b16 %v2154
        %v2358 = vunpack.c.h.b16 %v2154
        %v2359 = vunpack.c.l.b16 %v2155
        %v2360 = vunpack.c.h.b16 %v2155
        %v2361 = vunpack.c.l.b16 %v2156
        %v2362 = vunpack.c.h.b16 %v2156
        %v2363 = vunpack.c.l.b16 %v2157
        %v2364 = vunpack.c.h.b16 %v2157
        %v2365 = vunpack.c.l.b16 %v2158
        %v2366 = vunpack.c.h.b16 %v2158
        %v2367 = vunpack.c.l.b16 %v2159
        %v2368 = vunpack.c.h.b16 %v2159
        %v2369 = vunpack.c.l.b16 %v2160
        %v2370 = vunpack.c.h.b16 %v2160
        %v2371 = vunpack.c.l.b16 %v2161
        %v2372 = vunpack.c.h.b16 %v2161
        %v2373 = vunpack.c.l.b16 %v2162
        %v2374 = vunpack.c.h.b16 %v2162
        %v2375 = vunpack.c.l.b16 %v2163
        %v2376 = vunpack.c.h.b16 %v2163
        %v2377 = vunpack.c.l.b16 %v2164
        %v2378 = vunpack.c.h.b16 %v2164
        %v2379 = vunpack.c.l.b16 %v2165
        %v2380 = vunpack.c.h.b16 %v2165
        %v2381 = vunpack.c.l.b16 %v2166
        %v2382 = vunpack.c.h.b16 %v2166
        %v2383 = vunpack.c.l.b16 %v2167
        %v2384 = vunpack.c.h.b16 %v2167
        %v2385 = vunpack.c.l.b16 %v2168
        %v2386 = vunpack.c.h.b16 %v2168
        %v2387 = vunpack.c.l.b16 %v2169
        %v2388 = vunpack.c.h.b16 %v2169
        %v2389 = vunpack.c.l.b16 %v2170
        %v2390 = vunpack.c.h.b16 %v2170
        %v2391 = vunpack.c.l.b16 %v2171
        %v2392 = vunpack.c.h.b16 %v2171
        %v2393 = vunpack.c.l.b16 %v2172
        %v2394 = vunpack.c.h.b16 %v2172
        %v2395 = vunpack.c.l.b16 %v2173
        %v2396 = vunpack.c.h.b16 %v2173
        %v2397 = vunpack.c.l.b16 %v2174
        %v2398 = vunpack.c.h.b16 %v2174
        %v2399 = vunpack.c.l.b16 %v2175
        %v2400 = vunpack.c.h.b16 %v2175
        %v2401 = vunpack.c.l.b16 %v2176
        %v2402 = vunpack.c.h.b16 %v2176
        %v2403 = vunpack.c.l.b16 %v2177
        %v2404 = vunpack.c.h.b16 %v2177
        %v2405 = vunpack.c.l.b16 %v2178
        %v2406 = vunpack.c.h.b16 %v2178
        %v2407 = vunpack.c.l.b16 %v2179
        %v2408 = vunpack.c.h.b16 %v2179
        %v2409 = vpack.c.b16 %v2283, %v2281
        %v2410 = vpack.c.b16 %v2284, %v2282
        %v2411 = vpack.c.b16 %v2287, %v2285
        %v2412 = vpack.c.b16 %v2288, %v2286
        %v2413 = vpack.c.b16 %v2291, %v2289
        %v2414 = vpack.c.b16 %v2292, %v2290
        %v2415 = vpack.c.b16 %v2295, %v2293
        %v2416 = vpack.c.b16 %v2296, %v2294
        %v2417 = vpack.c.b16 %v2299, %v2297
        %v2418 = vpack.c.b16 %v2300, %v2298
        %v2419 = vpack.c.b16 %v2303, %v2301
        %v2420 = vpack.c.b16 %v2304, %v2302
        %v2421 = vpack.c.b16 %v2307, %v2305
        %v2422 = vpack.c.b16 %v2308, %v2306
        %v2423 = vpack.c.b16 %v2311, %v2309
        %v2424 = vpack.c.b16 %v2312, %v2310
        %v2425 = vpack.c.b16 %v2315, %v2313
        %v2426 = vpack.c.b16 %v2316, %v2314
        %v2427 = vpack.c.b16 %v2319, %v2317
        %v2428 = vpack.c.b16 %v2320, %v2318
        %v2429 = vpack.c.b16 %v2323, %v2321
        %v2430 = vpack.c.b16 %v2324, %v2322
        %v2431 = vpack.c.b16 %v2327, %v2325
        %v2432 = vpack.c.b16 %v2328, %v2326
        %v2433 = vpack.c.b16 %v2331, %v2329
        %v2434 = vpack.c.b16 %v2332, %v2330
        %v2435 = vpack.c.b16 %v2335, %v2333
        %v2436 = vpack.c.b16 %v2336, %v2334
        %v2437 = vpack.c.b16 %v2339, %v2337
        %v2438 = vpack.c.b16 %v2340, %v2338
        %v2439 = vpack.c.b16 %v2343, %v2341
        %v2440 = vpack.c.b16 %v2344, %v2342
        %v2441 = vpack.c.b16 %v2347, %v2345
        %v2442 = vpack.c.b16 %v2348, %v2346
        %v2443 = vpack.c.b16 %v2351, %v2349
        %v2444 = vpack.c.b16 %v2352, %v2350
        %v2445 = vpack.c.b16 %v2355, %v2353
        %v2446 = vpack.c.b16 %v2356, %v2354
        %v2447 = vpack.c.b16 %v2359, %v2357
        %v2448 = vpack.c.b16 %v2360, %v2358
        %v2449 = vpack.c.b16 %v2363, %v2361
        %v2450 = vpack.c.b16 %v2364, %v2362
        %v2451 = vpack.c.b16 %v2367, %v2365
        %v2452 = vpack.c.b16 %v2368, %v2366
        %v2453 = vpack.c.b16 %v2371, %v2369
        %v2454 = vpack.c.b16 %v2372, %v2370
        %v2455 = vpack.c.b16 %v2375, %v2373
        %v2456 = vpack.c.b16 %v2376, %v2374
        %v2457 = vpack.c.b16 %v2379, %v2377
        %v2458 = vpack.c.b16 %v2380, %v2378
        %v2459 = vpack.c.b16 %v2383, %v2381
        %v2460 = vpack.c.b16 %v2384, %v2382
        %v2461 = vpack.c.b16 %v2387, %v2385
        %v2462 = vpack.c.b16 %v2388, %v2386
        %v2463 = vpack.c.b16 %v2391, %v2389
        %v2464 = vpack.c.b16 %v2392, %v2390
        %v2465 = vpack.c.b16 %v2395, %v2393
        %v2466 = vpack.c.b16 %v2396, %v2394
        %v2467 = vpack.c.b16 %v2399, %v2397
        %v2468 = vpack.c.b16 %v2400, %v2398
        %v2469 = vpack.c.b16 %v2403, %v2401
        %v2470 = vpack.c.b16 %v2404, %v2402
        %v2471 = vpack.c.b16 %v2407, %v2405
        %v2472 = vpack.c.b16 %v2408, %v2406
        %2537 = vmatpush.bf16.msra.mxu0 %v2423
        %2538 = vmatpush.bf16.msra.mxu0 %v2421
        %2539 = vmatpush.bf16.msra.mxu0 %v2419
        %2540 = vmatpush.bf16.msra.mxu0 %v2417
        %2541 = vmatpush.bf16.msra.mxu0 %v2415
        %2542 = vmatpush.bf16.msra.mxu0 %v2413
        %2543 = vmatpush.bf16.msra.mxu0 %v2411
        %2544 = vmatpush.bf16.msra.mxu0 %v2409
        %2545 = vmatmul.bf16.gmra.mxu0 %v2191
        %v2546 = vpop.f32.mrf.mxu0
        %v2547 = vadd.f32 0.0, %v2546
        %v2548 = vpop.f32.mrf.mxu0
        %v2549 = vadd.f32 0.0, %v2548
        %2550 = vmatmul.bf16.gmra.mxu0 %v2202
        %v2551 = vpop.f32.mrf.mxu0
        %v2552 = vadd.f32 0.0, %v2551
        %v2553 = vpop.f32.mrf.mxu0
        %v2554 = vadd.f32 0.0, %v2553
        %2555 = vdwg.mxu0
        %2556 = vmatpush.bf16.msra.mxu0 %v2439
        %2557 = vmatpush.bf16.msra.mxu0 %v2437
        %2558 = vmatpush.bf16.msra.mxu0 %v2435
        %2559 = vmatpush.bf16.msra.mxu0 %v2433
        %2560 = vmatpush.bf16.msra.mxu0 %v2431
        %2561 = vmatpush.bf16.msra.mxu0 %v2429
        %2562 = vmatpush.bf16.msra.mxu0 %v2427
        %2563 = vmatpush.bf16.msra.mxu0 %v2425
        %2564 = vmatmul.bf16.gmra.mxu0 %v2194
        %v2565 = vpop.f32.mrf.mxu0
        %v2566 = vadd.f32 %v2547, %v2565
        %v2567 = vpop.f32.mrf.mxu0
        %v2568 = vadd.f32 %v2549, %v2567
        %2569 = vmatmul.bf16.gmra.mxu0 %v2204
        %v2570 = vpop.f32.mrf.mxu0
        %v2571 = vadd.f32 %v2552, %v2570
        %v2572 = vpop.f32.mrf.mxu0
        %v2573 = vadd.f32 %v2554, %v2572
        %2574 = vdwg.mxu0
        %2575 = vmatpush.bf16.msra.mxu0 %v2455
        %2576 = vmatpush.bf16.msra.mxu0 %v2453
        %2577 = vmatpush.bf16.msra.mxu0 %v2451
        %2578 = vmatpush.bf16.msra.mxu0 %v2449
        %2579 = vmatpush.bf16.msra.mxu0 %v2447
        %2580 = vmatpush.bf16.msra.mxu0 %v2445
        %2581 = vmatpush.bf16.msra.mxu0 %v2443
        %2582 = vmatpush.bf16.msra.mxu0 %v2441
        %2583 = vmatmul.bf16.gmra.mxu0 %v2197
        %v2584 = vpop.f32.mrf.mxu0
        %v2585 = vadd.f32 %v2566, %v2584
        %v2586 = vpop.f32.mrf.mxu0
        %v2587 = vadd.f32 %v2568, %v2586
        %2588 = vmatmul.bf16.gmra.mxu0 %v2206
        %v2589 = vpop.f32.mrf.mxu0
        %v2590 = vadd.f32 %v2571, %v2589
        %v2591 = vpop.f32.mrf.mxu0
        %v2592 = vadd.f32 %v2573, %v2591
        %2593 = vdwg.mxu0
        %2594 = vmatpush.bf16.msra.mxu0 %v2471
        %2595 = vmatpush.bf16.msra.mxu0 %v2469
        %2596 = vmatpush.bf16.msra.mxu0 %v2467
        %2597 = vmatpush.bf16.msra.mxu0 %v2465
        %2598 = vmatpush.bf16.msra.mxu0 %v2463
        %2599 = vmatpush.bf16.msra.mxu0 %v2461
        %2600 = vmatpush.bf16.msra.mxu0 %v2459
        %2601 = vmatpush.bf16.msra.mxu0 %v2457
        %2602 = vmatmul.bf16.gmra.mxu0 %v2200
        %v2603 = vpop.f32.mrf.mxu0
        %v2604 = vadd.f32 %v2585, %v2603
        %v2605 = vpop.f32.mrf.mxu0
        %v2606 = vadd.f32 %v2587, %v2605
        %2607 = vmatmul.bf16.gmra.mxu0 %v2208
        %v2608 = vpop.f32.mrf.mxu0
        %v2609 = vadd.f32 %v2590, %v2608
        %v2610 = vpop.f32.mrf.mxu0
        %v2611 = vadd.f32 %v2592, %v2610
        %2612 = vdwg.mxu0
        %2613 = vmatpush.bf16.msra.mxu0 %v2424
        %2614 = vmatpush.bf16.msra.mxu0 %v2422
        %2615 = vmatpush.bf16.msra.mxu0 %v2420
        %2616 = vmatpush.bf16.msra.mxu0 %v2418
        %2617 = vmatpush.bf16.msra.mxu0 %v2416
        %2618 = vmatpush.bf16.msra.mxu0 %v2414
        %2619 = vmatpush.bf16.msra.mxu0 %v2412
        %2620 = vmatpush.bf16.msra.mxu0 %v2410
        %2621 = vmatmul.bf16.gmra.mxu0 %v2191
        %v2622 = vpop.f32.mrf.mxu0
        %v2623 = vadd.f32 0.0, %v2622
        %v2624 = vpop.f32.mrf.mxu0
        %v2625 = vadd.f32 0.0, %v2624
        %2626 = vmatmul.bf16.gmra.mxu0 %v2202
        %v2627 = vpop.f32.mrf.mxu0
        %v2628 = vadd.f32 0.0, %v2627
        %v2629 = vpop.f32.mrf.mxu0
        %v2630 = vadd.f32 0.0, %v2629
        %2631 = vdwg.mxu0
        %2632 = vmatpush.bf16.msra.mxu0 %v2440
        %2633 = vmatpush.bf16.msra.mxu0 %v2438
        %2634 = vmatpush.bf16.msra.mxu0 %v2436
        %2635 = vmatpush.bf16.msra.mxu0 %v2434
        %2636 = vmatpush.bf16.msra.mxu0 %v2432
        %2637 = vmatpush.bf16.msra.mxu0 %v2430
        %2638 = vmatpush.bf16.msra.mxu0 %v2428
        %2639 = vmatpush.bf16.msra.mxu0 %v2426
        %2640 = vmatmul.bf16.gmra.mxu0 %v2194
        %v2641 = vpop.f32.mrf.mxu0
        %v2642 = vadd.f32 %v2623, %v2641
        %v2643 = vpop.f32.mrf.mxu0
        %v2644 = vadd.f32 %v2625, %v2643
        %2645 = vmatmul.bf16.gmra.mxu0 %v2204
        %v2646 = vpop.f32.mrf.mxu0
        %v2647 = vadd.f32 %v2628, %v2646
        %v2648 = vpop.f32.mrf.mxu0
        %v2649 = vadd.f32 %v2630, %v2648
        %2650 = vdwg.mxu0
        %2651 = vmatpush.bf16.msra.mxu0 %v2456
        %2652 = vmatpush.bf16.msra.mxu0 %v2454
        %2653 = vmatpush.bf16.msra.mxu0 %v2452
        %2654 = vmatpush.bf16.msra.mxu0 %v2450
        %2655 = vmatpush.bf16.msra.mxu0 %v2448
        %2656 = vmatpush.bf16.msra.mxu0 %v2446
        %2657 = vmatpush.bf16.msra.mxu0 %v2444
        %2658 = vmatpush.bf16.msra.mxu0 %v2442
        %2659 = vmatmul.bf16.gmra.mxu0 %v2197
        %v2660 = vpop.f32.mrf.mxu0
        %v2661 = vadd.f32 %v2642, %v2660
        %v2662 = vpop.f32.mrf.mxu0
        %v2663 = vadd.f32 %v2644, %v2662
        %2664 = vmatmul.bf16.gmra.mxu0 %v2206
        %v2665 = vpop.f32.mrf.mxu0
        %v2666 = vadd.f32 %v2647, %v2665
        %v2667 = vpop.f32.mrf.mxu0
        %v2668 = vadd.f32 %v2649, %v2667
        %2669 = vdwg.mxu0
        %2670 = vmatpush.bf16.msra.mxu0 %v2472
        %2671 = vmatpush.bf16.msra.mxu0 %v2470
        %2672 = vmatpush.bf16.msra.mxu0 %v2468
        %2673 = vmatpush.bf16.msra.mxu0 %v2466
        %2674 = vmatpush.bf16.msra.mxu0 %v2464
        %2675 = vmatpush.bf16.msra.mxu0 %v2462
        %2676 = vmatpush.bf16.msra.mxu0 %v2460
        %2677 = vmatpush.bf16.msra.mxu0 %v2458
        %2678 = vmatmul.bf16.gmra.mxu0 %v2200
        %v2679 = vpop.f32.mrf.mxu0
        %v2680 = vadd.f32 %v2661, %v2679
        %v2681 = vpop.f32.mrf.mxu0
        %v2682 = vadd.f32 %v2663, %v2681
        %2683 = vmatmul.bf16.gmra.mxu0 %v2208
        %v2684 = vpop.f32.mrf.mxu0
        %v2685 = vadd.f32 %v2666, %v2684
        %v2686 = vpop.f32.mrf.mxu0
        %v2687 = vadd.f32 %v2668, %v2686
        %2688 = vdwg.mxu0
        %v2689 = vadd.f32 %v2030, %v2604
        %v2690 = vadd.f32 %v2106, %v2680
        %v2691 = vadd.f32 %v2032, %v2606
        %v2692 = vadd.f32 %v2108, %v2682
        %v2693 = vadd.f32 %v2035, %v2609
        %v2694 = vadd.f32 %v2111, %v2685
        %v2695 = vadd.f32 %v2037, %v2611
        %v2696 = vadd.f32 %v2113, %v2687
        %v2697 = vpack.c.bf16 %v2691, %v2689
        %v2698 = vpack.c.bf16 %v2692, %v2690
        %v2699 = vpack.c.bf16 %v2695, %v2693
        %v2700 = vpack.c.bf16 %v2696, %v2694
        %v2701 = vld [vmem:[#allocation4] sm:$0xff]
        %v2702 = vld [vmem:[#allocation4 + $0x8] sm:$0xff]
        %v2703 = vld [vmem:[#allocation4 + $0x10] sm:$0xff]
        %v2704 = vld [vmem:[#allocation4 + $0x18] sm:$0xff]
        %v2705 = vld [vmem:[#allocation4 + $0x20] sm:$0xff]
        %v2706 = vld [vmem:[#allocation4 + $0x28] sm:$0xff]
        %v2707 = vld [vmem:[#allocation4 + $0x30] sm:$0xff]
        %v2708 = vld [vmem:[#allocation4 + $0x38] sm:$0xff]
        %v2709 = vld [vmem:[#allocation4 + $0x40] sm:$0xff]
        %v2710 = vld [vmem:[#allocation4 + $0x48] sm:$0xff]
        %v2711 = vld [vmem:[#allocation4 + $0x50] sm:$0xff]
        %v2712 = vld [vmem:[#allocation4 + $0x58] sm:$0xff]
        %v2713 = vld [vmem:[#allocation4 + $0x60] sm:$0xff]
        %v2714 = vld [vmem:[#allocation4 + $0x68] sm:$0xff]
        %v2715 = vld [vmem:[#allocation4 + $0x70] sm:$0xff]
        %v2716 = vld [vmem:[#allocation4 + $0x78] sm:$0xff]
        %v2717 = vld [vmem:[#allocation4 + $0x80] sm:$0xff]
        %v2718 = vld [vmem:[#allocation4 + $0x88] sm:$0xff]
        %v2719 = vld [vmem:[#allocation4 + $0x90] sm:$0xff]
        %v2720 = vld [vmem:[#allocation4 + $0x98] sm:$0xff]
        %v2721 = vld [vmem:[#allocation4 + $0xa0] sm:$0xff]
        %v2722 = vld [vmem:[#allocation4 + $0xa8] sm:$0xff]
        %v2723 = vld [vmem:[#allocation4 + $0xb0] sm:$0xff]
        %v2724 = vld [vmem:[#allocation4 + $0xb8] sm:$0xff]
        %v2725 = vld [vmem:[#allocation4 + $0xc0] sm:$0xff]
        %v2726 = vld [vmem:[#allocation4 + $0xc8] sm:$0xff]
        %v2727 = vld [vmem:[#allocation4 + $0xd0] sm:$0xff]
        %v2728 = vld [vmem:[#allocation4 + $0xd8] sm:$0xff]
        %v2729 = vld [vmem:[#allocation4 + $0xe0] sm:$0xff]
        %v2730 = vld [vmem:[#allocation4 + $0xe8] sm:$0xff]
        %v2731 = vld [vmem:[#allocation4 + $0xf0] sm:$0xff]
        %v2732 = vld [vmem:[#allocation4 + $0xf8] sm:$0xff]
        %v2733 = vld [vmem:[#allocation4 + $0x100] sm:$0xff]
        %v2734 = vld [vmem:[#allocation4 + $0x108] sm:$0xff]
        %v2735 = vld [vmem:[#allocation4 + $0x110] sm:$0xff]
        %v2736 = vld [vmem:[#allocation4 + $0x118] sm:$0xff]
        %v2737 = vld [vmem:[#allocation4 + $0x120] sm:$0xff]
        %v2738 = vld [vmem:[#allocation4 + $0x128] sm:$0xff]
        %v2739 = vld [vmem:[#allocation4 + $0x130] sm:$0xff]
        %v2740 = vld [vmem:[#allocation4 + $0x138] sm:$0xff]
        %v2741 = vld [vmem:[#allocation4 + $0x140] sm:$0xff]
        %v2742 = vld [vmem:[#allocation4 + $0x148] sm:$0xff]
        %v2743 = vld [vmem:[#allocation4 + $0x150] sm:$0xff]
        %v2744 = vld [vmem:[#allocation4 + $0x158] sm:$0xff]
        %v2745 = vld [vmem:[#allocation4 + $0x160] sm:$0xff]
        %v2746 = vld [vmem:[#allocation4 + $0x168] sm:$0xff]
        %v2747 = vld [vmem:[#allocation4 + $0x170] sm:$0xff]
        %v2748 = vld [vmem:[#allocation4 + $0x178] sm:$0xff]
        %v2749 = vld [vmem:[#allocation4 + $0x180] sm:$0xff]
        %v2750 = vld [vmem:[#allocation4 + $0x188] sm:$0xff]
        %v2751 = vld [vmem:[#allocation4 + $0x190] sm:$0xff]
        %v2752 = vld [vmem:[#allocation4 + $0x198] sm:$0xff]
        %v2753 = vld [vmem:[#allocation4 + $0x1a0] sm:$0xff]
        %v2754 = vld [vmem:[#allocation4 + $0x1a8] sm:$0xff]
        %v2755 = vld [vmem:[#allocation4 + $0x1b0] sm:$0xff]
        %v2756 = vld [vmem:[#allocation4 + $0x1b8] sm:$0xff]
        %v2757 = vld [vmem:[#allocation4 + $0x1c0] sm:$0xff]
        %v2758 = vld [vmem:[#allocation4 + $0x1c8] sm:$0xff]
        %v2759 = vld [vmem:[#allocation4 + $0x1d0] sm:$0xff]
        %v2760 = vld [vmem:[#allocation4 + $0x1d8] sm:$0xff]
        %v2761 = vld [vmem:[#allocation4 + $0x1e0] sm:$0xff]
        %v2762 = vld [vmem:[#allocation4 + $0x1e8] sm:$0xff]
        %v2763 = vld [vmem:[#allocation4 + $0x1f0] sm:$0xff]
        %v2764 = vld [vmem:[#allocation4 + $0x1f8] sm:$0xff]
        %v2829 = vunpack.c.l.b16 %v2701
        %v2830 = vunpack.c.h.b16 %v2701
        %v2831 = vunpack.c.l.b16 %v2702
        %v2832 = vunpack.c.h.b16 %v2702
        %v2833 = vunpack.c.l.b16 %v2703
        %v2834 = vunpack.c.h.b16 %v2703
        %v2835 = vunpack.c.l.b16 %v2704
        %v2836 = vunpack.c.h.b16 %v2704
        %v2837 = vunpack.c.l.b16 %v2705
        %v2838 = vunpack.c.h.b16 %v2705
        %v2839 = vunpack.c.l.b16 %v2706
        %v2840 = vunpack.c.h.b16 %v2706
        %v2841 = vunpack.c.l.b16 %v2707
        %v2842 = vunpack.c.h.b16 %v2707
        %v2843 = vunpack.c.l.b16 %v2708
        %v2844 = vunpack.c.h.b16 %v2708
        %v2845 = vunpack.c.l.b16 %v2709
        %v2846 = vunpack.c.h.b16 %v2709
        %v2847 = vunpack.c.l.b16 %v2710
        %v2848 = vunpack.c.h.b16 %v2710
        %v2849 = vunpack.c.l.b16 %v2711
        %v2850 = vunpack.c.h.b16 %v2711
        %v2851 = vunpack.c.l.b16 %v2712
        %v2852 = vunpack.c.h.b16 %v2712
        %v2853 = vunpack.c.l.b16 %v2713
        %v2854 = vunpack.c.h.b16 %v2713
        %v2855 = vunpack.c.l.b16 %v2714
        %v2856 = vunpack.c.h.b16 %v2714
        %v2857 = vunpack.c.l.b16 %v2715
        %v2858 = vunpack.c.h.b16 %v2715
        %v2859 = vunpack.c.l.b16 %v2716
        %v2860 = vunpack.c.h.b16 %v2716
        %v2861 = vunpack.c.l.b16 %v2717
        %v2862 = vunpack.c.h.b16 %v2717
        %v2863 = vunpack.c.l.b16 %v2718
        %v2864 = vunpack.c.h.b16 %v2718
        %v2865 = vunpack.c.l.b16 %v2719
        %v2866 = vunpack.c.h.b16 %v2719
        %v2867 = vunpack.c.l.b16 %v2720
        %v2868 = vunpack.c.h.b16 %v2720
        %v2869 = vunpack.c.l.b16 %v2721
        %v2870 = vunpack.c.h.b16 %v2721
        %v2871 = vunpack.c.l.b16 %v2722
        %v2872 = vunpack.c.h.b16 %v2722
        %v2873 = vunpack.c.l.b16 %v2723
        %v2874 = vunpack.c.h.b16 %v2723
        %v2875 = vunpack.c.l.b16 %v2724
        %v2876 = vunpack.c.h.b16 %v2724
        %v2877 = vunpack.c.l.b16 %v2725
        %v2878 = vunpack.c.h.b16 %v2725
        %v2879 = vunpack.c.l.b16 %v2726
        %v2880 = vunpack.c.h.b16 %v2726
        %v2881 = vunpack.c.l.b16 %v2727
        %v2882 = vunpack.c.h.b16 %v2727
        %v2883 = vunpack.c.l.b16 %v2728
        %v2884 = vunpack.c.h.b16 %v2728
        %v2885 = vunpack.c.l.b16 %v2729
        %v2886 = vunpack.c.h.b16 %v2729
        %v2887 = vunpack.c.l.b16 %v2730
        %v2888 = vunpack.c.h.b16 %v2730
        %v2889 = vunpack.c.l.b16 %v2731
        %v2890 = vunpack.c.h.b16 %v2731
        %v2891 = vunpack.c.l.b16 %v2732
        %v2892 = vunpack.c.h.b16 %v2732
        %v2893 = vunpack.c.l.b16 %v2733
        %v2894 = vunpack.c.h.b16 %v2733
        %v2895 = vunpack.c.l.b16 %v2734
        %v2896 = vunpack.c.h.b16 %v2734
        %v2897 = vunpack.c.l.b16 %v2735
        %v2898 = vunpack.c.h.b16 %v2735
        %v2899 = vunpack.c.l.b16 %v2736
        %v2900 = vunpack.c.h.b16 %v2736
        %v2901 = vunpack.c.l.b16 %v2737
        %v2902 = vunpack.c.h.b16 %v2737
        %v2903 = vunpack.c.l.b16 %v2738
        %v2904 = vunpack.c.h.b16 %v2738
        %v2905 = vunpack.c.l.b16 %v2739
        %v2906 = vunpack.c.h.b16 %v2739
        %v2907 = vunpack.c.l.b16 %v2740
        %v2908 = vunpack.c.h.b16 %v2740
        %v2909 = vunpack.c.l.b16 %v2741
        %v2910 = vunpack.c.h.b16 %v2741
        %v2911 = vunpack.c.l.b16 %v2742
        %v2912 = vunpack.c.h.b16 %v2742
        %v2913 = vunpack.c.l.b16 %v2743
        %v2914 = vunpack.c.h.b16 %v2743
        %v2915 = vunpack.c.l.b16 %v2744
        %v2916 = vunpack.c.h.b16 %v2744
        %v2917 = vunpack.c.l.b16 %v2745
        %v2918 = vunpack.c.h.b16 %v2745
        %v2919 = vunpack.c.l.b16 %v2746
        %v2920 = vunpack.c.h.b16 %v2746
        %v2921 = vunpack.c.l.b16 %v2747
        %v2922 = vunpack.c.h.b16 %v2747
        %v2923 = vunpack.c.l.b16 %v2748
        %v2924 = vunpack.c.h.b16 %v2748
        %v2925 = vunpack.c.l.b16 %v2749
        %v2926 = vunpack.c.h.b16 %v2749
        %v2927 = vunpack.c.l.b16 %v2750
        %v2928 = vunpack.c.h.b16 %v2750
        %v2929 = vunpack.c.l.b16 %v2751
        %v2930 = vunpack.c.h.b16 %v2751
        %v2931 = vunpack.c.l.b16 %v2752
        %v2932 = vunpack.c.h.b16 %v2752
        %v2933 = vunpack.c.l.b16 %v2753
        %v2934 = vunpack.c.h.b16 %v2753
        %v2935 = vunpack.c.l.b16 %v2754
        %v2936 = vunpack.c.h.b16 %v2754
        %v2937 = vunpack.c.l.b16 %v2755
        %v2938 = vunpack.c.h.b16 %v2755
        %v2939 = vunpack.c.l.b16 %v2756
        %v2940 = vunpack.c.h.b16 %v2756
        %v2941 = vunpack.c.l.b16 %v2757
        %v2942 = vunpack.c.h.b16 %v2757
        %v2943 = vunpack.c.l.b16 %v2758
        %v2944 = vunpack.c.h.b16 %v2758
        %v2945 = vunpack.c.l.b16 %v2759
        %v2946 = vunpack.c.h.b16 %v2759
        %v2947 = vunpack.c.l.b16 %v2760
        %v2948 = vunpack.c.h.b16 %v2760
        %v2949 = vunpack.c.l.b16 %v2761
        %v2950 = vunpack.c.h.b16 %v2761
        %v2951 = vunpack.c.l.b16 %v2762
        %v2952 = vunpack.c.h.b16 %v2762
        %v2953 = vunpack.c.l.b16 %v2763
        %v2954 = vunpack.c.h.b16 %v2763
        %v2955 = vunpack.c.l.b16 %v2764
        %v2956 = vunpack.c.h.b16 %v2764
        %v2957 = vpack.c.b16 %v2833, %v2829
        %v2958 = vpack.c.b16 %v2834, %v2830
        %v2959 = vpack.c.b16 %v2835, %v2831
        %v2960 = vpack.c.b16 %v2836, %v2832
        %v2961 = vpack.c.b16 %v2841, %v2837
        %v2962 = vpack.c.b16 %v2842, %v2838
        %v2963 = vpack.c.b16 %v2843, %v2839
        %v2964 = vpack.c.b16 %v2844, %v2840
        %v2965 = vpack.c.b16 %v2849, %v2845
        %v2966 = vpack.c.b16 %v2850, %v2846
        %v2967 = vpack.c.b16 %v2851, %v2847
        %v2968 = vpack.c.b16 %v2852, %v2848
        %v2969 = vpack.c.b16 %v2857, %v2853
        %v2970 = vpack.c.b16 %v2858, %v2854
        %v2971 = vpack.c.b16 %v2859, %v2855
        %v2972 = vpack.c.b16 %v2860, %v2856
        %v2973 = vpack.c.b16 %v2865, %v2861
        %v2974 = vpack.c.b16 %v2866, %v2862
        %v2975 = vpack.c.b16 %v2867, %v2863
        %v2976 = vpack.c.b16 %v2868, %v2864
        %v2977 = vpack.c.b16 %v2873, %v2869
        %v2978 = vpack.c.b16 %v2874, %v2870
        %v2979 = vpack.c.b16 %v2875, %v2871
        %v2980 = vpack.c.b16 %v2876, %v2872
        %v2981 = vpack.c.b16 %v2881, %v2877
        %v2982 = vpack.c.b16 %v2882, %v2878
        %v2983 = vpack.c.b16 %v2883, %v2879
        %v2984 = vpack.c.b16 %v2884, %v2880
        %v2985 = vpack.c.b16 %v2889, %v2885
        %v2986 = vpack.c.b16 %v2890, %v2886
        %v2987 = vpack.c.b16 %v2891, %v2887
        %v2988 = vpack.c.b16 %v2892, %v2888
        %v2989 = vpack.c.b16 %v2897, %v2893
        %v2990 = vpack.c.b16 %v2898, %v2894
        %v2991 = vpack.c.b16 %v2899, %v2895
        %v2992 = vpack.c.b16 %v2900, %v2896
        %v2993 = vpack.c.b16 %v2905, %v2901
        %v2994 = vpack.c.b16 %v2906, %v2902
        %v2995 = vpack.c.b16 %v2907, %v2903
        %v2996 = vpack.c.b16 %v2908, %v2904
        %v2997 = vpack.c.b16 %v2913, %v2909
        %v2998 = vpack.c.b16 %v2914, %v2910
        %v2999 = vpack.c.b16 %v2915, %v2911
        %v3000 = vpack.c.b16 %v2916, %v2912
        %v3001 = vpack.c.b16 %v2921, %v2917
        %v3002 = vpack.c.b16 %v2922, %v2918
        %v3003 = vpack.c.b16 %v2923, %v2919
        %v3004 = vpack.c.b16 %v2924, %v2920
        %v3005 = vpack.c.b16 %v2929, %v2925
        %v3006 = vpack.c.b16 %v2930, %v2926
        %v3007 = vpack.c.b16 %v2931, %v2927
        %v3008 = vpack.c.b16 %v2932, %v2928
        %v3009 = vpack.c.b16 %v2937, %v2933
        %v3010 = vpack.c.b16 %v2938, %v2934
        %v3011 = vpack.c.b16 %v2939, %v2935
        %v3012 = vpack.c.b16 %v2940, %v2936
        %v3013 = vpack.c.b16 %v2945, %v2941
        %v3014 = vpack.c.b16 %v2946, %v2942
        %v3015 = vpack.c.b16 %v2947, %v2943
        %v3016 = vpack.c.b16 %v2948, %v2944
        %v3017 = vpack.c.b16 %v2953, %v2949
        %v3018 = vpack.c.b16 %v2954, %v2950
        %v3019 = vpack.c.b16 %v2955, %v2951
        %v3020 = vpack.c.b16 %v2956, %v2952
        %3085 = vmatpush.bf16.msra.mxu0 %v2985
        %3086 = vmatpush.bf16.msra.mxu0 %v2981
        %3087 = vmatpush.bf16.msra.mxu0 %v2977
        %3088 = vmatpush.bf16.msra.mxu0 %v2973
        %3089 = vmatpush.bf16.msra.mxu0 %v2969
        %3090 = vmatpush.bf16.msra.mxu0 %v2965
        %3091 = vmatpush.bf16.msra.mxu0 %v2961
        %3092 = vmatpush.bf16.msra.mxu0 %v2957
        %3093 = vmatmul.bf16.gmra.mxu0 %v2697
        %v3094 = vpop.f32.mrf.mxu0
        %v3095 = vadd.f32 0.0, %v3094
        %v3096 = vpop.f32.mrf.mxu0
        %v3097 = vadd.f32 0.0, %v3096
        %3098 = vmatmul.bf16.gmra.mxu0 %v2699
        %v3099 = vpop.f32.mrf.mxu0
        %v3100 = vadd.f32 0.0, %v3099
        %v3101 = vpop.f32.mrf.mxu0
        %v3102 = vadd.f32 0.0, %v3101
        %3103 = vdwg.mxu0
        %3104 = vmatpush.bf16.msra.mxu0 %v3017
        %3105 = vmatpush.bf16.msra.mxu0 %v3013
        %3106 = vmatpush.bf16.msra.mxu0 %v3009
        %3107 = vmatpush.bf16.msra.mxu0 %v3005
        %3108 = vmatpush.bf16.msra.mxu0 %v3001
        %3109 = vmatpush.bf16.msra.mxu0 %v2997
        %3110 = vmatpush.bf16.msra.mxu0 %v2993
        %3111 = vmatpush.bf16.msra.mxu0 %v2989
        %3112 = vmatmul.bf16.gmra.mxu0 %v2698
        %v3113 = vpop.f32.mrf.mxu0
        %v3114 = vadd.f32 %v3095, %v3113
        %v3115 = vpop.f32.mrf.mxu0
        %v3116 = vadd.f32 %v3097, %v3115
        %3117 = vmatmul.bf16.gmra.mxu0 %v2700
        %v3118 = vpop.f32.mrf.mxu0
        %v3119 = vadd.f32 %v3100, %v3118
        %v3120 = vpop.f32.mrf.mxu0
        %v3121 = vadd.f32 %v3102, %v3120
        %3122 = vdwg.mxu0
        %3123 = vmatpush.bf16.msra.mxu0 %v2986
        %3124 = vmatpush.bf16.msra.mxu0 %v2982
        %3125 = vmatpush.bf16.msra.mxu0 %v2978
        %3126 = vmatpush.bf16.msra.mxu0 %v2974
        %3127 = vmatpush.bf16.msra.mxu0 %v2970
        %3128 = vmatpush.bf16.msra.mxu0 %v2966
        %3129 = vmatpush.bf16.msra.mxu0 %v2962
        %3130 = vmatpush.bf16.msra.mxu0 %v2958
        %3131 = vmatmul.bf16.gmra.mxu0 %v2697
        %v3132 = vpop.f32.mrf.mxu0
        %v3133 = vadd.f32 0.0, %v3132
        %v3134 = vpop.f32.mrf.mxu0
        %v3135 = vadd.f32 0.0, %v3134
        %3136 = vmatmul.bf16.gmra.mxu0 %v2699
        %v3137 = vpop.f32.mrf.mxu0
        %v3138 = vadd.f32 0.0, %v3137
        %v3139 = vpop.f32.mrf.mxu0
        %v3140 = vadd.f32 0.0, %v3139
        %3141 = vdwg.mxu0
        %3142 = vmatpush.bf16.msra.mxu0 %v3018
        %3143 = vmatpush.bf16.msra.mxu0 %v3014
        %3144 = vmatpush.bf16.msra.mxu0 %v3010
        %3145 = vmatpush.bf16.msra.mxu0 %v3006
        %3146 = vmatpush.bf16.msra.mxu0 %v3002
        %3147 = vmatpush.bf16.msra.mxu0 %v2998
        %3148 = vmatpush.bf16.msra.mxu0 %v2994
        %3149 = vmatpush.bf16.msra.mxu0 %v2990
        %3150 = vmatmul.bf16.gmra.mxu0 %v2698
        %v3151 = vpop.f32.mrf.mxu0
        %v3152 = vadd.f32 %v3133, %v3151
        %v3153 = vpop.f32.mrf.mxu0
        %v3154 = vadd.f32 %v3135, %v3153
        %3155 = vmatmul.bf16.gmra.mxu0 %v2700
        %v3156 = vpop.f32.mrf.mxu0
        %v3157 = vadd.f32 %v3138, %v3156
        %v3158 = vpop.f32.mrf.mxu0
        %v3159 = vadd.f32 %v3140, %v3158
        %3160 = vdwg.mxu0
        %3161 = vmatpush.bf16.msra.mxu0 %v2987
        %3162 = vmatpush.bf16.msra.mxu0 %v2983
        %3163 = vmatpush.bf16.msra.mxu0 %v2979
        %3164 = vmatpush.bf16.msra.mxu0 %v2975
        %3165 = vmatpush.bf16.msra.mxu0 %v2971
        %3166 = vmatpush.bf16.msra.mxu0 %v2967
        %3167 = vmatpush.bf16.msra.mxu0 %v2963
        %3168 = vmatpush.bf16.msra.mxu0 %v2959
        %3169 = vmatmul.bf16.gmra.mxu0 %v2697
        %v3170 = vpop.f32.mrf.mxu0
        %v3171 = vadd.f32 0.0, %v3170
        %v3172 = vpop.f32.mrf.mxu0
        %v3173 = vadd.f32 0.0, %v3172
        %3174 = vmatmul.bf16.gmra.mxu0 %v2699
        %v3175 = vpop.f32.mrf.mxu0
        %v3176 = vadd.f32 0.0, %v3175
        %v3177 = vpop.f32.mrf.mxu0
        %v3178 = vadd.f32 0.0, %v3177
        %3179 = vdwg.mxu0
        %3180 = vmatpush.bf16.msra.mxu0 %v3019
        %3181 = vmatpush.bf16.msra.mxu0 %v3015
        %3182 = vmatpush.bf16.msra.mxu0 %v3011
        %3183 = vmatpush.bf16.msra.mxu0 %v3007
        %3184 = vmatpush.bf16.msra.mxu0 %v3003
        %3185 = vmatpush.bf16.msra.mxu0 %v2999
        %3186 = vmatpush.bf16.msra.mxu0 %v2995
        %3187 = vmatpush.bf16.msra.mxu0 %v2991
        %3188 = vmatmul.bf16.gmra.mxu0 %v2698
        %v3189 = vpop.f32.mrf.mxu0
        %v3190 = vadd.f32 %v3171, %v3189
        %v3191 = vpop.f32.mrf.mxu0
        %v3192 = vadd.f32 %v3173, %v3191
        %3193 = vmatmul.bf16.gmra.mxu0 %v2700
        %v3194 = vpop.f32.mrf.mxu0
        %v3195 = vadd.f32 %v3176, %v3194
        %v3196 = vpop.f32.mrf.mxu0
        %v3197 = vadd.f32 %v3178, %v3196
        %3198 = vdwg.mxu0
        %3199 = vmatpush.bf16.msra.mxu0 %v2988
        %3200 = vmatpush.bf16.msra.mxu0 %v2984
        %3201 = vmatpush.bf16.msra.mxu0 %v2980
        %3202 = vmatpush.bf16.msra.mxu0 %v2976
        %3203 = vmatpush.bf16.msra.mxu0 %v2972
        %3204 = vmatpush.bf16.msra.mxu0 %v2968
        %3205 = vmatpush.bf16.msra.mxu0 %v2964
        %3206 = vmatpush.bf16.msra.mxu0 %v2960
        %3207 = vmatmul.bf16.gmra.mxu0 %v2697
        %v3208 = vpop.f32.mrf.mxu0
        %v3209 = vadd.f32 0.0, %v3208
        %v3210 = vpop.f32.mrf.mxu0
        %v3211 = vadd.f32 0.0, %v3210
        %3212 = vmatmul.bf16.gmra.mxu0 %v2699
        %v3213 = vpop.f32.mrf.mxu0
        %v3214 = vadd.f32 0.0, %v3213
        %v3215 = vpop.f32.mrf.mxu0
        %v3216 = vadd.f32 0.0, %v3215
        %3217 = vdwg.mxu0
        %3218 = vmatpush.bf16.msra.mxu0 %v3020
        %3219 = vmatpush.bf16.msra.mxu0 %v3016
        %3220 = vmatpush.bf16.msra.mxu0 %v3012
        %3221 = vmatpush.bf16.msra.mxu0 %v3008
        %3222 = vmatpush.bf16.msra.mxu0 %v3004
        %3223 = vmatpush.bf16.msra.mxu0 %v3000
        %3224 = vmatpush.bf16.msra.mxu0 %v2996
        %3225 = vmatpush.bf16.msra.mxu0 %v2992
        %3226 = vmatmul.bf16.gmra.mxu0 %v2698
        %v3227 = vpop.f32.mrf.mxu0
        %v3228 = vadd.f32 %v3209, %v3227
        %v3229 = vpop.f32.mrf.mxu0
        %v3230 = vadd.f32 %v3211, %v3229
        %3231 = vmatmul.bf16.gmra.mxu0 %v2700
        %v3232 = vpop.f32.mrf.mxu0
        %v3233 = vadd.f32 %v3214, %v3232
        %v3234 = vpop.f32.mrf.mxu0
        %v3235 = vadd.f32 %v3216, %v3234
        %3236 = vdwg.mxu0
        %v3237 = vmax.f32 %v3114, 0.0
        %v3238 = vmax.f32 %v3152, 0.0
        %v3239 = vmax.f32 %v3190, 0.0
        %v3240 = vmax.f32 %v3228, 0.0
        %v3241 = vmax.f32 %v3116, 0.0
        %v3242 = vmax.f32 %v3154, 0.0
        %v3243 = vmax.f32 %v3192, 0.0
        %v3244 = vmax.f32 %v3230, 0.0
        %v3245 = vmax.f32 %v3119, 0.0
        %v3246 = vmax.f32 %v3157, 0.0
        %v3247 = vmax.f32 %v3195, 0.0
        %v3248 = vmax.f32 %v3233, 0.0
        %v3249 = vmax.f32 %v3121, 0.0
        %v3250 = vmax.f32 %v3159, 0.0
        %v3251 = vmax.f32 %v3197, 0.0
        %v3252 = vmax.f32 %v3235, 0.0
        %v3253 = vpack.c.bf16 %v3238, %v3237
        %v3254 = vpack.c.bf16 %v3240, %v3239
        %v3255 = vpack.c.bf16 %v3242, %v3241
        %v3256 = vpack.c.bf16 %v3244, %v3243
        %v3257 = vpack.c.bf16 %v3246, %v3245
        %v3258 = vpack.c.bf16 %v3248, %v3247
        %v3259 = vpack.c.bf16 %v3250, %v3249
        %v3260 = vpack.c.bf16 %v3252, %v3251
        %v3269 = vunpack.c.l.b16 %v3253
        %v3270 = vunpack.c.h.b16 %v3253
        %v3271 = vunpack.c.l.b16 %v3254
        %v3272 = vunpack.c.h.b16 %v3254
        %v3273 = vunpack.c.l.b16 %v3255
        %v3274 = vunpack.c.h.b16 %v3255
        %v3275 = vunpack.c.l.b16 %v3256
        %v3276 = vunpack.c.h.b16 %v3256
        %v3277 = vunpack.c.l.b16 %v3257
        %v3278 = vunpack.c.h.b16 %v3257
        %v3279 = vunpack.c.l.b16 %v3258
        %v3280 = vunpack.c.h.b16 %v3258
        %v3281 = vunpack.c.l.b16 %v3259
        %v3282 = vunpack.c.h.b16 %v3259
        %v3283 = vunpack.c.l.b16 %v3260
        %v3284 = vunpack.c.h.b16 %v3260
        %v3285 = vpack.c.b16 %v3273, %v3269
        %v3286 = vpack.c.b16 %v3274, %v3270
        %v3287 = vpack.c.b16 %v3275, %v3271
        %v3288 = vpack.c.b16 %v3276, %v3272
        %v3289 = vpack.c.b16 %v3281, %v3277
        %v3290 = vpack.c.b16 %v3282, %v3278
        %v3291 = vpack.c.b16 %v3283, %v3279
        %v3292 = vpack.c.b16 %v3284, %v3280
        %v3294 = vshrl.u32 %v3285, 16
        %v3296 = vrot.slane %v3294, 7
        %v3297 = vshll.u32 %v3285, 16
        %v3299 = vor.u32 %v3296, %v3297
        %v3301 = vshrl.u32 %v3286, 16
        %v3303 = vrot.slane %v3301, 7
        %v3304 = vshll.u32 %v3286, 16
        %v3306 = vor.u32 %v3303, %v3304
        %v3308 = vshrl.u32 %v3287, 16
        %v3310 = vrot.slane %v3308, 7
        %v3311 = vshll.u32 %v3287, 16
        %v3313 = vor.u32 %v3310, %v3311
        %v3315 = vshrl.u32 %v3288, 16
        %v3317 = vrot.slane %v3315, 7
        %v3318 = vshll.u32 %v3288, 16
        %v3320 = vor.u32 %v3317, %v3318
        %v3322 = vshrl.u32 %v3289, 16
        %v3324 = vrot.slane %v3322, 7
        %v3325 = vshll.u32 %v3289, 16
        %v3327 = vor.u32 %v3324, %v3325
        %v3328 = vsel %vm870, %v3296, %v3327
        %v3330 = vshrl.u32 %v3290, 16
        %v3332 = vrot.slane %v3330, 7
        %v3333 = vshll.u32 %v3290, 16
        %v3335 = vor.u32 %v3332, %v3333
        %v3336 = vsel %vm870, %v3303, %v3335
        %v3338 = vshrl.u32 %v3291, 16
        %v3340 = vrot.slane %v3338, 7
        %v3341 = vshll.u32 %v3291, 16
        %v3343 = vor.u32 %v3340, %v3341
        %v3344 = vsel %vm870, %v3310, %v3343
        %v3346 = vshrl.u32 %v3292, 16
        %v3348 = vrot.slane %v3346, 7
        %v3349 = vshll.u32 %v3292, 16
        %v3351 = vor.u32 %v3348, %v3349
        %v3352 = vsel %vm870, %v3317, %v3351
        %v3365 = vsel %vm944, 0, %v3299
        %v3366 = vsel %vm944, 0, %v3306
        %v3367 = vsel %vm944, 0, %v3313
        %v3368 = vsel %vm944, 0, %v3320
        %v3369 = vsel %vm944, %v3324, 0
        %v3370 = vsel %vm944, %v3332, 0
        %v3371 = vsel %vm944, %v3340, 0
        %v3372 = vsel %vm944, %v3348, 0
        %v3373 = vld [vmem:[#allocation6] sm:$0xff]
        %v3374 = vld [vmem:[#allocation6 + $0x8] sm:$0xff]
        %v3375 = vld [vmem:[#allocation6 + $0x10] sm:$0xff]
        %v3376 = vld [vmem:[#allocation6 + $0x18] sm:$0xff]
        %v3377 = vld [vmem:[#allocation6 + $0x20] sm:$0xff]
        %v3378 = vld [vmem:[#allocation6 + $0x28] sm:$0xff]
        %v3379 = vld [vmem:[#allocation6 + $0x30] sm:$0xff]
        %v3380 = vld [vmem:[#allocation6 + $0x38] sm:$0xff]
        %v3381 = vld [vmem:[#allocation6 + $0x40] sm:$0xff]
        %v3382 = vld [vmem:[#allocation6 + $0x48] sm:$0xff]
        %v3383 = vld [vmem:[#allocation6 + $0x50] sm:$0xff]
        %v3384 = vld [vmem:[#allocation6 + $0x58] sm:$0xff]
        %v3385 = vld [vmem:[#allocation6 + $0x60] sm:$0xff]
        %v3386 = vld [vmem:[#allocation6 + $0x68] sm:$0xff]
        %v3387 = vld [vmem:[#allocation6 + $0x70] sm:$0xff]
        %v3388 = vld [vmem:[#allocation6 + $0x78] sm:$0xff]
        %v3389 = vld [vmem:[#allocation6 + $0x80] sm:$0xff]
        %v3390 = vld [vmem:[#allocation6 + $0x88] sm:$0xff]
        %v3391 = vld [vmem:[#allocation6 + $0x90] sm:$0xff]
        %v3392 = vld [vmem:[#allocation6 + $0x98] sm:$0xff]
        %v3393 = vld [vmem:[#allocation6 + $0xa0] sm:$0xff]
        %v3394 = vld [vmem:[#allocation6 + $0xa8] sm:$0xff]
        %v3395 = vld [vmem:[#allocation6 + $0xb0] sm:$0xff]
        %v3396 = vld [vmem:[#allocation6 + $0xb8] sm:$0xff]
        %v3397 = vld [vmem:[#allocation6 + $0xc0] sm:$0xff]
        %v3398 = vld [vmem:[#allocation6 + $0xc8] sm:$0xff]
        %v3399 = vld [vmem:[#allocation6 + $0xd0] sm:$0xff]
        %v3400 = vld [vmem:[#allocation6 + $0xd8] sm:$0xff]
        %v3401 = vld [vmem:[#allocation6 + $0xe0] sm:$0xff]
        %v3402 = vld [vmem:[#allocation6 + $0xe8] sm:$0xff]
        %v3403 = vld [vmem:[#allocation6 + $0xf0] sm:$0xff]
        %v3404 = vld [vmem:[#allocation6 + $0xf8] sm:$0xff]
        %v3405 = vld [vmem:[#allocation6 + $0x100] sm:$0xff]
        %v3406 = vld [vmem:[#allocation6 + $0x108] sm:$0xff]
        %v3407 = vld [vmem:[#allocation6 + $0x110] sm:$0xff]
        %v3408 = vld [vmem:[#allocation6 + $0x118] sm:$0xff]
        %v3409 = vld [vmem:[#allocation6 + $0x120] sm:$0xff]
        %v3410 = vld [vmem:[#allocation6 + $0x128] sm:$0xff]
        %v3411 = vld [vmem:[#allocation6 + $0x130] sm:$0xff]
        %v3412 = vld [vmem:[#allocation6 + $0x138] sm:$0xff]
        %v3413 = vld [vmem:[#allocation6 + $0x140] sm:$0xff]
        %v3414 = vld [vmem:[#allocation6 + $0x148] sm:$0xff]
        %v3415 = vld [vmem:[#allocation6 + $0x150] sm:$0xff]
        %v3416 = vld [vmem:[#allocation6 + $0x158] sm:$0xff]
        %v3417 = vld [vmem:[#allocation6 + $0x160] sm:$0xff]
        %v3418 = vld [vmem:[#allocation6 + $0x168] sm:$0xff]
        %v3419 = vld [vmem:[#allocation6 + $0x170] sm:$0xff]
        %v3420 = vld [vmem:[#allocation6 + $0x178] sm:$0xff]
        %v3421 = vld [vmem:[#allocation6 + $0x180] sm:$0xff]
        %v3422 = vld [vmem:[#allocation6 + $0x188] sm:$0xff]
        %v3423 = vld [vmem:[#allocation6 + $0x190] sm:$0xff]
        %v3424 = vld [vmem:[#allocation6 + $0x198] sm:$0xff]
        %v3425 = vld [vmem:[#allocation6 + $0x1a0] sm:$0xff]
        %v3426 = vld [vmem:[#allocation6 + $0x1a8] sm:$0xff]
        %v3427 = vld [vmem:[#allocation6 + $0x1b0] sm:$0xff]
        %v3428 = vld [vmem:[#allocation6 + $0x1b8] sm:$0xff]
        %v3429 = vld [vmem:[#allocation6 + $0x1c0] sm:$0xff]
        %v3430 = vld [vmem:[#allocation6 + $0x1c8] sm:$0xff]
        %v3431 = vld [vmem:[#allocation6 + $0x1d0] sm:$0xff]
        %v3432 = vld [vmem:[#allocation6 + $0x1d8] sm:$0xff]
        %v3433 = vld [vmem:[#allocation6 + $0x1e0] sm:$0xff]
        %v3434 = vld [vmem:[#allocation6 + $0x1e8] sm:$0xff]
        %v3435 = vld [vmem:[#allocation6 + $0x1f0] sm:$0xff]
        %v3436 = vld [vmem:[#allocation6 + $0x1f8] sm:$0xff]
        %s3437 = scalar_lea.vmem [#allocation6], 512
        %v3438 = vld [vmem:[%s3437] sm:$0xff]
        %v3439 = vld [vmem:[%s3437 + $0x8] sm:$0xff]
        %v3440 = vld [vmem:[%s3437 + $0x10] sm:$0xff]
        %v3441 = vld [vmem:[%s3437 + $0x18] sm:$0xff]
        %v3442 = vld [vmem:[%s3437 + $0x20] sm:$0xff]
        %v3443 = vld [vmem:[%s3437 + $0x28] sm:$0xff]
        %v3444 = vld [vmem:[%s3437 + $0x30] sm:$0xff]
        %v3445 = vld [vmem:[%s3437 + $0x38] sm:$0xff]
        %v3446 = vld [vmem:[%s3437 + $0x40] sm:$0xff]
        %v3447 = vld [vmem:[%s3437 + $0x48] sm:$0xff]
        %v3448 = vld [vmem:[%s3437 + $0x50] sm:$0xff]
        %v3449 = vld [vmem:[%s3437 + $0x58] sm:$0xff]
        %v3450 = vld [vmem:[%s3437 + $0x60] sm:$0xff]
        %v3451 = vld [vmem:[%s3437 + $0x68] sm:$0xff]
        %v3452 = vld [vmem:[%s3437 + $0x70] sm:$0xff]
        %v3453 = vld [vmem:[%s3437 + $0x78] sm:$0xff]
        %v3454 = vld [vmem:[%s3437 + $0x80] sm:$0xff]
        %v3455 = vld [vmem:[%s3437 + $0x88] sm:$0xff]
        %v3456 = vld [vmem:[%s3437 + $0x90] sm:$0xff]
        %v3457 = vld [vmem:[%s3437 + $0x98] sm:$0xff]
        %v3458 = vld [vmem:[%s3437 + $0xa0] sm:$0xff]
        %v3459 = vld [vmem:[%s3437 + $0xa8] sm:$0xff]
        %v3460 = vld [vmem:[%s3437 + $0xb0] sm:$0xff]
        %v3461 = vld [vmem:[%s3437 + $0xb8] sm:$0xff]
        %v3462 = vld [vmem:[%s3437 + $0xc0] sm:$0xff]
        %v3463 = vld [vmem:[%s3437 + $0xc8] sm:$0xff]
        %v3464 = vld [vmem:[%s3437 + $0xd0] sm:$0xff]
        %v3465 = vld [vmem:[%s3437 + $0xd8] sm:$0xff]
        %v3466 = vld [vmem:[%s3437 + $0xe0] sm:$0xff]
        %v3467 = vld [vmem:[%s3437 + $0xe8] sm:$0xff]
        %v3468 = vld [vmem:[%s3437 + $0xf0] sm:$0xff]
        %v3469 = vld [vmem:[%s3437 + $0xf8] sm:$0xff]
        %v3470 = vld [vmem:[%s3437 + $0x100] sm:$0xff]
        %v3471 = vld [vmem:[%s3437 + $0x108] sm:$0xff]
        %v3472 = vld [vmem:[%s3437 + $0x110] sm:$0xff]
        %v3473 = vld [vmem:[%s3437 + $0x118] sm:$0xff]
        %v3474 = vld [vmem:[%s3437 + $0x120] sm:$0xff]
        %v3475 = vld [vmem:[%s3437 + $0x128] sm:$0xff]
        %v3476 = vld [vmem:[%s3437 + $0x130] sm:$0xff]
        %v3477 = vld [vmem:[%s3437 + $0x138] sm:$0xff]
        %v3478 = vld [vmem:[%s3437 + $0x140] sm:$0xff]
        %v3479 = vld [vmem:[%s3437 + $0x148] sm:$0xff]
        %v3480 = vld [vmem:[%s3437 + $0x150] sm:$0xff]
        %v3481 = vld [vmem:[%s3437 + $0x158] sm:$0xff]
        %v3482 = vld [vmem:[%s3437 + $0x160] sm:$0xff]
        %v3483 = vld [vmem:[%s3437 + $0x168] sm:$0xff]
        %v3484 = vld [vmem:[%s3437 + $0x170] sm:$0xff]
        %v3485 = vld [vmem:[%s3437 + $0x178] sm:$0xff]
        %v3486 = vld [vmem:[%s3437 + $0x180] sm:$0xff]
        %v3487 = vld [vmem:[%s3437 + $0x188] sm:$0xff]
        %v3488 = vld [vmem:[%s3437 + $0x190] sm:$0xff]
        %v3489 = vld [vmem:[%s3437 + $0x198] sm:$0xff]
        %v3490 = vld [vmem:[%s3437 + $0x1a0] sm:$0xff]
        %v3491 = vld [vmem:[%s3437 + $0x1a8] sm:$0xff]
        %v3492 = vld [vmem:[%s3437 + $0x1b0] sm:$0xff]
        %v3493 = vld [vmem:[%s3437 + $0x1b8] sm:$0xff]
        %v3494 = vld [vmem:[%s3437 + $0x1c0] sm:$0xff]
        %v3495 = vld [vmem:[%s3437 + $0x1c8] sm:$0xff]
        %v3496 = vld [vmem:[%s3437 + $0x1d0] sm:$0xff]
        %v3497 = vld [vmem:[%s3437 + $0x1d8] sm:$0xff]
        %v3498 = vld [vmem:[%s3437 + $0x1e0] sm:$0xff]
        %v3499 = vld [vmem:[%s3437 + $0x1e8] sm:$0xff]
        %v3500 = vld [vmem:[%s3437 + $0x1f0] sm:$0xff]
        %v3501 = vld [vmem:[%s3437 + $0x1f8] sm:$0xff]
        %v3503 = vshrl.u32 %v3365, 16
        %v3505 = vshll.u32 %v3365, 16
        %v3507 = vrot.slane %v3505, 1
        %v3508 = vor.u32 %v3503, %v3507
        %v3510 = vshll.u32 %v3328, 16
        %v3512 = vrot.slane %v3510, 1
        %v3513 = vsel %vm1082, %v3508, %v3512
        %v3515 = vshrl.u32 %v3366, 16
        %v3517 = vshll.u32 %v3366, 16
        %v3519 = vrot.slane %v3517, 1
        %v3520 = vor.u32 %v3515, %v3519
        %v3522 = vshll.u32 %v3336, 16
        %v3524 = vrot.slane %v3522, 1
        %v3525 = vsel %vm1082, %v3520, %v3524
        %v3527 = vshrl.u32 %v3367, 16
        %v3529 = vshll.u32 %v3367, 16
        %v3531 = vrot.slane %v3529, 1
        %v3532 = vor.u32 %v3527, %v3531
        %v3534 = vshll.u32 %v3344, 16
        %v3536 = vrot.slane %v3534, 1
        %v3537 = vsel %vm1082, %v3532, %v3536
        %v3539 = vshrl.u32 %v3368, 16
        %v3541 = vshll.u32 %v3368, 16
        %v3543 = vrot.slane %v3541, 1
        %v3544 = vor.u32 %v3539, %v3543
        %v3546 = vshll.u32 %v3352, 16
        %v3548 = vrot.slane %v3546, 1
        %v3549 = vsel %vm1082, %v3544, %v3548
        %v3550 = vshrl.u32 %v3328, 16
        %v3552 = vor.u32 %v3550, %v3512
        %v3554 = vshll.u32 %v3369, 16
        %v3556 = vrot.slane %v3554, 1
        %v3557 = vsel %vm1082, %v3552, %v3556
        %v3558 = vshrl.u32 %v3336, 16
        %v3560 = vor.u32 %v3558, %v3524
        %v3562 = vshll.u32 %v3370, 16
        %v3564 = vrot.slane %v3562, 1
        %v3565 = vsel %vm1082, %v3560, %v3564
        %v3566 = vshrl.u32 %v3344, 16
        %v3568 = vor.u32 %v3566, %v3536
        %v3570 = vshll.u32 %v3371, 16
        %v3572 = vrot.slane %v3570, 1
        %v3573 = vsel %vm1082, %v3568, %v3572
        %v3574 = vshrl.u32 %v3352, 16
        %v3576 = vor.u32 %v3574, %v3548
        %v3578 = vshll.u32 %v3372, 16
        %v3580 = vrot.slane %v3578, 1
        %v3581 = vsel %vm1082, %v3576, %v3580
        %v3654 = vunpack.c.l.b16 %v3438
        %v3655 = vunpack.c.h.b16 %v3438
        %v3656 = vunpack.c.l.b16 %v3439
        %v3657 = vunpack.c.h.b16 %v3439
        %v3658 = vunpack.c.l.b16 %v3440
        %v3659 = vunpack.c.h.b16 %v3440
        %v3660 = vunpack.c.l.b16 %v3441
        %v3661 = vunpack.c.h.b16 %v3441
        %v3662 = vunpack.c.l.b16 %v3442
        %v3663 = vunpack.c.h.b16 %v3442
        %v3664 = vunpack.c.l.b16 %v3443
        %v3665 = vunpack.c.h.b16 %v3443
        %v3666 = vunpack.c.l.b16 %v3444
        %v3667 = vunpack.c.h.b16 %v3444
        %v3668 = vunpack.c.l.b16 %v3445
        %v3669 = vunpack.c.h.b16 %v3445
        %v3670 = vunpack.c.l.b16 %v3446
        %v3671 = vunpack.c.h.b16 %v3446
        %v3672 = vunpack.c.l.b16 %v3447
        %v3673 = vunpack.c.h.b16 %v3447
        %v3674 = vunpack.c.l.b16 %v3448
        %v3675 = vunpack.c.h.b16 %v3448
        %v3676 = vunpack.c.l.b16 %v3449
        %v3677 = vunpack.c.h.b16 %v3449
        %v3678 = vunpack.c.l.b16 %v3450
        %v3679 = vunpack.c.h.b16 %v3450
        %v3680 = vunpack.c.l.b16 %v3451
        %v3681 = vunpack.c.h.b16 %v3451
        %v3682 = vunpack.c.l.b16 %v3452
        %v3683 = vunpack.c.h.b16 %v3452
        %v3684 = vunpack.c.l.b16 %v3453
        %v3685 = vunpack.c.h.b16 %v3453
        %v3686 = vunpack.c.l.b16 %v3454
        %v3687 = vunpack.c.h.b16 %v3454
        %v3688 = vunpack.c.l.b16 %v3455
        %v3689 = vunpack.c.h.b16 %v3455
        %v3690 = vunpack.c.l.b16 %v3456
        %v3691 = vunpack.c.h.b16 %v3456
        %v3692 = vunpack.c.l.b16 %v3457
        %v3693 = vunpack.c.h.b16 %v3457
        %v3694 = vunpack.c.l.b16 %v3458
        %v3695 = vunpack.c.h.b16 %v3458
        %v3696 = vunpack.c.l.b16 %v3459
        %v3697 = vunpack.c.h.b16 %v3459
        %v3698 = vunpack.c.l.b16 %v3460
        %v3699 = vunpack.c.h.b16 %v3460
        %v3700 = vunpack.c.l.b16 %v3461
        %v3701 = vunpack.c.h.b16 %v3461
        %v3702 = vunpack.c.l.b16 %v3462
        %v3703 = vunpack.c.h.b16 %v3462
        %v3704 = vunpack.c.l.b16 %v3463
        %v3705 = vunpack.c.h.b16 %v3463
        %v3706 = vunpack.c.l.b16 %v3464
        %v3707 = vunpack.c.h.b16 %v3464
        %v3708 = vunpack.c.l.b16 %v3465
        %v3709 = vunpack.c.h.b16 %v3465
        %v3710 = vunpack.c.l.b16 %v3466
        %v3711 = vunpack.c.h.b16 %v3466
        %v3712 = vunpack.c.l.b16 %v3467
        %v3713 = vunpack.c.h.b16 %v3467
        %v3714 = vunpack.c.l.b16 %v3468
        %v3715 = vunpack.c.h.b16 %v3468
        %v3716 = vunpack.c.l.b16 %v3469
        %v3717 = vunpack.c.h.b16 %v3469
        %v3718 = vunpack.c.l.b16 %v3470
        %v3719 = vunpack.c.h.b16 %v3470
        %v3720 = vunpack.c.l.b16 %v3471
        %v3721 = vunpack.c.h.b16 %v3471
        %v3722 = vunpack.c.l.b16 %v3472
        %v3723 = vunpack.c.h.b16 %v3472
        %v3724 = vunpack.c.l.b16 %v3473
        %v3725 = vunpack.c.h.b16 %v3473
        %v3726 = vunpack.c.l.b16 %v3474
        %v3727 = vunpack.c.h.b16 %v3474
        %v3728 = vunpack.c.l.b16 %v3475
        %v3729 = vunpack.c.h.b16 %v3475
        %v3730 = vunpack.c.l.b16 %v3476
        %v3731 = vunpack.c.h.b16 %v3476
        %v3732 = vunpack.c.l.b16 %v3477
        %v3733 = vunpack.c.h.b16 %v3477
        %v3734 = vunpack.c.l.b16 %v3478
        %v3735 = vunpack.c.h.b16 %v3478
        %v3736 = vunpack.c.l.b16 %v3479
        %v3737 = vunpack.c.h.b16 %v3479
        %v3738 = vunpack.c.l.b16 %v3480
        %v3739 = vunpack.c.h.b16 %v3480
        %v3740 = vunpack.c.l.b16 %v3481
        %v3741 = vunpack.c.h.b16 %v3481
        %v3742 = vunpack.c.l.b16 %v3482
        %v3743 = vunpack.c.h.b16 %v3482
        %v3744 = vunpack.c.l.b16 %v3483
        %v3745 = vunpack.c.h.b16 %v3483
        %v3746 = vunpack.c.l.b16 %v3484
        %v3747 = vunpack.c.h.b16 %v3484
        %v3748 = vunpack.c.l.b16 %v3485
        %v3749 = vunpack.c.h.b16 %v3485
        %v3750 = vunpack.c.l.b16 %v3486
        %v3751 = vunpack.c.h.b16 %v3486
        %v3752 = vunpack.c.l.b16 %v3487
        %v3753 = vunpack.c.h.b16 %v3487
        %v3754 = vunpack.c.l.b16 %v3488
        %v3755 = vunpack.c.h.b16 %v3488
        %v3756 = vunpack.c.l.b16 %v3489
        %v3757 = vunpack.c.h.b16 %v3489
        %v3758 = vunpack.c.l.b16 %v3490
        %v3759 = vunpack.c.h.b16 %v3490
        %v3760 = vunpack.c.l.b16 %v3491
        %v3761 = vunpack.c.h.b16 %v3491
        %v3762 = vunpack.c.l.b16 %v3492
        %v3763 = vunpack.c.h.b16 %v3492
        %v3764 = vunpack.c.l.b16 %v3493
        %v3765 = vunpack.c.h.b16 %v3493
        %v3766 = vunpack.c.l.b16 %v3494
        %v3767 = vunpack.c.h.b16 %v3494
        %v3768 = vunpack.c.l.b16 %v3495
        %v3769 = vunpack.c.h.b16 %v3495
        %v3770 = vunpack.c.l.b16 %v3496
        %v3771 = vunpack.c.h.b16 %v3496
        %v3772 = vunpack.c.l.b16 %v3497
        %v3773 = vunpack.c.h.b16 %v3497
        %v3774 = vunpack.c.l.b16 %v3498
        %v3775 = vunpack.c.h.b16 %v3498
        %v3776 = vunpack.c.l.b16 %v3499
        %v3777 = vunpack.c.h.b16 %v3499
        %v3778 = vunpack.c.l.b16 %v3500
        %v3779 = vunpack.c.h.b16 %v3500
        %v3780 = vunpack.c.l.b16 %v3501
        %v3781 = vunpack.c.h.b16 %v3501
        %v3782 = vpack.c.b16 %v3656, %v3654
        %v3783 = vpack.c.b16 %v3657, %v3655
        %v3784 = vpack.c.b16 %v3660, %v3658
        %v3785 = vpack.c.b16 %v3661, %v3659
        %v3786 = vpack.c.b16 %v3664, %v3662
        %v3787 = vpack.c.b16 %v3665, %v3663
        %v3788 = vpack.c.b16 %v3668, %v3666
        %v3789 = vpack.c.b16 %v3669, %v3667
        %v3790 = vpack.c.b16 %v3672, %v3670
        %v3791 = vpack.c.b16 %v3673, %v3671
        %v3792 = vpack.c.b16 %v3676, %v3674
        %v3793 = vpack.c.b16 %v3677, %v3675
        %v3794 = vpack.c.b16 %v3680, %v3678
        %v3795 = vpack.c.b16 %v3681, %v3679
        %v3796 = vpack.c.b16 %v3684, %v3682
        %v3797 = vpack.c.b16 %v3685, %v3683
        %v3798 = vpack.c.b16 %v3688, %v3686
        %v3799 = vpack.c.b16 %v3689, %v3687
        %v3800 = vpack.c.b16 %v3692, %v3690
        %v3801 = vpack.c.b16 %v3693, %v3691
        %v3802 = vpack.c.b16 %v3696, %v3694
        %v3803 = vpack.c.b16 %v3697, %v3695
        %v3804 = vpack.c.b16 %v3700, %v3698
        %v3805 = vpack.c.b16 %v3701, %v3699
        %v3806 = vpack.c.b16 %v3704, %v3702
        %v3807 = vpack.c.b16 %v3705, %v3703
        %v3808 = vpack.c.b16 %v3708, %v3706
        %v3809 = vpack.c.b16 %v3709, %v3707
        %v3810 = vpack.c.b16 %v3712, %v3710
        %v3811 = vpack.c.b16 %v3713, %v3711
        %v3812 = vpack.c.b16 %v3716, %v3714
        %v3813 = vpack.c.b16 %v3717, %v3715
        %v3814 = vpack.c.b16 %v3720, %v3718
        %v3815 = vpack.c.b16 %v3721, %v3719
        %v3816 = vpack.c.b16 %v3724, %v3722
        %v3817 = vpack.c.b16 %v3725, %v3723
        %v3818 = vpack.c.b16 %v3728, %v3726
        %v3819 = vpack.c.b16 %v3729, %v3727
        %v3820 = vpack.c.b16 %v3732, %v3730
        %v3821 = vpack.c.b16 %v3733, %v3731
        %v3822 = vpack.c.b16 %v3736, %v3734
        %v3823 = vpack.c.b16 %v3737, %v3735
        %v3824 = vpack.c.b16 %v3740, %v3738
        %v3825 = vpack.c.b16 %v3741, %v3739
        %v3826 = vpack.c.b16 %v3744, %v3742
        %v3827 = vpack.c.b16 %v3745, %v3743
        %v3828 = vpack.c.b16 %v3748, %v3746
        %v3829 = vpack.c.b16 %v3749, %v3747
        %v3830 = vpack.c.b16 %v3752, %v3750
        %v3831 = vpack.c.b16 %v3753, %v3751
        %v3832 = vpack.c.b16 %v3756, %v3754
        %v3833 = vpack.c.b16 %v3757, %v3755
        %v3834 = vpack.c.b16 %v3760, %v3758
        %v3835 = vpack.c.b16 %v3761, %v3759
        %v3836 = vpack.c.b16 %v3764, %v3762
        %v3837 = vpack.c.b16 %v3765, %v3763
        %v3838 = vpack.c.b16 %v3768, %v3766
        %v3839 = vpack.c.b16 %v3769, %v3767
        %v3840 = vpack.c.b16 %v3772, %v3770
        %v3841 = vpack.c.b16 %v3773, %v3771
        %v3842 = vpack.c.b16 %v3776, %v3774
        %v3843 = vpack.c.b16 %v3777, %v3775
        %v3844 = vpack.c.b16 %v3780, %v3778
        %v3845 = vpack.c.b16 %v3781, %v3779
        %3910 = vmatpush.bf16.msra.mxu0 %v3796
        %3911 = vmatpush.bf16.msra.mxu0 %v3794
        %3912 = vmatpush.bf16.msra.mxu0 %v3792
        %3913 = vmatpush.bf16.msra.mxu0 %v3790
        %3914 = vmatpush.bf16.msra.mxu0 %v3788
        %3915 = vmatpush.bf16.msra.mxu0 %v3786
        %3916 = vmatpush.bf16.msra.mxu0 %v3784
        %3917 = vmatpush.bf16.msra.mxu0 %v3782
        %3918 = vmatmul.bf16.gmra.mxu0 %v3513
        %v3919 = vpop.f32.mrf.mxu0
        %v3920 = vadd.f32 0.0, %v3919
        %v3921 = vpop.f32.mrf.mxu0
        %v3922 = vadd.f32 0.0, %v3921
        %3923 = vmatmul.bf16.gmra.mxu0 %v3557
        %v3924 = vpop.f32.mrf.mxu0
        %v3925 = vadd.f32 0.0, %v3924
        %v3926 = vpop.f32.mrf.mxu0
        %v3927 = vadd.f32 0.0, %v3926
        %3928 = vdwg.mxu0
        %3929 = vmatpush.bf16.msra.mxu0 %v3812
        %3930 = vmatpush.bf16.msra.mxu0 %v3810
        %3931 = vmatpush.bf16.msra.mxu0 %v3808
        %3932 = vmatpush.bf16.msra.mxu0 %v3806
        %3933 = vmatpush.bf16.msra.mxu0 %v3804
        %3934 = vmatpush.bf16.msra.mxu0 %v3802
        %3935 = vmatpush.bf16.msra.mxu0 %v3800
        %3936 = vmatpush.bf16.msra.mxu0 %v3798
        %3937 = vmatmul.bf16.gmra.mxu0 %v3525
        %v3938 = vpop.f32.mrf.mxu0
        %v3939 = vadd.f32 %v3920, %v3938
        %v3940 = vpop.f32.mrf.mxu0
        %v3941 = vadd.f32 %v3922, %v3940
        %3942 = vmatmul.bf16.gmra.mxu0 %v3565
        %v3943 = vpop.f32.mrf.mxu0
        %v3944 = vadd.f32 %v3925, %v3943
        %v3945 = vpop.f32.mrf.mxu0
        %v3946 = vadd.f32 %v3927, %v3945
        %3947 = vdwg.mxu0
        %3948 = vmatpush.bf16.msra.mxu0 %v3828
        %3949 = vmatpush.bf16.msra.mxu0 %v3826
        %3950 = vmatpush.bf16.msra.mxu0 %v3824
        %3951 = vmatpush.bf16.msra.mxu0 %v3822
        %3952 = vmatpush.bf16.msra.mxu0 %v3820
        %3953 = vmatpush.bf16.msra.mxu0 %v3818
        %3954 = vmatpush.bf16.msra.mxu0 %v3816
        %3955 = vmatpush.bf16.msra.mxu0 %v3814
        %3956 = vmatmul.bf16.gmra.mxu0 %v3537
        %v3957 = vpop.f32.mrf.mxu0
        %v3958 = vadd.f32 %v3939, %v3957
        %v3959 = vpop.f32.mrf.mxu0
        %v3960 = vadd.f32 %v3941, %v3959
        %3961 = vmatmul.bf16.gmra.mxu0 %v3573
        %v3962 = vpop.f32.mrf.mxu0
        %v3963 = vadd.f32 %v3944, %v3962
        %v3964 = vpop.f32.mrf.mxu0
        %v3965 = vadd.f32 %v3946, %v3964
        %3966 = vdwg.mxu0
        %3967 = vmatpush.bf16.msra.mxu0 %v3844
        %3968 = vmatpush.bf16.msra.mxu0 %v3842
        %3969 = vmatpush.bf16.msra.mxu0 %v3840
        %3970 = vmatpush.bf16.msra.mxu0 %v3838
        %3971 = vmatpush.bf16.msra.mxu0 %v3836
        %3972 = vmatpush.bf16.msra.mxu0 %v3834
        %3973 = vmatpush.bf16.msra.mxu0 %v3832
        %3974 = vmatpush.bf16.msra.mxu0 %v3830
        %3975 = vmatmul.bf16.gmra.mxu0 %v3549
        %v3976 = vpop.f32.mrf.mxu0
        %v3977 = vadd.f32 %v3958, %v3976
        %v3978 = vpop.f32.mrf.mxu0
        %v3979 = vadd.f32 %v3960, %v3978
        %3980 = vmatmul.bf16.gmra.mxu0 %v3581
        %v3981 = vpop.f32.mrf.mxu0
        %v3982 = vadd.f32 %v3963, %v3981
        %v3983 = vpop.f32.mrf.mxu0
        %v3984 = vadd.f32 %v3965, %v3983
        %3985 = vdwg.mxu0
        %3986 = vmatpush.bf16.msra.mxu0 %v3797
        %3987 = vmatpush.bf16.msra.mxu0 %v3795
        %3988 = vmatpush.bf16.msra.mxu0 %v3793
        %3989 = vmatpush.bf16.msra.mxu0 %v3791
        %3990 = vmatpush.bf16.msra.mxu0 %v3789
        %3991 = vmatpush.bf16.msra.mxu0 %v3787
        %3992 = vmatpush.bf16.msra.mxu0 %v3785
        %3993 = vmatpush.bf16.msra.mxu0 %v3783
        %3994 = vmatmul.bf16.gmra.mxu0 %v3513
        %v3995 = vpop.f32.mrf.mxu0
        %v3996 = vadd.f32 0.0, %v3995
        %v3997 = vpop.f32.mrf.mxu0
        %v3998 = vadd.f32 0.0, %v3997
        %3999 = vmatmul.bf16.gmra.mxu0 %v3557
        %v4000 = vpop.f32.mrf.mxu0
        %v4001 = vadd.f32 0.0, %v4000
        %v4002 = vpop.f32.mrf.mxu0
        %v4003 = vadd.f32 0.0, %v4002
        %4004 = vdwg.mxu0
        %4005 = vmatpush.bf16.msra.mxu0 %v3813
        %4006 = vmatpush.bf16.msra.mxu0 %v3811
        %4007 = vmatpush.bf16.msra.mxu0 %v3809
        %4008 = vmatpush.bf16.msra.mxu0 %v3807
        %4009 = vmatpush.bf16.msra.mxu0 %v3805
        %4010 = vmatpush.bf16.msra.mxu0 %v3803
        %4011 = vmatpush.bf16.msra.mxu0 %v3801
        %4012 = vmatpush.bf16.msra.mxu0 %v3799
        %4013 = vmatmul.bf16.gmra.mxu0 %v3525
        %v4014 = vpop.f32.mrf.mxu0
        %v4015 = vadd.f32 %v3996, %v4014
        %v4016 = vpop.f32.mrf.mxu0
        %v4017 = vadd.f32 %v3998, %v4016
        %4018 = vmatmul.bf16.gmra.mxu0 %v3565
        %v4019 = vpop.f32.mrf.mxu0
        %v4020 = vadd.f32 %v4001, %v4019
        %v4021 = vpop.f32.mrf.mxu0
        %v4022 = vadd.f32 %v4003, %v4021
        %4023 = vdwg.mxu0
        %4024 = vmatpush.bf16.msra.mxu0 %v3829
        %4025 = vmatpush.bf16.msra.mxu0 %v3827
        %4026 = vmatpush.bf16.msra.mxu0 %v3825
        %4027 = vmatpush.bf16.msra.mxu0 %v3823
        %4028 = vmatpush.bf16.msra.mxu0 %v3821
        %4029 = vmatpush.bf16.msra.mxu0 %v3819
        %4030 = vmatpush.bf16.msra.mxu0 %v3817
        %4031 = vmatpush.bf16.msra.mxu0 %v3815
        %4032 = vmatmul.bf16.gmra.mxu0 %v3537
        %v4033 = vpop.f32.mrf.mxu0
        %v4034 = vadd.f32 %v4015, %v4033
        %v4035 = vpop.f32.mrf.mxu0
        %v4036 = vadd.f32 %v4017, %v4035
        %4037 = vmatmul.bf16.gmra.mxu0 %v3573
        %v4038 = vpop.f32.mrf.mxu0
        %v4039 = vadd.f32 %v4020, %v4038
        %v4040 = vpop.f32.mrf.mxu0
        %v4041 = vadd.f32 %v4022, %v4040
        %4042 = vdwg.mxu0
        %4043 = vmatpush.bf16.msra.mxu0 %v3845
        %4044 = vmatpush.bf16.msra.mxu0 %v3843
        %4045 = vmatpush.bf16.msra.mxu0 %v3841
        %4046 = vmatpush.bf16.msra.mxu0 %v3839
        %4047 = vmatpush.bf16.msra.mxu0 %v3837
        %4048 = vmatpush.bf16.msra.mxu0 %v3835
        %4049 = vmatpush.bf16.msra.mxu0 %v3833
        %4050 = vmatpush.bf16.msra.mxu0 %v3831
        %4051 = vmatmul.bf16.gmra.mxu0 %v3549
        %v4052 = vpop.f32.mrf.mxu0
        %v4053 = vadd.f32 %v4034, %v4052
        %v4054 = vpop.f32.mrf.mxu0
        %v4055 = vadd.f32 %v4036, %v4054
        %4056 = vmatmul.bf16.gmra.mxu0 %v3581
        %v4057 = vpop.f32.mrf.mxu0
        %v4058 = vadd.f32 %v4039, %v4057
        %v4059 = vpop.f32.mrf.mxu0
        %v4060 = vadd.f32 %v4041, %v4059
        %4061 = vdwg.mxu0
        %v4126 = vunpack.c.l.b16 %v3373
        %v4127 = vunpack.c.h.b16 %v3373
        %v4128 = vunpack.c.l.b16 %v3374
        %v4129 = vunpack.c.h.b16 %v3374
        %v4130 = vunpack.c.l.b16 %v3375
        %v4131 = vunpack.c.h.b16 %v3375
        %v4132 = vunpack.c.l.b16 %v3376
        %v4133 = vunpack.c.h.b16 %v3376
        %v4134 = vunpack.c.l.b16 %v3377
        %v4135 = vunpack.c.h.b16 %v3377
        %v4136 = vunpack.c.l.b16 %v3378
        %v4137 = vunpack.c.h.b16 %v3378
        %v4138 = vunpack.c.l.b16 %v3379
        %v4139 = vunpack.c.h.b16 %v3379
        %v4140 = vunpack.c.l.b16 %v3380
        %v4141 = vunpack.c.h.b16 %v3380
        %v4142 = vunpack.c.l.b16 %v3381
        %v4143 = vunpack.c.h.b16 %v3381
        %v4144 = vunpack.c.l.b16 %v3382
        %v4145 = vunpack.c.h.b16 %v3382
        %v4146 = vunpack.c.l.b16 %v3383
        %v4147 = vunpack.c.h.b16 %v3383
        %v4148 = vunpack.c.l.b16 %v3384
        %v4149 = vunpack.c.h.b16 %v3384
        %v4150 = vunpack.c.l.b16 %v3385
        %v4151 = vunpack.c.h.b16 %v3385
        %v4152 = vunpack.c.l.b16 %v3386
        %v4153 = vunpack.c.h.b16 %v3386
        %v4154 = vunpack.c.l.b16 %v3387
        %v4155 = vunpack.c.h.b16 %v3387
        %v4156 = vunpack.c.l.b16 %v3388
        %v4157 = vunpack.c.h.b16 %v3388
        %v4158 = vunpack.c.l.b16 %v3389
        %v4159 = vunpack.c.h.b16 %v3389
        %v4160 = vunpack.c.l.b16 %v3390
        %v4161 = vunpack.c.h.b16 %v3390
        %v4162 = vunpack.c.l.b16 %v3391
        %v4163 = vunpack.c.h.b16 %v3391
        %v4164 = vunpack.c.l.b16 %v3392
        %v4165 = vunpack.c.h.b16 %v3392
        %v4166 = vunpack.c.l.b16 %v3393
        %v4167 = vunpack.c.h.b16 %v3393
        %v4168 = vunpack.c.l.b16 %v3394
        %v4169 = vunpack.c.h.b16 %v3394
        %v4170 = vunpack.c.l.b16 %v3395
        %v4171 = vunpack.c.h.b16 %v3395
        %v4172 = vunpack.c.l.b16 %v3396
        %v4173 = vunpack.c.h.b16 %v3396
        %v4174 = vunpack.c.l.b16 %v3397
        %v4175 = vunpack.c.h.b16 %v3397
        %v4176 = vunpack.c.l.b16 %v3398
        %v4177 = vunpack.c.h.b16 %v3398
        %v4178 = vunpack.c.l.b16 %v3399
        %v4179 = vunpack.c.h.b16 %v3399
        %v4180 = vunpack.c.l.b16 %v3400
        %v4181 = vunpack.c.h.b16 %v3400
        %v4182 = vunpack.c.l.b16 %v3401
        %v4183 = vunpack.c.h.b16 %v3401
        %v4184 = vunpack.c.l.b16 %v3402
        %v4185 = vunpack.c.h.b16 %v3402
        %v4186 = vunpack.c.l.b16 %v3403
        %v4187 = vunpack.c.h.b16 %v3403
        %v4188 = vunpack.c.l.b16 %v3404
        %v4189 = vunpack.c.h.b16 %v3404
        %v4190 = vunpack.c.l.b16 %v3405
        %v4191 = vunpack.c.h.b16 %v3405
        %v4192 = vunpack.c.l.b16 %v3406
        %v4193 = vunpack.c.h.b16 %v3406
        %v4194 = vunpack.c.l.b16 %v3407
        %v4195 = vunpack.c.h.b16 %v3407
        %v4196 = vunpack.c.l.b16 %v3408
        %v4197 = vunpack.c.h.b16 %v3408
        %v4198 = vunpack.c.l.b16 %v3409
        %v4199 = vunpack.c.h.b16 %v3409
        %v4200 = vunpack.c.l.b16 %v3410
        %v4201 = vunpack.c.h.b16 %v3410
        %v4202 = vunpack.c.l.b16 %v3411
        %v4203 = vunpack.c.h.b16 %v3411
        %v4204 = vunpack.c.l.b16 %v3412
        %v4205 = vunpack.c.h.b16 %v3412
        %v4206 = vunpack.c.l.b16 %v3413
        %v4207 = vunpack.c.h.b16 %v3413
        %v4208 = vunpack.c.l.b16 %v3414
        %v4209 = vunpack.c.h.b16 %v3414
        %v4210 = vunpack.c.l.b16 %v3415
        %v4211 = vunpack.c.h.b16 %v3415
        %v4212 = vunpack.c.l.b16 %v3416
        %v4213 = vunpack.c.h.b16 %v3416
        %v4214 = vunpack.c.l.b16 %v3417
        %v4215 = vunpack.c.h.b16 %v3417
        %v4216 = vunpack.c.l.b16 %v3418
        %v4217 = vunpack.c.h.b16 %v3418
        %v4218 = vunpack.c.l.b16 %v3419
        %v4219 = vunpack.c.h.b16 %v3419
        %v4220 = vunpack.c.l.b16 %v3420
        %v4221 = vunpack.c.h.b16 %v3420
        %v4222 = vunpack.c.l.b16 %v3421
        %v4223 = vunpack.c.h.b16 %v3421
        %v4224 = vunpack.c.l.b16 %v3422
        %v4225 = vunpack.c.h.b16 %v3422
        %v4226 = vunpack.c.l.b16 %v3423
        %v4227 = vunpack.c.h.b16 %v3423
        %v4228 = vunpack.c.l.b16 %v3424
        %v4229 = vunpack.c.h.b16 %v3424
        %v4230 = vunpack.c.l.b16 %v3425
        %v4231 = vunpack.c.h.b16 %v3425
        %v4232 = vunpack.c.l.b16 %v3426
        %v4233 = vunpack.c.h.b16 %v3426
        %v4234 = vunpack.c.l.b16 %v3427
        %v4235 = vunpack.c.h.b16 %v3427
        %v4236 = vunpack.c.l.b16 %v3428
        %v4237 = vunpack.c.h.b16 %v3428
        %v4238 = vunpack.c.l.b16 %v3429
        %v4239 = vunpack.c.h.b16 %v3429
        %v4240 = vunpack.c.l.b16 %v3430
        %v4241 = vunpack.c.h.b16 %v3430
        %v4242 = vunpack.c.l.b16 %v3431
        %v4243 = vunpack.c.h.b16 %v3431
        %v4244 = vunpack.c.l.b16 %v3432
        %v4245 = vunpack.c.h.b16 %v3432
        %v4246 = vunpack.c.l.b16 %v3433
        %v4247 = vunpack.c.h.b16 %v3433
        %v4248 = vunpack.c.l.b16 %v3434
        %v4249 = vunpack.c.h.b16 %v3434
        %v4250 = vunpack.c.l.b16 %v3435
        %v4251 = vunpack.c.h.b16 %v3435
        %v4252 = vunpack.c.l.b16 %v3436
        %v4253 = vunpack.c.h.b16 %v3436
        %v4254 = vpack.c.b16 %v4128, %v4126
        %v4255 = vpack.c.b16 %v4129, %v4127
        %v4256 = vpack.c.b16 %v4132, %v4130
        %v4257 = vpack.c.b16 %v4133, %v4131
        %v4258 = vpack.c.b16 %v4136, %v4134
        %v4259 = vpack.c.b16 %v4137, %v4135
        %v4260 = vpack.c.b16 %v4140, %v4138
        %v4261 = vpack.c.b16 %v4141, %v4139
        %v4262 = vpack.c.b16 %v4144, %v4142
        %v4263 = vpack.c.b16 %v4145, %v4143
        %v4264 = vpack.c.b16 %v4148, %v4146
        %v4265 = vpack.c.b16 %v4149, %v4147
        %v4266 = vpack.c.b16 %v4152, %v4150
        %v4267 = vpack.c.b16 %v4153, %v4151
        %v4268 = vpack.c.b16 %v4156, %v4154
        %v4269 = vpack.c.b16 %v4157, %v4155
        %v4270 = vpack.c.b16 %v4160, %v4158
        %v4271 = vpack.c.b16 %v4161, %v4159
        %v4272 = vpack.c.b16 %v4164, %v4162
        %v4273 = vpack.c.b16 %v4165, %v4163
        %v4274 = vpack.c.b16 %v4168, %v4166
        %v4275 = vpack.c.b16 %v4169, %v4167
        %v4276 = vpack.c.b16 %v4172, %v4170
        %v4277 = vpack.c.b16 %v4173, %v4171
        %v4278 = vpack.c.b16 %v4176, %v4174
        %v4279 = vpack.c.b16 %v4177, %v4175
        %v4280 = vpack.c.b16 %v4180, %v4178
        %v4281 = vpack.c.b16 %v4181, %v4179
        %v4282 = vpack.c.b16 %v4184, %v4182
        %v4283 = vpack.c.b16 %v4185, %v4183
        %v4284 = vpack.c.b16 %v4188, %v4186
        %v4285 = vpack.c.b16 %v4189, %v4187
        %v4286 = vpack.c.b16 %v4192, %v4190
        %v4287 = vpack.c.b16 %v4193, %v4191
        %v4288 = vpack.c.b16 %v4196, %v4194
        %v4289 = vpack.c.b16 %v4197, %v4195
        %v4290 = vpack.c.b16 %v4200, %v4198
        %v4291 = vpack.c.b16 %v4201, %v4199
        %v4292 = vpack.c.b16 %v4204, %v4202
        %v4293 = vpack.c.b16 %v4205, %v4203
        %v4294 = vpack.c.b16 %v4208, %v4206
        %v4295 = vpack.c.b16 %v4209, %v4207
        %v4296 = vpack.c.b16 %v4212, %v4210
        %v4297 = vpack.c.b16 %v4213, %v4211
        %v4298 = vpack.c.b16 %v4216, %v4214
        %v4299 = vpack.c.b16 %v4217, %v4215
        %v4300 = vpack.c.b16 %v4220, %v4218
        %v4301 = vpack.c.b16 %v4221, %v4219
        %v4302 = vpack.c.b16 %v4224, %v4222
        %v4303 = vpack.c.b16 %v4225, %v4223
        %v4304 = vpack.c.b16 %v4228, %v4226
        %v4305 = vpack.c.b16 %v4229, %v4227
        %v4306 = vpack.c.b16 %v4232, %v4230
        %v4307 = vpack.c.b16 %v4233, %v4231
        %v4308 = vpack.c.b16 %v4236, %v4234
        %v4309 = vpack.c.b16 %v4237, %v4235
        %v4310 = vpack.c.b16 %v4240, %v4238
        %v4311 = vpack.c.b16 %v4241, %v4239
        %v4312 = vpack.c.b16 %v4244, %v4242
        %v4313 = vpack.c.b16 %v4245, %v4243
        %v4314 = vpack.c.b16 %v4248, %v4246
        %v4315 = vpack.c.b16 %v4249, %v4247
        %v4316 = vpack.c.b16 %v4252, %v4250
        %v4317 = vpack.c.b16 %v4253, %v4251
        %4382 = vmatpush.bf16.msra.mxu0 %v4268
        %4383 = vmatpush.bf16.msra.mxu0 %v4266
        %4384 = vmatpush.bf16.msra.mxu0 %v4264
        %4385 = vmatpush.bf16.msra.mxu0 %v4262
        %4386 = vmatpush.bf16.msra.mxu0 %v4260
        %4387 = vmatpush.bf16.msra.mxu0 %v4258
        %4388 = vmatpush.bf16.msra.mxu0 %v4256
        %4389 = vmatpush.bf16.msra.mxu0 %v4254
        %4390 = vmatmul.bf16.gmra.mxu0 %v3365
        %v4391 = vpop.f32.mrf.mxu0
        %v4392 = vadd.f32 %v3977, %v4391
        %v4393 = vpop.f32.mrf.mxu0
        %v4394 = vadd.f32 %v3979, %v4393
        %4395 = vmatmul.bf16.gmra.mxu0 %v3328
        %v4396 = vpop.f32.mrf.mxu0
        %v4397 = vadd.f32 %v3982, %v4396
        %v4398 = vpop.f32.mrf.mxu0
        %v4399 = vadd.f32 %v3984, %v4398
        %4400 = vdwg.mxu0
        %4401 = vmatpush.bf16.msra.mxu0 %v4284
        %4402 = vmatpush.bf16.msra.mxu0 %v4282
        %4403 = vmatpush.bf16.msra.mxu0 %v4280
        %4404 = vmatpush.bf16.msra.mxu0 %v4278
        %4405 = vmatpush.bf16.msra.mxu0 %v4276
        %4406 = vmatpush.bf16.msra.mxu0 %v4274
        %4407 = vmatpush.bf16.msra.mxu0 %v4272
        %4408 = vmatpush.bf16.msra.mxu0 %v4270
        %4409 = vmatmul.bf16.gmra.mxu0 %v3366
        %v4410 = vpop.f32.mrf.mxu0
        %v4411 = vadd.f32 %v4392, %v4410
        %v4412 = vpop.f32.mrf.mxu0
        %v4413 = vadd.f32 %v4394, %v4412
        %4414 = vmatmul.bf16.gmra.mxu0 %v3336
        %v4415 = vpop.f32.mrf.mxu0
        %v4416 = vadd.f32 %v4397, %v4415
        %v4417 = vpop.f32.mrf.mxu0
        %v4418 = vadd.f32 %v4399, %v4417
        %4419 = vdwg.mxu0
        %4420 = vmatpush.bf16.msra.mxu0 %v4300
        %4421 = vmatpush.bf16.msra.mxu0 %v4298
        %4422 = vmatpush.bf16.msra.mxu0 %v4296
        %4423 = vmatpush.bf16.msra.mxu0 %v4294
        %4424 = vmatpush.bf16.msra.mxu0 %v4292
        %4425 = vmatpush.bf16.msra.mxu0 %v4290
        %4426 = vmatpush.bf16.msra.mxu0 %v4288
        %4427 = vmatpush.bf16.msra.mxu0 %v4286
        %4428 = vmatmul.bf16.gmra.mxu0 %v3367
        %v4429 = vpop.f32.mrf.mxu0
        %v4430 = vadd.f32 %v4411, %v4429
        %v4431 = vpop.f32.mrf.mxu0
        %v4432 = vadd.f32 %v4413, %v4431
        %4433 = vmatmul.bf16.gmra.mxu0 %v3344
        %v4434 = vpop.f32.mrf.mxu0
        %v4435 = vadd.f32 %v4416, %v4434
        %v4436 = vpop.f32.mrf.mxu0
        %v4437 = vadd.f32 %v4418, %v4436
        %4438 = vdwg.mxu0
        %4439 = vmatpush.bf16.msra.mxu0 %v4316
        %4440 = vmatpush.bf16.msra.mxu0 %v4314
        %4441 = vmatpush.bf16.msra.mxu0 %v4312
        %4442 = vmatpush.bf16.msra.mxu0 %v4310
        %4443 = vmatpush.bf16.msra.mxu0 %v4308
        %4444 = vmatpush.bf16.msra.mxu0 %v4306
        %4445 = vmatpush.bf16.msra.mxu0 %v4304
        %4446 = vmatpush.bf16.msra.mxu0 %v4302
        %4447 = vmatmul.bf16.gmra.mxu0 %v3368
        %v4448 = vpop.f32.mrf.mxu0
        %v4449 = vadd.f32 %v4430, %v4448
        %v4450 = vpop.f32.mrf.mxu0
        %v4451 = vadd.f32 %v4432, %v4450
        %4452 = vmatmul.bf16.gmra.mxu0 %v3352
        %v4453 = vpop.f32.mrf.mxu0
        %v4454 = vadd.f32 %v4435, %v4453
        %v4455 = vpop.f32.mrf.mxu0
        %v4456 = vadd.f32 %v4437, %v4455
        %4457 = vdwg.mxu0
        %4458 = vmatpush.bf16.msra.mxu0 %v4269
        %4459 = vmatpush.bf16.msra.mxu0 %v4267
        %4460 = vmatpush.bf16.msra.mxu0 %v4265
        %4461 = vmatpush.bf16.msra.mxu0 %v4263
        %4462 = vmatpush.bf16.msra.mxu0 %v4261
        %4463 = vmatpush.bf16.msra.mxu0 %v4259
        %4464 = vmatpush.bf16.msra.mxu0 %v4257
        %4465 = vmatpush.bf16.msra.mxu0 %v4255
        %4466 = vmatmul.bf16.gmra.mxu0 %v3365
        %v4467 = vpop.f32.mrf.mxu0
        %v4468 = vadd.f32 %v4053, %v4467
        %v4469 = vpop.f32.mrf.mxu0
        %v4470 = vadd.f32 %v4055, %v4469
        %4471 = vmatmul.bf16.gmra.mxu0 %v3328
        %v4472 = vpop.f32.mrf.mxu0
        %v4473 = vadd.f32 %v4058, %v4472
        %v4474 = vpop.f32.mrf.mxu0
        %v4475 = vadd.f32 %v4060, %v4474
        %4476 = vdwg.mxu0
        %4477 = vmatpush.bf16.msra.mxu0 %v4285
        %4478 = vmatpush.bf16.msra.mxu0 %v4283
        %4479 = vmatpush.bf16.msra.mxu0 %v4281
        %4480 = vmatpush.bf16.msra.mxu0 %v4279
        %4481 = vmatpush.bf16.msra.mxu0 %v4277
        %4482 = vmatpush.bf16.msra.mxu0 %v4275
        %4483 = vmatpush.bf16.msra.mxu0 %v4273
        %4484 = vmatpush.bf16.msra.mxu0 %v4271
        %4485 = vmatmul.bf16.gmra.mxu0 %v3366
        %v4486 = vpop.f32.mrf.mxu0
        %v4487 = vadd.f32 %v4468, %v4486
        %v4488 = vpop.f32.mrf.mxu0
        %v4489 = vadd.f32 %v4470, %v4488
        %4490 = vmatmul.bf16.gmra.mxu0 %v3336
        %v4491 = vpop.f32.mrf.mxu0
        %v4492 = vadd.f32 %v4473, %v4491
        %v4493 = vpop.f32.mrf.mxu0
        %v4494 = vadd.f32 %v4475, %v4493
        %4495 = vdwg.mxu0
        %4496 = vmatpush.bf16.msra.mxu0 %v4301
        %4497 = vmatpush.bf16.msra.mxu0 %v4299
        %4498 = vmatpush.bf16.msra.mxu0 %v4297
        %4499 = vmatpush.bf16.msra.mxu0 %v4295
        %4500 = vmatpush.bf16.msra.mxu0 %v4293
        %4501 = vmatpush.bf16.msra.mxu0 %v4291
        %4502 = vmatpush.bf16.msra.mxu0 %v4289
        %4503 = vmatpush.bf16.msra.mxu0 %v4287
        %4504 = vmatmul.bf16.gmra.mxu0 %v3367
        %v4505 = vpop.f32.mrf.mxu0
        %v4506 = vadd.f32 %v4487, %v4505
        %v4507 = vpop.f32.mrf.mxu0
        %v4508 = vadd.f32 %v4489, %v4507
        %4509 = vmatmul.bf16.gmra.mxu0 %v3344
        %v4510 = vpop.f32.mrf.mxu0
        %v4511 = vadd.f32 %v4492, %v4510
        %v4512 = vpop.f32.mrf.mxu0
        %v4513 = vadd.f32 %v4494, %v4512
        %4514 = vdwg.mxu0
        %4515 = vmatpush.bf16.msra.mxu0 %v4317
        %4516 = vmatpush.bf16.msra.mxu0 %v4315
        %4517 = vmatpush.bf16.msra.mxu0 %v4313
        %4518 = vmatpush.bf16.msra.mxu0 %v4311
        %4519 = vmatpush.bf16.msra.mxu0 %v4309
        %4520 = vmatpush.bf16.msra.mxu0 %v4307
        %4521 = vmatpush.bf16.msra.mxu0 %v4305
        %4522 = vmatpush.bf16.msra.mxu0 %v4303
        %4523 = vmatmul.bf16.gmra.mxu0 %v3368
        %v4524 = vpop.f32.mrf.mxu0
        %v4525 = vadd.f32 %v4506, %v4524
        %v4526 = vpop.f32.mrf.mxu0
        %v4527 = vadd.f32 %v4508, %v4526
        %4528 = vmatmul.bf16.gmra.mxu0 %v3352
        %v4529 = vpop.f32.mrf.mxu0
        %v4530 = vadd.f32 %v4511, %v4529
        %v4531 = vpop.f32.mrf.mxu0
        %v4532 = vadd.f32 %v4513, %v4531
        %4533 = vdwg.mxu0
        %s4534 = scalar_lea.vmem [#allocation6], 1024
        %v4535 = vld [vmem:[%s4534] sm:$0xff]
        %v4536 = vld [vmem:[%s4534 + $0x8] sm:$0xff]
        %v4537 = vld [vmem:[%s4534 + $0x10] sm:$0xff]
        %v4538 = vld [vmem:[%s4534 + $0x18] sm:$0xff]
        %v4539 = vld [vmem:[%s4534 + $0x20] sm:$0xff]
        %v4540 = vld [vmem:[%s4534 + $0x28] sm:$0xff]
        %v4541 = vld [vmem:[%s4534 + $0x30] sm:$0xff]
        %v4542 = vld [vmem:[%s4534 + $0x38] sm:$0xff]
        %v4543 = vld [vmem:[%s4534 + $0x40] sm:$0xff]
        %v4544 = vld [vmem:[%s4534 + $0x48] sm:$0xff]
        %v4545 = vld [vmem:[%s4534 + $0x50] sm:$0xff]
        %v4546 = vld [vmem:[%s4534 + $0x58] sm:$0xff]
        %v4547 = vld [vmem:[%s4534 + $0x60] sm:$0xff]
        %v4548 = vld [vmem:[%s4534 + $0x68] sm:$0xff]
        %v4549 = vld [vmem:[%s4534 + $0x70] sm:$0xff]
        %v4550 = vld [vmem:[%s4534 + $0x78] sm:$0xff]
        %v4551 = vld [vmem:[%s4534 + $0x80] sm:$0xff]
        %v4552 = vld [vmem:[%s4534 + $0x88] sm:$0xff]
        %v4553 = vld [vmem:[%s4534 + $0x90] sm:$0xff]
        %v4554 = vld [vmem:[%s4534 + $0x98] sm:$0xff]
        %v4555 = vld [vmem:[%s4534 + $0xa0] sm:$0xff]
        %v4556 = vld [vmem:[%s4534 + $0xa8] sm:$0xff]
        %v4557 = vld [vmem:[%s4534 + $0xb0] sm:$0xff]
        %v4558 = vld [vmem:[%s4534 + $0xb8] sm:$0xff]
        %v4559 = vld [vmem:[%s4534 + $0xc0] sm:$0xff]
        %v4560 = vld [vmem:[%s4534 + $0xc8] sm:$0xff]
        %v4561 = vld [vmem:[%s4534 + $0xd0] sm:$0xff]
        %v4562 = vld [vmem:[%s4534 + $0xd8] sm:$0xff]
        %v4563 = vld [vmem:[%s4534 + $0xe0] sm:$0xff]
        %v4564 = vld [vmem:[%s4534 + $0xe8] sm:$0xff]
        %v4565 = vld [vmem:[%s4534 + $0xf0] sm:$0xff]
        %v4566 = vld [vmem:[%s4534 + $0xf8] sm:$0xff]
        %v4567 = vld [vmem:[%s4534 + $0x100] sm:$0xff]
        %v4568 = vld [vmem:[%s4534 + $0x108] sm:$0xff]
        %v4569 = vld [vmem:[%s4534 + $0x110] sm:$0xff]
        %v4570 = vld [vmem:[%s4534 + $0x118] sm:$0xff]
        %v4571 = vld [vmem:[%s4534 + $0x120] sm:$0xff]
        %v4572 = vld [vmem:[%s4534 + $0x128] sm:$0xff]
        %v4573 = vld [vmem:[%s4534 + $0x130] sm:$0xff]
        %v4574 = vld [vmem:[%s4534 + $0x138] sm:$0xff]
        %v4575 = vld [vmem:[%s4534 + $0x140] sm:$0xff]
        %v4576 = vld [vmem:[%s4534 + $0x148] sm:$0xff]
        %v4577 = vld [vmem:[%s4534 + $0x150] sm:$0xff]
        %v4578 = vld [vmem:[%s4534 + $0x158] sm:$0xff]
        %v4579 = vld [vmem:[%s4534 + $0x160] sm:$0xff]
        %v4580 = vld [vmem:[%s4534 + $0x168] sm:$0xff]
        %v4581 = vld [vmem:[%s4534 + $0x170] sm:$0xff]
        %v4582 = vld [vmem:[%s4534 + $0x178] sm:$0xff]
        %v4583 = vld [vmem:[%s4534 + $0x180] sm:$0xff]
        %v4584 = vld [vmem:[%s4534 + $0x188] sm:$0xff]
        %v4585 = vld [vmem:[%s4534 + $0x190] sm:$0xff]
        %v4586 = vld [vmem:[%s4534 + $0x198] sm:$0xff]
        %v4587 = vld [vmem:[%s4534 + $0x1a0] sm:$0xff]
        %v4588 = vld [vmem:[%s4534 + $0x1a8] sm:$0xff]
        %v4589 = vld [vmem:[%s4534 + $0x1b0] sm:$0xff]
        %v4590 = vld [vmem:[%s4534 + $0x1b8] sm:$0xff]
        %v4591 = vld [vmem:[%s4534 + $0x1c0] sm:$0xff]
        %v4592 = vld [vmem:[%s4534 + $0x1c8] sm:$0xff]
        %v4593 = vld [vmem:[%s4534 + $0x1d0] sm:$0xff]
        %v4594 = vld [vmem:[%s4534 + $0x1d8] sm:$0xff]
        %v4595 = vld [vmem:[%s4534 + $0x1e0] sm:$0xff]
        %v4596 = vld [vmem:[%s4534 + $0x1e8] sm:$0xff]
        %v4597 = vld [vmem:[%s4534 + $0x1f0] sm:$0xff]
        %v4598 = vld [vmem:[%s4534 + $0x1f8] sm:$0xff]
        %v4607 = vrot.slane %v3365, 1
        %v4608 = vrot.slane %v3328, 1
        %v4609 = vsel %vm2188, %v4607, %v4608
        %v4610 = vrot.slane %v3366, 1
        %v4611 = vrot.slane %v3336, 1
        %v4612 = vsel %vm2188, %v4610, %v4611
        %v4613 = vrot.slane %v3367, 1
        %v4614 = vrot.slane %v3344, 1
        %v4615 = vsel %vm2188, %v4613, %v4614
        %v4616 = vrot.slane %v3368, 1
        %v4617 = vrot.slane %v3352, 1
        %v4618 = vsel %vm2188, %v4616, %v4617
        %v4619 = vrot.slane %v3369, 1
        %v4620 = vsel %vm2188, %v4608, %v4619
        %v4621 = vrot.slane %v3370, 1
        %v4622 = vsel %vm2188, %v4611, %v4621
        %v4623 = vrot.slane %v3371, 1
        %v4624 = vsel %vm2188, %v4614, %v4623
        %v4625 = vrot.slane %v3372, 1
        %v4626 = vsel %vm2188, %v4617, %v4625
        %v4699 = vunpack.c.l.b16 %v4535
        %v4700 = vunpack.c.h.b16 %v4535
        %v4701 = vunpack.c.l.b16 %v4536
        %v4702 = vunpack.c.h.b16 %v4536
        %v4703 = vunpack.c.l.b16 %v4537
        %v4704 = vunpack.c.h.b16 %v4537
        %v4705 = vunpack.c.l.b16 %v4538
        %v4706 = vunpack.c.h.b16 %v4538
        %v4707 = vunpack.c.l.b16 %v4539
        %v4708 = vunpack.c.h.b16 %v4539
        %v4709 = vunpack.c.l.b16 %v4540
        %v4710 = vunpack.c.h.b16 %v4540
        %v4711 = vunpack.c.l.b16 %v4541
        %v4712 = vunpack.c.h.b16 %v4541
        %v4713 = vunpack.c.l.b16 %v4542
        %v4714 = vunpack.c.h.b16 %v4542
        %v4715 = vunpack.c.l.b16 %v4543
        %v4716 = vunpack.c.h.b16 %v4543
        %v4717 = vunpack.c.l.b16 %v4544
        %v4718 = vunpack.c.h.b16 %v4544
        %v4719 = vunpack.c.l.b16 %v4545
        %v4720 = vunpack.c.h.b16 %v4545
        %v4721 = vunpack.c.l.b16 %v4546
        %v4722 = vunpack.c.h.b16 %v4546
        %v4723 = vunpack.c.l.b16 %v4547
        %v4724 = vunpack.c.h.b16 %v4547
        %v4725 = vunpack.c.l.b16 %v4548
        %v4726 = vunpack.c.h.b16 %v4548
        %v4727 = vunpack.c.l.b16 %v4549
        %v4728 = vunpack.c.h.b16 %v4549
        %v4729 = vunpack.c.l.b16 %v4550
        %v4730 = vunpack.c.h.b16 %v4550
        %v4731 = vunpack.c.l.b16 %v4551
        %v4732 = vunpack.c.h.b16 %v4551
        %v4733 = vunpack.c.l.b16 %v4552
        %v4734 = vunpack.c.h.b16 %v4552
        %v4735 = vunpack.c.l.b16 %v4553
        %v4736 = vunpack.c.h.b16 %v4553
        %v4737 = vunpack.c.l.b16 %v4554
        %v4738 = vunpack.c.h.b16 %v4554
        %v4739 = vunpack.c.l.b16 %v4555
        %v4740 = vunpack.c.h.b16 %v4555
        %v4741 = vunpack.c.l.b16 %v4556
        %v4742 = vunpack.c.h.b16 %v4556
        %v4743 = vunpack.c.l.b16 %v4557
        %v4744 = vunpack.c.h.b16 %v4557
        %v4745 = vunpack.c.l.b16 %v4558
        %v4746 = vunpack.c.h.b16 %v4558
        %v4747 = vunpack.c.l.b16 %v4559
        %v4748 = vunpack.c.h.b16 %v4559
        %v4749 = vunpack.c.l.b16 %v4560
        %v4750 = vunpack.c.h.b16 %v4560
        %v4751 = vunpack.c.l.b16 %v4561
        %v4752 = vunpack.c.h.b16 %v4561
        %v4753 = vunpack.c.l.b16 %v4562
        %v4754 = vunpack.c.h.b16 %v4562
        %v4755 = vunpack.c.l.b16 %v4563
        %v4756 = vunpack.c.h.b16 %v4563
        %v4757 = vunpack.c.l.b16 %v4564
        %v4758 = vunpack.c.h.b16 %v4564
        %v4759 = vunpack.c.l.b16 %v4565
        %v4760 = vunpack.c.h.b16 %v4565
        %v4761 = vunpack.c.l.b16 %v4566
        %v4762 = vunpack.c.h.b16 %v4566
        %v4763 = vunpack.c.l.b16 %v4567
        %v4764 = vunpack.c.h.b16 %v4567
        %v4765 = vunpack.c.l.b16 %v4568
        %v4766 = vunpack.c.h.b16 %v4568
        %v4767 = vunpack.c.l.b16 %v4569
        %v4768 = vunpack.c.h.b16 %v4569
        %v4769 = vunpack.c.l.b16 %v4570
        %v4770 = vunpack.c.h.b16 %v4570
        %v4771 = vunpack.c.l.b16 %v4571
        %v4772 = vunpack.c.h.b16 %v4571
        %v4773 = vunpack.c.l.b16 %v4572
        %v4774 = vunpack.c.h.b16 %v4572
        %v4775 = vunpack.c.l.b16 %v4573
        %v4776 = vunpack.c.h.b16 %v4573
        %v4777 = vunpack.c.l.b16 %v4574
        %v4778 = vunpack.c.h.b16 %v4574
        %v4779 = vunpack.c.l.b16 %v4575
        %v4780 = vunpack.c.h.b16 %v4575
        %v4781 = vunpack.c.l.b16 %v4576
        %v4782 = vunpack.c.h.b16 %v4576
        %v4783 = vunpack.c.l.b16 %v4577
        %v4784 = vunpack.c.h.b16 %v4577
        %v4785 = vunpack.c.l.b16 %v4578
        %v4786 = vunpack.c.h.b16 %v4578
        %v4787 = vunpack.c.l.b16 %v4579
        %v4788 = vunpack.c.h.b16 %v4579
        %v4789 = vunpack.c.l.b16 %v4580
        %v4790 = vunpack.c.h.b16 %v4580
        %v4791 = vunpack.c.l.b16 %v4581
        %v4792 = vunpack.c.h.b16 %v4581
        %v4793 = vunpack.c.l.b16 %v4582
        %v4794 = vunpack.c.h.b16 %v4582
        %v4795 = vunpack.c.l.b16 %v4583
        %v4796 = vunpack.c.h.b16 %v4583
        %v4797 = vunpack.c.l.b16 %v4584
        %v4798 = vunpack.c.h.b16 %v4584
        %v4799 = vunpack.c.l.b16 %v4585
        %v4800 = vunpack.c.h.b16 %v4585
        %v4801 = vunpack.c.l.b16 %v4586
        %v4802 = vunpack.c.h.b16 %v4586
        %v4803 = vunpack.c.l.b16 %v4587
        %v4804 = vunpack.c.h.b16 %v4587
        %v4805 = vunpack.c.l.b16 %v4588
        %v4806 = vunpack.c.h.b16 %v4588
        %v4807 = vunpack.c.l.b16 %v4589
        %v4808 = vunpack.c.h.b16 %v4589
        %v4809 = vunpack.c.l.b16 %v4590
        %v4810 = vunpack.c.h.b16 %v4590
        %v4811 = vunpack.c.l.b16 %v4591
        %v4812 = vunpack.c.h.b16 %v4591
        %v4813 = vunpack.c.l.b16 %v4592
        %v4814 = vunpack.c.h.b16 %v4592
        %v4815 = vunpack.c.l.b16 %v4593
        %v4816 = vunpack.c.h.b16 %v4593
        %v4817 = vunpack.c.l.b16 %v4594
        %v4818 = vunpack.c.h.b16 %v4594
        %v4819 = vunpack.c.l.b16 %v4595
        %v4820 = vunpack.c.h.b16 %v4595
        %v4821 = vunpack.c.l.b16 %v4596
        %v4822 = vunpack.c.h.b16 %v4596
        %v4823 = vunpack.c.l.b16 %v4597
        %v4824 = vunpack.c.h.b16 %v4597
        %v4825 = vunpack.c.l.b16 %v4598
        %v4826 = vunpack.c.h.b16 %v4598
        %v4827 = vpack.c.b16 %v4701, %v4699
        %v4828 = vpack.c.b16 %v4702, %v4700
        %v4829 = vpack.c.b16 %v4705, %v4703
        %v4830 = vpack.c.b16 %v4706, %v4704
        %v4831 = vpack.c.b16 %v4709, %v4707
        %v4832 = vpack.c.b16 %v4710, %v4708
        %v4833 = vpack.c.b16 %v4713, %v4711
        %v4834 = vpack.c.b16 %v4714, %v4712
        %v4835 = vpack.c.b16 %v4717, %v4715
        %v4836 = vpack.c.b16 %v4718, %v4716
        %v4837 = vpack.c.b16 %v4721, %v4719
        %v4838 = vpack.c.b16 %v4722, %v4720
        %v4839 = vpack.c.b16 %v4725, %v4723
        %v4840 = vpack.c.b16 %v4726, %v4724
        %v4841 = vpack.c.b16 %v4729, %v4727
        %v4842 = vpack.c.b16 %v4730, %v4728
        %v4843 = vpack.c.b16 %v4733, %v4731
        %v4844 = vpack.c.b16 %v4734, %v4732
        %v4845 = vpack.c.b16 %v4737, %v4735
        %v4846 = vpack.c.b16 %v4738, %v4736
        %v4847 = vpack.c.b16 %v4741, %v4739
        %v4848 = vpack.c.b16 %v4742, %v4740
        %v4849 = vpack.c.b16 %v4745, %v4743
        %v4850 = vpack.c.b16 %v4746, %v4744
        %v4851 = vpack.c.b16 %v4749, %v4747
        %v4852 = vpack.c.b16 %v4750, %v4748
        %v4853 = vpack.c.b16 %v4753, %v4751
        %v4854 = vpack.c.b16 %v4754, %v4752
        %v4855 = vpack.c.b16 %v4757, %v4755
        %v4856 = vpack.c.b16 %v4758, %v4756
        %v4857 = vpack.c.b16 %v4761, %v4759
        %v4858 = vpack.c.b16 %v4762, %v4760
        %v4859 = vpack.c.b16 %v4765, %v4763
        %v4860 = vpack.c.b16 %v4766, %v4764
        %v4861 = vpack.c.b16 %v4769, %v4767
        %v4862 = vpack.c.b16 %v4770, %v4768
        %v4863 = vpack.c.b16 %v4773, %v4771
        %v4864 = vpack.c.b16 %v4774, %v4772
        %v4865 = vpack.c.b16 %v4777, %v4775
        %v4866 = vpack.c.b16 %v4778, %v4776
        %v4867 = vpack.c.b16 %v4781, %v4779
        %v4868 = vpack.c.b16 %v4782, %v4780
        %v4869 = vpack.c.b16 %v4785, %v4783
        %v4870 = vpack.c.b16 %v4786, %v4784
        %v4871 = vpack.c.b16 %v4789, %v4787
        %v4872 = vpack.c.b16 %v4790, %v4788
        %v4873 = vpack.c.b16 %v4793, %v4791
        %v4874 = vpack.c.b16 %v4794, %v4792
        %v4875 = vpack.c.b16 %v4797, %v4795
        %v4876 = vpack.c.b16 %v4798, %v4796
        %v4877 = vpack.c.b16 %v4801, %v4799
        %v4878 = vpack.c.b16 %v4802, %v4800
        %v4879 = vpack.c.b16 %v4805, %v4803
        %v4880 = vpack.c.b16 %v4806, %v4804
        %v4881 = vpack.c.b16 %v4809, %v4807
        %v4882 = vpack.c.b16 %v4810, %v4808
        %v4883 = vpack.c.b16 %v4813, %v4811
        %v4884 = vpack.c.b16 %v4814, %v4812
        %v4885 = vpack.c.b16 %v4817, %v4815
        %v4886 = vpack.c.b16 %v4818, %v4816
        %v4887 = vpack.c.b16 %v4821, %v4819
        %v4888 = vpack.c.b16 %v4822, %v4820
        %v4889 = vpack.c.b16 %v4825, %v4823
        %v4890 = vpack.c.b16 %v4826, %v4824
        %4955 = vmatpush.bf16.msra.mxu0 %v4841
        %4956 = vmatpush.bf16.msra.mxu0 %v4839
        %4957 = vmatpush.bf16.msra.mxu0 %v4837
        %4958 = vmatpush.bf16.msra.mxu0 %v4835
        %4959 = vmatpush.bf16.msra.mxu0 %v4833
        %4960 = vmatpush.bf16.msra.mxu0 %v4831
        %4961 = vmatpush.bf16.msra.mxu0 %v4829
        %4962 = vmatpush.bf16.msra.mxu0 %v4827
        %4963 = vmatmul.bf16.gmra.mxu0 %v4609
        %v4964 = vpop.f32.mrf.mxu0
        %v4965 = vadd.f32 0.0, %v4964
        %v4966 = vpop.f32.mrf.mxu0
        %v4967 = vadd.f32 0.0, %v4966
        %4968 = vmatmul.bf16.gmra.mxu0 %v4620
        %v4969 = vpop.f32.mrf.mxu0
        %v4970 = vadd.f32 0.0, %v4969
        %v4971 = vpop.f32.mrf.mxu0
        %v4972 = vadd.f32 0.0, %v4971
        %4973 = vdwg.mxu0
        %4974 = vmatpush.bf16.msra.mxu0 %v4857
        %4975 = vmatpush.bf16.msra.mxu0 %v4855
        %4976 = vmatpush.bf16.msra.mxu0 %v4853
        %4977 = vmatpush.bf16.msra.mxu0 %v4851
        %4978 = vmatpush.bf16.msra.mxu0 %v4849
        %4979 = vmatpush.bf16.msra.mxu0 %v4847
        %4980 = vmatpush.bf16.msra.mxu0 %v4845
        %4981 = vmatpush.bf16.msra.mxu0 %v4843
        %4982 = vmatmul.bf16.gmra.mxu0 %v4612
        %v4983 = vpop.f32.mrf.mxu0
        %v4984 = vadd.f32 %v4965, %v4983
        %v4985 = vpop.f32.mrf.mxu0
        %v4986 = vadd.f32 %v4967, %v4985
        %4987 = vmatmul.bf16.gmra.mxu0 %v4622
        %v4988 = vpop.f32.mrf.mxu0
        %v4989 = vadd.f32 %v4970, %v4988
        %v4990 = vpop.f32.mrf.mxu0
        %v4991 = vadd.f32 %v4972, %v4990
        %4992 = vdwg.mxu0
        %4993 = vmatpush.bf16.msra.mxu0 %v4873
        %4994 = vmatpush.bf16.msra.mxu0 %v4871
        %4995 = vmatpush.bf16.msra.mxu0 %v4869
        %4996 = vmatpush.bf16.msra.mxu0 %v4867
        %4997 = vmatpush.bf16.msra.mxu0 %v4865
        %4998 = vmatpush.bf16.msra.mxu0 %v4863
        %4999 = vmatpush.bf16.msra.mxu0 %v4861
        %5000 = vmatpush.bf16.msra.mxu0 %v4859
        %5001 = vmatmul.bf16.gmra.mxu0 %v4615
        %v5002 = vpop.f32.mrf.mxu0
        %v5003 = vadd.f32 %v4984, %v5002
        %v5004 = vpop.f32.mrf.mxu0
        %v5005 = vadd.f32 %v4986, %v5004
        %5006 = vmatmul.bf16.gmra.mxu0 %v4624
        %v5007 = vpop.f32.mrf.mxu0
        %v5008 = vadd.f32 %v4989, %v5007
        %v5009 = vpop.f32.mrf.mxu0
        %v5010 = vadd.f32 %v4991, %v5009
        %5011 = vdwg.mxu0
        %5012 = vmatpush.bf16.msra.mxu0 %v4889
        %5013 = vmatpush.bf16.msra.mxu0 %v4887
        %5014 = vmatpush.bf16.msra.mxu0 %v4885
        %5015 = vmatpush.bf16.msra.mxu0 %v4883
        %5016 = vmatpush.bf16.msra.mxu0 %v4881
        %5017 = vmatpush.bf16.msra.mxu0 %v4879
        %5018 = vmatpush.bf16.msra.mxu0 %v4877
        %5019 = vmatpush.bf16.msra.mxu0 %v4875
        %5020 = vmatmul.bf16.gmra.mxu0 %v4618
        %v5021 = vpop.f32.mrf.mxu0
        %v5022 = vadd.f32 %v5003, %v5021
        %v5023 = vpop.f32.mrf.mxu0
        %v5024 = vadd.f32 %v5005, %v5023
        %5025 = vmatmul.bf16.gmra.mxu0 %v4626
        %v5026 = vpop.f32.mrf.mxu0
        %v5027 = vadd.f32 %v5008, %v5026
        %v5028 = vpop.f32.mrf.mxu0
        %v5029 = vadd.f32 %v5010, %v5028
        %5030 = vdwg.mxu0
        %5031 = vmatpush.bf16.msra.mxu0 %v4842
        %5032 = vmatpush.bf16.msra.mxu0 %v4840
        %5033 = vmatpush.bf16.msra.mxu0 %v4838
        %5034 = vmatpush.bf16.msra.mxu0 %v4836
        %5035 = vmatpush.bf16.msra.mxu0 %v4834
        %5036 = vmatpush.bf16.msra.mxu0 %v4832
        %5037 = vmatpush.bf16.msra.mxu0 %v4830
        %5038 = vmatpush.bf16.msra.mxu0 %v4828
        %5039 = vmatmul.bf16.gmra.mxu0 %v4609
        %v5040 = vpop.f32.mrf.mxu0
        %v5041 = vadd.f32 0.0, %v5040
        %v5042 = vpop.f32.mrf.mxu0
        %v5043 = vadd.f32 0.0, %v5042
        %5044 = vmatmul.bf16.gmra.mxu0 %v4620
        %v5045 = vpop.f32.mrf.mxu0
        %v5046 = vadd.f32 0.0, %v5045
        %v5047 = vpop.f32.mrf.mxu0
        %v5048 = vadd.f32 0.0, %v5047
        %5049 = vdwg.mxu0
        %5050 = vmatpush.bf16.msra.mxu0 %v4858
        %5051 = vmatpush.bf16.msra.mxu0 %v4856
        %5052 = vmatpush.bf16.msra.mxu0 %v4854
        %5053 = vmatpush.bf16.msra.mxu0 %v4852
        %5054 = vmatpush.bf16.msra.mxu0 %v4850
        %5055 = vmatpush.bf16.msra.mxu0 %v4848
        %5056 = vmatpush.bf16.msra.mxu0 %v4846
        %5057 = vmatpush.bf16.msra.mxu0 %v4844
        %5058 = vmatmul.bf16.gmra.mxu0 %v4612
        %v5059 = vpop.f32.mrf.mxu0
        %v5060 = vadd.f32 %v5041, %v5059
        %v5061 = vpop.f32.mrf.mxu0
        %v5062 = vadd.f32 %v5043, %v5061
        %5063 = vmatmul.bf16.gmra.mxu0 %v4622
        %v5064 = vpop.f32.mrf.mxu0
        %v5065 = vadd.f32 %v5046, %v5064
        %v5066 = vpop.f32.mrf.mxu0
        %v5067 = vadd.f32 %v5048, %v5066
        %5068 = vdwg.mxu0
        %5069 = vmatpush.bf16.msra.mxu0 %v4874
        %5070 = vmatpush.bf16.msra.mxu0 %v4872
        %5071 = vmatpush.bf16.msra.mxu0 %v4870
        %5072 = vmatpush.bf16.msra.mxu0 %v4868
        %5073 = vmatpush.bf16.msra.mxu0 %v4866
        %5074 = vmatpush.bf16.msra.mxu0 %v4864
        %5075 = vmatpush.bf16.msra.mxu0 %v4862
        %5076 = vmatpush.bf16.msra.mxu0 %v4860
        %5077 = vmatmul.bf16.gmra.mxu0 %v4615
        %v5078 = vpop.f32.mrf.mxu0
        %v5079 = vadd.f32 %v5060, %v5078
        %v5080 = vpop.f32.mrf.mxu0
        %v5081 = vadd.f32 %v5062, %v5080
        %5082 = vmatmul.bf16.gmra.mxu0 %v4624
        %v5083 = vpop.f32.mrf.mxu0
        %v5084 = vadd.f32 %v5065, %v5083
        %v5085 = vpop.f32.mrf.mxu0
        %v5086 = vadd.f32 %v5067, %v5085
        %5087 = vdwg.mxu0
        %5088 = vmatpush.bf16.msra.mxu0 %v4890
        %5089 = vmatpush.bf16.msra.mxu0 %v4888
        %5090 = vmatpush.bf16.msra.mxu0 %v4886
        %5091 = vmatpush.bf16.msra.mxu0 %v4884
        %5092 = vmatpush.bf16.msra.mxu0 %v4882
        %5093 = vmatpush.bf16.msra.mxu0 %v4880
        %5094 = vmatpush.bf16.msra.mxu0 %v4878
        %5095 = vmatpush.bf16.msra.mxu0 %v4876
        %5096 = vmatmul.bf16.gmra.mxu0 %v4618
        %v5097 = vpop.f32.mrf.mxu0
        %v5098 = vadd.f32 %v5079, %v5097
        %v5099 = vpop.f32.mrf.mxu0
        %v5100 = vadd.f32 %v5081, %v5099
        %5101 = vmatmul.bf16.gmra.mxu0 %v4626
        %v5102 = vpop.f32.mrf.mxu0
        %v5103 = vadd.f32 %v5084, %v5102
        %v5104 = vpop.f32.mrf.mxu0
        %v5105 = vadd.f32 %v5086, %v5104
        %5106 = vdwg.mxu0
        %v5107 = vadd.f32 %v4449, %v5022
        %v5108 = vadd.f32 %v4525, %v5098
        %v5109 = vadd.f32 %v4451, %v5024
        %v5110 = vadd.f32 %v4527, %v5100
        %v5111 = vadd.f32 %v4454, %v5027
        %v5112 = vadd.f32 %v4530, %v5103
        %v5113 = vadd.f32 %v4456, %v5029
        %v5114 = vadd.f32 %v4532, %v5105
        %v5115 = vpack.c.bf16 %v5109, %v5107
        %v5116 = vpack.c.bf16 %v5110, %v5108
        %v5117 = vpack.c.bf16 %v5113, %v5111
        %v5118 = vpack.c.bf16 %v5114, %v5112
        %v5119 = vld [vmem:[#allocation8] sm:$0xff]
        %v5120 = vld [vmem:[#allocation8 + $0x8] sm:$0xff]
        %v5121 = vld [vmem:[#allocation8 + $0x10] sm:$0xff]
        %v5122 = vld [vmem:[#allocation8 + $0x18] sm:$0xff]
        %v5123 = vld [vmem:[#allocation8 + $0x20] sm:$0xff]
        %v5124 = vld [vmem:[#allocation8 + $0x28] sm:$0xff]
        %v5125 = vld [vmem:[#allocation8 + $0x30] sm:$0xff]
        %v5126 = vld [vmem:[#allocation8 + $0x38] sm:$0xff]
        %v5127 = vld [vmem:[#allocation8 + $0x40] sm:$0xff]
        %v5128 = vld [vmem:[#allocation8 + $0x48] sm:$0xff]
        %v5129 = vld [vmem:[#allocation8 + $0x50] sm:$0xff]
        %v5130 = vld [vmem:[#allocation8 + $0x58] sm:$0xff]
        %v5131 = vld [vmem:[#allocation8 + $0x60] sm:$0xff]
        %v5132 = vld [vmem:[#allocation8 + $0x68] sm:$0xff]
        %v5133 = vld [vmem:[#allocation8 + $0x70] sm:$0xff]
        %v5134 = vld [vmem:[#allocation8 + $0x78] sm:$0xff]
        %v5135 = vld [vmem:[#allocation8 + $0x80] sm:$0xff]
        %v5136 = vld [vmem:[#allocation8 + $0x88] sm:$0xff]
        %v5137 = vld [vmem:[#allocation8 + $0x90] sm:$0xff]
        %v5138 = vld [vmem:[#allocation8 + $0x98] sm:$0xff]
        %v5139 = vld [vmem:[#allocation8 + $0xa0] sm:$0xff]
        %v5140 = vld [vmem:[#allocation8 + $0xa8] sm:$0xff]
        %v5141 = vld [vmem:[#allocation8 + $0xb0] sm:$0xff]
        %v5142 = vld [vmem:[#allocation8 + $0xb8] sm:$0xff]
        %v5143 = vld [vmem:[#allocation8 + $0xc0] sm:$0xff]
        %v5144 = vld [vmem:[#allocation8 + $0xc8] sm:$0xff]
        %v5145 = vld [vmem:[#allocation8 + $0xd0] sm:$0xff]
        %v5146 = vld [vmem:[#allocation8 + $0xd8] sm:$0xff]
        %v5147 = vld [vmem:[#allocation8 + $0xe0] sm:$0xff]
        %v5148 = vld [vmem:[#allocation8 + $0xe8] sm:$0xff]
        %v5149 = vld [vmem:[#allocation8 + $0xf0] sm:$0xff]
        %v5150 = vld [vmem:[#allocation8 + $0xf8] sm:$0xff]
        %v5151 = vld [vmem:[#allocation8 + $0x100] sm:$0xff]
        %v5152 = vld [vmem:[#allocation8 + $0x108] sm:$0xff]
        %v5153 = vld [vmem:[#allocation8 + $0x110] sm:$0xff]
        %v5154 = vld [vmem:[#allocation8 + $0x118] sm:$0xff]
        %v5155 = vld [vmem:[#allocation8 + $0x120] sm:$0xff]
        %v5156 = vld [vmem:[#allocation8 + $0x128] sm:$0xff]
        %v5157 = vld [vmem:[#allocation8 + $0x130] sm:$0xff]
        %v5158 = vld [vmem:[#allocation8 + $0x138] sm:$0xff]
        %v5159 = vld [vmem:[#allocation8 + $0x140] sm:$0xff]
        %v5160 = vld [vmem:[#allocation8 + $0x148] sm:$0xff]
        %v5161 = vld [vmem:[#allocation8 + $0x150] sm:$0xff]
        %v5162 = vld [vmem:[#allocation8 + $0x158] sm:$0xff]
        %v5163 = vld [vmem:[#allocation8 + $0x160] sm:$0xff]
        %v5164 = vld [vmem:[#allocation8 + $0x168] sm:$0xff]
        %v5165 = vld [vmem:[#allocation8 + $0x170] sm:$0xff]
        %v5166 = vld [vmem:[#allocation8 + $0x178] sm:$0xff]
        %v5167 = vld [vmem:[#allocation8 + $0x180] sm:$0xff]
        %v5168 = vld [vmem:[#allocation8 + $0x188] sm:$0xff]
        %v5169 = vld [vmem:[#allocation8 + $0x190] sm:$0xff]
        %v5170 = vld [vmem:[#allocation8 + $0x198] sm:$0xff]
        %v5171 = vld [vmem:[#allocation8 + $0x1a0] sm:$0xff]
        %v5172 = vld [vmem:[#allocation8 + $0x1a8] sm:$0xff]
        %v5173 = vld [vmem:[#allocation8 + $0x1b0] sm:$0xff]
        %v5174 = vld [vmem:[#allocation8 + $0x1b8] sm:$0xff]
        %v5175 = vld [vmem:[#allocation8 + $0x1c0] sm:$0xff]
        %v5176 = vld [vmem:[#allocation8 + $0x1c8] sm:$0xff]
        %v5177 = vld [vmem:[#allocation8 + $0x1d0] sm:$0xff]
        %v5178 = vld [vmem:[#allocation8 + $0x1d8] sm:$0xff]
        %v5179 = vld [vmem:[#allocation8 + $0x1e0] sm:$0xff]
        %v5180 = vld [vmem:[#allocation8 + $0x1e8] sm:$0xff]
        %v5181 = vld [vmem:[#allocation8 + $0x1f0] sm:$0xff]
        %v5182 = vld [vmem:[#allocation8 + $0x1f8] sm:$0xff]
        %v5247 = vunpack.c.l.b16 %v5119
        %v5248 = vunpack.c.h.b16 %v5119
        %v5249 = vunpack.c.l.b16 %v5120
        %v5250 = vunpack.c.h.b16 %v5120
        %v5251 = vunpack.c.l.b16 %v5121
        %v5252 = vunpack.c.h.b16 %v5121
        %v5253 = vunpack.c.l.b16 %v5122
        %v5254 = vunpack.c.h.b16 %v5122
        %v5255 = vunpack.c.l.b16 %v5123
        %v5256 = vunpack.c.h.b16 %v5123
        %v5257 = vunpack.c.l.b16 %v5124
        %v5258 = vunpack.c.h.b16 %v5124
        %v5259 = vunpack.c.l.b16 %v5125
        %v5260 = vunpack.c.h.b16 %v5125
        %v5261 = vunpack.c.l.b16 %v5126
        %v5262 = vunpack.c.h.b16 %v5126
        %v5263 = vunpack.c.l.b16 %v5127
        %v5264 = vunpack.c.h.b16 %v5127
        %v5265 = vunpack.c.l.b16 %v5128
        %v5266 = vunpack.c.h.b16 %v5128
        %v5267 = vunpack.c.l.b16 %v5129
        %v5268 = vunpack.c.h.b16 %v5129
        %v5269 = vunpack.c.l.b16 %v5130
        %v5270 = vunpack.c.h.b16 %v5130
        %v5271 = vunpack.c.l.b16 %v5131
        %v5272 = vunpack.c.h.b16 %v5131
        %v5273 = vunpack.c.l.b16 %v5132
        %v5274 = vunpack.c.h.b16 %v5132
        %v5275 = vunpack.c.l.b16 %v5133
        %v5276 = vunpack.c.h.b16 %v5133
        %v5277 = vunpack.c.l.b16 %v5134
        %v5278 = vunpack.c.h.b16 %v5134
        %v5279 = vunpack.c.l.b16 %v5135
        %v5280 = vunpack.c.h.b16 %v5135
        %v5281 = vunpack.c.l.b16 %v5136
        %v5282 = vunpack.c.h.b16 %v5136
        %v5283 = vunpack.c.l.b16 %v5137
        %v5284 = vunpack.c.h.b16 %v5137
        %v5285 = vunpack.c.l.b16 %v5138
        %v5286 = vunpack.c.h.b16 %v5138
        %v5287 = vunpack.c.l.b16 %v5139
        %v5288 = vunpack.c.h.b16 %v5139
        %v5289 = vunpack.c.l.b16 %v5140
        %v5290 = vunpack.c.h.b16 %v5140
        %v5291 = vunpack.c.l.b16 %v5141
        %v5292 = vunpack.c.h.b16 %v5141
        %v5293 = vunpack.c.l.b16 %v5142
        %v5294 = vunpack.c.h.b16 %v5142
        %v5295 = vunpack.c.l.b16 %v5143
        %v5296 = vunpack.c.h.b16 %v5143
        %v5297 = vunpack.c.l.b16 %v5144
        %v5298 = vunpack.c.h.b16 %v5144
        %v5299 = vunpack.c.l.b16 %v5145
        %v5300 = vunpack.c.h.b16 %v5145
        %v5301 = vunpack.c.l.b16 %v5146
        %v5302 = vunpack.c.h.b16 %v5146
        %v5303 = vunpack.c.l.b16 %v5147
        %v5304 = vunpack.c.h.b16 %v5147
        %v5305 = vunpack.c.l.b16 %v5148
        %v5306 = vunpack.c.h.b16 %v5148
        %v5307 = vunpack.c.l.b16 %v5149
        %v5308 = vunpack.c.h.b16 %v5149
        %v5309 = vunpack.c.l.b16 %v5150
        %v5310 = vunpack.c.h.b16 %v5150
        %v5311 = vunpack.c.l.b16 %v5151
        %v5312 = vunpack.c.h.b16 %v5151
        %v5313 = vunpack.c.l.b16 %v5152
        %v5314 = vunpack.c.h.b16 %v5152
        %v5315 = vunpack.c.l.b16 %v5153
        %v5316 = vunpack.c.h.b16 %v5153
        %v5317 = vunpack.c.l.b16 %v5154
        %v5318 = vunpack.c.h.b16 %v5154
        %v5319 = vunpack.c.l.b16 %v5155
        %v5320 = vunpack.c.h.b16 %v5155
        %v5321 = vunpack.c.l.b16 %v5156
        %v5322 = vunpack.c.h.b16 %v5156
        %v5323 = vunpack.c.l.b16 %v5157
        %v5324 = vunpack.c.h.b16 %v5157
        %v5325 = vunpack.c.l.b16 %v5158
        %v5326 = vunpack.c.h.b16 %v5158
        %v5327 = vunpack.c.l.b16 %v5159
        %v5328 = vunpack.c.h.b16 %v5159
        %v5329 = vunpack.c.l.b16 %v5160
        %v5330 = vunpack.c.h.b16 %v5160
        %v5331 = vunpack.c.l.b16 %v5161
        %v5332 = vunpack.c.h.b16 %v5161
        %v5333 = vunpack.c.l.b16 %v5162
        %v5334 = vunpack.c.h.b16 %v5162
        %v5335 = vunpack.c.l.b16 %v5163
        %v5336 = vunpack.c.h.b16 %v5163
        %v5337 = vunpack.c.l.b16 %v5164
        %v5338 = vunpack.c.h.b16 %v5164
        %v5339 = vunpack.c.l.b16 %v5165
        %v5340 = vunpack.c.h.b16 %v5165
        %v5341 = vunpack.c.l.b16 %v5166
        %v5342 = vunpack.c.h.b16 %v5166
        %v5343 = vunpack.c.l.b16 %v5167
        %v5344 = vunpack.c.h.b16 %v5167
        %v5345 = vunpack.c.l.b16 %v5168
        %v5346 = vunpack.c.h.b16 %v5168
        %v5347 = vunpack.c.l.b16 %v5169
        %v5348 = vunpack.c.h.b16 %v5169
        %v5349 = vunpack.c.l.b16 %v5170
        %v5350 = vunpack.c.h.b16 %v5170
        %v5351 = vunpack.c.l.b16 %v5171
        %v5352 = vunpack.c.h.b16 %v5171
        %v5353 = vunpack.c.l.b16 %v5172
        %v5354 = vunpack.c.h.b16 %v5172
        %v5355 = vunpack.c.l.b16 %v5173
        %v5356 = vunpack.c.h.b16 %v5173
        %v5357 = vunpack.c.l.b16 %v5174
        %v5358 = vunpack.c.h.b16 %v5174
        %v5359 = vunpack.c.l.b16 %v5175
        %v5360 = vunpack.c.h.b16 %v5175
        %v5361 = vunpack.c.l.b16 %v5176
        %v5362 = vunpack.c.h.b16 %v5176
        %v5363 = vunpack.c.l.b16 %v5177
        %v5364 = vunpack.c.h.b16 %v5177
        %v5365 = vunpack.c.l.b16 %v5178
        %v5366 = vunpack.c.h.b16 %v5178
        %v5367 = vunpack.c.l.b16 %v5179
        %v5368 = vunpack.c.h.b16 %v5179
        %v5369 = vunpack.c.l.b16 %v5180
        %v5370 = vunpack.c.h.b16 %v5180
        %v5371 = vunpack.c.l.b16 %v5181
        %v5372 = vunpack.c.h.b16 %v5181
        %v5373 = vunpack.c.l.b16 %v5182
        %v5374 = vunpack.c.h.b16 %v5182
        %v5375 = vpack.c.b16 %v5251, %v5247
        %v5376 = vpack.c.b16 %v5252, %v5248
        %v5377 = vpack.c.b16 %v5253, %v5249
        %v5378 = vpack.c.b16 %v5254, %v5250
        %v5379 = vpack.c.b16 %v5259, %v5255
        %v5380 = vpack.c.b16 %v5260, %v5256
        %v5381 = vpack.c.b16 %v5261, %v5257
        %v5382 = vpack.c.b16 %v5262, %v5258
        %v5383 = vpack.c.b16 %v5267, %v5263
        %v5384 = vpack.c.b16 %v5268, %v5264
        %v5385 = vpack.c.b16 %v5269, %v5265
        %v5386 = vpack.c.b16 %v5270, %v5266
        %v5387 = vpack.c.b16 %v5275, %v5271
        %v5388 = vpack.c.b16 %v5276, %v5272
        %v5389 = vpack.c.b16 %v5277, %v5273
        %v5390 = vpack.c.b16 %v5278, %v5274
        %v5391 = vpack.c.b16 %v5283, %v5279
        %v5392 = vpack.c.b16 %v5284, %v5280
        %v5393 = vpack.c.b16 %v5285, %v5281
        %v5394 = vpack.c.b16 %v5286, %v5282
        %v5395 = vpack.c.b16 %v5291, %v5287
        %v5396 = vpack.c.b16 %v5292, %v5288
        %v5397 = vpack.c.b16 %v5293, %v5289
        %v5398 = vpack.c.b16 %v5294, %v5290
        %v5399 = vpack.c.b16 %v5299, %v5295
        %v5400 = vpack.c.b16 %v5300, %v5296
        %v5401 = vpack.c.b16 %v5301, %v5297
        %v5402 = vpack.c.b16 %v5302, %v5298
        %v5403 = vpack.c.b16 %v5307, %v5303
        %v5404 = vpack.c.b16 %v5308, %v5304
        %v5405 = vpack.c.b16 %v5309, %v5305
        %v5406 = vpack.c.b16 %v5310, %v5306
        %v5407 = vpack.c.b16 %v5315, %v5311
        %v5408 = vpack.c.b16 %v5316, %v5312
        %v5409 = vpack.c.b16 %v5317, %v5313
        %v5410 = vpack.c.b16 %v5318, %v5314
        %v5411 = vpack.c.b16 %v5323, %v5319
        %v5412 = vpack.c.b16 %v5324, %v5320
        %v5413 = vpack.c.b16 %v5325, %v5321
        %v5414 = vpack.c.b16 %v5326, %v5322
        %v5415 = vpack.c.b16 %v5331, %v5327
        %v5416 = vpack.c.b16 %v5332, %v5328
        %v5417 = vpack.c.b16 %v5333, %v5329
        %v5418 = vpack.c.b16 %v5334, %v5330
        %v5419 = vpack.c.b16 %v5339, %v5335
        %v5420 = vpack.c.b16 %v5340, %v5336
        %v5421 = vpack.c.b16 %v5341, %v5337
        %v5422 = vpack.c.b16 %v5342, %v5338
        %v5423 = vpack.c.b16 %v5347, %v5343
        %v5424 = vpack.c.b16 %v5348, %v5344
        %v5425 = vpack.c.b16 %v5349, %v5345
        %v5426 = vpack.c.b16 %v5350, %v5346
        %v5427 = vpack.c.b16 %v5355, %v5351
        %v5428 = vpack.c.b16 %v5356, %v5352
        %v5429 = vpack.c.b16 %v5357, %v5353
        %v5430 = vpack.c.b16 %v5358, %v5354
        %v5431 = vpack.c.b16 %v5363, %v5359
        %v5432 = vpack.c.b16 %v5364, %v5360
        %v5433 = vpack.c.b16 %v5365, %v5361
        %v5434 = vpack.c.b16 %v5366, %v5362
        %v5435 = vpack.c.b16 %v5371, %v5367
        %v5436 = vpack.c.b16 %v5372, %v5368
        %v5437 = vpack.c.b16 %v5373, %v5369
        %v5438 = vpack.c.b16 %v5374, %v5370
        %5503 = vmatpush.bf16.msra.mxu0 %v5403
        %5504 = vmatpush.bf16.msra.mxu0 %v5399
        %5505 = vmatpush.bf16.msra.mxu0 %v5395
        %5506 = vmatpush.bf16.msra.mxu0 %v5391
        %5507 = vmatpush.bf16.msra.mxu0 %v5387
        %5508 = vmatpush.bf16.msra.mxu0 %v5383
        %5509 = vmatpush.bf16.msra.mxu0 %v5379
        %5510 = vmatpush.bf16.msra.mxu0 %v5375
        %5511 = vmatmul.bf16.gmra.mxu0 %v5115
        %v5512 = vpop.f32.mrf.mxu0
        %v5513 = vadd.f32 0.0, %v5512
        %v5514 = vpop.f32.mrf.mxu0
        %v5515 = vadd.f32 0.0, %v5514
        %5516 = vmatmul.bf16.gmra.mxu0 %v5117
        %v5517 = vpop.f32.mrf.mxu0
        %v5518 = vadd.f32 0.0, %v5517
        %v5519 = vpop.f32.mrf.mxu0
        %v5520 = vadd.f32 0.0, %v5519
        %5521 = vdwg.mxu0
        %5522 = vmatpush.bf16.msra.mxu0 %v5435
        %5523 = vmatpush.bf16.msra.mxu0 %v5431
        %5524 = vmatpush.bf16.msra.mxu0 %v5427
        %5525 = vmatpush.bf16.msra.mxu0 %v5423
        %5526 = vmatpush.bf16.msra.mxu0 %v5419
        %5527 = vmatpush.bf16.msra.mxu0 %v5415
        %5528 = vmatpush.bf16.msra.mxu0 %v5411
        %5529 = vmatpush.bf16.msra.mxu0 %v5407
        %5530 = vmatmul.bf16.gmra.mxu0 %v5116
        %v5531 = vpop.f32.mrf.mxu0
        %v5532 = vadd.f32 %v5513, %v5531
        %v5533 = vpop.f32.mrf.mxu0
        %v5534 = vadd.f32 %v5515, %v5533
        %5535 = vmatmul.bf16.gmra.mxu0 %v5118
        %v5536 = vpop.f32.mrf.mxu0
        %v5537 = vadd.f32 %v5518, %v5536
        %v5538 = vpop.f32.mrf.mxu0
        %v5539 = vadd.f32 %v5520, %v5538
        %5540 = vdwg.mxu0
        %5541 = vmatpush.bf16.msra.mxu0 %v5404
        %5542 = vmatpush.bf16.msra.mxu0 %v5400
        %5543 = vmatpush.bf16.msra.mxu0 %v5396
        %5544 = vmatpush.bf16.msra.mxu0 %v5392
        %5545 = vmatpush.bf16.msra.mxu0 %v5388
        %5546 = vmatpush.bf16.msra.mxu0 %v5384
        %5547 = vmatpush.bf16.msra.mxu0 %v5380
        %5548 = vmatpush.bf16.msra.mxu0 %v5376
        %5549 = vmatmul.bf16.gmra.mxu0 %v5115
        %v5550 = vpop.f32.mrf.mxu0
        %v5551 = vadd.f32 0.0, %v5550
        %v5552 = vpop.f32.mrf.mxu0
        %v5553 = vadd.f32 0.0, %v5552
        %5554 = vmatmul.bf16.gmra.mxu0 %v5117
        %v5555 = vpop.f32.mrf.mxu0
        %v5556 = vadd.f32 0.0, %v5555
        %v5557 = vpop.f32.mrf.mxu0
        %v5558 = vadd.f32 0.0, %v5557
        %5559 = vdwg.mxu0
        %5560 = vmatpush.bf16.msra.mxu0 %v5436
        %5561 = vmatpush.bf16.msra.mxu0 %v5432
        %5562 = vmatpush.bf16.msra.mxu0 %v5428
        %5563 = vmatpush.bf16.msra.mxu0 %v5424
        %5564 = vmatpush.bf16.msra.mxu0 %v5420
        %5565 = vmatpush.bf16.msra.mxu0 %v5416
        %5566 = vmatpush.bf16.msra.mxu0 %v5412
        %5567 = vmatpush.bf16.msra.mxu0 %v5408
        %5568 = vmatmul.bf16.gmra.mxu0 %v5116
        %v5569 = vpop.f32.mrf.mxu0
        %v5570 = vadd.f32 %v5551, %v5569
        %v5571 = vpop.f32.mrf.mxu0
        %v5572 = vadd.f32 %v5553, %v5571
        %5573 = vmatmul.bf16.gmra.mxu0 %v5118
        %v5574 = vpop.f32.mrf.mxu0
        %v5575 = vadd.f32 %v5556, %v5574
        %v5576 = vpop.f32.mrf.mxu0
        %v5577 = vadd.f32 %v5558, %v5576
        %5578 = vdwg.mxu0
        %5579 = vmatpush.bf16.msra.mxu0 %v5405
        %5580 = vmatpush.bf16.msra.mxu0 %v5401
        %5581 = vmatpush.bf16.msra.mxu0 %v5397
        %5582 = vmatpush.bf16.msra.mxu0 %v5393
        %5583 = vmatpush.bf16.msra.mxu0 %v5389
        %5584 = vmatpush.bf16.msra.mxu0 %v5385
        %5585 = vmatpush.bf16.msra.mxu0 %v5381
        %5586 = vmatpush.bf16.msra.mxu0 %v5377
        %5587 = vmatmul.bf16.gmra.mxu0 %v5115
        %v5588 = vpop.f32.mrf.mxu0
        %v5589 = vadd.f32 0.0, %v5588
        %v5590 = vpop.f32.mrf.mxu0
        %v5591 = vadd.f32 0.0, %v5590
        %5592 = vmatmul.bf16.gmra.mxu0 %v5117
        %v5593 = vpop.f32.mrf.mxu0
        %v5594 = vadd.f32 0.0, %v5593
        %v5595 = vpop.f32.mrf.mxu0
        %v5596 = vadd.f32 0.0, %v5595
        %5597 = vdwg.mxu0
        %5598 = vmatpush.bf16.msra.mxu0 %v5437
        %5599 = vmatpush.bf16.msra.mxu0 %v5433
        %5600 = vmatpush.bf16.msra.mxu0 %v5429
        %5601 = vmatpush.bf16.msra.mxu0 %v5425
        %5602 = vmatpush.bf16.msra.mxu0 %v5421
        %5603 = vmatpush.bf16.msra.mxu0 %v5417
        %5604 = vmatpush.bf16.msra.mxu0 %v5413
        %5605 = vmatpush.bf16.msra.mxu0 %v5409
        %5606 = vmatmul.bf16.gmra.mxu0 %v5116
        %v5607 = vpop.f32.mrf.mxu0
        %v5608 = vadd.f32 %v5589, %v5607
        %v5609 = vpop.f32.mrf.mxu0
        %v5610 = vadd.f32 %v5591, %v5609
        %5611 = vmatmul.bf16.gmra.mxu0 %v5118
        %v5612 = vpop.f32.mrf.mxu0
        %v5613 = vadd.f32 %v5594, %v5612
        %v5614 = vpop.f32.mrf.mxu0
        %v5615 = vadd.f32 %v5596, %v5614
        %5616 = vdwg.mxu0
        %5617 = vmatpush.bf16.msra.mxu0 %v5406
        %5618 = vmatpush.bf16.msra.mxu0 %v5402
        %5619 = vmatpush.bf16.msra.mxu0 %v5398
        %5620 = vmatpush.bf16.msra.mxu0 %v5394
        %5621 = vmatpush.bf16.msra.mxu0 %v5390
        %5622 = vmatpush.bf16.msra.mxu0 %v5386
        %5623 = vmatpush.bf16.msra.mxu0 %v5382
        %5624 = vmatpush.bf16.msra.mxu0 %v5378
        %5625 = vmatmul.bf16.gmra.mxu0 %v5115
        %v5626 = vpop.f32.mrf.mxu0
        %v5627 = vadd.f32 0.0, %v5626
        %v5628 = vpop.f32.mrf.mxu0
        %v5629 = vadd.f32 0.0, %v5628
        %5630 = vmatmul.bf16.gmra.mxu0 %v5117
        %v5631 = vpop.f32.mrf.mxu0
        %v5632 = vadd.f32 0.0, %v5631
        %v5633 = vpop.f32.mrf.mxu0
        %v5634 = vadd.f32 0.0, %v5633
        %5635 = vdwg.mxu0
        %5636 = vmatpush.bf16.msra.mxu0 %v5438
        %5637 = vmatpush.bf16.msra.mxu0 %v5434
        %5638 = vmatpush.bf16.msra.mxu0 %v5430
        %5639 = vmatpush.bf16.msra.mxu0 %v5426
        %5640 = vmatpush.bf16.msra.mxu0 %v5422
        %5641 = vmatpush.bf16.msra.mxu0 %v5418
        %5642 = vmatpush.bf16.msra.mxu0 %v5414
        %5643 = vmatpush.bf16.msra.mxu0 %v5410
        %5644 = vmatmul.bf16.gmra.mxu0 %v5116
        %v5645 = vpop.f32.mrf.mxu0
        %v5646 = vadd.f32 %v5627, %v5645
        %v5647 = vpop.f32.mrf.mxu0
        %v5648 = vadd.f32 %v5629, %v5647
        %5649 = vmatmul.bf16.gmra.mxu0 %v5118
        %v5650 = vpop.f32.mrf.mxu0
        %v5651 = vadd.f32 %v5632, %v5650
        %v5652 = vpop.f32.mrf.mxu0
        %v5653 = vadd.f32 %v5634, %v5652
        %5654 = vdwg.mxu0
        %v5655 = vpack.c.bf16 %v5534, %v5532
        %v5656 = vpack.c.bf16 %v5572, %v5570
        %v5657 = vpack.c.bf16 %v5610, %v5608
        %v5658 = vpack.c.bf16 %v5648, %v5646
        %v5659 = vpack.c.bf16 %v5539, %v5537
        %v5660 = vpack.c.bf16 %v5577, %v5575
        %v5661 = vpack.c.bf16 %v5615, %v5613
        %v5662 = vpack.c.bf16 %v5653, %v5651
        %v5663 = vld [vmem:[#allocation9] sm:$0xf]
        %v5664 = vld [vmem:[#allocation9 + $0x4] sm:$0xf]
        %v5665 = vld [vmem:[#allocation9 + $0x8] sm:$0xf]
        %v5666 = vld [vmem:[#allocation9 + $0xc] sm:$0xf]
        %v5667 = vld [vmem:[#allocation9 + $0x10] sm:$0xf]
        %v5668 = vld [vmem:[#allocation9 + $0x14] sm:$0xf]
        %v5669 = vld [vmem:[#allocation9 + $0x18] sm:$0xf]
        %v5670 = vld [vmem:[#allocation9 + $0x1c] sm:$0xf]
        %v5671 = vld [vmem:[#allocation9 + $0x20] sm:$0xf]
        %v5672 = vld [vmem:[#allocation9 + $0x24] sm:$0xf]
        %v5673 = vld [vmem:[#allocation9 + $0x28] sm:$0xf]
        %v5674 = vld [vmem:[#allocation9 + $0x2c] sm:$0xf]
        %v5675 = vld [vmem:[#allocation9 + $0x30] sm:$0xf]
        %v5676 = vld [vmem:[#allocation9 + $0x34] sm:$0xf]
        %v5677 = vld [vmem:[#allocation9 + $0x38] sm:$0xf]
        %v5678 = vld [vmem:[#allocation9 + $0x3c] sm:$0xf]
        %v5679 = vld [vmem:[#allocation9 + $0x40] sm:$0xf]
        %v5680 = vld [vmem:[#allocation9 + $0x44] sm:$0xf]
        %v5681 = vld [vmem:[#allocation9 + $0x48] sm:$0xf]
        %v5682 = vld [vmem:[#allocation9 + $0x4c] sm:$0xf]
        %v5683 = vld [vmem:[#allocation9 + $0x50] sm:$0xf]
        %v5684 = vld [vmem:[#allocation9 + $0x54] sm:$0xf]
        %v5685 = vld [vmem:[#allocation9 + $0x58] sm:$0xf]
        %v5686 = vld [vmem:[#allocation9 + $0x5c] sm:$0xf]
        %v5687 = vld [vmem:[#allocation9 + $0x60] sm:$0xf]
        %v5688 = vld [vmem:[#allocation9 + $0x64] sm:$0xf]
        %v5689 = vld [vmem:[#allocation9 + $0x68] sm:$0xf]
        %v5690 = vld [vmem:[#allocation9 + $0x6c] sm:$0xf]
        %v5691 = vld [vmem:[#allocation9 + $0x70] sm:$0xf]
        %v5692 = vld [vmem:[#allocation9 + $0x74] sm:$0xf]
        %v5693 = vld [vmem:[#allocation9 + $0x78] sm:$0xf]
        %v5694 = vld [vmem:[#allocation9 + $0x7c] sm:$0xf]
        %v5695 = vld [vmem:[#allocation9 + $0x80] sm:$0xf]
        %v5696 = vld [vmem:[#allocation9 + $0x84] sm:$0xf]
        %v5697 = vld [vmem:[#allocation9 + $0x88] sm:$0xf]
        %v5698 = vld [vmem:[#allocation9 + $0x8c] sm:$0xf]
        %v5699 = vld [vmem:[#allocation9 + $0x90] sm:$0xf]
        %v5700 = vld [vmem:[#allocation9 + $0x94] sm:$0xf]
        %v5701 = vld [vmem:[#allocation9 + $0x98] sm:$0xf]
        %v5702 = vld [vmem:[#allocation9 + $0x9c] sm:$0xf]
        %v5703 = vld [vmem:[#allocation9 + $0xa0] sm:$0xf]
        %v5704 = vld [vmem:[#allocation9 + $0xa4] sm:$0xf]
        %v5705 = vld [vmem:[#allocation9 + $0xa8] sm:$0xf]
        %v5706 = vld [vmem:[#allocation9 + $0xac] sm:$0xf]
        %v5707 = vld [vmem:[#allocation9 + $0xb0] sm:$0xf]
        %v5708 = vld [vmem:[#allocation9 + $0xb4] sm:$0xf]
        %v5709 = vld [vmem:[#allocation9 + $0xb8] sm:$0xf]
        %v5710 = vld [vmem:[#allocation9 + $0xbc] sm:$0xf]
        %v5711 = vld [vmem:[#allocation9 + $0xc0] sm:$0xf]
        %v5712 = vld [vmem:[#allocation9 + $0xc4] sm:$0xf]
        %v5713 = vld [vmem:[#allocation9 + $0xc8] sm:$0xf]
        %v5714 = vld [vmem:[#allocation9 + $0xcc] sm:$0xf]
        %v5715 = vld [vmem:[#allocation9 + $0xd0] sm:$0xf]
        %v5716 = vld [vmem:[#allocation9 + $0xd4] sm:$0xf]
        %v5717 = vld [vmem:[#allocation9 + $0xd8] sm:$0xf]
        %v5718 = vld [vmem:[#allocation9 + $0xdc] sm:$0xf]
        %v5719 = vld [vmem:[#allocation9 + $0xe0] sm:$0xf]
        %v5720 = vld [vmem:[#allocation9 + $0xe4] sm:$0xf]
        %v5721 = vld [vmem:[#allocation9 + $0xe8] sm:$0xf]
        %v5722 = vld [vmem:[#allocation9 + $0xec] sm:$0xf]
        %v5723 = vld [vmem:[#allocation9 + $0xf0] sm:$0xf]
        %v5724 = vld [vmem:[#allocation9 + $0xf4] sm:$0xf]
        %v5725 = vld [vmem:[#allocation9 + $0xf8] sm:$0xf]
        %v5726 = vld [vmem:[#allocation9 + $0xfc] sm:$0xf]
        %v5727 = vld [vmem:[%s6] sm:$0x1]
        %v5729 = vperm.slane %v5727, 0
        %v5795 = vunpack.c.l.b16 %v5663
        %v5796 = vunpack.c.l.b16 %v5664
        %v5797 = vunpack.c.l.b16 %v5665
        %v5798 = vunpack.c.l.b16 %v5666
        %v5799 = vunpack.c.l.b16 %v5667
        %v5800 = vunpack.c.l.b16 %v5668
        %v5801 = vunpack.c.l.b16 %v5669
        %v5802 = vunpack.c.l.b16 %v5670
        %v5803 = vunpack.c.l.b16 %v5671
        %v5804 = vunpack.c.l.b16 %v5672
        %v5805 = vunpack.c.l.b16 %v5673
        %v5806 = vunpack.c.l.b16 %v5674
        %v5807 = vunpack.c.l.b16 %v5675
        %v5808 = vunpack.c.l.b16 %v5676
        %v5809 = vunpack.c.l.b16 %v5677
        %v5810 = vunpack.c.l.b16 %v5678
        %v5811 = vunpack.c.l.b16 %v5679
        %v5812 = vunpack.c.l.b16 %v5680
        %v5813 = vunpack.c.l.b16 %v5681
        %v5814 = vunpack.c.l.b16 %v5682
        %v5815 = vunpack.c.l.b16 %v5683
        %v5816 = vunpack.c.l.b16 %v5684
        %v5817 = vunpack.c.l.b16 %v5685
        %v5818 = vunpack.c.l.b16 %v5686
        %v5819 = vunpack.c.l.b16 %v5687
        %v5820 = vunpack.c.l.b16 %v5688
        %v5821 = vunpack.c.l.b16 %v5689
        %v5822 = vunpack.c.l.b16 %v5690
        %v5823 = vunpack.c.l.b16 %v5691
        %v5824 = vunpack.c.l.b16 %v5692
        %v5825 = vunpack.c.l.b16 %v5693
        %v5826 = vunpack.c.l.b16 %v5694
        %v5827 = vunpack.c.l.b16 %v5695
        %v5828 = vunpack.c.l.b16 %v5696
        %v5829 = vunpack.c.l.b16 %v5697
        %v5830 = vunpack.c.l.b16 %v5698
        %v5831 = vunpack.c.l.b16 %v5699
        %v5832 = vunpack.c.l.b16 %v5700
        %v5833 = vunpack.c.l.b16 %v5701
        %v5834 = vunpack.c.l.b16 %v5702
        %v5835 = vunpack.c.l.b16 %v5703
        %v5836 = vunpack.c.l.b16 %v5704
        %v5837 = vunpack.c.l.b16 %v5705
        %v5838 = vunpack.c.l.b16 %v5706
        %v5839 = vunpack.c.l.b16 %v5707
        %v5840 = vunpack.c.l.b16 %v5708
        %v5841 = vunpack.c.l.b16 %v5709
        %v5842 = vunpack.c.l.b16 %v5710
        %v5843 = vunpack.c.l.b16 %v5711
        %v5844 = vunpack.c.l.b16 %v5712
        %v5845 = vunpack.c.l.b16 %v5713
        %v5846 = vunpack.c.l.b16 %v5714
        %v5847 = vunpack.c.l.b16 %v5715
        %v5848 = vunpack.c.l.b16 %v5716
        %v5849 = vunpack.c.l.b16 %v5717
        %v5850 = vunpack.c.l.b16 %v5718
        %v5851 = vunpack.c.l.b16 %v5719
        %v5852 = vunpack.c.l.b16 %v5720
        %v5853 = vunpack.c.l.b16 %v5721
        %v5854 = vunpack.c.l.b16 %v5722
        %v5855 = vunpack.c.l.b16 %v5723
        %v5856 = vunpack.c.l.b16 %v5724
        %v5857 = vunpack.c.l.b16 %v5725
        %v5858 = vunpack.c.l.b16 %v5726
        %v5859 = vpack.c.b16 %v5796, %v5795
        %v5860 = vpack.c.b16 %v5798, %v5797
        %v5861 = vpack.c.b16 %v5800, %v5799
        %v5862 = vpack.c.b16 %v5802, %v5801
        %v5863 = vpack.c.b16 %v5804, %v5803
        %v5864 = vpack.c.b16 %v5806, %v5805
        %v5865 = vpack.c.b16 %v5808, %v5807
        %v5866 = vpack.c.b16 %v5810, %v5809
        %v5867 = vpack.c.b16 %v5812, %v5811
        %v5868 = vpack.c.b16 %v5814, %v5813
        %v5869 = vpack.c.b16 %v5816, %v5815
        %v5870 = vpack.c.b16 %v5818, %v5817
        %v5871 = vpack.c.b16 %v5820, %v5819
        %v5872 = vpack.c.b16 %v5822, %v5821
        %v5873 = vpack.c.b16 %v5824, %v5823
        %v5874 = vpack.c.b16 %v5826, %v5825
        %v5875 = vpack.c.b16 %v5828, %v5827
        %v5876 = vpack.c.b16 %v5830, %v5829
        %v5877 = vpack.c.b16 %v5832, %v5831
        %v5878 = vpack.c.b16 %v5834, %v5833
        %v5879 = vpack.c.b16 %v5836, %v5835
        %v5880 = vpack.c.b16 %v5838, %v5837
        %v5881 = vpack.c.b16 %v5840, %v5839
        %v5882 = vpack.c.b16 %v5842, %v5841
        %v5883 = vpack.c.b16 %v5844, %v5843
        %v5884 = vpack.c.b16 %v5846, %v5845
        %v5885 = vpack.c.b16 %v5848, %v5847
        %v5886 = vpack.c.b16 %v5850, %v5849
        %v5887 = vpack.c.b16 %v5852, %v5851
        %v5888 = vpack.c.b16 %v5854, %v5853
        %v5889 = vpack.c.b16 %v5856, %v5855
        %v5890 = vpack.c.b16 %v5858, %v5857
        %5923 = vmatpush.bf16.msra.mxu0 %v5866
        %5924 = vmatpush.bf16.msra.mxu0 %v5865
        %5925 = vmatpush.bf16.msra.mxu0 %v5864
        %5926 = vmatpush.bf16.msra.mxu0 %v5863
        %5927 = vmatpush.bf16.msra.mxu0 %v5862
        %5928 = vmatpush.bf16.msra.mxu0 %v5861
        %5929 = vmatpush.bf16.msra.mxu0 %v5860
        %5930 = vmatpush.bf16.msra.mxu0 %v5859
        %5931 = vmatmul.bf16.gmra.mxu0 %v5655
        %v5932 = vpop.f32.mrf.mxu0
        %v5933 = vadd.f32 %v5729, %v5932
        %v5934 = vpop.f32.mrf.mxu0
        %v5935 = vadd.f32 %v5729, %v5934
        %5936 = vmatmul.bf16.gmra.mxu0 %v5659
        %v5937 = vpop.f32.mrf.mxu0
        %v5938 = vadd.f32 %v5729, %v5937
        %v5939 = vpop.f32.mrf.mxu0
        %v5940 = vadd.f32 %v5729, %v5939
        %5941 = vdwg.mxu0
        %5942 = vmatpush.bf16.msra.mxu0 %v5874
        %5943 = vmatpush.bf16.msra.mxu0 %v5873
        %5944 = vmatpush.bf16.msra.mxu0 %v5872
        %5945 = vmatpush.bf16.msra.mxu0 %v5871
        %5946 = vmatpush.bf16.msra.mxu0 %v5870
        %5947 = vmatpush.bf16.msra.mxu0 %v5869
        %5948 = vmatpush.bf16.msra.mxu0 %v5868
        %5949 = vmatpush.bf16.msra.mxu0 %v5867
        %5950 = vmatmul.bf16.gmra.mxu0 %v5656
        %v5951 = vpop.f32.mrf.mxu0
        %v5952 = vadd.f32 %v5933, %v5951
        %v5953 = vpop.f32.mrf.mxu0
        %v5954 = vadd.f32 %v5935, %v5953
        %5955 = vmatmul.bf16.gmra.mxu0 %v5660
        %v5956 = vpop.f32.mrf.mxu0
        %v5957 = vadd.f32 %v5938, %v5956
        %v5958 = vpop.f32.mrf.mxu0
        %v5959 = vadd.f32 %v5940, %v5958
        %5960 = vdwg.mxu0
        %5961 = vmatpush.bf16.msra.mxu0 %v5882
        %5962 = vmatpush.bf16.msra.mxu0 %v5881
        %5963 = vmatpush.bf16.msra.mxu0 %v5880
        %5964 = vmatpush.bf16.msra.mxu0 %v5879
        %5965 = vmatpush.bf16.msra.mxu0 %v5878
        %5966 = vmatpush.bf16.msra.mxu0 %v5877
        %5967 = vmatpush.bf16.msra.mxu0 %v5876
        %5968 = vmatpush.bf16.msra.mxu0 %v5875
        %5969 = vmatmul.bf16.gmra.mxu0 %v5657
        %v5970 = vpop.f32.mrf.mxu0
        %v5971 = vadd.f32 %v5952, %v5970
        %v5972 = vpop.f32.mrf.mxu0
        %v5973 = vadd.f32 %v5954, %v5972
        %5974 = vmatmul.bf16.gmra.mxu0 %v5661
        %v5975 = vpop.f32.mrf.mxu0
        %v5976 = vadd.f32 %v5957, %v5975
        %v5977 = vpop.f32.mrf.mxu0
        %v5978 = vadd.f32 %v5959, %v5977
        %5979 = vdwg.mxu0
        %5980 = vmatpush.bf16.msra.mxu0 %v5890
        %5981 = vmatpush.bf16.msra.mxu0 %v5889
        %5982 = vmatpush.bf16.msra.mxu0 %v5888
        %5983 = vmatpush.bf16.msra.mxu0 %v5887
        %5984 = vmatpush.bf16.msra.mxu0 %v5886
        %5985 = vmatpush.bf16.msra.mxu0 %v5885
        %5986 = vmatpush.bf16.msra.mxu0 %v5884
        %5987 = vmatpush.bf16.msra.mxu0 %v5883
        %5988 = vmatmul.bf16.gmra.mxu0 %v5658
        %v5989 = vpop.f32.mrf.mxu0
        %v5990 = vadd.f32 %v5971, %v5989
        %v5991 = vpop.f32.mrf.mxu0
        %v5992 = vadd.f32 %v5973, %v5991
        %5993 = vmatmul.bf16.gmra.mxu0 %v5662
        %v5994 = vpop.f32.mrf.mxu0
        %v5995 = vadd.f32 %v5976, %v5994
        %v5996 = vpop.f32.mrf.mxu0
        %v5997 = vadd.f32 %v5978, %v5996
        %5998 = vdwg.mxu0
        %v5999 = vpack.c.bf16 %v5992, %v5990
        %v6000 = vpack.c.bf16 %v5997, %v5995
        %v6001 = vld [vmem:[#allocation11] sm:$0xf]
        %v6002 = vld [vmem:[#allocation11 + $0x4] sm:$0xf]
        %v6003 = vld [vmem:[#allocation11 + $0x8] sm:$0xf]
        %v6004 = vld [vmem:[#allocation11 + $0xc] sm:$0xf]
        %v6005 = vld [vmem:[#allocation11 + $0x10] sm:$0xf]
        %v6006 = vld [vmem:[#allocation11 + $0x14] sm:$0xf]
        %v6007 = vld [vmem:[#allocation11 + $0x18] sm:$0xf]
        %v6008 = vld [vmem:[#allocation11 + $0x1c] sm:$0xf]
        %v6009 = vld [vmem:[#allocation11 + $0x20] sm:$0xf]
        %v6010 = vld [vmem:[#allocation11 + $0x24] sm:$0xf]
        %v6011 = vld [vmem:[#allocation11 + $0x28] sm:$0xf]
        %v6012 = vld [vmem:[#allocation11 + $0x2c] sm:$0xf]
        %v6013 = vld [vmem:[#allocation11 + $0x30] sm:$0xf]
        %v6014 = vld [vmem:[#allocation11 + $0x34] sm:$0xf]
        %v6015 = vld [vmem:[#allocation11 + $0x38] sm:$0xf]
        %v6016 = vld [vmem:[#allocation11 + $0x3c] sm:$0xf]
        %v6017 = vld [vmem:[%s8] sm:$0x1]
        %v6019 = vperm.slane %v6017, 0
        %v6037 = vunpack.c.l.b16 %v6001
        %v6038 = vunpack.c.l.b16 %v6002
        %v6039 = vunpack.c.l.b16 %v6003
        %v6040 = vunpack.c.l.b16 %v6004
        %v6041 = vunpack.c.l.b16 %v6005
        %v6042 = vunpack.c.l.b16 %v6006
        %v6043 = vunpack.c.l.b16 %v6007
        %v6044 = vunpack.c.l.b16 %v6008
        %v6045 = vunpack.c.l.b16 %v6009
        %v6046 = vunpack.c.l.b16 %v6010
        %v6047 = vunpack.c.l.b16 %v6011
        %v6048 = vunpack.c.l.b16 %v6012
        %v6049 = vunpack.c.l.b16 %v6013
        %v6050 = vunpack.c.l.b16 %v6014
        %v6051 = vunpack.c.l.b16 %v6015
        %v6052 = vunpack.c.l.b16 %v6016
        %v6053 = vpack.c.b16 %v6038, %v6037
        %v6054 = vpack.c.b16 %v6040, %v6039
        %v6055 = vpack.c.b16 %v6042, %v6041
        %v6056 = vpack.c.b16 %v6044, %v6043
        %v6057 = vpack.c.b16 %v6046, %v6045
        %v6058 = vpack.c.b16 %v6048, %v6047
        %v6059 = vpack.c.b16 %v6050, %v6049
        %v6060 = vpack.c.b16 %v6052, %v6051
        %6069 = vmatpush.bf16.msra.mxu0 %v6060
        %6070 = vmatpush.bf16.msra.mxu0 %v6059
        %6071 = vmatpush.bf16.msra.mxu0 %v6058
        %6072 = vmatpush.bf16.msra.mxu0 %v6057
        %6073 = vmatpush.bf16.msra.mxu0 %v6056
        %6074 = vmatpush.bf16.msra.mxu0 %v6055
        %6075 = vmatpush.bf16.msra.mxu0 %v6054
        %6076 = vmatpush.bf16.msra.mxu0 %v6053
        %6077 = vmatmul.bf16.gmra.mxu0 %v5999
        %v6078 = vpop.f32.mrf.mxu0
        %v6079 = vadd.f32 %v6019, %v6078
        %v6080 = vpop.f32.mrf.mxu0
        %v6081 = vadd.f32 %v6019, %v6080
        %6082 = vmatmul.bf16.gmra.mxu0 %v6000
        %v6083 = vpop.f32.mrf.mxu0
        %v6084 = vadd.f32 %v6019, %v6083
        %v6085 = vpop.f32.mrf.mxu0
        %v6086 = vadd.f32 %v6019, %v6085
        %6087 = vdwg.mxu0
        %6088 = vst [vmem:[#allocation2] sm:$0xff] %v5990
        %6089 = vst [vmem:[#allocation2 + $0x8] sm:$0xff] %v5992
        %6090 = vst [vmem:[#allocation2 + $0x10] sm:$0xff] %v5995
        %6091 = vst [vmem:[#allocation2 + $0x18] sm:$0xff] %v5997
        %v6092 = vld [vmem:[#allocation2] ss:$2 sm:$0xff]
        %s6093 = scalar_lea.vmem [#allocation2], 16
        %v6094 = vld [vmem:[%s6093] ss:$2 sm:$0x7f]
        %v6095 = vpack.c.bf16 %v6094, %v6092
        %v6096 = vld [vmem:[%s9] sm:$0xf]
        %v6097 = vld [vmem:[%s9 + $0x4] sm:$0xf]
        %v6098 = vld [vmem:[%s9 + $0x8] sm:$0xf]
        %v6099 = vld [vmem:[%s9 + $0xc] sm:$0xf]
        %v6100 = vld [vmem:[%s9 + $0x10] sm:$0xf]
        %v6101 = vld [vmem:[%s9 + $0x14] sm:$0xf]
        %v6102 = vld [vmem:[%s9 + $0x18] sm:$0xf]
        %v6103 = vld [vmem:[%s9 + $0x1c] sm:$0xf]
        %v6104 = vld [vmem:[%s9 + $0x20] sm:$0xf]
        %v6105 = vld [vmem:[%s9 + $0x24] sm:$0xf]
        %v6106 = vld [vmem:[%s9 + $0x28] sm:$0xf]
        %v6107 = vld [vmem:[%s9 + $0x2c] sm:$0xf]
        %v6108 = vld [vmem:[%s9 + $0x30] sm:$0xf]
        %v6109 = vld [vmem:[%s9 + $0x34] sm:$0xf]
        %v6110 = vld [vmem:[%s9 + $0x38] sm:$0xf]
        %v6111 = vld [vmem:[%s9 + $0x3c] sm:$0xf]
        %s6112 = scalar_lea.vmem [#allocation2], 1
        %v6113 = vld [vmem:[%s6112] ss:$2 sm:$0xff]
        %s6114 = scalar_lea.vmem [#allocation2], 17
        %v6115 = vld [vmem:[%s6114] ss:$2 sm:$0x7f]
        %v6116 = vpack.c.bf16 %v6115, %v6113
        %s6117 = scalar_lea.vmem %s9, 64
        %v6118 = vld [vmem:[%s6117] sm:$0xf]
        %v6119 = vld [vmem:[%s6117 + $0x4] sm:$0xf]
        %v6120 = vld [vmem:[%s6117 + $0x8] sm:$0xf]
        %v6121 = vld [vmem:[%s6117 + $0xc] sm:$0xf]
        %v6122 = vld [vmem:[%s6117 + $0x10] sm:$0xf]
        %v6123 = vld [vmem:[%s6117 + $0x14] sm:$0xf]
        %v6124 = vld [vmem:[%s6117 + $0x18] sm:$0xf]
        %v6125 = vld [vmem:[%s6117 + $0x1c] sm:$0xf]
        %v6126 = vld [vmem:[%s6117 + $0x20] sm:$0xf]
        %v6127 = vld [vmem:[%s6117 + $0x24] sm:$0xf]
        %v6128 = vld [vmem:[%s6117 + $0x28] sm:$0xf]
        %v6129 = vld [vmem:[%s6117 + $0x2c] sm:$0xf]
        %v6130 = vld [vmem:[%s6117 + $0x30] sm:$0xf]
        %v6131 = vld [vmem:[%s6117 + $0x34] sm:$0xf]
        %v6132 = vld [vmem:[%s6117 + $0x38] sm:$0xf]
        %v6133 = vld [vmem:[%s6117 + $0x3c] sm:$0xf]
        %v6150 = vunpack.c.l.b16 %v6118
        %v6151 = vunpack.c.l.b16 %v6119
        %v6152 = vunpack.c.l.b16 %v6120
        %v6153 = vunpack.c.l.b16 %v6121
        %v6154 = vunpack.c.l.b16 %v6122
        %v6155 = vunpack.c.l.b16 %v6123
        %v6156 = vunpack.c.l.b16 %v6124
        %v6157 = vunpack.c.l.b16 %v6125
        %v6158 = vunpack.c.l.b16 %v6126
        %v6159 = vunpack.c.l.b16 %v6127
        %v6160 = vunpack.c.l.b16 %v6128
        %v6161 = vunpack.c.l.b16 %v6129
        %v6162 = vunpack.c.l.b16 %v6130
        %v6163 = vunpack.c.l.b16 %v6131
        %v6164 = vunpack.c.l.b16 %v6132
        %v6165 = vunpack.c.l.b16 %v6133
        %v6166 = vpack.c.b16 %v6151, %v6150
        %v6167 = vpack.c.b16 %v6153, %v6152
        %v6168 = vpack.c.b16 %v6155, %v6154
        %v6169 = vpack.c.b16 %v6157, %v6156
        %v6170 = vpack.c.b16 %v6159, %v6158
        %v6171 = vpack.c.b16 %v6161, %v6160
        %v6172 = vpack.c.b16 %v6163, %v6162
        %v6173 = vpack.c.b16 %v6165, %v6164
        %6182 = vmatpush.bf16.msra.mxu0 %v6173
        %6183 = vmatpush.bf16.msra.mxu0 %v6172
        %6184 = vmatpush.bf16.msra.mxu0 %v6171
        %6185 = vmatpush.bf16.msra.mxu0 %v6170
        %6186 = vmatpush.bf16.msra.mxu0 %v6169
        %6187 = vmatpush.bf16.msra.mxu0 %v6168
        %6188 = vmatpush.bf16.msra.mxu0 %v6167
        %6189 = vmatpush.bf16.msra.mxu0 %v6166
        %6190 = vmatmul.bf16.gmra.mxu0 %v6116
        %v6191 = vpop.f32.mrf.mxu0
        %v6192 = vadd.f32 0.0, %v6191
        %v6193 = vpop.f32.mrf.mxu0
        %v6194 = vadd.f32 0.0, %v6193
        %6195 = vdwg.mxu0
        %v6212 = vunpack.c.l.b16 %v6096
        %v6213 = vunpack.c.l.b16 %v6097
        %v6214 = vunpack.c.l.b16 %v6098
        %v6215 = vunpack.c.l.b16 %v6099
        %v6216 = vunpack.c.l.b16 %v6100
        %v6217 = vunpack.c.l.b16 %v6101
        %v6218 = vunpack.c.l.b16 %v6102
        %v6219 = vunpack.c.l.b16 %v6103
        %v6220 = vunpack.c.l.b16 %v6104
        %v6221 = vunpack.c.l.b16 %v6105
        %v6222 = vunpack.c.l.b16 %v6106
        %v6223 = vunpack.c.l.b16 %v6107
        %v6224 = vunpack.c.l.b16 %v6108
        %v6225 = vunpack.c.l.b16 %v6109
        %v6226 = vunpack.c.l.b16 %v6110
        %v6227 = vunpack.c.l.b16 %v6111
        %v6228 = vpack.c.b16 %v6213, %v6212
        %v6229 = vpack.c.b16 %v6215, %v6214
        %v6230 = vpack.c.b16 %v6217, %v6216
        %v6231 = vpack.c.b16 %v6219, %v6218
        %v6232 = vpack.c.b16 %v6221, %v6220
        %v6233 = vpack.c.b16 %v6223, %v6222
        %v6234 = vpack.c.b16 %v6225, %v6224
        %v6235 = vpack.c.b16 %v6227, %v6226
        %6244 = vmatpush.bf16.msra.mxu0 %v6235
        %6245 = vmatpush.bf16.msra.mxu0 %v6234
        %6246 = vmatpush.bf16.msra.mxu0 %v6233
        %6247 = vmatpush.bf16.msra.mxu0 %v6232
        %6248 = vmatpush.bf16.msra.mxu0 %v6231
        %6249 = vmatpush.bf16.msra.mxu0 %v6230
        %6250 = vmatpush.bf16.msra.mxu0 %v6229
        %6251 = vmatpush.bf16.msra.mxu0 %v6228
        %6252 = vmatmul.bf16.gmra.mxu0 %v6095
        %v6253 = vpop.f32.mrf.mxu0
        %v6254 = vadd.f32 %v6192, %v6253
        %v6255 = vpop.f32.mrf.mxu0
        %v6256 = vadd.f32 %v6194, %v6255
        %6257 = vdwg.mxu0
        %s6258 = scalar_lea.vmem [#allocation2], 2
        %v6259 = vld [vmem:[%s6258] ss:$2 sm:$0xff]
        %s6260 = scalar_lea.vmem [#allocation2], 18
        %v6261 = vld [vmem:[%s6260] ss:$2 sm:$0x7f]
        %v6262 = vpack.c.bf16 %v6261, %v6259
        %s6263 = scalar_lea.vmem %s9, 128
        %v6264 = vld [vmem:[%s6263] sm:$0xf]
        %v6265 = vld [vmem:[%s6263 + $0x4] sm:$0xf]
        %v6266 = vld [vmem:[%s6263 + $0x8] sm:$0xf]
        %v6267 = vld [vmem:[%s6263 + $0xc] sm:$0xf]
        %v6268 = vld [vmem:[%s6263 + $0x10] sm:$0xf]
        %v6269 = vld [vmem:[%s6263 + $0x14] sm:$0xf]
        %v6270 = vld [vmem:[%s6263 + $0x18] sm:$0xf]
        %v6271 = vld [vmem:[%s6263 + $0x1c] sm:$0xf]
        %v6272 = vld [vmem:[%s6263 + $0x20] sm:$0xf]
        %v6273 = vld [vmem:[%s6263 + $0x24] sm:$0xf]
        %v6274 = vld [vmem:[%s6263 + $0x28] sm:$0xf]
        %v6275 = vld [vmem:[%s6263 + $0x2c] sm:$0xf]
        %v6276 = vld [vmem:[%s6263 + $0x30] sm:$0xf]
        %v6277 = vld [vmem:[%s6263 + $0x34] sm:$0xf]
        %v6278 = vld [vmem:[%s6263 + $0x38] sm:$0xf]
        %v6279 = vld [vmem:[%s6263 + $0x3c] sm:$0xf]
        %v6296 = vunpack.c.l.b16 %v6264
        %v6297 = vunpack.c.l.b16 %v6265
        %v6298 = vunpack.c.l.b16 %v6266
        %v6299 = vunpack.c.l.b16 %v6267
        %v6300 = vunpack.c.l.b16 %v6268
        %v6301 = vunpack.c.l.b16 %v6269
        %v6302 = vunpack.c.l.b16 %v6270
        %v6303 = vunpack.c.l.b16 %v6271
        %v6304 = vunpack.c.l.b16 %v6272
        %v6305 = vunpack.c.l.b16 %v6273
        %v6306 = vunpack.c.l.b16 %v6274
        %v6307 = vunpack.c.l.b16 %v6275
        %v6308 = vunpack.c.l.b16 %v6276
        %v6309 = vunpack.c.l.b16 %v6277
        %v6310 = vunpack.c.l.b16 %v6278
        %v6311 = vunpack.c.l.b16 %v6279
        %v6312 = vpack.c.b16 %v6297, %v6296
        %v6313 = vpack.c.b16 %v6299, %v6298
        %v6314 = vpack.c.b16 %v6301, %v6300
        %v6315 = vpack.c.b16 %v6303, %v6302
        %v6316 = vpack.c.b16 %v6305, %v6304
        %v6317 = vpack.c.b16 %v6307, %v6306
        %v6318 = vpack.c.b16 %v6309, %v6308
        %v6319 = vpack.c.b16 %v6311, %v6310
        %6328 = vmatpush.bf16.msra.mxu0 %v6319
        %6329 = vmatpush.bf16.msra.mxu0 %v6318
        %6330 = vmatpush.bf16.msra.mxu0 %v6317
        %6331 = vmatpush.bf16.msra.mxu0 %v6316
        %6332 = vmatpush.bf16.msra.mxu0 %v6315
        %6333 = vmatpush.bf16.msra.mxu0 %v6314
        %6334 = vmatpush.bf16.msra.mxu0 %v6313
        %6335 = vmatpush.bf16.msra.mxu0 %v6312
        %6336 = vmatmul.bf16.gmra.mxu0 %v6262
        %v6337 = vpop.f32.mrf.mxu0
        %v6338 = vadd.f32 0.0, %v6337
        %v6339 = vpop.f32.mrf.mxu0
        %v6340 = vadd.f32 0.0, %v6339
        %6341 = vdwg.mxu0
        %v6342 = vadd.f32 %v6254, %v6338
        %v6343 = vadd.f32 %v6256, %v6340
        %v6344 = vld [vmem:[%s10] sm:$0x1]
        %v6346 = vperm.slane %v6344, 0
        %v6348 = vadd.f32 %v6342, %v6346
        %v6349 = vadd.f32 %v6343, %v6346
        %vm6352 = vcmask 1046528
        %v6353 = vrot.slane %v6348, 1
        %v6354 = vrot.slane %v6349, 1
        %v6355 = vsel %vm6352, %v6353, %v6354
        %v6357 = vmax.f32 %v6348, %v6355
        %vm6358 = vcmask 1045504
        %v6359 = vrot.slane %v6348, 2
        %v6360 = vrot.slane %v6349, 2
        %v6361 = vsel %vm6358, %v6359, %v6360
        %v6363 = vmax.f32 %v6357, %v6361
        %vm6364 = vcmask 1044480
        %v6365 = vrot.slane %v6348, 3
        %v6366 = vrot.slane %v6349, 3
        %v6367 = vsel %vm6364, %v6365, %v6366
        %v6369 = vmax.f32 %v6363, %v6367
        %vm6370 = vcmask 1043456
        %v6371 = vrot.slane %v6348, 4
        %v6372 = vrot.slane %v6349, 4
        %v6373 = vsel %vm6370, %v6371, %v6372
        %v6375 = vmax.f32 %v6369, %v6373
        %vm6376 = vcmask 1042432
        %v6377 = vrot.slane %v6348, 5
        %v6378 = vrot.slane %v6349, 5
        %v6379 = vsel %vm6376, %v6377, %v6378
        %v6381 = vmax.f32 %v6375, %v6379
        %vm6382 = vcmask 1041408
        %v6383 = vrot.slane %v6348, 6
        %v6384 = vrot.slane %v6349, 6
        %v6385 = vsel %vm6382, %v6383, %v6384
        %v6387 = vmax.f32 %v6381, %v6385
        %v6389 = vrot.slane %v6387, 2
        %v6391 = vrot.slane %v6387, 4
        %vm6393 = vcmask 1040384
        %v6394 = vsel %vm6393, %v6387, %v6389
        %v6395 = vsel %vm6382, %v6394, %v6391
        %6397 = vrot.lane.b32.xlu0 %v6395, 124
        %v6398 = vpop.permute.xlu0 %6397
        %v6400 = vmax.f32 %v6395, %v6398
        %6401 = vrot.lane.b32.xlu0 %v6395, 120
        %v6402 = vpop.permute.xlu0 %6401
        %v6404 = vmax.f32 %v6400, %v6402
        %6405 = vrot.lane.b32.xlu0 %v6395, 116
        %v6406 = vpop.permute.xlu0 %6405
        %v6408 = vmax.f32 %v6404, %v6406
        %6409 = vrot.lane.b32.xlu0 %v6395, 112
        %v6410 = vpop.permute.xlu0 %6409
        %v6412 = vmax.f32 %v6408, %v6410
        %6413 = vrot.lane.b32.xlu0 %v6395, 108
        %v6414 = vpop.permute.xlu0 %6413
        %v6416 = vmax.f32 %v6412, %v6414
        %6417 = vrot.lane.b32.xlu0 %v6395, 104
        %v6418 = vpop.permute.xlu0 %6417
        %v6420 = vmax.f32 %v6416, %v6418
        %6422 = vrot.lane.b32.xlu0 %v6420, 120
        %v6423 = vpop.permute.xlu0 %6422
        %6425 = vrot.lane.b32.xlu0 %v6420, 112
        %v6426 = vpop.permute.xlu0 %6425
        %vm6428 = vcmask 31744
        %v6429 = vsel %vm6428, %v6420, %v6423
        %vm6430 = vcmask 64512
        %v6431 = vsel %vm6430, %v6429, %v6426
        %v6433 = vrot.slane %v6431, 7
        %v6435 = vsel %vm6393, 0.0, %v6433
        %v6436 = vsel %vm6370, %v6435, 0.0
        %v6438 = vrot.slane %v6436, 1
        %6439 = vrot.lane.b32.xlu0 %v6438, 12
        %v6440 = vpop.permute.xlu0 %6439
        %v6442 = vrot.slane %v6436, 2
        %6443 = vrot.lane.b32.xlu0 %v6442, 24
        %v6444 = vpop.permute.xlu0 %6443
        %vm6446 = vcmask 97280
        %v6447 = vsel %vm6446, %v6436, %v6440
        %vm6448 = vcmask 195584
        %v6449 = vsel %vm6448, %v6447, %v6444
        %v6450 = vpack.c.bf16 %v6449, %v6449
        %v6451 = vld [vmem:[%s11] sm:$0xf]
        %v6452 = vld [vmem:[%s11 + $0x4] sm:$0xf]
        %v6453 = vld [vmem:[%s11 + $0x8] sm:$0xf]
        %v6454 = vld [vmem:[%s11 + $0xc] sm:$0xf]
        %v6455 = vld [vmem:[%s11 + $0x10] sm:$0x3]
        %v6456 = vld [vmem:[%s12] sm:$0x1]
        %v6457 = vperm.slane %v6456, 0
        %v6463 = vunpack.c.l.b16 %v6451
        %v6464 = vunpack.c.l.b16 %v6452
        %v6465 = vunpack.c.l.b16 %v6453
        %v6466 = vunpack.c.l.b16 %v6454
        %v6467 = vunpack.c.l.b16 %v6455
        %v6468 = vpack.c.b16 %v6464, %v6463
        %v6469 = vpack.c.b16 %v6466, %v6465
        %v6470 = vpack.c.b16 %v6467, %v6467
        %vm6473 = vcmask 293888
        %v6475 = vsel %vm6473, %v6450, 0
        %v6478 = vsel %vm6382, %v6470, 0
        %6480 = vmatpush.bf16.msra.mxu0 0
        %6481 = vmatpush.bf16.msra.mxu0 0
        %6482 = vmatpush.bf16.msra.mxu0 0
        %6483 = vmatpush.bf16.msra.mxu0 0
        %6484 = vmatpush.bf16.msra.mxu0 0
        %6485 = vmatpush.bf16.msra.mxu0 %v6478
        %6486 = vmatpush.bf16.msra.mxu0 %v6469
        %6487 = vmatpush.bf16.msra.mxu0 %v6468
        %6488 = vmatmul.bf16.gmra.mxu0 %v6475
        %v6489 = vpop.f32.mrf.mxu0
        %v6490 = vadd.f32 %v6457, %v6489
        %v6491 = vpop.f32.mrf.mxu0
        %6492 = vdwg.mxu0
        %v6493 = vmax.f32 %v6490, 0.0
        %v6495 = vrot.slane %v6493, 7
        %v6497 = vsel %vm6393, 0.0, %v6495
        %v6498 = vsel %vm6370, %v6497, 0.0
        %v6500 = vrot.slane %v6498, 1
        %6501 = vrot.lane.b32.xlu0 %v6500, 12
        %v6502 = vpop.permute.xlu0 %6501
        %v6504 = vrot.slane %v6498, 2
        %6505 = vrot.lane.b32.xlu0 %v6504, 24
        %v6506 = vpop.permute.xlu0 %6505
        %v6508 = vsel %vm6446, %v6498, %v6502
        %v6509 = vsel %vm6448, %v6508, %v6506
        %v6510 = vpack.c.bf16 %v6509, %v6509
        %s6511 = scalar_lea.vmem %s11, 20
        %v6512 = vld [vmem:[%s6511] sm:$0xf]
        %v6513 = vld [vmem:[%s6511 + $0x4] sm:$0xf]
        %v6514 = vld [vmem:[%s6511 + $0x8] sm:$0xf]
        %v6515 = vld [vmem:[%s6511 + $0xc] sm:$0xf]
        %v6516 = vld [vmem:[%s6511 + $0x10] sm:$0x3]
        %v6517 = vld [vmem:[%s12 + $0x1] sm:$0x1]
        %v6518 = vperm.slane %v6517, 0
        %v6524 = vunpack.c.l.b16 %v6512
        %v6525 = vunpack.c.l.b16 %v6513
        %v6526 = vunpack.c.l.b16 %v6514
        %v6527 = vunpack.c.l.b16 %v6515
        %v6528 = vunpack.c.l.b16 %v6516
        %v6529 = vpack.c.b16 %v6525, %v6524
        %v6530 = vpack.c.b16 %v6527, %v6526
        %v6531 = vpack.c.b16 %v6528, %v6528
        %v6535 = vsel %vm6473, %v6510, 0
        %v6538 = vsel %vm6382, %v6531, 0
        %6540 = vmatpush.bf16.msra.mxu0 0
        %6541 = vmatpush.bf16.msra.mxu0 0
        %6542 = vmatpush.bf16.msra.mxu0 0
        %6543 = vmatpush.bf16.msra.mxu0 0
        %6544 = vmatpush.bf16.msra.mxu0 0
        %6545 = vmatpush.bf16.msra.mxu0 %v6538
        %6546 = vmatpush.bf16.msra.mxu0 %v6530
        %6547 = vmatpush.bf16.msra.mxu0 %v6529
        %6548 = vmatmul.bf16.gmra.mxu0 %v6535
        %v6549 = vpop.f32.mrf.mxu0
        %v6550 = vadd.f32 %v6518, %v6549
        %v6551 = vpop.f32.mrf.mxu0
        %6552 = vdwg.mxu0
        %v6553 = vmax.f32 %v6550, 0.0
        %v6555 = vrot.slane %v6553, 7
        %v6557 = vsel %vm6393, 0.0, %v6555
        %v6558 = vsel %vm6370, %v6557, 0.0
        %v6560 = vrot.slane %v6558, 1
        %6561 = vrot.lane.b32.xlu0 %v6560, 12
        %v6562 = vpop.permute.xlu0 %6561
        %v6564 = vrot.slane %v6558, 2
        %6565 = vrot.lane.b32.xlu0 %v6564, 24
        %v6566 = vpop.permute.xlu0 %6565
        %v6568 = vsel %vm6446, %v6558, %v6562
        %v6569 = vsel %vm6448, %v6568, %v6566
        %v6570 = vpack.c.bf16 %v6569, %v6569
        %s6571 = scalar_lea.vmem %s11, 40
        %v6572 = vld [vmem:[%s6571] sm:$0xf]
        %v6573 = vld [vmem:[%s6571 + $0x4] sm:$0xf]
        %v6574 = vld [vmem:[%s6571 + $0x8] sm:$0xf]
        %v6575 = vld [vmem:[%s6571 + $0xc] sm:$0xf]
        %v6576 = vld [vmem:[%s6571 + $0x10] sm:$0x3]
        %v6577 = vld [vmem:[%s12 + $0x2] sm:$0x1]
        %v6578 = vperm.slane %v6577, 0
        %v6584 = vunpack.c.l.b16 %v6572
        %v6585 = vunpack.c.l.b16 %v6573
        %v6586 = vunpack.c.l.b16 %v6574
        %v6587 = vunpack.c.l.b16 %v6575
        %v6588 = vunpack.c.l.b16 %v6576
        %v6589 = vpack.c.b16 %v6585, %v6584
        %v6590 = vpack.c.b16 %v6587, %v6586
        %v6591 = vpack.c.b16 %v6588, %v6588
        %v6595 = vsel %vm6473, %v6570, 0
        %v6598 = vsel %vm6382, %v6591, 0
        %6600 = vmatpush.bf16.msra.mxu0 0
        %6601 = vmatpush.bf16.msra.mxu0 0
        %6602 = vmatpush.bf16.msra.mxu0 0
        %6603 = vmatpush.bf16.msra.mxu0 0
        %6604 = vmatpush.bf16.msra.mxu0 0
        %6605 = vmatpush.bf16.msra.mxu0 %v6598
        %6606 = vmatpush.bf16.msra.mxu0 %v6590
        %6607 = vmatpush.bf16.msra.mxu0 %v6589
        %6608 = vmatmul.bf16.gmra.mxu0 %v6595
        %v6609 = vpop.f32.mrf.mxu0
        %v6610 = vadd.f32 %v6578, %v6609
        %v6611 = vpop.f32.mrf.mxu0
        %6612 = vdwg.mxu0
        %v6613 = vpack.c.bf16 %v6610, %v6610
        %v6614 = vld [vmem:[%s13] sm:$0xf]
        %v6615 = vld [vmem:[%s13 + $0x4] sm:$0x3]
        %v6618 = vunpack.c.l.b16 %v6614
        %v6619 = vunpack.c.l.b16 %v6615
        %v6620 = vpack.c.b16 %v6619, %v6618
        %v6622 = vsel %vm6446, %v6613, 0
        %v6625 = vsel %vm6358, %v6620, 0
        %6627 = vmatpush.bf16.msra.mxu0 0
        %6628 = vmatpush.bf16.msra.mxu0 0
        %6629 = vmatpush.bf16.msra.mxu0 0
        %6630 = vmatpush.bf16.msra.mxu0 0
        %6631 = vmatpush.bf16.msra.mxu0 0
        %6632 = vmatpush.bf16.msra.mxu0 0
        %6633 = vmatpush.bf16.msra.mxu0 0
        %6634 = vmatpush.bf16.msra.mxu0 %v6625
        %6635 = vmatmul.bf16.gmra.mxu0 %v6622
        %v6636 = vpop.f32.mrf.mxu0
        %v6637 = vadd.f32 0.0, %v6636
        %v6638 = vpop.f32.mrf.mxu0
        %6639 = vdwg.mxu0
        %v6640 = vld [vmem:[%s14] sm:$0xf]
        %v6641 = vld [vmem:[%s14 + $0x4] sm:$0xf]
        %v6642 = vld [vmem:[%s14 + $0x8] sm:$0xf]
        %v6643 = vld [vmem:[%s14 + $0xc] sm:$0xf]
        %v6644 = vpack.c.bf16 %v6637, %v6637
        %v6649 = vunpack.c.l.b16 %v6640
        %v6650 = vunpack.c.l.b16 %v6641
        %v6651 = vunpack.c.l.b16 %v6642
        %v6652 = vunpack.c.l.b16 %v6643
        %v6653 = vpack.c.b16 %v6650, %v6649
        %v6654 = vpack.c.b16 %v6652, %v6651
        %vm6655 = vcmask 23552
        %v6657 = vsel %vm6655, %v6653, 0
        %v6660 = vsel %vm6655, %v6654, 0
        %v6662 = vsel %vm6393, 4294967295, 65535
        %v6663 = vsel %vm6382, %v6662, 0
        %v6665 = vand.u32 %v6644, %v6663
        %6667 = vmatpush.bf16.msra.mxu0 0
        %6668 = vmatpush.bf16.msra.mxu0 0
        %6669 = vmatpush.bf16.msra.mxu0 0
        %6670 = vmatpush.bf16.msra.mxu0 0
        %6671 = vmatpush.bf16.msra.mxu0 0
        %6672 = vmatpush.bf16.msra.mxu0 0
        %6673 = vmatpush.bf16.msra.mxu0 0
        %6674 = vmatpush.bf16.msra.mxu0 %v6665
        %6675 = vmatmul.bf16.gmra.mxu0 %v6657
        %v6676 = vpop.f32.mrf.mxu0
        %v6677 = vadd.f32 %v6079, %v6676
        %v6678 = vpop.f32.mrf.mxu0
        %v6679 = vadd.f32 %v6081, %v6678
        %6680 = vmatmul.bf16.gmra.mxu0 %v6660
        %v6681 = vpop.f32.mrf.mxu0
        %v6682 = vadd.f32 %v6084, %v6681
        %v6683 = vpop.f32.mrf.mxu0
        %v6684 = vadd.f32 %v6086, %v6683
        %6685 = vdwg.mxu0
        %v6686 = vpack.c.bf16 %v6679, %v6677
        %v6687 = vpack.c.bf16 %v6684, %v6682
        %v6688 = vld [vmem:[#allocation12] sm:$0xff]
        %v6689 = vld [vmem:[#allocation12 + $0x8] sm:$0xff]
        %v6690 = vld [vmem:[#allocation12 + $0x10] sm:$0xff]
        %v6691 = vld [vmem:[#allocation12 + $0x18] sm:$0xff]
        %v6692 = vld [vmem:[#allocation12 + $0x20] sm:$0xff]
        %v6693 = vld [vmem:[#allocation12 + $0x28] sm:$0xff]
        %v6694 = vld [vmem:[#allocation12 + $0x30] sm:$0xff]
        %v6695 = vld [vmem:[#allocation12 + $0x38] sm:$0xff]
        %v6696 = vld [vmem:[#allocation12 + $0x40] sm:$0xff]
        %v6697 = vld [vmem:[#allocation12 + $0x48] sm:$0xff]
        %v6698 = vld [vmem:[#allocation12 + $0x50] sm:$0xff]
        %v6699 = vld [vmem:[#allocation12 + $0x58] sm:$0xff]
        %v6700 = vld [vmem:[#allocation12 + $0x60] sm:$0xff]
        %v6701 = vld [vmem:[#allocation12 + $0x68] sm:$0xff]
        %v6702 = vld [vmem:[#allocation12 + $0x70] sm:$0xff]
        %v6703 = vld [vmem:[#allocation12 + $0x78] sm:$0xff]
        %v6704 = vld [vmem:[#allocation12 + $0x80] sm:$0xff]
        %v6705 = vld [vmem:[#allocation12 + $0x88] sm:$0xff]
        %v6706 = vld [vmem:[#allocation12 + $0x90] sm:$0xff]
        %v6707 = vld [vmem:[#allocation12 + $0x98] sm:$0xff]
        %v6708 = vld [vmem:[#allocation12 + $0xa0] sm:$0xff]
        %v6709 = vld [vmem:[#allocation12 + $0xa8] sm:$0xff]
        %v6710 = vld [vmem:[#allocation12 + $0xb0] sm:$0xff]
        %v6711 = vld [vmem:[#allocation12 + $0xb8] sm:$0xff]
        %v6712 = vld [vmem:[#allocation12 + $0xc0] sm:$0xff]
        %v6713 = vld [vmem:[#allocation12 + $0xc8] sm:$0xff]
        %v6714 = vld [vmem:[#allocation12 + $0xd0] sm:$0xff]
        %v6715 = vld [vmem:[#allocation12 + $0xd8] sm:$0xff]
        %v6716 = vld [vmem:[#allocation12 + $0xe0] sm:$0xff]
        %v6717 = vld [vmem:[#allocation12 + $0xe8] sm:$0xff]
        %v6718 = vld [vmem:[#allocation12 + $0xf0] sm:$0xff]
        %v6719 = vld [vmem:[#allocation12 + $0xf8] sm:$0xff]
        %v6720 = vld [vmem:[%s16] sm:$0xf]
        %v6722 = vperm.slane %v6720, 0
        %v6723 = vperm.slane %v6720, 1
        %v6724 = vperm.slane %v6720, 2
        %v6725 = vperm.slane %v6720, 3
        %v6762 = vunpack.c.l.b16 %v6688
        %v6763 = vunpack.c.h.b16 %v6688
        %v6764 = vunpack.c.l.b16 %v6689
        %v6765 = vunpack.c.h.b16 %v6689
        %v6766 = vunpack.c.l.b16 %v6690
        %v6767 = vunpack.c.h.b16 %v6690
        %v6768 = vunpack.c.l.b16 %v6691
        %v6769 = vunpack.c.h.b16 %v6691
        %v6770 = vunpack.c.l.b16 %v6692
        %v6771 = vunpack.c.h.b16 %v6692
        %v6772 = vunpack.c.l.b16 %v6693
        %v6773 = vunpack.c.h.b16 %v6693
        %v6774 = vunpack.c.l.b16 %v6694
        %v6775 = vunpack.c.h.b16 %v6694
        %v6776 = vunpack.c.l.b16 %v6695
        %v6777 = vunpack.c.h.b16 %v6695
        %v6778 = vunpack.c.l.b16 %v6696
        %v6779 = vunpack.c.h.b16 %v6696
        %v6780 = vunpack.c.l.b16 %v6697
        %v6781 = vunpack.c.h.b16 %v6697
        %v6782 = vunpack.c.l.b16 %v6698
        %v6783 = vunpack.c.h.b16 %v6698
        %v6784 = vunpack.c.l.b16 %v6699
        %v6785 = vunpack.c.h.b16 %v6699
        %v6786 = vunpack.c.l.b16 %v6700
        %v6787 = vunpack.c.h.b16 %v6700
        %v6788 = vunpack.c.l.b16 %v6701
        %v6789 = vunpack.c.h.b16 %v6701
        %v6790 = vunpack.c.l.b16 %v6702
        %v6791 = vunpack.c.h.b16 %v6702
        %v6792 = vunpack.c.l.b16 %v6703
        %v6793 = vunpack.c.h.b16 %v6703
        %v6794 = vunpack.c.l.b16 %v6704
        %v6795 = vunpack.c.h.b16 %v6704
        %v6796 = vunpack.c.l.b16 %v6705
        %v6797 = vunpack.c.h.b16 %v6705
        %v6798 = vunpack.c.l.b16 %v6706
        %v6799 = vunpack.c.h.b16 %v6706
        %v6800 = vunpack.c.l.b16 %v6707
        %v6801 = vunpack.c.h.b16 %v6707
        %v6802 = vunpack.c.l.b16 %v6708
        %v6803 = vunpack.c.h.b16 %v6708
        %v6804 = vunpack.c.l.b16 %v6709
        %v6805 = vunpack.c.h.b16 %v6709
        %v6806 = vunpack.c.l.b16 %v6710
        %v6807 = vunpack.c.h.b16 %v6710
        %v6808 = vunpack.c.l.b16 %v6711
        %v6809 = vunpack.c.h.b16 %v6711
        %v6810 = vunpack.c.l.b16 %v6712
        %v6811 = vunpack.c.h.b16 %v6712
        %v6812 = vunpack.c.l.b16 %v6713
        %v6813 = vunpack.c.h.b16 %v6713
        %v6814 = vunpack.c.l.b16 %v6714
        %v6815 = vunpack.c.h.b16 %v6714
        %v6816 = vunpack.c.l.b16 %v6715
        %v6817 = vunpack.c.h.b16 %v6715
        %v6818 = vunpack.c.l.b16 %v6716
        %v6819 = vunpack.c.h.b16 %v6716
        %v6820 = vunpack.c.l.b16 %v6717
        %v6821 = vunpack.c.h.b16 %v6717
        %v6822 = vunpack.c.l.b16 %v6718
        %v6823 = vunpack.c.h.b16 %v6718
        %v6824 = vunpack.c.l.b16 %v6719
        %v6825 = vunpack.c.h.b16 %v6719
        %v6826 = vpack.c.b16 %v6766, %v6762
        %v6827 = vpack.c.b16 %v6767, %v6763
        %v6828 = vpack.c.b16 %v6768, %v6764
        %v6829 = vpack.c.b16 %v6769, %v6765
        %v6830 = vpack.c.b16 %v6774, %v6770
        %v6831 = vpack.c.b16 %v6775, %v6771
        %v6832 = vpack.c.b16 %v6776, %v6772
        %v6833 = vpack.c.b16 %v6777, %v6773
        %v6834 = vpack.c.b16 %v6782, %v6778
        %v6835 = vpack.c.b16 %v6783, %v6779
        %v6836 = vpack.c.b16 %v6784, %v6780
        %v6837 = vpack.c.b16 %v6785, %v6781
        %v6838 = vpack.c.b16 %v6790, %v6786
        %v6839 = vpack.c.b16 %v6791, %v6787
        %v6840 = vpack.c.b16 %v6792, %v6788
        %v6841 = vpack.c.b16 %v6793, %v6789
        %v6842 = vpack.c.b16 %v6798, %v6794
        %v6843 = vpack.c.b16 %v6799, %v6795
        %v6844 = vpack.c.b16 %v6800, %v6796
        %v6845 = vpack.c.b16 %v6801, %v6797
        %v6846 = vpack.c.b16 %v6806, %v6802
        %v6847 = vpack.c.b16 %v6807, %v6803
        %v6848 = vpack.c.b16 %v6808, %v6804
        %v6849 = vpack.c.b16 %v6809, %v6805
        %v6850 = vpack.c.b16 %v6814, %v6810
        %v6851 = vpack.c.b16 %v6815, %v6811
        %v6852 = vpack.c.b16 %v6816, %v6812
        %v6853 = vpack.c.b16 %v6817, %v6813
        %v6854 = vpack.c.b16 %v6822, %v6818
        %v6855 = vpack.c.b16 %v6823, %v6819
        %v6856 = vpack.c.b16 %v6824, %v6820
        %v6857 = vpack.c.b16 %v6825, %v6821
        %6890 = vmatpush.bf16.msra.mxu0 %v6854
        %6891 = vmatpush.bf16.msra.mxu0 %v6850
        %6892 = vmatpush.bf16.msra.mxu0 %v6846
        %6893 = vmatpush.bf16.msra.mxu0 %v6842
        %6894 = vmatpush.bf16.msra.mxu0 %v6838
        %6895 = vmatpush.bf16.msra.mxu0 %v6834
        %6896 = vmatpush.bf16.msra.mxu0 %v6830
        %6897 = vmatpush.bf16.msra.mxu0 %v6826
        %6898 = vmatmul.bf16.gmra.mxu0 %v6686
        %v6899 = vpop.f32.mrf.mxu0
        %v6900 = vadd.f32 %v6722, %v6899
        %v6901 = vpop.f32.mrf.mxu0
        %v6902 = vadd.f32 %v6722, %v6901
        %6903 = vmatmul.bf16.gmra.mxu0 %v6687
        %v6904 = vpop.f32.mrf.mxu0
        %v6905 = vadd.f32 %v6722, %v6904
        %v6906 = vpop.f32.mrf.mxu0
        %v6907 = vadd.f32 %v6722, %v6906
        %6908 = vdwg.mxu0
        %6909 = vmatpush.bf16.msra.mxu0 %v6855
        %6910 = vmatpush.bf16.msra.mxu0 %v6851
        %6911 = vmatpush.bf16.msra.mxu0 %v6847
        %6912 = vmatpush.bf16.msra.mxu0 %v6843
        %6913 = vmatpush.bf16.msra.mxu0 %v6839
        %6914 = vmatpush.bf16.msra.mxu0 %v6835
        %6915 = vmatpush.bf16.msra.mxu0 %v6831
        %6916 = vmatpush.bf16.msra.mxu0 %v6827
        %6917 = vmatmul.bf16.gmra.mxu0 %v6686
        %v6918 = vpop.f32.mrf.mxu0
        %v6919 = vadd.f32 %v6723, %v6918
        %v6920 = vpop.f32.mrf.mxu0
        %v6921 = vadd.f32 %v6723, %v6920
        %6922 = vmatmul.bf16.gmra.mxu0 %v6687
        %v6923 = vpop.f32.mrf.mxu0
        %v6924 = vadd.f32 %v6723, %v6923
        %v6925 = vpop.f32.mrf.mxu0
        %v6926 = vadd.f32 %v6723, %v6925
        %6927 = vdwg.mxu0
        %6928 = vmatpush.bf16.msra.mxu0 %v6856
        %6929 = vmatpush.bf16.msra.mxu0 %v6852
        %6930 = vmatpush.bf16.msra.mxu0 %v6848
        %6931 = vmatpush.bf16.msra.mxu0 %v6844
        %6932 = vmatpush.bf16.msra.mxu0 %v6840
        %6933 = vmatpush.bf16.msra.mxu0 %v6836
        %6934 = vmatpush.bf16.msra.mxu0 %v6832
        %6935 = vmatpush.bf16.msra.mxu0 %v6828
        %6936 = vmatmul.bf16.gmra.mxu0 %v6686
        %v6937 = vpop.f32.mrf.mxu0
        %v6938 = vadd.f32 %v6724, %v6937
        %v6939 = vpop.f32.mrf.mxu0
        %v6940 = vadd.f32 %v6724, %v6939
        %6941 = vmatmul.bf16.gmra.mxu0 %v6687
        %v6942 = vpop.f32.mrf.mxu0
        %v6943 = vadd.f32 %v6724, %v6942
        %v6944 = vpop.f32.mrf.mxu0
        %v6945 = vadd.f32 %v6724, %v6944
        %6946 = vdwg.mxu0
        %6947 = vmatpush.bf16.msra.mxu0 %v6857
        %6948 = vmatpush.bf16.msra.mxu0 %v6853
        %6949 = vmatpush.bf16.msra.mxu0 %v6849
        %6950 = vmatpush.bf16.msra.mxu0 %v6845
        %6951 = vmatpush.bf16.msra.mxu0 %v6841
        %6952 = vmatpush.bf16.msra.mxu0 %v6837
        %6953 = vmatpush.bf16.msra.mxu0 %v6833
        %6954 = vmatpush.bf16.msra.mxu0 %v6829
        %6955 = vmatmul.bf16.gmra.mxu0 %v6686
        %v6956 = vpop.f32.mrf.mxu0
        %v6957 = vadd.f32 %v6725, %v6956
        %v6958 = vpop.f32.mrf.mxu0
        %v6959 = vadd.f32 %v6725, %v6958
        %6960 = vmatmul.bf16.gmra.mxu0 %v6687
        %v6961 = vpop.f32.mrf.mxu0
        %v6962 = vadd.f32 %v6725, %v6961
        %v6963 = vpop.f32.mrf.mxu0
        %v6964 = vadd.f32 %v6725, %v6963
        %6965 = vdwg.mxu0
        %v6966 = vxor.u32 %v6900, 2147483648
        %v6967 = vxor.u32 %v6919, 2147483648
        %v6968 = vxor.u32 %v6938, 2147483648
        %v6969 = vxor.u32 %v6957, 2147483648
        %v6970 = vxor.u32 %v6902, 2147483648
        %v6971 = vxor.u32 %v6921, 2147483648
        %v6972 = vxor.u32 %v6940, 2147483648
        %v6973 = vxor.u32 %v6959, 2147483648
        %v6974 = vxor.u32 %v6905, 2147483648
        %v6975 = vxor.u32 %v6924, 2147483648
        %v6976 = vxor.u32 %v6943, 2147483648
        %v6977 = vxor.u32 %v6962, 2147483648
        %v6978 = vxor.u32 %v6907, 2147483648
        %v6979 = vxor.u32 %v6926, 2147483648
        %v6980 = vxor.u32 %v6945, 2147483648
        %v6981 = vxor.u32 %v6964, 2147483648
        %v6982 = vmul.f32 %v6966, 1.442695
        %v6983 = vpow.pop %v6982
        %v6984 = vmul.f32 %v6967, 1.442695
        %v6985 = vpow.pop %v6984
        %v6986 = vmul.f32 %v6968, 1.442695
        %v6987 = vpow.pop %v6986
        %v6988 = vmul.f32 %v6969, 1.442695
        %v6989 = vpow.pop %v6988
        %v6990 = vmul.f32 %v6970, 1.442695
        %v6991 = vpow.pop %v6990
        %v6992 = vmul.f32 %v6971, 1.442695
        %v6993 = vpow.pop %v6992
        %v6994 = vmul.f32 %v6972, 1.442695
        %v6995 = vpow.pop %v6994
        %v6996 = vmul.f32 %v6973, 1.442695
        %v6997 = vpow.pop %v6996
        %v6998 = vmul.f32 %v6974, 1.442695
        %v6999 = vpow.pop %v6998
        %v7000 = vmul.f32 %v6975, 1.442695
        %v7001 = vpow.pop %v7000
        %v7002 = vmul.f32 %v6976, 1.442695
        %v7003 = vpow.pop %v7002
        %v7004 = vmul.f32 %v6977, 1.442695
        %v7005 = vpow.pop %v7004
        %v7006 = vmul.f32 %v6978, 1.442695
        %v7007 = vpow.pop %v7006
        %v7008 = vmul.f32 %v6979, 1.442695
        %v7009 = vpow.pop %v7008
        %v7010 = vmul.f32 %v6980, 1.442695
        %v7011 = vpow.pop %v7010
        %v7012 = vmul.f32 %v6981, 1.442695
        %v7013 = vpow.pop %v7012
        %v7014 = vadd.f32 %v6983, 1.0
        %v7015 = vadd.f32 %v6985, 1.0
        %v7016 = vadd.f32 %v6987, 1.0
        %v7017 = vadd.f32 %v6989, 1.0
        %v7018 = vadd.f32 %v6991, 1.0
        %v7019 = vadd.f32 %v6993, 1.0
        %v7020 = vadd.f32 %v6995, 1.0
        %v7021 = vadd.f32 %v6997, 1.0
        %v7022 = vadd.f32 %v6999, 1.0
        %v7023 = vadd.f32 %v7001, 1.0
        %v7024 = vadd.f32 %v7003, 1.0
        %v7025 = vadd.f32 %v7005, 1.0
        %v7026 = vadd.f32 %v7007, 1.0
        %v7027 = vadd.f32 %v7009, 1.0
        %v7028 = vadd.f32 %v7011, 1.0
        %v7029 = vadd.f32 %v7013, 1.0
        %v7030 = vrcp.pop %v7014
        %v7031 = vmul.f32 %v7014, %v7030
        %v7032 = vsub.f32 1.0, %v7031
        %v7033 = vmul.f32 %v7030, %v7032
        %v7034 = vadd.f32 %v7030, %v7033
        %vm7035 = vweird.f32 %v7014
        %vm7036 = vweird.f32 %v7030
        %vm7037 = vmor %vm7035, %vm7036
        %v7038 = vsel %vm7037, %v7030, %v7034
        %v7039 = vand.u32 2147483647, %v7014
        %vm7040 = vcmp.eq.f32.partialorder %v7039, 8.507059e+37
        %v7041 = vand.u32 %v7014, 2147483648
        %v7042 = vor.u32 1.1754944e-38, %v7041
        %v7043 = vsel %vm7040, %v7042, %v7038
        %v7044 = vmul.f32 1.0, %v7043
        %v7045 = vrcp.pop %v7015
        %v7046 = vmul.f32 %v7015, %v7045
        %v7047 = vsub.f32 1.0, %v7046
        %v7048 = vmul.f32 %v7045, %v7047
        %v7049 = vadd.f32 %v7045, %v7048
        %vm7050 = vweird.f32 %v7015
        %vm7051 = vweird.f32 %v7045
        %vm7052 = vmor %vm7050, %vm7051
        %v7053 = vsel %vm7052, %v7045, %v7049
        %v7054 = vand.u32 2147483647, %v7015
        %vm7055 = vcmp.eq.f32.partialorder %v7054, 8.507059e+37
        %v7056 = vand.u32 %v7015, 2147483648
        %v7057 = vor.u32 1.1754944e-38, %v7056
        %v7058 = vsel %vm7055, %v7057, %v7053
        %v7059 = vmul.f32 1.0, %v7058
        %v7060 = vrcp.pop %v7016
        %v7061 = vmul.f32 %v7016, %v7060
        %v7062 = vsub.f32 1.0, %v7061
        %v7063 = vmul.f32 %v7060, %v7062
        %v7064 = vadd.f32 %v7060, %v7063
        %vm7065 = vweird.f32 %v7016
        %vm7066 = vweird.f32 %v7060
        %vm7067 = vmor %vm7065, %vm7066
        %v7068 = vsel %vm7067, %v7060, %v7064
        %v7069 = vand.u32 2147483647, %v7016
        %vm7070 = vcmp.eq.f32.partialorder %v7069, 8.507059e+37
        %v7071 = vand.u32 %v7016, 2147483648
        %v7072 = vor.u32 1.1754944e-38, %v7071
        %v7073 = vsel %vm7070, %v7072, %v7068
        %v7074 = vmul.f32 1.0, %v7073
        %v7075 = vrcp.pop %v7017
        %v7076 = vmul.f32 %v7017, %v7075
        %v7077 = vsub.f32 1.0, %v7076
        %v7078 = vmul.f32 %v7075, %v7077
        %v7079 = vadd.f32 %v7075, %v7078
        %vm7080 = vweird.f32 %v7017
        %vm7081 = vweird.f32 %v7075
        %vm7082 = vmor %vm7080, %vm7081
        %v7083 = vsel %vm7082, %v7075, %v7079
        %v7084 = vand.u32 2147483647, %v7017
        %vm7085 = vcmp.eq.f32.partialorder %v7084, 8.507059e+37
        %v7086 = vand.u32 %v7017, 2147483648
        %v7087 = vor.u32 1.1754944e-38, %v7086
        %v7088 = vsel %vm7085, %v7087, %v7083
        %v7089 = vmul.f32 1.0, %v7088
        %v7090 = vrcp.pop %v7018
        %v7091 = vmul.f32 %v7018, %v7090
        %v7092 = vsub.f32 1.0, %v7091
        %v7093 = vmul.f32 %v7090, %v7092
        %v7094 = vadd.f32 %v7090, %v7093
        %vm7095 = vweird.f32 %v7018
        %vm7096 = vweird.f32 %v7090
        %vm7097 = vmor %vm7095, %vm7096
        %v7098 = vsel %vm7097, %v7090, %v7094
        %v7099 = vand.u32 2147483647, %v7018
        %vm7100 = vcmp.eq.f32.partialorder %v7099, 8.507059e+37
        %v7101 = vand.u32 %v7018, 2147483648
        %v7102 = vor.u32 1.1754944e-38, %v7101
        %v7103 = vsel %vm7100, %v7102, %v7098
        %v7104 = vmul.f32 1.0, %v7103
        %v7105 = vrcp.pop %v7019
        %v7106 = vmul.f32 %v7019, %v7105
        %v7107 = vsub.f32 1.0, %v7106
        %v7108 = vmul.f32 %v7105, %v7107
        %v7109 = vadd.f32 %v7105, %v7108
        %vm7110 = vweird.f32 %v7019
        %vm7111 = vweird.f32 %v7105
        %vm7112 = vmor %vm7110, %vm7111
        %v7113 = vsel %vm7112, %v7105, %v7109
        %v7114 = vand.u32 2147483647, %v7019
        %vm7115 = vcmp.eq.f32.partialorder %v7114, 8.507059e+37
        %v7116 = vand.u32 %v7019, 2147483648
        %v7117 = vor.u32 1.1754944e-38, %v7116
        %v7118 = vsel %vm7115, %v7117, %v7113
        %v7119 = vmul.f32 1.0, %v7118
        %v7120 = vrcp.pop %v7020
        %v7121 = vmul.f32 %v7020, %v7120
        %v7122 = vsub.f32 1.0, %v7121
        %v7123 = vmul.f32 %v7120, %v7122
        %v7124 = vadd.f32 %v7120, %v7123
        %vm7125 = vweird.f32 %v7020
        %vm7126 = vweird.f32 %v7120
        %vm7127 = vmor %vm7125, %vm7126
        %v7128 = vsel %vm7127, %v7120, %v7124
        %v7129 = vand.u32 2147483647, %v7020
        %vm7130 = vcmp.eq.f32.partialorder %v7129, 8.507059e+37
        %v7131 = vand.u32 %v7020, 2147483648
        %v7132 = vor.u32 1.1754944e-38, %v7131
        %v7133 = vsel %vm7130, %v7132, %v7128
        %v7134 = vmul.f32 1.0, %v7133
        %v7135 = vrcp.pop %v7021
        %v7136 = vmul.f32 %v7021, %v7135
        %v7137 = vsub.f32 1.0, %v7136
        %v7138 = vmul.f32 %v7135, %v7137
        %v7139 = vadd.f32 %v7135, %v7138
        %vm7140 = vweird.f32 %v7021
        %vm7141 = vweird.f32 %v7135
        %vm7142 = vmor %vm7140, %vm7141
        %v7143 = vsel %vm7142, %v7135, %v7139
        %v7144 = vand.u32 2147483647, %v7021
        %vm7145 = vcmp.eq.f32.partialorder %v7144, 8.507059e+37
        %v7146 = vand.u32 %v7021, 2147483648
        %v7147 = vor.u32 1.1754944e-38, %v7146
        %v7148 = vsel %vm7145, %v7147, %v7143
        %v7149 = vmul.f32 1.0, %v7148
        %v7150 = vrcp.pop %v7022
        %v7151 = vmul.f32 %v7022, %v7150
        %v7152 = vsub.f32 1.0, %v7151
        %v7153 = vmul.f32 %v7150, %v7152
        %v7154 = vadd.f32 %v7150, %v7153
        %vm7155 = vweird.f32 %v7022
        %vm7156 = vweird.f32 %v7150
        %vm7157 = vmor %vm7155, %vm7156
        %v7158 = vsel %vm7157, %v7150, %v7154
        %v7159 = vand.u32 2147483647, %v7022
        %vm7160 = vcmp.eq.f32.partialorder %v7159, 8.507059e+37
        %v7161 = vand.u32 %v7022, 2147483648
        %v7162 = vor.u32 1.1754944e-38, %v7161
        %v7163 = vsel %vm7160, %v7162, %v7158
        %v7164 = vmul.f32 1.0, %v7163
        %v7165 = vrcp.pop %v7023
        %v7166 = vmul.f32 %v7023, %v7165
        %v7167 = vsub.f32 1.0, %v7166
        %v7168 = vmul.f32 %v7165, %v7167
        %v7169 = vadd.f32 %v7165, %v7168
        %vm7170 = vweird.f32 %v7023
        %vm7171 = vweird.f32 %v7165
        %vm7172 = vmor %vm7170, %vm7171
        %v7173 = vsel %vm7172, %v7165, %v7169
        %v7174 = vand.u32 2147483647, %v7023
        %vm7175 = vcmp.eq.f32.partialorder %v7174, 8.507059e+37
        %v7176 = vand.u32 %v7023, 2147483648
        %v7177 = vor.u32 1.1754944e-38, %v7176
        %v7178 = vsel %vm7175, %v7177, %v7173
        %v7179 = vmul.f32 1.0, %v7178
        %v7180 = vrcp.pop %v7024
        %v7181 = vmul.f32 %v7024, %v7180
        %v7182 = vsub.f32 1.0, %v7181
        %v7183 = vmul.f32 %v7180, %v7182
        %v7184 = vadd.f32 %v7180, %v7183
        %vm7185 = vweird.f32 %v7024
        %vm7186 = vweird.f32 %v7180
        %vm7187 = vmor %vm7185, %vm7186
        %v7188 = vsel %vm7187, %v7180, %v7184
        %v7189 = vand.u32 2147483647, %v7024
        %vm7190 = vcmp.eq.f32.partialorder %v7189, 8.507059e+37
        %v7191 = vand.u32 %v7024, 2147483648
        %v7192 = vor.u32 1.1754944e-38, %v7191
        %v7193 = vsel %vm7190, %v7192, %v7188
        %v7194 = vmul.f32 1.0, %v7193
        %v7195 = vrcp.pop %v7025
        %v7196 = vmul.f32 %v7025, %v7195
        %v7197 = vsub.f32 1.0, %v7196
        %v7198 = vmul.f32 %v7195, %v7197
        %v7199 = vadd.f32 %v7195, %v7198
        %vm7200 = vweird.f32 %v7025
        %vm7201 = vweird.f32 %v7195
        %vm7202 = vmor %vm7200, %vm7201
        %v7203 = vsel %vm7202, %v7195, %v7199
        %v7204 = vand.u32 2147483647, %v7025
        %vm7205 = vcmp.eq.f32.partialorder %v7204, 8.507059e+37
        %v7206 = vand.u32 %v7025, 2147483648
        %v7207 = vor.u32 1.1754944e-38, %v7206
        %v7208 = vsel %vm7205, %v7207, %v7203
        %v7209 = vmul.f32 1.0, %v7208
        %v7210 = vrcp.pop %v7026
        %v7211 = vmul.f32 %v7026, %v7210
        %v7212 = vsub.f32 1.0, %v7211
        %v7213 = vmul.f32 %v7210, %v7212
        %v7214 = vadd.f32 %v7210, %v7213
        %vm7215 = vweird.f32 %v7026
        %vm7216 = vweird.f32 %v7210
        %vm7217 = vmor %vm7215, %vm7216
        %v7218 = vsel %vm7217, %v7210, %v7214
        %v7219 = vand.u32 2147483647, %v7026
        %vm7220 = vcmp.eq.f32.partialorder %v7219, 8.507059e+37
        %v7221 = vand.u32 %v7026, 2147483648
        %v7222 = vor.u32 1.1754944e-38, %v7221
        %v7223 = vsel %vm7220, %v7222, %v7218
        %v7224 = vmul.f32 1.0, %v7223
        %v7225 = vrcp.pop %v7027
        %v7226 = vmul.f32 %v7027, %v7225
        %v7227 = vsub.f32 1.0, %v7226
        %v7228 = vmul.f32 %v7225, %v7227
        %v7229 = vadd.f32 %v7225, %v7228
        %vm7230 = vweird.f32 %v7027
        %vm7231 = vweird.f32 %v7225
        %vm7232 = vmor %vm7230, %vm7231
        %v7233 = vsel %vm7232, %v7225, %v7229
        %v7234 = vand.u32 2147483647, %v7027
        %vm7235 = vcmp.eq.f32.partialorder %v7234, 8.507059e+37
        %v7236 = vand.u32 %v7027, 2147483648
        %v7237 = vor.u32 1.1754944e-38, %v7236
        %v7238 = vsel %vm7235, %v7237, %v7233
        %v7239 = vmul.f32 1.0, %v7238
        %v7240 = vrcp.pop %v7028
        %v7241 = vmul.f32 %v7028, %v7240
        %v7242 = vsub.f32 1.0, %v7241
        %v7243 = vmul.f32 %v7240, %v7242
        %v7244 = vadd.f32 %v7240, %v7243
        %vm7245 = vweird.f32 %v7028
        %vm7246 = vweird.f32 %v7240
        %vm7247 = vmor %vm7245, %vm7246
        %v7248 = vsel %vm7247, %v7240, %v7244
        %v7249 = vand.u32 2147483647, %v7028
        %vm7250 = vcmp.eq.f32.partialorder %v7249, 8.507059e+37
        %v7251 = vand.u32 %v7028, 2147483648
        %v7252 = vor.u32 1.1754944e-38, %v7251
        %v7253 = vsel %vm7250, %v7252, %v7248
        %v7254 = vmul.f32 1.0, %v7253
        %v7255 = vrcp.pop %v7029
        %v7256 = vmul.f32 %v7029, %v7255
        %v7257 = vsub.f32 1.0, %v7256
        %v7258 = vmul.f32 %v7255, %v7257
        %v7259 = vadd.f32 %v7255, %v7258
        %vm7260 = vweird.f32 %v7029
        %vm7261 = vweird.f32 %v7255
        %vm7262 = vmor %vm7260, %vm7261
        %v7263 = vsel %vm7262, %v7255, %v7259
        %v7264 = vand.u32 2147483647, %v7029
        %vm7265 = vcmp.eq.f32.partialorder %v7264, 8.507059e+37
        %v7266 = vand.u32 %v7029, 2147483648
        %v7267 = vor.u32 1.1754944e-38, %v7266
        %v7268 = vsel %vm7265, %v7267, %v7263
        %v7269 = vmul.f32 1.0, %v7268
        %v7270 = vmul.f32 %v5532, %v7044
        %v7271 = vmul.f32 %v5570, %v7059
        %v7272 = vmul.f32 %v5608, %v7074
        %v7273 = vmul.f32 %v5646, %v7089
        %v7274 = vmul.f32 %v5534, %v7104
        %v7275 = vmul.f32 %v5572, %v7119
        %v7276 = vmul.f32 %v5610, %v7134
        %v7277 = vmul.f32 %v5648, %v7149
        %v7278 = vmul.f32 %v5537, %v7164
        %v7279 = vmul.f32 %v5575, %v7179
        %v7280 = vmul.f32 %v5613, %v7194
        %v7281 = vmul.f32 %v5651, %v7209
        %v7282 = vmul.f32 %v5539, %v7224
        %v7283 = vmul.f32 %v5577, %v7239
        %v7284 = vmul.f32 %v5615, %v7254
        %v7285 = vmul.f32 %v5653, %v7269
        %v7286 = vadd.f32 %v5532, %v5534
        %v7287 = vadd.f32 %v7286, %v5537
        %v7288 = vadd.f32 %v7287, %v5539
        %v7289 = vrot.slane %v7288, 4
        %v7290 = vadd.f32 %v7288, %v7289
        %v7291 = vrot.slane %v7290, 2
        %v7292 = vadd.f32 %v7290, %v7291
        %v7293 = vrot.slane %v7292, 1
        %v7294 = vadd.f32 %v7292, %v7293
        %v7295 = vadd.f32 %v5570, %v5572
        %v7296 = vadd.f32 %v7295, %v5575
        %v7297 = vadd.f32 %v7296, %v5577
        %v7298 = vrot.slane %v7297, 4
        %v7299 = vadd.f32 %v7297, %v7298
        %v7300 = vrot.slane %v7299, 2
        %v7301 = vadd.f32 %v7299, %v7300
        %v7302 = vrot.slane %v7301, 1
        %v7303 = vadd.f32 %v7301, %v7302
        %v7304 = vadd.f32 %v5608, %v5610
        %v7305 = vadd.f32 %v7304, %v5613
        %v7306 = vadd.f32 %v7305, %v5615
        %v7307 = vrot.slane %v7306, 4
        %v7308 = vadd.f32 %v7306, %v7307
        %v7309 = vrot.slane %v7308, 2
        %v7310 = vadd.f32 %v7308, %v7309
        %v7311 = vrot.slane %v7310, 1
        %v7312 = vadd.f32 %v7310, %v7311
        %v7313 = vadd.f32 %v5646, %v5648
        %v7314 = vadd.f32 %v7313, %v5651
        %v7315 = vadd.f32 %v7314, %v5653
        %v7316 = vrot.slane %v7315, 4
        %v7317 = vadd.f32 %v7315, %v7316
        %v7318 = vrot.slane %v7317, 2
        %v7319 = vadd.f32 %v7317, %v7318
        %v7320 = vrot.slane %v7319, 1
        %v7321 = vadd.f32 %v7319, %v7320
        %v7322 = vadd.f32 %v7294, %v7312
        %v7323 = vadd.f32 %v7303, %v7321
        %v7324 = vadd.f32 %v7322, %v7323
        %7326 = vrot.lane.b32.xlu0 %v7324, 64
        %v7327 = vpop.permute.xlu0 %7326
        %v7329 = vadd.f32 %v7324, %v7327
        %7331 = vrot.lane.b32.xlu0 %v7329, 96
        %v7332 = vpop.permute.xlu0 %7331
        %v7334 = vadd.f32 %v7329, %v7332
        %7336 = vrot.lane.b32.xlu0 %v7334, 112
        %v7337 = vpop.permute.xlu0 %7336
        %v7339 = vadd.f32 %v7334, %v7337
        %v7340 = vmul.f32 %v7339, 0.0009765625
        %7342 = vrot.lane.b32.xlu0 %v7340, 16
        %v7343 = vpop.permute.xlu0 %7342
        %vm7345 = vcmask 130048
        %v7346 = vsel %vm7345, %v7340, %v7343
        %7348 = vrot.lane.b32.xlu0 %v7346, 32
        %v7349 = vpop.permute.xlu0 %7348
        %vm7351 = vcmask 261120
        %v7352 = vsel %vm7351, %v7346, %v7349
        %7354 = vrot.lane.b32.xlu0 %v7352, 64
        %v7355 = vpop.permute.xlu0 %7354
        %vm7357 = vcmask 523264
        %v7358 = vsel %vm7357, %v7352, %v7355
        %v7359 = vperm.slane %v7358, 0
        %v7360 = vsub.f32 %v5532, %v7359
        %v7361 = vsub.f32 %v5570, %v7359
        %v7362 = vsub.f32 %v5608, %v7359
        %v7363 = vsub.f32 %v5646, %v7359
        %v7364 = vsub.f32 %v5534, %v7359
        %v7365 = vsub.f32 %v5572, %v7359
        %v7366 = vsub.f32 %v5610, %v7359
        %v7367 = vsub.f32 %v5648, %v7359
        %v7368 = vsub.f32 %v5537, %v7359
        %v7369 = vsub.f32 %v5575, %v7359
        %v7370 = vsub.f32 %v5613, %v7359
        %v7371 = vsub.f32 %v5651, %v7359
        %v7372 = vsub.f32 %v5539, %v7359
        %v7373 = vsub.f32 %v5577, %v7359
        %v7374 = vsub.f32 %v5615, %v7359
        %v7375 = vsub.f32 %v5653, %v7359
        %v7376 = vmul.f32 %v7360, %v7360
        %v7377 = vmul.f32 %v7361, %v7361
        %v7378 = vmul.f32 %v7362, %v7362
        %v7379 = vmul.f32 %v7363, %v7363
        %v7380 = vmul.f32 %v7364, %v7364
        %v7381 = vmul.f32 %v7365, %v7365
        %v7382 = vmul.f32 %v7366, %v7366
        %v7383 = vmul.f32 %v7367, %v7367
        %v7384 = vmul.f32 %v7368, %v7368
        %v7385 = vmul.f32 %v7369, %v7369
        %v7386 = vmul.f32 %v7370, %v7370
        %v7387 = vmul.f32 %v7371, %v7371
        %v7388 = vmul.f32 %v7372, %v7372
        %v7389 = vmul.f32 %v7373, %v7373
        %v7390 = vmul.f32 %v7374, %v7374
        %v7391 = vmul.f32 %v7375, %v7375
        %v7392 = vadd.f32 %v7376, %v7380
        %v7393 = vadd.f32 %v7392, %v7384
        %v7394 = vadd.f32 %v7393, %v7388
        %v7395 = vrot.slane %v7394, 4
        %v7396 = vadd.f32 %v7394, %v7395
        %v7397 = vrot.slane %v7396, 2
        %v7398 = vadd.f32 %v7396, %v7397
        %v7399 = vrot.slane %v7398, 1
        %v7400 = vadd.f32 %v7398, %v7399
        %v7401 = vadd.f32 %v7377, %v7381
        %v7402 = vadd.f32 %v7401, %v7385
        %v7403 = vadd.f32 %v7402, %v7389
        %v7404 = vrot.slane %v7403, 4
        %v7405 = vadd.f32 %v7403, %v7404
        %v7406 = vrot.slane %v7405, 2
        %v7407 = vadd.f32 %v7405, %v7406
        %v7408 = vrot.slane %v7407, 1
        %v7409 = vadd.f32 %v7407, %v7408
        %v7410 = vadd.f32 %v7378, %v7382
        %v7411 = vadd.f32 %v7410, %v7386
        %v7412 = vadd.f32 %v7411, %v7390
        %v7413 = vrot.slane %v7412, 4
        %v7414 = vadd.f32 %v7412, %v7413
        %v7415 = vrot.slane %v7414, 2
        %v7416 = vadd.f32 %v7414, %v7415
        %v7417 = vrot.slane %v7416, 1
        %v7418 = vadd.f32 %v7416, %v7417
        %v7419 = vadd.f32 %v7379, %v7383
        %v7420 = vadd.f32 %v7419, %v7387
        %v7421 = vadd.f32 %v7420, %v7391
        %v7422 = vrot.slane %v7421, 4
        %v7423 = vadd.f32 %v7421, %v7422
        %v7424 = vrot.slane %v7423, 2
        %v7425 = vadd.f32 %v7423, %v7424
        %v7426 = vrot.slane %v7425, 1
        %v7427 = vadd.f32 %v7425, %v7426
        %v7428 = vadd.f32 %v7400, %v7418
        %v7429 = vadd.f32 %v7409, %v7427
        %v7430 = vadd.f32 %v7428, %v7429
        %7432 = vrot.lane.b32.xlu0 %v7430, 64
        %v7433 = vpop.permute.xlu0 %7432
        %v7435 = vadd.f32 %v7430, %v7433
        %7437 = vrot.lane.b32.xlu0 %v7435, 96
        %v7438 = vpop.permute.xlu0 %7437
        %v7440 = vadd.f32 %v7435, %v7438
        %7442 = vrot.lane.b32.xlu0 %v7440, 112
        %v7443 = vpop.permute.xlu0 %7442
        %v7445 = vadd.f32 %v7440, %v7443
        %v7446 = vmul.f32 %v7445, 0.0009765625
        %v7447 = vrsqrt.pop %v7446
        %v7448 = vmul.f32 %v7447, %v7446
        %v7449 = vmul.f32 %v7448, %v7447
        %v7450 = vmul.f32 0.5, %v7449
        %v7451 = vsub.f32 1.5, %v7450
        %v7452 = vmul.f32 %v7447, %v7451
        %v7453 = vmul.f32 %v7446, %v7452
        %vm7454 = vcmp.eq.f32.partialorder %v7446, inf
        %v7455 = vsel %vm7454, %v7446, %v7453
        %vm7456 = vcmp.eq.f32.partialorder %v7446, 0.0
        %v7457 = vand.u32 %v7446, 2147483648
        %v7458 = vsel %vm7456, %v7457, %v7455
        %v7459 = vadd.f32 %v7458, %v7340
        %v7460 = vld [vmem:[%s17] sm:$0xff]
        %v7461 = vld [vmem:[%s17 + $0x8] sm:$0xff]
        %v7462 = vld [vmem:[#allocation3] sm:$0x1]
        %v7464 = vsel %vm7345, %v7459, 0
        %7466 = vmatpush.msra.mxu0 0.0
        %7467 = vmatpush.msra.mxu0 0.0
        %7468 = vmatpush.msra.mxu0 0.0
        %7469 = vmatpush.msra.mxu0 0.0
        %7470 = vmatpush.msra.mxu0 0.0
        %7471 = vmatpush.msra.mxu0 0.0
        %7472 = vmatpush.msra.mxu0 0.0
        %7473 = vmatpush.msra.mxu0 0.0
        %7474 = vmatpush.msra.mxu0 0.0
        %7475 = vmatpush.msra.mxu0 0.0
        %7476 = vmatpush.msra.mxu0 0.0
        %7477 = vmatpush.msra.mxu0 0.0
        %7478 = vmatpush.msra.mxu0 0.0
        %7479 = vmatpush.msra.mxu0 0.0
        %7480 = vmatpush.msra.mxu0 %v7461
        %7481 = vmatpush.msra.mxu0 %v7460
        %7482 = vmatmul.f32.gmra.mxu0 %v7464
        %v7483 = vpop.f32.mrf.mxu0
        %v7484 = vadd.f32 %v7462, %v7483
        %7485 = vdwg.mxu0
        %v7486 = vmax.f32 %v7484, 0.0
        %v7487 = vld [vmem:[%s19] sm:$0x1]
        %v7488 = vld [vmem:[%s20] sm:$0x1]
        %vm7489 = vcmask 7168
        %v7491 = vsel %vm7489, %v7486, 0
        %v7494 = vsel %vm6393, %v7487, 0
        %7496 = vmatpush.msra.mxu0 0.0
        %7497 = vmatpush.msra.mxu0 0.0
        %7498 = vmatpush.msra.mxu0 0.0
        %7499 = vmatpush.msra.mxu0 0.0
        %7500 = vmatpush.msra.mxu0 0.0
        %7501 = vmatpush.msra.mxu0 0.0
        %7502 = vmatpush.msra.mxu0 0.0
        %7503 = vmatpush.msra.mxu0 0.0
        %7504 = vmatpush.msra.mxu0 0.0
        %7505 = vmatpush.msra.mxu0 0.0
        %7506 = vmatpush.msra.mxu0 0.0
        %7507 = vmatpush.msra.mxu0 0.0
        %7508 = vmatpush.msra.mxu0 0.0
        %7509 = vmatpush.msra.mxu0 0.0
        %7510 = vmatpush.msra.mxu0 0.0
        %7511 = vmatpush.msra.mxu0 %v7494
        %7512 = vmatmul.f32.gmra.mxu0 %v7491
        %v7513 = vpop.f32.mrf.mxu0
        %v7514 = vadd.f32 %v7488, %v7513
        %7515 = vdwg.mxu0
        %v7516 = vxor.u32 %v7514, 2147483648
        %v7517 = vmul.f32 %v7516, 1.442695
        %v7518 = vpow.pop %v7517
        %v7519 = vadd.f32 %v7518, 1.0
        %v7520 = vrcp.pop %v7519
        %v7521 = vmul.f32 %v7519, %v7520
        %v7522 = vsub.f32 1.0, %v7521
        %v7523 = vmul.f32 %v7520, %v7522
        %v7524 = vadd.f32 %v7520, %v7523
        %vm7525 = vweird.f32 %v7519
        %vm7526 = vweird.f32 %v7520
        %vm7527 = vmor %vm7525, %vm7526
        %v7528 = vsel %vm7527, %v7520, %v7524
        %v7529 = vand.u32 2147483647, %v7519
        %vm7530 = vcmp.eq.f32.partialorder %v7529, 8.507059e+37
        %v7531 = vand.u32 %v7519, 2147483648
        %v7532 = vor.u32 1.1754944e-38, %v7531
        %v7533 = vsel %vm7530, %v7532, %v7528
        %v7534 = vmul.f32 1.0, %v7533
        %7536 = vrot.lane.b32.xlu0 %v7534, 16
        %v7537 = vpop.permute.xlu0 %7536
        %v7539 = vsel %vm7345, %v7534, %v7537
        %7541 = vrot.lane.b32.xlu0 %v7539, 32
        %v7542 = vpop.permute.xlu0 %7541
        %v7544 = vsel %vm7351, %v7539, %v7542
        %7546 = vrot.lane.b32.xlu0 %v7544, 64
        %v7547 = vpop.permute.xlu0 %7546
        %v7549 = vsel %vm7357, %v7544, %v7547
        %v7550 = vperm.slane %v7549, 0
        %v7551 = vmul.f32 %v5532, %v7550
        %v7552 = vmul.f32 %v5570, %v7550
        %v7553 = vmul.f32 %v5608, %v7550
        %v7554 = vmul.f32 %v5646, %v7550
        %v7555 = vmul.f32 %v5534, %v7550
        %v7556 = vmul.f32 %v5572, %v7550
        %v7557 = vmul.f32 %v5610, %v7550
        %v7558 = vmul.f32 %v5648, %v7550
        %v7559 = vmul.f32 %v5537, %v7550
        %v7560 = vmul.f32 %v5575, %v7550
        %v7561 = vmul.f32 %v5613, %v7550
        %v7562 = vmul.f32 %v5651, %v7550
        %v7563 = vmul.f32 %v5539, %v7550
        %v7564 = vmul.f32 %v5577, %v7550
        %v7565 = vmul.f32 %v5615, %v7550
        %v7566 = vmul.f32 %v5653, %v7550
        %v7567 = vpack.c.bf16 %v7274, %v7270
        %v7568 = vpack.c.bf16 %v7275, %v7271
        %v7569 = vpack.c.bf16 %v7276, %v7272
        %v7570 = vpack.c.bf16 %v7277, %v7273
        %v7571 = vpack.c.bf16 %v7282, %v7278
        %v7572 = vpack.c.bf16 %v7283, %v7279
        %v7573 = vpack.c.bf16 %v7284, %v7280
        %v7574 = vpack.c.bf16 %v7285, %v7281
        %v7575 = vld [vmem:[%s21] sm:$0xff]
        %v7576 = vld [vmem:[%s21 + $0x8] sm:$0xff]
        %v7577 = vld [vmem:[%s21 + $0x10] sm:$0xff]
        %v7578 = vld [vmem:[%s21 + $0x18] sm:$0xff]
        %v7579 = vld [vmem:[%s21 + $0x20] sm:$0xff]
        %v7580 = vld [vmem:[%s21 + $0x28] sm:$0xff]
        %v7581 = vld [vmem:[%s21 + $0x30] sm:$0xff]
        %v7582 = vld [vmem:[%s21 + $0x38] sm:$0xff]
        %v7583 = vld [vmem:[%s21 + $0x40] sm:$0xff]
        %v7584 = vld [vmem:[%s21 + $0x48] sm:$0xff]
        %v7585 = vld [vmem:[%s21 + $0x50] sm:$0xff]
        %v7586 = vld [vmem:[%s21 + $0x58] sm:$0xff]
        %v7587 = vld [vmem:[%s21 + $0x60] sm:$0xff]
        %v7588 = vld [vmem:[%s21 + $0x68] sm:$0xff]
        %v7589 = vld [vmem:[%s21 + $0x70] sm:$0xff]
        %v7590 = vld [vmem:[%s21 + $0x78] sm:$0xff]
        %v7591 = vld [vmem:[%s21 + $0x80] sm:$0xff]
        %v7592 = vld [vmem:[%s21 + $0x88] sm:$0xff]
        %v7593 = vld [vmem:[%s21 + $0x90] sm:$0xff]
        %v7594 = vld [vmem:[%s21 + $0x98] sm:$0xff]
        %v7595 = vld [vmem:[%s21 + $0xa0] sm:$0xff]
        %v7596 = vld [vmem:[%s21 + $0xa8] sm:$0xff]
        %v7597 = vld [vmem:[%s21 + $0xb0] sm:$0xff]
        %v7598 = vld [vmem:[%s21 + $0xb8] sm:$0xff]
        %v7599 = vld [vmem:[%s21 + $0xc0] sm:$0xff]
        %v7600 = vld [vmem:[%s21 + $0xc8] sm:$0xff]
        %v7601 = vld [vmem:[%s21 + $0xd0] sm:$0xff]
        %v7602 = vld [vmem:[%s21 + $0xd8] sm:$0xff]
        %v7603 = vld [vmem:[%s21 + $0xe0] sm:$0xff]
        %v7604 = vld [vmem:[%s21 + $0xe8] sm:$0xff]
        %v7605 = vld [vmem:[%s21 + $0xf0] sm:$0xff]
        %v7606 = vld [vmem:[%s21 + $0xf8] sm:$0xff]
        %v7607 = vld [vmem:[%s21 + $0x100] sm:$0xff]
        %v7608 = vld [vmem:[%s21 + $0x108] sm:$0xff]
        %v7609 = vld [vmem:[%s21 + $0x110] sm:$0xff]
        %v7610 = vld [vmem:[%s21 + $0x118] sm:$0xff]
        %v7611 = vld [vmem:[%s21 + $0x120] sm:$0xff]
        %v7612 = vld [vmem:[%s21 + $0x128] sm:$0xff]
        %v7613 = vld [vmem:[%s21 + $0x130] sm:$0xff]
        %v7614 = vld [vmem:[%s21 + $0x138] sm:$0xff]
        %v7615 = vld [vmem:[%s21 + $0x140] sm:$0xff]
        %v7616 = vld [vmem:[%s21 + $0x148] sm:$0xff]
        %v7617 = vld [vmem:[%s21 + $0x150] sm:$0xff]
        %v7618 = vld [vmem:[%s21 + $0x158] sm:$0xff]
        %v7619 = vld [vmem:[%s21 + $0x160] sm:$0xff]
        %v7620 = vld [vmem:[%s21 + $0x168] sm:$0xff]
        %v7621 = vld [vmem:[%s21 + $0x170] sm:$0xff]
        %v7622 = vld [vmem:[%s21 + $0x178] sm:$0xff]
        %v7623 = vld [vmem:[%s21 + $0x180] sm:$0xff]
        %v7624 = vld [vmem:[%s21 + $0x188] sm:$0xff]
        %v7625 = vld [vmem:[%s21 + $0x190] sm:$0xff]
        %v7626 = vld [vmem:[%s21 + $0x198] sm:$0xff]
        %v7627 = vld [vmem:[%s21 + $0x1a0] sm:$0xff]
        %v7628 = vld [vmem:[%s21 + $0x1a8] sm:$0xff]
        %v7629 = vld [vmem:[%s21 + $0x1b0] sm:$0xff]
        %v7630 = vld [vmem:[%s21 + $0x1b8] sm:$0xff]
        %v7631 = vld [vmem:[%s21 + $0x1c0] sm:$0xff]
        %v7632 = vld [vmem:[%s21 + $0x1c8] sm:$0xff]
        %v7633 = vld [vmem:[%s21 + $0x1d0] sm:$0xff]
        %v7634 = vld [vmem:[%s21 + $0x1d8] sm:$0xff]
        %v7635 = vld [vmem:[%s21 + $0x1e0] sm:$0xff]
        %v7636 = vld [vmem:[%s21 + $0x1e8] sm:$0xff]
        %v7637 = vld [vmem:[%s21 + $0x1f0] sm:$0xff]
        %v7638 = vld [vmem:[%s21 + $0x1f8] sm:$0xff]
        %v7639 = vld [vmem:[%s21 + $0x200] sm:$0xff]
        %v7640 = vld [vmem:[%s21 + $0x208] sm:$0xff]
        %v7641 = vld [vmem:[%s21 + $0x210] sm:$0xff]
        %v7642 = vld [vmem:[%s21 + $0x218] sm:$0xff]
        %v7643 = vld [vmem:[%s21 + $0x220] sm:$0xff]
        %v7644 = vld [vmem:[%s21 + $0x228] sm:$0xff]
        %v7645 = vld [vmem:[%s21 + $0x230] sm:$0xff]
        %v7646 = vld [vmem:[%s21 + $0x238] sm:$0xff]
        %v7647 = vld [vmem:[%s21 + $0x240] sm:$0xff]
        %v7648 = vld [vmem:[%s21 + $0x248] sm:$0xff]
        %v7649 = vld [vmem:[%s21 + $0x250] sm:$0xff]
        %v7650 = vld [vmem:[%s21 + $0x258] sm:$0xff]
        %v7651 = vld [vmem:[%s21 + $0x260] sm:$0xff]
        %v7652 = vld [vmem:[%s21 + $0x268] sm:$0xff]
        %v7653 = vld [vmem:[%s21 + $0x270] sm:$0xff]
        %v7654 = vld [vmem:[%s21 + $0x278] sm:$0xff]
        %v7655 = vld [vmem:[%s21 + $0x280] sm:$0xff]
        %v7656 = vld [vmem:[%s21 + $0x288] sm:$0xff]
        %v7657 = vld [vmem:[%s21 + $0x290] sm:$0xff]
        %v7658 = vld [vmem:[%s21 + $0x298] sm:$0xff]
        %v7659 = vld [vmem:[%s21 + $0x2a0] sm:$0xff]
        %v7660 = vld [vmem:[%s21 + $0x2a8] sm:$0xff]
        %v7661 = vld [vmem:[%s21 + $0x2b0] sm:$0xff]
        %v7662 = vld [vmem:[%s21 + $0x2b8] sm:$0xff]
        %v7663 = vld [vmem:[%s21 + $0x2c0] sm:$0xff]
        %v7664 = vld [vmem:[%s21 + $0x2c8] sm:$0xff]
        %v7665 = vld [vmem:[%s21 + $0x2d0] sm:$0xff]
        %v7666 = vld [vmem:[%s21 + $0x2d8] sm:$0xff]
        %v7667 = vld [vmem:[%s21 + $0x2e0] sm:$0xff]
        %v7668 = vld [vmem:[%s21 + $0x2e8] sm:$0xff]
        %v7669 = vld [vmem:[%s21 + $0x2f0] sm:$0xff]
        %v7670 = vld [vmem:[%s21 + $0x2f8] sm:$0xff]
        %v7671 = vld [vmem:[%s21 + $0x300] sm:$0xff]
        %v7672 = vld [vmem:[%s21 + $0x308] sm:$0xff]
        %v7673 = vld [vmem:[%s21 + $0x310] sm:$0xff]
        %v7674 = vld [vmem:[%s21 + $0x318] sm:$0xff]
        %v7675 = vld [vmem:[%s21 + $0x320] sm:$0xff]
        %v7676 = vld [vmem:[%s21 + $0x328] sm:$0xff]
        %v7677 = vld [vmem:[%s21 + $0x330] sm:$0xff]
        %v7678 = vld [vmem:[%s21 + $0x338] sm:$0xff]
        %v7679 = vld [vmem:[%s21 + $0x340] sm:$0xff]
        %v7680 = vld [vmem:[%s21 + $0x348] sm:$0xff]
        %v7681 = vld [vmem:[%s21 + $0x350] sm:$0xff]
        %v7682 = vld [vmem:[%s21 + $0x358] sm:$0xff]
        %v7683 = vld [vmem:[%s21 + $0x360] sm:$0xff]
        %v7684 = vld [vmem:[%s21 + $0x368] sm:$0xff]
        %v7685 = vld [vmem:[%s21 + $0x370] sm:$0xff]
        %v7686 = vld [vmem:[%s21 + $0x378] sm:$0xff]
        %v7687 = vld [vmem:[%s21 + $0x380] sm:$0xff]
        %v7688 = vld [vmem:[%s21 + $0x388] sm:$0xff]
        %v7689 = vld [vmem:[%s21 + $0x390] sm:$0xff]
        %v7690 = vld [vmem:[%s21 + $0x398] sm:$0xff]
        %v7691 = vld [vmem:[%s21 + $0x3a0] sm:$0xff]
        %v7692 = vld [vmem:[%s21 + $0x3a8] sm:$0xff]
        %v7693 = vld [vmem:[%s21 + $0x3b0] sm:$0xff]
        %v7694 = vld [vmem:[%s21 + $0x3b8] sm:$0xff]
        %v7695 = vld [vmem:[%s21 + $0x3c0] sm:$0xff]
        %v7696 = vld [vmem:[%s21 + $0x3c8] sm:$0xff]
        %v7697 = vld [vmem:[%s21 + $0x3d0] sm:$0xff]
        %v7698 = vld [vmem:[%s21 + $0x3d8] sm:$0xff]
        %v7699 = vld [vmem:[%s21 + $0x3e0] sm:$0xff]
        %v7700 = vld [vmem:[%s21 + $0x3e8] sm:$0xff]
        %v7701 = vld [vmem:[%s21 + $0x3f0] sm:$0xff]
        %v7702 = vld [vmem:[%s21 + $0x3f8] sm:$0xff]
        %v7703 = vpack.c.bf16 %v7555, %v7551
        %v7704 = vpack.c.bf16 %v7556, %v7552
        %v7705 = vpack.c.bf16 %v7557, %v7553
        %v7706 = vpack.c.bf16 %v7558, %v7554
        %v7707 = vpack.c.bf16 %v7563, %v7559
        %v7708 = vpack.c.bf16 %v7564, %v7560
        %v7709 = vpack.c.bf16 %v7565, %v7561
        %v7710 = vpack.c.bf16 %v7566, %v7562
        %s7711 = scalar_lea.vmem %s21, 1024
        %v7712 = vld [vmem:[%s7711] sm:$0xff]
        %v7713 = vld [vmem:[%s7711 + $0x8] sm:$0xff]
        %v7714 = vld [vmem:[%s7711 + $0x10] sm:$0xff]
        %v7715 = vld [vmem:[%s7711 + $0x18] sm:$0xff]
        %v7716 = vld [vmem:[%s7711 + $0x20] sm:$0xff]
        %v7717 = vld [vmem:[%s7711 + $0x28] sm:$0xff]
        %v7718 = vld [vmem:[%s7711 + $0x30] sm:$0xff]
        %v7719 = vld [vmem:[%s7711 + $0x38] sm:$0xff]
        %v7720 = vld [vmem:[%s7711 + $0x40] sm:$0xff]
        %v7721 = vld [vmem:[%s7711 + $0x48] sm:$0xff]
        %v7722 = vld [vmem:[%s7711 + $0x50] sm:$0xff]
        %v7723 = vld [vmem:[%s7711 + $0x58] sm:$0xff]
        %v7724 = vld [vmem:[%s7711 + $0x60] sm:$0xff]
        %v7725 = vld [vmem:[%s7711 + $0x68] sm:$0xff]
        %v7726 = vld [vmem:[%s7711 + $0x70] sm:$0xff]
        %v7727 = vld [vmem:[%s7711 + $0x78] sm:$0xff]
        %v7728 = vld [vmem:[%s7711 + $0x80] sm:$0xff]
        %v7729 = vld [vmem:[%s7711 + $0x88] sm:$0xff]
        %v7730 = vld [vmem:[%s7711 + $0x90] sm:$0xff]
        %v7731 = vld [vmem:[%s7711 + $0x98] sm:$0xff]
        %v7732 = vld [vmem:[%s7711 + $0xa0] sm:$0xff]
        %v7733 = vld [vmem:[%s7711 + $0xa8] sm:$0xff]
        %v7734 = vld [vmem:[%s7711 + $0xb0] sm:$0xff]
        %v7735 = vld [vmem:[%s7711 + $0xb8] sm:$0xff]
        %v7736 = vld [vmem:[%s7711 + $0xc0] sm:$0xff]
        %v7737 = vld [vmem:[%s7711 + $0xc8] sm:$0xff]
        %v7738 = vld [vmem:[%s7711 + $0xd0] sm:$0xff]
        %v7739 = vld [vmem:[%s7711 + $0xd8] sm:$0xff]
        %v7740 = vld [vmem:[%s7711 + $0xe0] sm:$0xff]
        %v7741 = vld [vmem:[%s7711 + $0xe8] sm:$0xff]
        %v7742 = vld [vmem:[%s7711 + $0xf0] sm:$0xff]
        %v7743 = vld [vmem:[%s7711 + $0xf8] sm:$0xff]
        %v7744 = vld [vmem:[%s7711 + $0x100] sm:$0xff]
        %v7745 = vld [vmem:[%s7711 + $0x108] sm:$0xff]
        %v7746 = vld [vmem:[%s7711 + $0x110] sm:$0xff]
        %v7747 = vld [vmem:[%s7711 + $0x118] sm:$0xff]
        %v7748 = vld [vmem:[%s7711 + $0x120] sm:$0xff]
        %v7749 = vld [vmem:[%s7711 + $0x128] sm:$0xff]
        %v7750 = vld [vmem:[%s7711 + $0x130] sm:$0xff]
        %v7751 = vld [vmem:[%s7711 + $0x138] sm:$0xff]
        %v7752 = vld [vmem:[%s7711 + $0x140] sm:$0xff]
        %v7753 = vld [vmem:[%s7711 + $0x148] sm:$0xff]
        %v7754 = vld [vmem:[%s7711 + $0x150] sm:$0xff]
        %v7755 = vld [vmem:[%s7711 + $0x158] sm:$0xff]
        %v7756 = vld [vmem:[%s7711 + $0x160] sm:$0xff]
        %v7757 = vld [vmem:[%s7711 + $0x168] sm:$0xff]
        %v7758 = vld [vmem:[%s7711 + $0x170] sm:$0xff]
        %v7759 = vld [vmem:[%s7711 + $0x178] sm:$0xff]
        %v7760 = vld [vmem:[%s7711 + $0x180] sm:$0xff]
        %v7761 = vld [vmem:[%s7711 + $0x188] sm:$0xff]
        %v7762 = vld [vmem:[%s7711 + $0x190] sm:$0xff]
        %v7763 = vld [vmem:[%s7711 + $0x198] sm:$0xff]
        %v7764 = vld [vmem:[%s7711 + $0x1a0] sm:$0xff]
        %v7765 = vld [vmem:[%s7711 + $0x1a8] sm:$0xff]
        %v7766 = vld [vmem:[%s7711 + $0x1b0] sm:$0xff]
        %v7767 = vld [vmem:[%s7711 + $0x1b8] sm:$0xff]
        %v7768 = vld [vmem:[%s7711 + $0x1c0] sm:$0xff]
        %v7769 = vld [vmem:[%s7711 + $0x1c8] sm:$0xff]
        %v7770 = vld [vmem:[%s7711 + $0x1d0] sm:$0xff]
        %v7771 = vld [vmem:[%s7711 + $0x1d8] sm:$0xff]
        %v7772 = vld [vmem:[%s7711 + $0x1e0] sm:$0xff]
        %v7773 = vld [vmem:[%s7711 + $0x1e8] sm:$0xff]
        %v7774 = vld [vmem:[%s7711 + $0x1f0] sm:$0xff]
        %v7775 = vld [vmem:[%s7711 + $0x1f8] sm:$0xff]
        %v7776 = vld [vmem:[%s7711 + $0x200] sm:$0xff]
        %v7777 = vld [vmem:[%s7711 + $0x208] sm:$0xff]
        %v7778 = vld [vmem:[%s7711 + $0x210] sm:$0xff]
        %v7779 = vld [vmem:[%s7711 + $0x218] sm:$0xff]
        %v7780 = vld [vmem:[%s7711 + $0x220] sm:$0xff]
        %v7781 = vld [vmem:[%s7711 + $0x228] sm:$0xff]
        %v7782 = vld [vmem:[%s7711 + $0x230] sm:$0xff]
        %v7783 = vld [vmem:[%s7711 + $0x238] sm:$0xff]
        %v7784 = vld [vmem:[%s7711 + $0x240] sm:$0xff]
        %v7785 = vld [vmem:[%s7711 + $0x248] sm:$0xff]
        %v7786 = vld [vmem:[%s7711 + $0x250] sm:$0xff]
        %v7787 = vld [vmem:[%s7711 + $0x258] sm:$0xff]
        %v7788 = vld [vmem:[%s7711 + $0x260] sm:$0xff]
        %v7789 = vld [vmem:[%s7711 + $0x268] sm:$0xff]
        %v7790 = vld [vmem:[%s7711 + $0x270] sm:$0xff]
        %v7791 = vld [vmem:[%s7711 + $0x278] sm:$0xff]
        %v7792 = vld [vmem:[%s7711 + $0x280] sm:$0xff]
        %v7793 = vld [vmem:[%s7711 + $0x288] sm:$0xff]
        %v7794 = vld [vmem:[%s7711 + $0x290] sm:$0xff]
        %v7795 = vld [vmem:[%s7711 + $0x298] sm:$0xff]
        %v7796 = vld [vmem:[%s7711 + $0x2a0] sm:$0xff]
        %v7797 = vld [vmem:[%s7711 + $0x2a8] sm:$0xff]
        %v7798 = vld [vmem:[%s7711 + $0x2b0] sm:$0xff]
        %v7799 = vld [vmem:[%s7711 + $0x2b8] sm:$0xff]
        %v7800 = vld [vmem:[%s7711 + $0x2c0] sm:$0xff]
        %v7801 = vld [vmem:[%s7711 + $0x2c8] sm:$0xff]
        %v7802 = vld [vmem:[%s7711 + $0x2d0] sm:$0xff]
        %v7803 = vld [vmem:[%s7711 + $0x2d8] sm:$0xff]
        %v7804 = vld [vmem:[%s7711 + $0x2e0] sm:$0xff]
        %v7805 = vld [vmem:[%s7711 + $0x2e8] sm:$0xff]
        %v7806 = vld [vmem:[%s7711 + $0x2f0] sm:$0xff]
        %v7807 = vld [vmem:[%s7711 + $0x2f8] sm:$0xff]
        %v7808 = vld [vmem:[%s7711 + $0x300] sm:$0xff]
        %v7809 = vld [vmem:[%s7711 + $0x308] sm:$0xff]
        %v7810 = vld [vmem:[%s7711 + $0x310] sm:$0xff]
        %v7811 = vld [vmem:[%s7711 + $0x318] sm:$0xff]
        %v7812 = vld [vmem:[%s7711 + $0x320] sm:$0xff]
        %v7813 = vld [vmem:[%s7711 + $0x328] sm:$0xff]
        %v7814 = vld [vmem:[%s7711 + $0x330] sm:$0xff]
        %v7815 = vld [vmem:[%s7711 + $0x338] sm:$0xff]
        %v7816 = vld [vmem:[%s7711 + $0x340] sm:$0xff]
        %v7817 = vld [vmem:[%s7711 + $0x348] sm:$0xff]
        %v7818 = vld [vmem:[%s7711 + $0x350] sm:$0xff]
        %v7819 = vld [vmem:[%s7711 + $0x358] sm:$0xff]
        %v7820 = vld [vmem:[%s7711 + $0x360] sm:$0xff]
        %v7821 = vld [vmem:[%s7711 + $0x368] sm:$0xff]
        %v7822 = vld [vmem:[%s7711 + $0x370] sm:$0xff]
        %v7823 = vld [vmem:[%s7711 + $0x378] sm:$0xff]
        %v7824 = vld [vmem:[%s7711 + $0x380] sm:$0xff]
        %v7825 = vld [vmem:[%s7711 + $0x388] sm:$0xff]
        %v7826 = vld [vmem:[%s7711 + $0x390] sm:$0xff]
        %v7827 = vld [vmem:[%s7711 + $0x398] sm:$0xff]
        %v7828 = vld [vmem:[%s7711 + $0x3a0] sm:$0xff]
        %v7829 = vld [vmem:[%s7711 + $0x3a8] sm:$0xff]
        %v7830 = vld [vmem:[%s7711 + $0x3b0] sm:$0xff]
        %v7831 = vld [vmem:[%s7711 + $0x3b8] sm:$0xff]
        %v7832 = vld [vmem:[%s7711 + $0x3c0] sm:$0xff]
        %v7833 = vld [vmem:[%s7711 + $0x3c8] sm:$0xff]
        %v7834 = vld [vmem:[%s7711 + $0x3d0] sm:$0xff]
        %v7835 = vld [vmem:[%s7711 + $0x3d8] sm:$0xff]
        %v7836 = vld [vmem:[%s7711 + $0x3e0] sm:$0xff]
        %v7837 = vld [vmem:[%s7711 + $0x3e8] sm:$0xff]
        %v7838 = vld [vmem:[%s7711 + $0x3f0] sm:$0xff]
        %v7839 = vld [vmem:[%s7711 + $0x3f8] sm:$0xff]
        %v7968 = vunpack.c.l.b16 %v7712
        %v7969 = vunpack.c.h.b16 %v7712
        %v7970 = vunpack.c.l.b16 %v7713
        %v7971 = vunpack.c.h.b16 %v7713
        %v7972 = vunpack.c.l.b16 %v7714
        %v7973 = vunpack.c.h.b16 %v7714
        %v7974 = vunpack.c.l.b16 %v7715
        %v7975 = vunpack.c.h.b16 %v7715
        %v7976 = vunpack.c.l.b16 %v7716
        %v7977 = vunpack.c.h.b16 %v7716
        %v7978 = vunpack.c.l.b16 %v7717
        %v7979 = vunpack.c.h.b16 %v7717
        %v7980 = vunpack.c.l.b16 %v7718
        %v7981 = vunpack.c.h.b16 %v7718
        %v7982 = vunpack.c.l.b16 %v7719
        %v7983 = vunpack.c.h.b16 %v7719
        %v7984 = vunpack.c.l.b16 %v7720
        %v7985 = vunpack.c.h.b16 %v7720
        %v7986 = vunpack.c.l.b16 %v7721
        %v7987 = vunpack.c.h.b16 %v7721
        %v7988 = vunpack.c.l.b16 %v7722
        %v7989 = vunpack.c.h.b16 %v7722
        %v7990 = vunpack.c.l.b16 %v7723
        %v7991 = vunpack.c.h.b16 %v7723
        %v7992 = vunpack.c.l.b16 %v7724
        %v7993 = vunpack.c.h.b16 %v7724
        %v7994 = vunpack.c.l.b16 %v7725
        %v7995 = vunpack.c.h.b16 %v7725
        %v7996 = vunpack.c.l.b16 %v7726
        %v7997 = vunpack.c.h.b16 %v7726
        %v7998 = vunpack.c.l.b16 %v7727
        %v7999 = vunpack.c.h.b16 %v7727
        %v8000 = vunpack.c.l.b16 %v7728
        %v8001 = vunpack.c.h.b16 %v7728
        %v8002 = vunpack.c.l.b16 %v7729
        %v8003 = vunpack.c.h.b16 %v7729
        %v8004 = vunpack.c.l.b16 %v7730
        %v8005 = vunpack.c.h.b16 %v7730
        %v8006 = vunpack.c.l.b16 %v7731
        %v8007 = vunpack.c.h.b16 %v7731
        %v8008 = vunpack.c.l.b16 %v7732
        %v8009 = vunpack.c.h.b16 %v7732
        %v8010 = vunpack.c.l.b16 %v7733
        %v8011 = vunpack.c.h.b16 %v7733
        %v8012 = vunpack.c.l.b16 %v7734
        %v8013 = vunpack.c.h.b16 %v7734
        %v8014 = vunpack.c.l.b16 %v7735
        %v8015 = vunpack.c.h.b16 %v7735
        %v8016 = vunpack.c.l.b16 %v7736
        %v8017 = vunpack.c.h.b16 %v7736
        %v8018 = vunpack.c.l.b16 %v7737
        %v8019 = vunpack.c.h.b16 %v7737
        %v8020 = vunpack.c.l.b16 %v7738
        %v8021 = vunpack.c.h.b16 %v7738
        %v8022 = vunpack.c.l.b16 %v7739
        %v8023 = vunpack.c.h.b16 %v7739
        %v8024 = vunpack.c.l.b16 %v7740
        %v8025 = vunpack.c.h.b16 %v7740
        %v8026 = vunpack.c.l.b16 %v7741
        %v8027 = vunpack.c.h.b16 %v7741
        %v8028 = vunpack.c.l.b16 %v7742
        %v8029 = vunpack.c.h.b16 %v7742
        %v8030 = vunpack.c.l.b16 %v7743
        %v8031 = vunpack.c.h.b16 %v7743
        %v8032 = vunpack.c.l.b16 %v7744
        %v8033 = vunpack.c.h.b16 %v7744
        %v8034 = vunpack.c.l.b16 %v7745
        %v8035 = vunpack.c.h.b16 %v7745
        %v8036 = vunpack.c.l.b16 %v7746
        %v8037 = vunpack.c.h.b16 %v7746
        %v8038 = vunpack.c.l.b16 %v7747
        %v8039 = vunpack.c.h.b16 %v7747
        %v8040 = vunpack.c.l.b16 %v7748
        %v8041 = vunpack.c.h.b16 %v7748
        %v8042 = vunpack.c.l.b16 %v7749
        %v8043 = vunpack.c.h.b16 %v7749
        %v8044 = vunpack.c.l.b16 %v7750
        %v8045 = vunpack.c.h.b16 %v7750
        %v8046 = vunpack.c.l.b16 %v7751
        %v8047 = vunpack.c.h.b16 %v7751
        %v8048 = vunpack.c.l.b16 %v7752
        %v8049 = vunpack.c.h.b16 %v7752
        %v8050 = vunpack.c.l.b16 %v7753
        %v8051 = vunpack.c.h.b16 %v7753
        %v8052 = vunpack.c.l.b16 %v7754
        %v8053 = vunpack.c.h.b16 %v7754
        %v8054 = vunpack.c.l.b16 %v7755
        %v8055 = vunpack.c.h.b16 %v7755
        %v8056 = vunpack.c.l.b16 %v7756
        %v8057 = vunpack.c.h.b16 %v7756
        %v8058 = vunpack.c.l.b16 %v7757
        %v8059 = vunpack.c.h.b16 %v7757
        %v8060 = vunpack.c.l.b16 %v7758
        %v8061 = vunpack.c.h.b16 %v7758
        %v8062 = vunpack.c.l.b16 %v7759
        %v8063 = vunpack.c.h.b16 %v7759
        %v8064 = vunpack.c.l.b16 %v7760
        %v8065 = vunpack.c.h.b16 %v7760
        %v8066 = vunpack.c.l.b16 %v7761
        %v8067 = vunpack.c.h.b16 %v7761
        %v8068 = vunpack.c.l.b16 %v7762
        %v8069 = vunpack.c.h.b16 %v7762
        %v8070 = vunpack.c.l.b16 %v7763
        %v8071 = vunpack.c.h.b16 %v7763
        %v8072 = vunpack.c.l.b16 %v7764
        %v8073 = vunpack.c.h.b16 %v7764
        %v8074 = vunpack.c.l.b16 %v7765
        %v8075 = vunpack.c.h.b16 %v7765
        %v8076 = vunpack.c.l.b16 %v7766
        %v8077 = vunpack.c.h.b16 %v7766
        %v8078 = vunpack.c.l.b16 %v7767
        %v8079 = vunpack.c.h.b16 %v7767
        %v8080 = vunpack.c.l.b16 %v7768
        %v8081 = vunpack.c.h.b16 %v7768
        %v8082 = vunpack.c.l.b16 %v7769
        %v8083 = vunpack.c.h.b16 %v7769
        %v8084 = vunpack.c.l.b16 %v7770
        %v8085 = vunpack.c.h.b16 %v7770
        %v8086 = vunpack.c.l.b16 %v7771
        %v8087 = vunpack.c.h.b16 %v7771
        %v8088 = vunpack.c.l.b16 %v7772
        %v8089 = vunpack.c.h.b16 %v7772
        %v8090 = vunpack.c.l.b16 %v7773
        %v8091 = vunpack.c.h.b16 %v7773
        %v8092 = vunpack.c.l.b16 %v7774
        %v8093 = vunpack.c.h.b16 %v7774
        %v8094 = vunpack.c.l.b16 %v7775
        %v8095 = vunpack.c.h.b16 %v7775
        %v8096 = vunpack.c.l.b16 %v7776
        %v8097 = vunpack.c.h.b16 %v7776
        %v8098 = vunpack.c.l.b16 %v7777
        %v8099 = vunpack.c.h.b16 %v7777
        %v8100 = vunpack.c.l.b16 %v7778
        %v8101 = vunpack.c.h.b16 %v7778
        %v8102 = vunpack.c.l.b16 %v7779
        %v8103 = vunpack.c.h.b16 %v7779
        %v8104 = vunpack.c.l.b16 %v7780
        %v8105 = vunpack.c.h.b16 %v7780
        %v8106 = vunpack.c.l.b16 %v7781
        %v8107 = vunpack.c.h.b16 %v7781
        %v8108 = vunpack.c.l.b16 %v7782
        %v8109 = vunpack.c.h.b16 %v7782
        %v8110 = vunpack.c.l.b16 %v7783
        %v8111 = vunpack.c.h.b16 %v7783
        %v8112 = vunpack.c.l.b16 %v7784
        %v8113 = vunpack.c.h.b16 %v7784
        %v8114 = vunpack.c.l.b16 %v7785
        %v8115 = vunpack.c.h.b16 %v7785
        %v8116 = vunpack.c.l.b16 %v7786
        %v8117 = vunpack.c.h.b16 %v7786
        %v8118 = vunpack.c.l.b16 %v7787
        %v8119 = vunpack.c.h.b16 %v7787
        %v8120 = vunpack.c.l.b16 %v7788
        %v8121 = vunpack.c.h.b16 %v7788
        %v8122 = vunpack.c.l.b16 %v7789
        %v8123 = vunpack.c.h.b16 %v7789
        %v8124 = vunpack.c.l.b16 %v7790
        %v8125 = vunpack.c.h.b16 %v7790
        %v8126 = vunpack.c.l.b16 %v7791
        %v8127 = vunpack.c.h.b16 %v7791
        %v8128 = vunpack.c.l.b16 %v7792
        %v8129 = vunpack.c.h.b16 %v7792
        %v8130 = vunpack.c.l.b16 %v7793
        %v8131 = vunpack.c.h.b16 %v7793
        %v8132 = vunpack.c.l.b16 %v7794
        %v8133 = vunpack.c.h.b16 %v7794
        %v8134 = vunpack.c.l.b16 %v7795
        %v8135 = vunpack.c.h.b16 %v7795
        %v8136 = vunpack.c.l.b16 %v7796
        %v8137 = vunpack.c.h.b16 %v7796
        %v8138 = vunpack.c.l.b16 %v7797
        %v8139 = vunpack.c.h.b16 %v7797
        %v8140 = vunpack.c.l.b16 %v7798
        %v8141 = vunpack.c.h.b16 %v7798
        %v8142 = vunpack.c.l.b16 %v7799
        %v8143 = vunpack.c.h.b16 %v7799
        %v8144 = vunpack.c.l.b16 %v7800
        %v8145 = vunpack.c.h.b16 %v7800
        %v8146 = vunpack.c.l.b16 %v7801
        %v8147 = vunpack.c.h.b16 %v7801
        %v8148 = vunpack.c.l.b16 %v7802
        %v8149 = vunpack.c.h.b16 %v7802
        %v8150 = vunpack.c.l.b16 %v7803
        %v8151 = vunpack.c.h.b16 %v7803
        %v8152 = vunpack.c.l.b16 %v7804
        %v8153 = vunpack.c.h.b16 %v7804
        %v8154 = vunpack.c.l.b16 %v7805
        %v8155 = vunpack.c.h.b16 %v7805
        %v8156 = vunpack.c.l.b16 %v7806
        %v8157 = vunpack.c.h.b16 %v7806
        %v8158 = vunpack.c.l.b16 %v7807
        %v8159 = vunpack.c.h.b16 %v7807
        %v8160 = vunpack.c.l.b16 %v7808
        %v8161 = vunpack.c.h.b16 %v7808
        %v8162 = vunpack.c.l.b16 %v7809
        %v8163 = vunpack.c.h.b16 %v7809
        %v8164 = vunpack.c.l.b16 %v7810
        %v8165 = vunpack.c.h.b16 %v7810
        %v8166 = vunpack.c.l.b16 %v7811
        %v8167 = vunpack.c.h.b16 %v7811
        %v8168 = vunpack.c.l.b16 %v7812
        %v8169 = vunpack.c.h.b16 %v7812
        %v8170 = vunpack.c.l.b16 %v7813
        %v8171 = vunpack.c.h.b16 %v7813
        %v8172 = vunpack.c.l.b16 %v7814
        %v8173 = vunpack.c.h.b16 %v7814
        %v8174 = vunpack.c.l.b16 %v7815
        %v8175 = vunpack.c.h.b16 %v7815
        %v8176 = vunpack.c.l.b16 %v7816
        %v8177 = vunpack.c.h.b16 %v7816
        %v8178 = vunpack.c.l.b16 %v7817
        %v8179 = vunpack.c.h.b16 %v7817
        %v8180 = vunpack.c.l.b16 %v7818
        %v8181 = vunpack.c.h.b16 %v7818
        %v8182 = vunpack.c.l.b16 %v7819
        %v8183 = vunpack.c.h.b16 %v7819
        %v8184 = vunpack.c.l.b16 %v7820
        %v8185 = vunpack.c.h.b16 %v7820
        %v8186 = vunpack.c.l.b16 %v7821
        %v8187 = vunpack.c.h.b16 %v7821
        %v8188 = vunpack.c.l.b16 %v7822
        %v8189 = vunpack.c.h.b16 %v7822
        %v8190 = vunpack.c.l.b16 %v7823
        %v8191 = vunpack.c.h.b16 %v7823
        %v8192 = vunpack.c.l.b16 %v7824
        %v8193 = vunpack.c.h.b16 %v7824
        %v8194 = vunpack.c.l.b16 %v7825
        %v8195 = vunpack.c.h.b16 %v7825
        %v8196 = vunpack.c.l.b16 %v7826
        %v8197 = vunpack.c.h.b16 %v7826
        %v8198 = vunpack.c.l.b16 %v7827
        %v8199 = vunpack.c.h.b16 %v7827
        %v8200 = vunpack.c.l.b16 %v7828
        %v8201 = vunpack.c.h.b16 %v7828
        %v8202 = vunpack.c.l.b16 %v7829
        %v8203 = vunpack.c.h.b16 %v7829
        %v8204 = vunpack.c.l.b16 %v7830
        %v8205 = vunpack.c.h.b16 %v7830
        %v8206 = vunpack.c.l.b16 %v7831
        %v8207 = vunpack.c.h.b16 %v7831
        %v8208 = vunpack.c.l.b16 %v7832
        %v8209 = vunpack.c.h.b16 %v7832
        %v8210 = vunpack.c.l.b16 %v7833
        %v8211 = vunpack.c.h.b16 %v7833
        %v8212 = vunpack.c.l.b16 %v7834
        %v8213 = vunpack.c.h.b16 %v7834
        %v8214 = vunpack.c.l.b16 %v7835
        %v8215 = vunpack.c.h.b16 %v7835
        %v8216 = vunpack.c.l.b16 %v7836
        %v8217 = vunpack.c.h.b16 %v7836
        %v8218 = vunpack.c.l.b16 %v7837
        %v8219 = vunpack.c.h.b16 %v7837
        %v8220 = vunpack.c.l.b16 %v7838
        %v8221 = vunpack.c.h.b16 %v7838
        %v8222 = vunpack.c.l.b16 %v7839
        %v8223 = vunpack.c.h.b16 %v7839
        %v8224 = vpack.c.b16 %v7972, %v7968
        %v8225 = vpack.c.b16 %v7973, %v7969
        %v8226 = vpack.c.b16 %v7974, %v7970
        %v8227 = vpack.c.b16 %v7975, %v7971
        %v8228 = vpack.c.b16 %v7980, %v7976
        %v8229 = vpack.c.b16 %v7981, %v7977
        %v8230 = vpack.c.b16 %v7982, %v7978
        %v8231 = vpack.c.b16 %v7983, %v7979
        %v8232 = vpack.c.b16 %v7988, %v7984
        %v8233 = vpack.c.b16 %v7989, %v7985
        %v8234 = vpack.c.b16 %v7990, %v7986
        %v8235 = vpack.c.b16 %v7991, %v7987
        %v8236 = vpack.c.b16 %v7996, %v7992
        %v8237 = vpack.c.b16 %v7997, %v7993
        %v8238 = vpack.c.b16 %v7998, %v7994
        %v8239 = vpack.c.b16 %v7999, %v7995
        %v8240 = vpack.c.b16 %v8004, %v8000
        %v8241 = vpack.c.b16 %v8005, %v8001
        %v8242 = vpack.c.b16 %v8006, %v8002
        %v8243 = vpack.c.b16 %v8007, %v8003
        %v8244 = vpack.c.b16 %v8012, %v8008
        %v8245 = vpack.c.b16 %v8013, %v8009
        %v8246 = vpack.c.b16 %v8014, %v8010
        %v8247 = vpack.c.b16 %v8015, %v8011
        %v8248 = vpack.c.b16 %v8020, %v8016
        %v8249 = vpack.c.b16 %v8021, %v8017
        %v8250 = vpack.c.b16 %v8022, %v8018
        %v8251 = vpack.c.b16 %v8023, %v8019
        %v8252 = vpack.c.b16 %v8028, %v8024
        %v8253 = vpack.c.b16 %v8029, %v8025
        %v8254 = vpack.c.b16 %v8030, %v8026
        %v8255 = vpack.c.b16 %v8031, %v8027
        %v8256 = vpack.c.b16 %v8036, %v8032
        %v8257 = vpack.c.b16 %v8037, %v8033
        %v8258 = vpack.c.b16 %v8038, %v8034
        %v8259 = vpack.c.b16 %v8039, %v8035
        %v8260 = vpack.c.b16 %v8044, %v8040
        %v8261 = vpack.c.b16 %v8045, %v8041
        %v8262 = vpack.c.b16 %v8046, %v8042
        %v8263 = vpack.c.b16 %v8047, %v8043
        %v8264 = vpack.c.b16 %v8052, %v8048
        %v8265 = vpack.c.b16 %v8053, %v8049
        %v8266 = vpack.c.b16 %v8054, %v8050
        %v8267 = vpack.c.b16 %v8055, %v8051
        %v8268 = vpack.c.b16 %v8060, %v8056
        %v8269 = vpack.c.b16 %v8061, %v8057
        %v8270 = vpack.c.b16 %v8062, %v8058
        %v8271 = vpack.c.b16 %v8063, %v8059
        %v8272 = vpack.c.b16 %v8068, %v8064
        %v8273 = vpack.c.b16 %v8069, %v8065
        %v8274 = vpack.c.b16 %v8070, %v8066
        %v8275 = vpack.c.b16 %v8071, %v8067
        %v8276 = vpack.c.b16 %v8076, %v8072
        %v8277 = vpack.c.b16 %v8077, %v8073
        %v8278 = vpack.c.b16 %v8078, %v8074
        %v8279 = vpack.c.b16 %v8079, %v8075
        %v8280 = vpack.c.b16 %v8084, %v8080
        %v8281 = vpack.c.b16 %v8085, %v8081
        %v8282 = vpack.c.b16 %v8086, %v8082
        %v8283 = vpack.c.b16 %v8087, %v8083
        %v8284 = vpack.c.b16 %v8092, %v8088
        %v8285 = vpack.c.b16 %v8093, %v8089
        %v8286 = vpack.c.b16 %v8094, %v8090
        %v8287 = vpack.c.b16 %v8095, %v8091
        %v8288 = vpack.c.b16 %v8100, %v8096
        %v8289 = vpack.c.b16 %v8101, %v8097
        %v8290 = vpack.c.b16 %v8102, %v8098
        %v8291 = vpack.c.b16 %v8103, %v8099
        %v8292 = vpack.c.b16 %v8108, %v8104
        %v8293 = vpack.c.b16 %v8109, %v8105
        %v8294 = vpack.c.b16 %v8110, %v8106
        %v8295 = vpack.c.b16 %v8111, %v8107
        %v8296 = vpack.c.b16 %v8116, %v8112
        %v8297 = vpack.c.b16 %v8117, %v8113
        %v8298 = vpack.c.b16 %v8118, %v8114
        %v8299 = vpack.c.b16 %v8119, %v8115
        %v8300 = vpack.c.b16 %v8124, %v8120
        %v8301 = vpack.c.b16 %v8125, %v8121
        %v8302 = vpack.c.b16 %v8126, %v8122
        %v8303 = vpack.c.b16 %v8127, %v8123
        %v8304 = vpack.c.b16 %v8132, %v8128
        %v8305 = vpack.c.b16 %v8133, %v8129
        %v8306 = vpack.c.b16 %v8134, %v8130
        %v8307 = vpack.c.b16 %v8135, %v8131
        %v8308 = vpack.c.b16 %v8140, %v8136
        %v8309 = vpack.c.b16 %v8141, %v8137
        %v8310 = vpack.c.b16 %v8142, %v8138
        %v8311 = vpack.c.b16 %v8143, %v8139
        %v8312 = vpack.c.b16 %v8148, %v8144
        %v8313 = vpack.c.b16 %v8149, %v8145
        %v8314 = vpack.c.b16 %v8150, %v8146
        %v8315 = vpack.c.b16 %v8151, %v8147
        %v8316 = vpack.c.b16 %v8156, %v8152
        %v8317 = vpack.c.b16 %v8157, %v8153
        %v8318 = vpack.c.b16 %v8158, %v8154
        %v8319 = vpack.c.b16 %v8159, %v8155
        %v8320 = vpack.c.b16 %v8164, %v8160
        %v8321 = vpack.c.b16 %v8165, %v8161
        %v8322 = vpack.c.b16 %v8166, %v8162
        %v8323 = vpack.c.b16 %v8167, %v8163
        %v8324 = vpack.c.b16 %v8172, %v8168
        %v8325 = vpack.c.b16 %v8173, %v8169
        %v8326 = vpack.c.b16 %v8174, %v8170
        %v8327 = vpack.c.b16 %v8175, %v8171
        %v8328 = vpack.c.b16 %v8180, %v8176
        %v8329 = vpack.c.b16 %v8181, %v8177
        %v8330 = vpack.c.b16 %v8182, %v8178
        %v8331 = vpack.c.b16 %v8183, %v8179
        %v8332 = vpack.c.b16 %v8188, %v8184
        %v8333 = vpack.c.b16 %v8189, %v8185
        %v8334 = vpack.c.b16 %v8190, %v8186
        %v8335 = vpack.c.b16 %v8191, %v8187
        %v8336 = vpack.c.b16 %v8196, %v8192
        %v8337 = vpack.c.b16 %v8197, %v8193
        %v8338 = vpack.c.b16 %v8198, %v8194
        %v8339 = vpack.c.b16 %v8199, %v8195
        %v8340 = vpack.c.b16 %v8204, %v8200
        %v8341 = vpack.c.b16 %v8205, %v8201
        %v8342 = vpack.c.b16 %v8206, %v8202
        %v8343 = vpack.c.b16 %v8207, %v8203
        %v8344 = vpack.c.b16 %v8212, %v8208
        %v8345 = vpack.c.b16 %v8213, %v8209
        %v8346 = vpack.c.b16 %v8214, %v8210
        %v8347 = vpack.c.b16 %v8215, %v8211
        %v8348 = vpack.c.b16 %v8220, %v8216
        %v8349 = vpack.c.b16 %v8221, %v8217
        %v8350 = vpack.c.b16 %v8222, %v8218
        %v8351 = vpack.c.b16 %v8223, %v8219
        %8480 = vmatpush.bf16.msra.mxu0 %v8252
        %8481 = vmatpush.bf16.msra.mxu0 %v8248
        %8482 = vmatpush.bf16.msra.mxu0 %v8244
        %8483 = vmatpush.bf16.msra.mxu0 %v8240
        %8484 = vmatpush.bf16.msra.mxu0 %v8236
        %8485 = vmatpush.bf16.msra.mxu0 %v8232
        %8486 = vmatpush.bf16.msra.mxu0 %v8228
        %8487 = vmatpush.bf16.msra.mxu0 %v8224
        %8488 = vmatmul.bf16.gmra.mxu0 %v7703
        %v8489 = vpop.f32.mrf.mxu0
        %v8490 = vadd.f32 0.0, %v8489
        %v8491 = vpop.f32.mrf.mxu0
        %v8492 = vadd.f32 0.0, %v8491
        %8493 = vmatmul.bf16.gmra.mxu0 %v7707
        %v8494 = vpop.f32.mrf.mxu0
        %v8495 = vadd.f32 0.0, %v8494
        %v8496 = vpop.f32.mrf.mxu0
        %v8497 = vadd.f32 0.0, %v8496
        %8498 = vdwg.mxu0
        %8499 = vmatpush.bf16.msra.mxu0 %v8284
        %8500 = vmatpush.bf16.msra.mxu0 %v8280
        %8501 = vmatpush.bf16.msra.mxu0 %v8276
        %8502 = vmatpush.bf16.msra.mxu0 %v8272
        %8503 = vmatpush.bf16.msra.mxu0 %v8268
        %8504 = vmatpush.bf16.msra.mxu0 %v8264
        %8505 = vmatpush.bf16.msra.mxu0 %v8260
        %8506 = vmatpush.bf16.msra.mxu0 %v8256
        %8507 = vmatmul.bf16.gmra.mxu0 %v7704
        %v8508 = vpop.f32.mrf.mxu0
        %v8509 = vadd.f32 %v8490, %v8508
        %v8510 = vpop.f32.mrf.mxu0
        %v8511 = vadd.f32 %v8492, %v8510
        %8512 = vmatmul.bf16.gmra.mxu0 %v7708
        %v8513 = vpop.f32.mrf.mxu0
        %v8514 = vadd.f32 %v8495, %v8513
        %v8515 = vpop.f32.mrf.mxu0
        %v8516 = vadd.f32 %v8497, %v8515
        %8517 = vdwg.mxu0
        %8518 = vmatpush.bf16.msra.mxu0 %v8316
        %8519 = vmatpush.bf16.msra.mxu0 %v8312
        %8520 = vmatpush.bf16.msra.mxu0 %v8308
        %8521 = vmatpush.bf16.msra.mxu0 %v8304
        %8522 = vmatpush.bf16.msra.mxu0 %v8300
        %8523 = vmatpush.bf16.msra.mxu0 %v8296
        %8524 = vmatpush.bf16.msra.mxu0 %v8292
        %8525 = vmatpush.bf16.msra.mxu0 %v8288
        %8526 = vmatmul.bf16.gmra.mxu0 %v7705
        %v8527 = vpop.f32.mrf.mxu0
        %v8528 = vadd.f32 %v8509, %v8527
        %v8529 = vpop.f32.mrf.mxu0
        %v8530 = vadd.f32 %v8511, %v8529
        %8531 = vmatmul.bf16.gmra.mxu0 %v7709
        %v8532 = vpop.f32.mrf.mxu0
        %v8533 = vadd.f32 %v8514, %v8532
        %v8534 = vpop.f32.mrf.mxu0
        %v8535 = vadd.f32 %v8516, %v8534
        %8536 = vdwg.mxu0
        %8537 = vmatpush.bf16.msra.mxu0 %v8348
        %8538 = vmatpush.bf16.msra.mxu0 %v8344
        %8539 = vmatpush.bf16.msra.mxu0 %v8340
        %8540 = vmatpush.bf16.msra.mxu0 %v8336
        %8541 = vmatpush.bf16.msra.mxu0 %v8332
        %8542 = vmatpush.bf16.msra.mxu0 %v8328
        %8543 = vmatpush.bf16.msra.mxu0 %v8324
        %8544 = vmatpush.bf16.msra.mxu0 %v8320
        %8545 = vmatmul.bf16.gmra.mxu0 %v7706
        %v8546 = vpop.f32.mrf.mxu0
        %v8547 = vadd.f32 %v8528, %v8546
        %v8548 = vpop.f32.mrf.mxu0
        %v8549 = vadd.f32 %v8530, %v8548
        %8550 = vmatmul.bf16.gmra.mxu0 %v7710
        %v8551 = vpop.f32.mrf.mxu0
        %v8552 = vadd.f32 %v8533, %v8551
        %v8553 = vpop.f32.mrf.mxu0
        %v8554 = vadd.f32 %v8535, %v8553
        %8555 = vdwg.mxu0
        %8556 = vmatpush.bf16.msra.mxu0 %v8253
        %8557 = vmatpush.bf16.msra.mxu0 %v8249
        %8558 = vmatpush.bf16.msra.mxu0 %v8245
        %8559 = vmatpush.bf16.msra.mxu0 %v8241
        %8560 = vmatpush.bf16.msra.mxu0 %v8237
        %8561 = vmatpush.bf16.msra.mxu0 %v8233
        %8562 = vmatpush.bf16.msra.mxu0 %v8229
        %8563 = vmatpush.bf16.msra.mxu0 %v8225
        %8564 = vmatmul.bf16.gmra.mxu0 %v7703
        %v8565 = vpop.f32.mrf.mxu0
        %v8566 = vadd.f32 0.0, %v8565
        %v8567 = vpop.f32.mrf.mxu0
        %v8568 = vadd.f32 0.0, %v8567
        %8569 = vmatmul.bf16.gmra.mxu0 %v7707
        %v8570 = vpop.f32.mrf.mxu0
        %v8571 = vadd.f32 0.0, %v8570
        %v8572 = vpop.f32.mrf.mxu0
        %v8573 = vadd.f32 0.0, %v8572
        %8574 = vdwg.mxu0
        %8575 = vmatpush.bf16.msra.mxu0 %v8285
        %8576 = vmatpush.bf16.msra.mxu0 %v8281
        %8577 = vmatpush.bf16.msra.mxu0 %v8277
        %8578 = vmatpush.bf16.msra.mxu0 %v8273
        %8579 = vmatpush.bf16.msra.mxu0 %v8269
        %8580 = vmatpush.bf16.msra.mxu0 %v8265
        %8581 = vmatpush.bf16.msra.mxu0 %v8261
        %8582 = vmatpush.bf16.msra.mxu0 %v8257
        %8583 = vmatmul.bf16.gmra.mxu0 %v7704
        %v8584 = vpop.f32.mrf.mxu0
        %v8585 = vadd.f32 %v8566, %v8584
        %v8586 = vpop.f32.mrf.mxu0
        %v8587 = vadd.f32 %v8568, %v8586
        %8588 = vmatmul.bf16.gmra.mxu0 %v7708
        %v8589 = vpop.f32.mrf.mxu0
        %v8590 = vadd.f32 %v8571, %v8589
        %v8591 = vpop.f32.mrf.mxu0
        %v8592 = vadd.f32 %v8573, %v8591
        %8593 = vdwg.mxu0
        %8594 = vmatpush.bf16.msra.mxu0 %v8317
        %8595 = vmatpush.bf16.msra.mxu0 %v8313
        %8596 = vmatpush.bf16.msra.mxu0 %v8309
        %8597 = vmatpush.bf16.msra.mxu0 %v8305
        %8598 = vmatpush.bf16.msra.mxu0 %v8301
        %8599 = vmatpush.bf16.msra.mxu0 %v8297
        %8600 = vmatpush.bf16.msra.mxu0 %v8293
        %8601 = vmatpush.bf16.msra.mxu0 %v8289
        %8602 = vmatmul.bf16.gmra.mxu0 %v7705
        %v8603 = vpop.f32.mrf.mxu0
        %v8604 = vadd.f32 %v8585, %v8603
        %v8605 = vpop.f32.mrf.mxu0
        %v8606 = vadd.f32 %v8587, %v8605
        %8607 = vmatmul.bf16.gmra.mxu0 %v7709
        %v8608 = vpop.f32.mrf.mxu0
        %v8609 = vadd.f32 %v8590, %v8608
        %v8610 = vpop.f32.mrf.mxu0
        %v8611 = vadd.f32 %v8592, %v8610
        %8612 = vdwg.mxu0
        %8613 = vmatpush.bf16.msra.mxu0 %v8349
        %8614 = vmatpush.bf16.msra.mxu0 %v8345
        %8615 = vmatpush.bf16.msra.mxu0 %v8341
        %8616 = vmatpush.bf16.msra.mxu0 %v8337
        %8617 = vmatpush.bf16.msra.mxu0 %v8333
        %8618 = vmatpush.bf16.msra.mxu0 %v8329
        %8619 = vmatpush.bf16.msra.mxu0 %v8325
        %8620 = vmatpush.bf16.msra.mxu0 %v8321
        %8621 = vmatmul.bf16.gmra.mxu0 %v7706
        %v8622 = vpop.f32.mrf.mxu0
        %v8623 = vadd.f32 %v8604, %v8622
        %v8624 = vpop.f32.mrf.mxu0
        %v8625 = vadd.f32 %v8606, %v8624
        %8626 = vmatmul.bf16.gmra.mxu0 %v7710
        %v8627 = vpop.f32.mrf.mxu0
        %v8628 = vadd.f32 %v8609, %v8627
        %v8629 = vpop.f32.mrf.mxu0
        %v8630 = vadd.f32 %v8611, %v8629
        %8631 = vdwg.mxu0
        %8632 = vmatpush.bf16.msra.mxu0 %v8254
        %8633 = vmatpush.bf16.msra.mxu0 %v8250
        %8634 = vmatpush.bf16.msra.mxu0 %v8246
        %8635 = vmatpush.bf16.msra.mxu0 %v8242
        %8636 = vmatpush.bf16.msra.mxu0 %v8238
        %8637 = vmatpush.bf16.msra.mxu0 %v8234
        %8638 = vmatpush.bf16.msra.mxu0 %v8230
        %8639 = vmatpush.bf16.msra.mxu0 %v8226
        %8640 = vmatmul.bf16.gmra.mxu0 %v7703
        %v8641 = vpop.f32.mrf.mxu0
        %v8642 = vadd.f32 0.0, %v8641
        %v8643 = vpop.f32.mrf.mxu0
        %v8644 = vadd.f32 0.0, %v8643
        %8645 = vmatmul.bf16.gmra.mxu0 %v7707
        %v8646 = vpop.f32.mrf.mxu0
        %v8647 = vadd.f32 0.0, %v8646
        %v8648 = vpop.f32.mrf.mxu0
        %v8649 = vadd.f32 0.0, %v8648
        %8650 = vdwg.mxu0
        %8651 = vmatpush.bf16.msra.mxu0 %v8286
        %8652 = vmatpush.bf16.msra.mxu0 %v8282
        %8653 = vmatpush.bf16.msra.mxu0 %v8278
        %8654 = vmatpush.bf16.msra.mxu0 %v8274
        %8655 = vmatpush.bf16.msra.mxu0 %v8270
        %8656 = vmatpush.bf16.msra.mxu0 %v8266
        %8657 = vmatpush.bf16.msra.mxu0 %v8262
        %8658 = vmatpush.bf16.msra.mxu0 %v8258
        %8659 = vmatmul.bf16.gmra.mxu0 %v7704
        %v8660 = vpop.f32.mrf.mxu0
        %v8661 = vadd.f32 %v8642, %v8660
        %v8662 = vpop.f32.mrf.mxu0
        %v8663 = vadd.f32 %v8644, %v8662
        %8664 = vmatmul.bf16.gmra.mxu0 %v7708
        %v8665 = vpop.f32.mrf.mxu0
        %v8666 = vadd.f32 %v8647, %v8665
        %v8667 = vpop.f32.mrf.mxu0
        %v8668 = vadd.f32 %v8649, %v8667
        %8669 = vdwg.mxu0
        %8670 = vmatpush.bf16.msra.mxu0 %v8318
        %8671 = vmatpush.bf16.msra.mxu0 %v8314
        %8672 = vmatpush.bf16.msra.mxu0 %v8310
        %8673 = vmatpush.bf16.msra.mxu0 %v8306
        %8674 = vmatpush.bf16.msra.mxu0 %v8302
        %8675 = vmatpush.bf16.msra.mxu0 %v8298
        %8676 = vmatpush.bf16.msra.mxu0 %v8294
        %8677 = vmatpush.bf16.msra.mxu0 %v8290
        %8678 = vmatmul.bf16.gmra.mxu0 %v7705
        %v8679 = vpop.f32.mrf.mxu0
        %v8680 = vadd.f32 %v8661, %v8679
        %v8681 = vpop.f32.mrf.mxu0
        %v8682 = vadd.f32 %v8663, %v8681
        %8683 = vmatmul.bf16.gmra.mxu0 %v7709
        %v8684 = vpop.f32.mrf.mxu0
        %v8685 = vadd.f32 %v8666, %v8684
        %v8686 = vpop.f32.mrf.mxu0
        %v8687 = vadd.f32 %v8668, %v8686
        %8688 = vdwg.mxu0
        %8689 = vmatpush.bf16.msra.mxu0 %v8350
        %8690 = vmatpush.bf16.msra.mxu0 %v8346
        %8691 = vmatpush.bf16.msra.mxu0 %v8342
        %8692 = vmatpush.bf16.msra.mxu0 %v8338
        %8693 = vmatpush.bf16.msra.mxu0 %v8334
        %8694 = vmatpush.bf16.msra.mxu0 %v8330
        %8695 = vmatpush.bf16.msra.mxu0 %v8326
        %8696 = vmatpush.bf16.msra.mxu0 %v8322
        %8697 = vmatmul.bf16.gmra.mxu0 %v7706
        %v8698 = vpop.f32.mrf.mxu0
        %v8699 = vadd.f32 %v8680, %v8698
        %v8700 = vpop.f32.mrf.mxu0
        %v8701 = vadd.f32 %v8682, %v8700
        %8702 = vmatmul.bf16.gmra.mxu0 %v7710
        %v8703 = vpop.f32.mrf.mxu0
        %v8704 = vadd.f32 %v8685, %v8703
        %v8705 = vpop.f32.mrf.mxu0
        %v8706 = vadd.f32 %v8687, %v8705
        %8707 = vdwg.mxu0
        %8708 = vmatpush.bf16.msra.mxu0 %v8255
        %8709 = vmatpush.bf16.msra.mxu0 %v8251
        %8710 = vmatpush.bf16.msra.mxu0 %v8247
        %8711 = vmatpush.bf16.msra.mxu0 %v8243
        %8712 = vmatpush.bf16.msra.mxu0 %v8239
        %8713 = vmatpush.bf16.msra.mxu0 %v8235
        %8714 = vmatpush.bf16.msra.mxu0 %v8231
        %8715 = vmatpush.bf16.msra.mxu0 %v8227
        %8716 = vmatmul.bf16.gmra.mxu0 %v7703
        %v8717 = vpop.f32.mrf.mxu0
        %v8718 = vadd.f32 0.0, %v8717
        %v8719 = vpop.f32.mrf.mxu0
        %v8720 = vadd.f32 0.0, %v8719
        %8721 = vmatmul.bf16.gmra.mxu0 %v7707
        %v8722 = vpop.f32.mrf.mxu0
        %v8723 = vadd.f32 0.0, %v8722
        %v8724 = vpop.f32.mrf.mxu0
        %v8725 = vadd.f32 0.0, %v8724
        %8726 = vdwg.mxu0
        %8727 = vmatpush.bf16.msra.mxu0 %v8287
        %8728 = vmatpush.bf16.msra.mxu0 %v8283
        %8729 = vmatpush.bf16.msra.mxu0 %v8279
        %8730 = vmatpush.bf16.msra.mxu0 %v8275
        %8731 = vmatpush.bf16.msra.mxu0 %v8271
        %8732 = vmatpush.bf16.msra.mxu0 %v8267
        %8733 = vmatpush.bf16.msra.mxu0 %v8263
        %8734 = vmatpush.bf16.msra.mxu0 %v8259
        %8735 = vmatmul.bf16.gmra.mxu0 %v7704
        %v8736 = vpop.f32.mrf.mxu0
        %v8737 = vadd.f32 %v8718, %v8736
        %v8738 = vpop.f32.mrf.mxu0
        %v8739 = vadd.f32 %v8720, %v8738
        %8740 = vmatmul.bf16.gmra.mxu0 %v7708
        %v8741 = vpop.f32.mrf.mxu0
        %v8742 = vadd.f32 %v8723, %v8741
        %v8743 = vpop.f32.mrf.mxu0
        %v8744 = vadd.f32 %v8725, %v8743
        %8745 = vdwg.mxu0
        %8746 = vmatpush.bf16.msra.mxu0 %v8319
        %8747 = vmatpush.bf16.msra.mxu0 %v8315
        %8748 = vmatpush.bf16.msra.mxu0 %v8311
        %8749 = vmatpush.bf16.msra.mxu0 %v8307
        %8750 = vmatpush.bf16.msra.mxu0 %v8303
        %8751 = vmatpush.bf16.msra.mxu0 %v8299
        %8752 = vmatpush.bf16.msra.mxu0 %v8295
        %8753 = vmatpush.bf16.msra.mxu0 %v8291
        %8754 = vmatmul.bf16.gmra.mxu0 %v7705
        %v8755 = vpop.f32.mrf.mxu0
        %v8756 = vadd.f32 %v8737, %v8755
        %v8757 = vpop.f32.mrf.mxu0
        %v8758 = vadd.f32 %v8739, %v8757
        %8759 = vmatmul.bf16.gmra.mxu0 %v7709
        %v8760 = vpop.f32.mrf.mxu0
        %v8761 = vadd.f32 %v8742, %v8760
        %v8762 = vpop.f32.mrf.mxu0
        %v8763 = vadd.f32 %v8744, %v8762
        %8764 = vdwg.mxu0
        %8765 = vmatpush.bf16.msra.mxu0 %v8351
        %8766 = vmatpush.bf16.msra.mxu0 %v8347
        %8767 = vmatpush.bf16.msra.mxu0 %v8343
        %8768 = vmatpush.bf16.msra.mxu0 %v8339
        %8769 = vmatpush.bf16.msra.mxu0 %v8335
        %8770 = vmatpush.bf16.msra.mxu0 %v8331
        %8771 = vmatpush.bf16.msra.mxu0 %v8327
        %8772 = vmatpush.bf16.msra.mxu0 %v8323
        %8773 = vmatmul.bf16.gmra.mxu0 %v7706
        %v8774 = vpop.f32.mrf.mxu0
        %v8775 = vadd.f32 %v8756, %v8774
        %v8776 = vpop.f32.mrf.mxu0
        %v8777 = vadd.f32 %v8758, %v8776
        %8778 = vmatmul.bf16.gmra.mxu0 %v7710
        %v8779 = vpop.f32.mrf.mxu0
        %v8780 = vadd.f32 %v8761, %v8779
        %v8781 = vpop.f32.mrf.mxu0
        %v8782 = vadd.f32 %v8763, %v8781
        %8783 = vdwg.mxu0
        %v8912 = vunpack.c.l.b16 %v7575
        %v8913 = vunpack.c.h.b16 %v7575
        %v8914 = vunpack.c.l.b16 %v7576
        %v8915 = vunpack.c.h.b16 %v7576
        %v8916 = vunpack.c.l.b16 %v7577
        %v8917 = vunpack.c.h.b16 %v7577
        %v8918 = vunpack.c.l.b16 %v7578
        %v8919 = vunpack.c.h.b16 %v7578
        %v8920 = vunpack.c.l.b16 %v7579
        %v8921 = vunpack.c.h.b16 %v7579
        %v8922 = vunpack.c.l.b16 %v7580
        %v8923 = vunpack.c.h.b16 %v7580
        %v8924 = vunpack.c.l.b16 %v7581
        %v8925 = vunpack.c.h.b16 %v7581
        %v8926 = vunpack.c.l.b16 %v7582
        %v8927 = vunpack.c.h.b16 %v7582
        %v8928 = vunpack.c.l.b16 %v7583
        %v8929 = vunpack.c.h.b16 %v7583
        %v8930 = vunpack.c.l.b16 %v7584
        %v8931 = vunpack.c.h.b16 %v7584
        %v8932 = vunpack.c.l.b16 %v7585
        %v8933 = vunpack.c.h.b16 %v7585
        %v8934 = vunpack.c.l.b16 %v7586
        %v8935 = vunpack.c.h.b16 %v7586
        %v8936 = vunpack.c.l.b16 %v7587
        %v8937 = vunpack.c.h.b16 %v7587
        %v8938 = vunpack.c.l.b16 %v7588
        %v8939 = vunpack.c.h.b16 %v7588
        %v8940 = vunpack.c.l.b16 %v7589
        %v8941 = vunpack.c.h.b16 %v7589
        %v8942 = vunpack.c.l.b16 %v7590
        %v8943 = vunpack.c.h.b16 %v7590
        %v8944 = vunpack.c.l.b16 %v7591
        %v8945 = vunpack.c.h.b16 %v7591
        %v8946 = vunpack.c.l.b16 %v7592
        %v8947 = vunpack.c.h.b16 %v7592
        %v8948 = vunpack.c.l.b16 %v7593
        %v8949 = vunpack.c.h.b16 %v7593
        %v8950 = vunpack.c.l.b16 %v7594
        %v8951 = vunpack.c.h.b16 %v7594
        %v8952 = vunpack.c.l.b16 %v7595
        %v8953 = vunpack.c.h.b16 %v7595
        %v8954 = vunpack.c.l.b16 %v7596
        %v8955 = vunpack.c.h.b16 %v7596
        %v8956 = vunpack.c.l.b16 %v7597
        %v8957 = vunpack.c.h.b16 %v7597
        %v8958 = vunpack.c.l.b16 %v7598
        %v8959 = vunpack.c.h.b16 %v7598
        %v8960 = vunpack.c.l.b16 %v7599
        %v8961 = vunpack.c.h.b16 %v7599
        %v8962 = vunpack.c.l.b16 %v7600
        %v8963 = vunpack.c.h.b16 %v7600
        %v8964 = vunpack.c.l.b16 %v7601
        %v8965 = vunpack.c.h.b16 %v7601
        %v8966 = vunpack.c.l.b16 %v7602
        %v8967 = vunpack.c.h.b16 %v7602
        %v8968 = vunpack.c.l.b16 %v7603
        %v8969 = vunpack.c.h.b16 %v7603
        %v8970 = vunpack.c.l.b16 %v7604
        %v8971 = vunpack.c.h.b16 %v7604
        %v8972 = vunpack.c.l.b16 %v7605
        %v8973 = vunpack.c.h.b16 %v7605
        %v8974 = vunpack.c.l.b16 %v7606
        %v8975 = vunpack.c.h.b16 %v7606
        %v8976 = vunpack.c.l.b16 %v7607
        %v8977 = vunpack.c.h.b16 %v7607
        %v8978 = vunpack.c.l.b16 %v7608
        %v8979 = vunpack.c.h.b16 %v7608
        %v8980 = vunpack.c.l.b16 %v7609
        %v8981 = vunpack.c.h.b16 %v7609
        %v8982 = vunpack.c.l.b16 %v7610
        %v8983 = vunpack.c.h.b16 %v7610
        %v8984 = vunpack.c.l.b16 %v7611
        %v8985 = vunpack.c.h.b16 %v7611
        %v8986 = vunpack.c.l.b16 %v7612
        %v8987 = vunpack.c.h.b16 %v7612
        %v8988 = vunpack.c.l.b16 %v7613
        %v8989 = vunpack.c.h.b16 %v7613
        %v8990 = vunpack.c.l.b16 %v7614
        %v8991 = vunpack.c.h.b16 %v7614
        %v8992 = vunpack.c.l.b16 %v7615
        %v8993 = vunpack.c.h.b16 %v7615
        %v8994 = vunpack.c.l.b16 %v7616
        %v8995 = vunpack.c.h.b16 %v7616
        %v8996 = vunpack.c.l.b16 %v7617
        %v8997 = vunpack.c.h.b16 %v7617
        %v8998 = vunpack.c.l.b16 %v7618
        %v8999 = vunpack.c.h.b16 %v7618
        %v9000 = vunpack.c.l.b16 %v7619
        %v9001 = vunpack.c.h.b16 %v7619
        %v9002 = vunpack.c.l.b16 %v7620
        %v9003 = vunpack.c.h.b16 %v7620
        %v9004 = vunpack.c.l.b16 %v7621
        %v9005 = vunpack.c.h.b16 %v7621
        %v9006 = vunpack.c.l.b16 %v7622
        %v9007 = vunpack.c.h.b16 %v7622
        %v9008 = vunpack.c.l.b16 %v7623
        %v9009 = vunpack.c.h.b16 %v7623
        %v9010 = vunpack.c.l.b16 %v7624
        %v9011 = vunpack.c.h.b16 %v7624
        %v9012 = vunpack.c.l.b16 %v7625
        %v9013 = vunpack.c.h.b16 %v7625
        %v9014 = vunpack.c.l.b16 %v7626
        %v9015 = vunpack.c.h.b16 %v7626
        %v9016 = vunpack.c.l.b16 %v7627
        %v9017 = vunpack.c.h.b16 %v7627
        %v9018 = vunpack.c.l.b16 %v7628
        %v9019 = vunpack.c.h.b16 %v7628
        %v9020 = vunpack.c.l.b16 %v7629
        %v9021 = vunpack.c.h.b16 %v7629
        %v9022 = vunpack.c.l.b16 %v7630
        %v9023 = vunpack.c.h.b16 %v7630
        %v9024 = vunpack.c.l.b16 %v7631
        %v9025 = vunpack.c.h.b16 %v7631
        %v9026 = vunpack.c.l.b16 %v7632
        %v9027 = vunpack.c.h.b16 %v7632
        %v9028 = vunpack.c.l.b16 %v7633
        %v9029 = vunpack.c.h.b16 %v7633
        %v9030 = vunpack.c.l.b16 %v7634
        %v9031 = vunpack.c.h.b16 %v7634
        %v9032 = vunpack.c.l.b16 %v7635
        %v9033 = vunpack.c.h.b16 %v7635
        %v9034 = vunpack.c.l.b16 %v7636
        %v9035 = vunpack.c.h.b16 %v7636
        %v9036 = vunpack.c.l.b16 %v7637
        %v9037 = vunpack.c.h.b16 %v7637
        %v9038 = vunpack.c.l.b16 %v7638
        %v9039 = vunpack.c.h.b16 %v7638
        %v9040 = vunpack.c.l.b16 %v7639
        %v9041 = vunpack.c.h.b16 %v7639
        %v9042 = vunpack.c.l.b16 %v7640
        %v9043 = vunpack.c.h.b16 %v7640
        %v9044 = vunpack.c.l.b16 %v7641
        %v9045 = vunpack.c.h.b16 %v7641
        %v9046 = vunpack.c.l.b16 %v7642
        %v9047 = vunpack.c.h.b16 %v7642
        %v9048 = vunpack.c.l.b16 %v7643
        %v9049 = vunpack.c.h.b16 %v7643
        %v9050 = vunpack.c.l.b16 %v7644
        %v9051 = vunpack.c.h.b16 %v7644
        %v9052 = vunpack.c.l.b16 %v7645
        %v9053 = vunpack.c.h.b16 %v7645
        %v9054 = vunpack.c.l.b16 %v7646
        %v9055 = vunpack.c.h.b16 %v7646
        %v9056 = vunpack.c.l.b16 %v7647
        %v9057 = vunpack.c.h.b16 %v7647
        %v9058 = vunpack.c.l.b16 %v7648
        %v9059 = vunpack.c.h.b16 %v7648
        %v9060 = vunpack.c.l.b16 %v7649
        %v9061 = vunpack.c.h.b16 %v7649
        %v9062 = vunpack.c.l.b16 %v7650
        %v9063 = vunpack.c.h.b16 %v7650
        %v9064 = vunpack.c.l.b16 %v7651
        %v9065 = vunpack.c.h.b16 %v7651
        %v9066 = vunpack.c.l.b16 %v7652
        %v9067 = vunpack.c.h.b16 %v7652
        %v9068 = vunpack.c.l.b16 %v7653
        %v9069 = vunpack.c.h.b16 %v7653
        %v9070 = vunpack.c.l.b16 %v7654
        %v9071 = vunpack.c.h.b16 %v7654
        %v9072 = vunpack.c.l.b16 %v7655
        %v9073 = vunpack.c.h.b16 %v7655
        %v9074 = vunpack.c.l.b16 %v7656
        %v9075 = vunpack.c.h.b16 %v7656
        %v9076 = vunpack.c.l.b16 %v7657
        %v9077 = vunpack.c.h.b16 %v7657
        %v9078 = vunpack.c.l.b16 %v7658
        %v9079 = vunpack.c.h.b16 %v7658
        %v9080 = vunpack.c.l.b16 %v7659
        %v9081 = vunpack.c.h.b16 %v7659
        %v9082 = vunpack.c.l.b16 %v7660
        %v9083 = vunpack.c.h.b16 %v7660
        %v9084 = vunpack.c.l.b16 %v7661
        %v9085 = vunpack.c.h.b16 %v7661
        %v9086 = vunpack.c.l.b16 %v7662
        %v9087 = vunpack.c.h.b16 %v7662
        %v9088 = vunpack.c.l.b16 %v7663
        %v9089 = vunpack.c.h.b16 %v7663
        %v9090 = vunpack.c.l.b16 %v7664
        %v9091 = vunpack.c.h.b16 %v7664
        %v9092 = vunpack.c.l.b16 %v7665
        %v9093 = vunpack.c.h.b16 %v7665
        %v9094 = vunpack.c.l.b16 %v7666
        %v9095 = vunpack.c.h.b16 %v7666
        %v9096 = vunpack.c.l.b16 %v7667
        %v9097 = vunpack.c.h.b16 %v7667
        %v9098 = vunpack.c.l.b16 %v7668
        %v9099 = vunpack.c.h.b16 %v7668
        %v9100 = vunpack.c.l.b16 %v7669
        %v9101 = vunpack.c.h.b16 %v7669
        %v9102 = vunpack.c.l.b16 %v7670
        %v9103 = vunpack.c.h.b16 %v7670
        %v9104 = vunpack.c.l.b16 %v7671
        %v9105 = vunpack.c.h.b16 %v7671
        %v9106 = vunpack.c.l.b16 %v7672
        %v9107 = vunpack.c.h.b16 %v7672
        %v9108 = vunpack.c.l.b16 %v7673
        %v9109 = vunpack.c.h.b16 %v7673
        %v9110 = vunpack.c.l.b16 %v7674
        %v9111 = vunpack.c.h.b16 %v7674
        %v9112 = vunpack.c.l.b16 %v7675
        %v9113 = vunpack.c.h.b16 %v7675
        %v9114 = vunpack.c.l.b16 %v7676
        %v9115 = vunpack.c.h.b16 %v7676
        %v9116 = vunpack.c.l.b16 %v7677
        %v9117 = vunpack.c.h.b16 %v7677
        %v9118 = vunpack.c.l.b16 %v7678
        %v9119 = vunpack.c.h.b16 %v7678
        %v9120 = vunpack.c.l.b16 %v7679
        %v9121 = vunpack.c.h.b16 %v7679
        %v9122 = vunpack.c.l.b16 %v7680
        %v9123 = vunpack.c.h.b16 %v7680
        %v9124 = vunpack.c.l.b16 %v7681
        %v9125 = vunpack.c.h.b16 %v7681
        %v9126 = vunpack.c.l.b16 %v7682
        %v9127 = vunpack.c.h.b16 %v7682
        %v9128 = vunpack.c.l.b16 %v7683
        %v9129 = vunpack.c.h.b16 %v7683
        %v9130 = vunpack.c.l.b16 %v7684
        %v9131 = vunpack.c.h.b16 %v7684
        %v9132 = vunpack.c.l.b16 %v7685
        %v9133 = vunpack.c.h.b16 %v7685
        %v9134 = vunpack.c.l.b16 %v7686
        %v9135 = vunpack.c.h.b16 %v7686
        %v9136 = vunpack.c.l.b16 %v7687
        %v9137 = vunpack.c.h.b16 %v7687
        %v9138 = vunpack.c.l.b16 %v7688
        %v9139 = vunpack.c.h.b16 %v7688
        %v9140 = vunpack.c.l.b16 %v7689
        %v9141 = vunpack.c.h.b16 %v7689
        %v9142 = vunpack.c.l.b16 %v7690
        %v9143 = vunpack.c.h.b16 %v7690
        %v9144 = vunpack.c.l.b16 %v7691
        %v9145 = vunpack.c.h.b16 %v7691
        %v9146 = vunpack.c.l.b16 %v7692
        %v9147 = vunpack.c.h.b16 %v7692
        %v9148 = vunpack.c.l.b16 %v7693
        %v9149 = vunpack.c.h.b16 %v7693
        %v9150 = vunpack.c.l.b16 %v7694
        %v9151 = vunpack.c.h.b16 %v7694
        %v9152 = vunpack.c.l.b16 %v7695
        %v9153 = vunpack.c.h.b16 %v7695
        %v9154 = vunpack.c.l.b16 %v7696
        %v9155 = vunpack.c.h.b16 %v7696
        %v9156 = vunpack.c.l.b16 %v7697
        %v9157 = vunpack.c.h.b16 %v7697
        %v9158 = vunpack.c.l.b16 %v7698
        %v9159 = vunpack.c.h.b16 %v7698
        %v9160 = vunpack.c.l.b16 %v7699
        %v9161 = vunpack.c.h.b16 %v7699
        %v9162 = vunpack.c.l.b16 %v7700
        %v9163 = vunpack.c.h.b16 %v7700
        %v9164 = vunpack.c.l.b16 %v7701
        %v9165 = vunpack.c.h.b16 %v7701
        %v9166 = vunpack.c.l.b16 %v7702
        %v9167 = vunpack.c.h.b16 %v7702
        %v9168 = vpack.c.b16 %v8916, %v8912
        %v9169 = vpack.c.b16 %v8917, %v8913
        %v9170 = vpack.c.b16 %v8918, %v8914
        %v9171 = vpack.c.b16 %v8919, %v8915
        %v9172 = vpack.c.b16 %v8924, %v8920
        %v9173 = vpack.c.b16 %v8925, %v8921
        %v9174 = vpack.c.b16 %v8926, %v8922
        %v9175 = vpack.c.b16 %v8927, %v8923
        %v9176 = vpack.c.b16 %v8932, %v8928
        %v9177 = vpack.c.b16 %v8933, %v8929
        %v9178 = vpack.c.b16 %v8934, %v8930
        %v9179 = vpack.c.b16 %v8935, %v8931
        %v9180 = vpack.c.b16 %v8940, %v8936
        %v9181 = vpack.c.b16 %v8941, %v8937
        %v9182 = vpack.c.b16 %v8942, %v8938
        %v9183 = vpack.c.b16 %v8943, %v8939
        %v9184 = vpack.c.b16 %v8948, %v8944
        %v9185 = vpack.c.b16 %v8949, %v8945
        %v9186 = vpack.c.b16 %v8950, %v8946
        %v9187 = vpack.c.b16 %v8951, %v8947
        %v9188 = vpack.c.b16 %v8956, %v8952
        %v9189 = vpack.c.b16 %v8957, %v8953
        %v9190 = vpack.c.b16 %v8958, %v8954
        %v9191 = vpack.c.b16 %v8959, %v8955
        %v9192 = vpack.c.b16 %v8964, %v8960
        %v9193 = vpack.c.b16 %v8965, %v8961
        %v9194 = vpack.c.b16 %v8966, %v8962
        %v9195 = vpack.c.b16 %v8967, %v8963
        %v9196 = vpack.c.b16 %v8972, %v8968
        %v9197 = vpack.c.b16 %v8973, %v8969
        %v9198 = vpack.c.b16 %v8974, %v8970
        %v9199 = vpack.c.b16 %v8975, %v8971
        %v9200 = vpack.c.b16 %v8980, %v8976
        %v9201 = vpack.c.b16 %v8981, %v8977
        %v9202 = vpack.c.b16 %v8982, %v8978
        %v9203 = vpack.c.b16 %v8983, %v8979
        %v9204 = vpack.c.b16 %v8988, %v8984
        %v9205 = vpack.c.b16 %v8989, %v8985
        %v9206 = vpack.c.b16 %v8990, %v8986
        %v9207 = vpack.c.b16 %v8991, %v8987
        %v9208 = vpack.c.b16 %v8996, %v8992
        %v9209 = vpack.c.b16 %v8997, %v8993
        %v9210 = vpack.c.b16 %v8998, %v8994
        %v9211 = vpack.c.b16 %v8999, %v8995
        %v9212 = vpack.c.b16 %v9004, %v9000
        %v9213 = vpack.c.b16 %v9005, %v9001
        %v9214 = vpack.c.b16 %v9006, %v9002
        %v9215 = vpack.c.b16 %v9007, %v9003
        %v9216 = vpack.c.b16 %v9012, %v9008
        %v9217 = vpack.c.b16 %v9013, %v9009
        %v9218 = vpack.c.b16 %v9014, %v9010
        %v9219 = vpack.c.b16 %v9015, %v9011
        %v9220 = vpack.c.b16 %v9020, %v9016
        %v9221 = vpack.c.b16 %v9021, %v9017
        %v9222 = vpack.c.b16 %v9022, %v9018
        %v9223 = vpack.c.b16 %v9023, %v9019
        %v9224 = vpack.c.b16 %v9028, %v9024
        %v9225 = vpack.c.b16 %v9029, %v9025
        %v9226 = vpack.c.b16 %v9030, %v9026
        %v9227 = vpack.c.b16 %v9031, %v9027
        %v9228 = vpack.c.b16 %v9036, %v9032
        %v9229 = vpack.c.b16 %v9037, %v9033
        %v9230 = vpack.c.b16 %v9038, %v9034
        %v9231 = vpack.c.b16 %v9039, %v9035
        %v9232 = vpack.c.b16 %v9044, %v9040
        %v9233 = vpack.c.b16 %v9045, %v9041
        %v9234 = vpack.c.b16 %v9046, %v9042
        %v9235 = vpack.c.b16 %v9047, %v9043
        %v9236 = vpack.c.b16 %v9052, %v9048
        %v9237 = vpack.c.b16 %v9053, %v9049
        %v9238 = vpack.c.b16 %v9054, %v9050
        %v9239 = vpack.c.b16 %v9055, %v9051
        %v9240 = vpack.c.b16 %v9060, %v9056
        %v9241 = vpack.c.b16 %v9061, %v9057
        %v9242 = vpack.c.b16 %v9062, %v9058
        %v9243 = vpack.c.b16 %v9063, %v9059
        %v9244 = vpack.c.b16 %v9068, %v9064
        %v9245 = vpack.c.b16 %v9069, %v9065
        %v9246 = vpack.c.b16 %v9070, %v9066
        %v9247 = vpack.c.b16 %v9071, %v9067
        %v9248 = vpack.c.b16 %v9076, %v9072
        %v9249 = vpack.c.b16 %v9077, %v9073
        %v9250 = vpack.c.b16 %v9078, %v9074
        %v9251 = vpack.c.b16 %v9079, %v9075
        %v9252 = vpack.c.b16 %v9084, %v9080
        %v9253 = vpack.c.b16 %v9085, %v9081
        %v9254 = vpack.c.b16 %v9086, %v9082
        %v9255 = vpack.c.b16 %v9087, %v9083
        %v9256 = vpack.c.b16 %v9092, %v9088
        %v9257 = vpack.c.b16 %v9093, %v9089
        %v9258 = vpack.c.b16 %v9094, %v9090
        %v9259 = vpack.c.b16 %v9095, %v9091
        %v9260 = vpack.c.b16 %v9100, %v9096
        %v9261 = vpack.c.b16 %v9101, %v9097
        %v9262 = vpack.c.b16 %v9102, %v9098
        %v9263 = vpack.c.b16 %v9103, %v9099
        %v9264 = vpack.c.b16 %v9108, %v9104
        %v9265 = vpack.c.b16 %v9109, %v9105
        %v9266 = vpack.c.b16 %v9110, %v9106
        %v9267 = vpack.c.b16 %v9111, %v9107
        %v9268 = vpack.c.b16 %v9116, %v9112
        %v9269 = vpack.c.b16 %v9117, %v9113
        %v9270 = vpack.c.b16 %v9118, %v9114
        %v9271 = vpack.c.b16 %v9119, %v9115
        %v9272 = vpack.c.b16 %v9124, %v9120
        %v9273 = vpack.c.b16 %v9125, %v9121
        %v9274 = vpack.c.b16 %v9126, %v9122
        %v9275 = vpack.c.b16 %v9127, %v9123
        %v9276 = vpack.c.b16 %v9132, %v9128
        %v9277 = vpack.c.b16 %v9133, %v9129
        %v9278 = vpack.c.b16 %v9134, %v9130
        %v9279 = vpack.c.b16 %v9135, %v9131
        %v9280 = vpack.c.b16 %v9140, %v9136
        %v9281 = vpack.c.b16 %v9141, %v9137
        %v9282 = vpack.c.b16 %v9142, %v9138
        %v9283 = vpack.c.b16 %v9143, %v9139
        %v9284 = vpack.c.b16 %v9148, %v9144
        %v9285 = vpack.c.b16 %v9149, %v9145
        %v9286 = vpack.c.b16 %v9150, %v9146
        %v9287 = vpack.c.b16 %v9151, %v9147
        %v9288 = vpack.c.b16 %v9156, %v9152
        %v9289 = vpack.c.b16 %v9157, %v9153
        %v9290 = vpack.c.b16 %v9158, %v9154
        %v9291 = vpack.c.b16 %v9159, %v9155
        %v9292 = vpack.c.b16 %v9164, %v9160
        %v9293 = vpack.c.b16 %v9165, %v9161
        %v9294 = vpack.c.b16 %v9166, %v9162
        %v9295 = vpack.c.b16 %v9167, %v9163
        %9424 = vmatpush.bf16.msra.mxu0 %v9196
        %9425 = vmatpush.bf16.msra.mxu0 %v9192
        %9426 = vmatpush.bf16.msra.mxu0 %v9188
        %9427 = vmatpush.bf16.msra.mxu0 %v9184
        %9428 = vmatpush.bf16.msra.mxu0 %v9180
        %9429 = vmatpush.bf16.msra.mxu0 %v9176
        %9430 = vmatpush.bf16.msra.mxu0 %v9172
        %9431 = vmatpush.bf16.msra.mxu0 %v9168
        %9432 = vmatmul.bf16.gmra.mxu0 %v7567
        %v9433 = vpop.f32.mrf.mxu0
        %v9434 = vadd.f32 %v8547, %v9433
        %v9435 = vpop.f32.mrf.mxu0
        %v9436 = vadd.f32 %v8549, %v9435
        %9437 = vmatmul.bf16.gmra.mxu0 %v7571
        %v9438 = vpop.f32.mrf.mxu0
        %v9439 = vadd.f32 %v8552, %v9438
        %v9440 = vpop.f32.mrf.mxu0
        %v9441 = vadd.f32 %v8554, %v9440
        %9442 = vdwg.mxu0
        %9443 = vmatpush.bf16.msra.mxu0 %v9228
        %9444 = vmatpush.bf16.msra.mxu0 %v9224
        %9445 = vmatpush.bf16.msra.mxu0 %v9220
        %9446 = vmatpush.bf16.msra.mxu0 %v9216
        %9447 = vmatpush.bf16.msra.mxu0 %v9212
        %9448 = vmatpush.bf16.msra.mxu0 %v9208
        %9449 = vmatpush.bf16.msra.mxu0 %v9204
        %9450 = vmatpush.bf16.msra.mxu0 %v9200
        %9451 = vmatmul.bf16.gmra.mxu0 %v7568
        %v9452 = vpop.f32.mrf.mxu0
        %v9453 = vadd.f32 %v9434, %v9452
        %v9454 = vpop.f32.mrf.mxu0
        %v9455 = vadd.f32 %v9436, %v9454
        %9456 = vmatmul.bf16.gmra.mxu0 %v7572
        %v9457 = vpop.f32.mrf.mxu0
        %v9458 = vadd.f32 %v9439, %v9457
        %v9459 = vpop.f32.mrf.mxu0
        %v9460 = vadd.f32 %v9441, %v9459
        %9461 = vdwg.mxu0
        %9462 = vmatpush.bf16.msra.mxu0 %v9260
        %9463 = vmatpush.bf16.msra.mxu0 %v9256
        %9464 = vmatpush.bf16.msra.mxu0 %v9252
        %9465 = vmatpush.bf16.msra.mxu0 %v9248
        %9466 = vmatpush.bf16.msra.mxu0 %v9244
        %9467 = vmatpush.bf16.msra.mxu0 %v9240
        %9468 = vmatpush.bf16.msra.mxu0 %v9236
        %9469 = vmatpush.bf16.msra.mxu0 %v9232
        %9470 = vmatmul.bf16.gmra.mxu0 %v7569
        %v9471 = vpop.f32.mrf.mxu0
        %v9472 = vadd.f32 %v9453, %v9471
        %v9473 = vpop.f32.mrf.mxu0
        %v9474 = vadd.f32 %v9455, %v9473
        %9475 = vmatmul.bf16.gmra.mxu0 %v7573
        %v9476 = vpop.f32.mrf.mxu0
        %v9477 = vadd.f32 %v9458, %v9476
        %v9478 = vpop.f32.mrf.mxu0
        %v9479 = vadd.f32 %v9460, %v9478
        %9480 = vdwg.mxu0
        %9481 = vmatpush.bf16.msra.mxu0 %v9292
        %9482 = vmatpush.bf16.msra.mxu0 %v9288
        %9483 = vmatpush.bf16.msra.mxu0 %v9284
        %9484 = vmatpush.bf16.msra.mxu0 %v9280
        %9485 = vmatpush.bf16.msra.mxu0 %v9276
        %9486 = vmatpush.bf16.msra.mxu0 %v9272
        %9487 = vmatpush.bf16.msra.mxu0 %v9268
        %9488 = vmatpush.bf16.msra.mxu0 %v9264
        %9489 = vmatmul.bf16.gmra.mxu0 %v7570
        %v9490 = vpop.f32.mrf.mxu0
        %v9491 = vadd.f32 %v9472, %v9490
        %v9492 = vpop.f32.mrf.mxu0
        %v9493 = vadd.f32 %v9474, %v9492
        %9494 = vmatmul.bf16.gmra.mxu0 %v7574
        %v9495 = vpop.f32.mrf.mxu0
        %v9496 = vadd.f32 %v9477, %v9495
        %v9497 = vpop.f32.mrf.mxu0
        %v9498 = vadd.f32 %v9479, %v9497
        %9499 = vdwg.mxu0
        %9500 = vmatpush.bf16.msra.mxu0 %v9197
        %9501 = vmatpush.bf16.msra.mxu0 %v9193
        %9502 = vmatpush.bf16.msra.mxu0 %v9189
        %9503 = vmatpush.bf16.msra.mxu0 %v9185
        %9504 = vmatpush.bf16.msra.mxu0 %v9181
        %9505 = vmatpush.bf16.msra.mxu0 %v9177
        %9506 = vmatpush.bf16.msra.mxu0 %v9173
        %9507 = vmatpush.bf16.msra.mxu0 %v9169
        %9508 = vmatmul.bf16.gmra.mxu0 %v7567
        %v9509 = vpop.f32.mrf.mxu0
        %v9510 = vadd.f32 %v8623, %v9509
        %v9511 = vpop.f32.mrf.mxu0
        %v9512 = vadd.f32 %v8625, %v9511
        %9513 = vmatmul.bf16.gmra.mxu0 %v7571
        %v9514 = vpop.f32.mrf.mxu0
        %v9515 = vadd.f32 %v8628, %v9514
        %v9516 = vpop.f32.mrf.mxu0
        %v9517 = vadd.f32 %v8630, %v9516
        %9518 = vdwg.mxu0
        %9519 = vmatpush.bf16.msra.mxu0 %v9229
        %9520 = vmatpush.bf16.msra.mxu0 %v9225
        %9521 = vmatpush.bf16.msra.mxu0 %v9221
        %9522 = vmatpush.bf16.msra.mxu0 %v9217
        %9523 = vmatpush.bf16.msra.mxu0 %v9213
        %9524 = vmatpush.bf16.msra.mxu0 %v9209
        %9525 = vmatpush.bf16.msra.mxu0 %v9205
        %9526 = vmatpush.bf16.msra.mxu0 %v9201
        %9527 = vmatmul.bf16.gmra.mxu0 %v7568
        %v9528 = vpop.f32.mrf.mxu0
        %v9529 = vadd.f32 %v9510, %v9528
        %v9530 = vpop.f32.mrf.mxu0
        %v9531 = vadd.f32 %v9512, %v9530
        %9532 = vmatmul.bf16.gmra.mxu0 %v7572
        %v9533 = vpop.f32.mrf.mxu0
        %v9534 = vadd.f32 %v9515, %v9533
        %v9535 = vpop.f32.mrf.mxu0
        %v9536 = vadd.f32 %v9517, %v9535
        %9537 = vdwg.mxu0
        %9538 = vmatpush.bf16.msra.mxu0 %v9261
        %9539 = vmatpush.bf16.msra.mxu0 %v9257
        %9540 = vmatpush.bf16.msra.mxu0 %v9253
        %9541 = vmatpush.bf16.msra.mxu0 %v9249
        %9542 = vmatpush.bf16.msra.mxu0 %v9245
        %9543 = vmatpush.bf16.msra.mxu0 %v9241
        %9544 = vmatpush.bf16.msra.mxu0 %v9237
        %9545 = vmatpush.bf16.msra.mxu0 %v9233
        %9546 = vmatmul.bf16.gmra.mxu0 %v7569
        %v9547 = vpop.f32.mrf.mxu0
        %v9548 = vadd.f32 %v9529, %v9547
        %v9549 = vpop.f32.mrf.mxu0
        %v9550 = vadd.f32 %v9531, %v9549
        %9551 = vmatmul.bf16.gmra.mxu0 %v7573
        %v9552 = vpop.f32.mrf.mxu0
        %v9553 = vadd.f32 %v9534, %v9552
        %v9554 = vpop.f32.mrf.mxu0
        %v9555 = vadd.f32 %v9536, %v9554
        %9556 = vdwg.mxu0
        %9557 = vmatpush.bf16.msra.mxu0 %v9293
        %9558 = vmatpush.bf16.msra.mxu0 %v9289
        %9559 = vmatpush.bf16.msra.mxu0 %v9285
        %9560 = vmatpush.bf16.msra.mxu0 %v9281
        %9561 = vmatpush.bf16.msra.mxu0 %v9277
        %9562 = vmatpush.bf16.msra.mxu0 %v9273
        %9563 = vmatpush.bf16.msra.mxu0 %v9269
        %9564 = vmatpush.bf16.msra.mxu0 %v9265
        %9565 = vmatmul.bf16.gmra.mxu0 %v7570
        %v9566 = vpop.f32.mrf.mxu0
        %v9567 = vadd.f32 %v9548, %v9566
        %v9568 = vpop.f32.mrf.mxu0
        %v9569 = vadd.f32 %v9550, %v9568
        %9570 = vmatmul.bf16.gmra.mxu0 %v7574
        %v9571 = vpop.f32.mrf.mxu0
        %v9572 = vadd.f32 %v9553, %v9571
        %v9573 = vpop.f32.mrf.mxu0
        %v9574 = vadd.f32 %v9555, %v9573
        %9575 = vdwg.mxu0
        %9576 = vmatpush.bf16.msra.mxu0 %v9198
        %9577 = vmatpush.bf16.msra.mxu0 %v9194
        %9578 = vmatpush.bf16.msra.mxu0 %v9190
        %9579 = vmatpush.bf16.msra.mxu0 %v9186
        %9580 = vmatpush.bf16.msra.mxu0 %v9182
        %9581 = vmatpush.bf16.msra.mxu0 %v9178
        %9582 = vmatpush.bf16.msra.mxu0 %v9174
        %9583 = vmatpush.bf16.msra.mxu0 %v9170
        %9584 = vmatmul.bf16.gmra.mxu0 %v7567
        %v9585 = vpop.f32.mrf.mxu0
        %v9586 = vadd.f32 %v8699, %v9585
        %v9587 = vpop.f32.mrf.mxu0
        %v9588 = vadd.f32 %v8701, %v9587
        %9589 = vmatmul.bf16.gmra.mxu0 %v7571
        %v9590 = vpop.f32.mrf.mxu0
        %v9591 = vadd.f32 %v8704, %v9590
        %v9592 = vpop.f32.mrf.mxu0
        %v9593 = vadd.f32 %v8706, %v9592
        %9594 = vdwg.mxu0
        %9595 = vmatpush.bf16.msra.mxu0 %v9230
        %9596 = vmatpush.bf16.msra.mxu0 %v9226
        %9597 = vmatpush.bf16.msra.mxu0 %v9222
        %9598 = vmatpush.bf16.msra.mxu0 %v9218
        %9599 = vmatpush.bf16.msra.mxu0 %v9214
        %9600 = vmatpush.bf16.msra.mxu0 %v9210
        %9601 = vmatpush.bf16.msra.mxu0 %v9206
        %9602 = vmatpush.bf16.msra.mxu0 %v9202
        %9603 = vmatmul.bf16.gmra.mxu0 %v7568
        %v9604 = vpop.f32.mrf.mxu0
        %v9605 = vadd.f32 %v9586, %v9604
        %v9606 = vpop.f32.mrf.mxu0
        %v9607 = vadd.f32 %v9588, %v9606
        %9608 = vmatmul.bf16.gmra.mxu0 %v7572
        %v9609 = vpop.f32.mrf.mxu0
        %v9610 = vadd.f32 %v9591, %v9609
        %v9611 = vpop.f32.mrf.mxu0
        %v9612 = vadd.f32 %v9593, %v9611
        %9613 = vdwg.mxu0
        %9614 = vmatpush.bf16.msra.mxu0 %v9262
        %9615 = vmatpush.bf16.msra.mxu0 %v9258
        %9616 = vmatpush.bf16.msra.mxu0 %v9254
        %9617 = vmatpush.bf16.msra.mxu0 %v9250
        %9618 = vmatpush.bf16.msra.mxu0 %v9246
        %9619 = vmatpush.bf16.msra.mxu0 %v9242
        %9620 = vmatpush.bf16.msra.mxu0 %v9238
        %9621 = vmatpush.bf16.msra.mxu0 %v9234
        %9622 = vmatmul.bf16.gmra.mxu0 %v7569
        %v9623 = vpop.f32.mrf.mxu0
        %v9624 = vadd.f32 %v9605, %v9623
        %v9625 = vpop.f32.mrf.mxu0
        %v9626 = vadd.f32 %v9607, %v9625
        %9627 = vmatmul.bf16.gmra.mxu0 %v7573
        %v9628 = vpop.f32.mrf.mxu0
        %v9629 = vadd.f32 %v9610, %v9628
        %v9630 = vpop.f32.mrf.mxu0
        %v9631 = vadd.f32 %v9612, %v9630
        %9632 = vdwg.mxu0
        %9633 = vmatpush.bf16.msra.mxu0 %v9294
        %9634 = vmatpush.bf16.msra.mxu0 %v9290
        %9635 = vmatpush.bf16.msra.mxu0 %v9286
        %9636 = vmatpush.bf16.msra.mxu0 %v9282
        %9637 = vmatpush.bf16.msra.mxu0 %v9278
        %9638 = vmatpush.bf16.msra.mxu0 %v9274
        %9639 = vmatpush.bf16.msra.mxu0 %v9270
        %9640 = vmatpush.bf16.msra.mxu0 %v9266
        %9641 = vmatmul.bf16.gmra.mxu0 %v7570
        %v9642 = vpop.f32.mrf.mxu0
        %v9643 = vadd.f32 %v9624, %v9642
        %v9644 = vpop.f32.mrf.mxu0
        %v9645 = vadd.f32 %v9626, %v9644
        %9646 = vmatmul.bf16.gmra.mxu0 %v7574
        %v9647 = vpop.f32.mrf.mxu0
        %v9648 = vadd.f32 %v9629, %v9647
        %v9649 = vpop.f32.mrf.mxu0
        %v9650 = vadd.f32 %v9631, %v9649
        %9651 = vdwg.mxu0
        %9652 = vmatpush.bf16.msra.mxu0 %v9199
        %9653 = vmatpush.bf16.msra.mxu0 %v9195
        %9654 = vmatpush.bf16.msra.mxu0 %v9191
        %9655 = vmatpush.bf16.msra.mxu0 %v9187
        %9656 = vmatpush.bf16.msra.mxu0 %v9183
        %9657 = vmatpush.bf16.msra.mxu0 %v9179
        %9658 = vmatpush.bf16.msra.mxu0 %v9175
        %9659 = vmatpush.bf16.msra.mxu0 %v9171
        %9660 = vmatmul.bf16.gmra.mxu0 %v7567
        %v9661 = vpop.f32.mrf.mxu0
        %v9662 = vadd.f32 %v8775, %v9661
        %v9663 = vpop.f32.mrf.mxu0
        %v9664 = vadd.f32 %v8777, %v9663
        %9665 = vmatmul.bf16.gmra.mxu0 %v7571
        %v9666 = vpop.f32.mrf.mxu0
        %v9667 = vadd.f32 %v8780, %v9666
        %v9668 = vpop.f32.mrf.mxu0
        %v9669 = vadd.f32 %v8782, %v9668
        %9670 = vdwg.mxu0
        %9671 = vmatpush.bf16.msra.mxu0 %v9231
        %9672 = vmatpush.bf16.msra.mxu0 %v9227
        %9673 = vmatpush.bf16.msra.mxu0 %v9223
        %9674 = vmatpush.bf16.msra.mxu0 %v9219
        %9675 = vmatpush.bf16.msra.mxu0 %v9215
        %9676 = vmatpush.bf16.msra.mxu0 %v9211
        %9677 = vmatpush.bf16.msra.mxu0 %v9207
        %9678 = vmatpush.bf16.msra.mxu0 %v9203
        %9679 = vmatmul.bf16.gmra.mxu0 %v7568
        %v9680 = vpop.f32.mrf.mxu0
        %v9681 = vadd.f32 %v9662, %v9680
        %v9682 = vpop.f32.mrf.mxu0
        %v9683 = vadd.f32 %v9664, %v9682
        %9684 = vmatmul.bf16.gmra.mxu0 %v7572
        %v9685 = vpop.f32.mrf.mxu0
        %v9686 = vadd.f32 %v9667, %v9685
        %v9687 = vpop.f32.mrf.mxu0
        %v9688 = vadd.f32 %v9669, %v9687
        %9689 = vdwg.mxu0
        %9690 = vmatpush.bf16.msra.mxu0 %v9263
        %9691 = vmatpush.bf16.msra.mxu0 %v9259
        %9692 = vmatpush.bf16.msra.mxu0 %v9255
        %9693 = vmatpush.bf16.msra.mxu0 %v9251
        %9694 = vmatpush.bf16.msra.mxu0 %v9247
        %9695 = vmatpush.bf16.msra.mxu0 %v9243
        %9696 = vmatpush.bf16.msra.mxu0 %v9239
        %9697 = vmatpush.bf16.msra.mxu0 %v9235
        %9698 = vmatmul.bf16.gmra.mxu0 %v7569
        %v9699 = vpop.f32.mrf.mxu0
        %v9700 = vadd.f32 %v9681, %v9699
        %v9701 = vpop.f32.mrf.mxu0
        %v9702 = vadd.f32 %v9683, %v9701
        %9703 = vmatmul.bf16.gmra.mxu0 %v7573
        %v9704 = vpop.f32.mrf.mxu0
        %v9705 = vadd.f32 %v9686, %v9704
        %v9706 = vpop.f32.mrf.mxu0
        %v9707 = vadd.f32 %v9688, %v9706
        %9708 = vdwg.mxu0
        %9709 = vmatpush.bf16.msra.mxu0 %v9295
        %9710 = vmatpush.bf16.msra.mxu0 %v9291
        %9711 = vmatpush.bf16.msra.mxu0 %v9287
        %9712 = vmatpush.bf16.msra.mxu0 %v9283
        %9713 = vmatpush.bf16.msra.mxu0 %v9279
        %9714 = vmatpush.bf16.msra.mxu0 %v9275
        %9715 = vmatpush.bf16.msra.mxu0 %v9271
        %9716 = vmatpush.bf16.msra.mxu0 %v9267
        %9717 = vmatmul.bf16.gmra.mxu0 %v7570
        %v9718 = vpop.f32.mrf.mxu0
        %v9719 = vadd.f32 %v9700, %v9718
        %v9720 = vpop.f32.mrf.mxu0
        %v9721 = vadd.f32 %v9702, %v9720
        %9722 = vmatmul.bf16.gmra.mxu0 %v7574
        %v9723 = vpop.f32.mrf.mxu0
        %v9724 = vadd.f32 %v9705, %v9723
        %v9725 = vpop.f32.mrf.mxu0
        %v9726 = vadd.f32 %v9707, %v9725
        %9727 = vdwg.mxu0
        %v9728 = vld [vmem:[%s22] sm:$0xf]
        %v9730 = vperm.slane %v9728, 0
        %v9731 = vperm.slane %v9728, 1
        %v9732 = vperm.slane %v9728, 2
        %v9733 = vperm.slane %v9728, 3
        %v9738 = vadd.f32 %v9491, %v9730
        %v9739 = vadd.f32 %v9567, %v9731
        %v9740 = vadd.f32 %v9643, %v9732
        %v9741 = vadd.f32 %v9719, %v9733
        %v9742 = vadd.f32 %v9493, %v9730
        %v9743 = vadd.f32 %v9569, %v9731
        %v9744 = vadd.f32 %v9645, %v9732
        %v9745 = vadd.f32 %v9721, %v9733
        %v9746 = vadd.f32 %v9496, %v9730
        %v9747 = vadd.f32 %v9572, %v9731
        %v9748 = vadd.f32 %v9648, %v9732
        %v9749 = vadd.f32 %v9724, %v9733
        %v9750 = vadd.f32 %v9498, %v9730
        %v9751 = vadd.f32 %v9574, %v9731
        %v9752 = vadd.f32 %v9650, %v9732
        %v9753 = vadd.f32 %v9726, %v9733
        %v9754 = vadd.f32 %v814, %v9738
        %v9755 = vadd.f32 %v815, %v9739
        %v9756 = vadd.f32 %v816, %v9740
        %v9757 = vadd.f32 %v817, %v9741
        %v9758 = vadd.f32 %v818, %v9742
        %v9759 = vadd.f32 %v819, %v9743
        %v9760 = vadd.f32 %v820, %v9744
        %v9761 = vadd.f32 %v821, %v9745
        %v9762 = vadd.f32 %v822, %v9746
        %v9763 = vadd.f32 %v823, %v9747
        %v9764 = vadd.f32 %v824, %v9748
        %v9765 = vadd.f32 %v825, %v9749
        %v9766 = vadd.f32 %v826, %v9750
        %v9767 = vadd.f32 %v827, %v9751
        %v9768 = vadd.f32 %v828, %v9752
        %v9769 = vadd.f32 %v829, %v9753
        %9770 = vst [vmem:[%s812] sm:$0xff] %v9754
        %9771 = vst [vmem:[%s812 + $0x8] sm:$0xff] %v9755
        %9772 = vst [vmem:[%s812 + $0x10] sm:$0xff] %v9756
        %9773 = vst [vmem:[%s812 + $0x18] sm:$0xff] %v9757
        %9774 = vst [vmem:[%s812 + $0x20] sm:$0xff] %v9758
        %9775 = vst [vmem:[%s812 + $0x28] sm:$0xff] %v9759
        %9776 = vst [vmem:[%s812 + $0x30] sm:$0xff] %v9760
        %9777 = vst [vmem:[%s812 + $0x38] sm:$0xff] %v9761
        %9778 = vst [vmem:[%s812 + $0x40] sm:$0xff] %v9762
        %9779 = vst [vmem:[%s812 + $0x48] sm:$0xff] %v9763
        %9780 = vst [vmem:[%s812 + $0x50] sm:$0xff] %v9764
        %9781 = vst [vmem:[%s812 + $0x58] sm:$0xff] %v9765
        %9782 = vst [vmem:[%s812 + $0x60] sm:$0xff] %v9766
        %9783 = vst [vmem:[%s812 + $0x68] sm:$0xff] %v9767
        %9784 = vst [vmem:[%s812 + $0x70] sm:$0xff] %v9768
        %9785 = vst [vmem:[%s812 + $0x78] sm:$0xff] %v9769
        %p9786 = scmp.lt.s32.totalorder %s40, 1
        %s9787 = scalar_select %p9786, %s40, 1
        %s9788 = smul.addr %s9787, 16
        %s9789 = smul.addr %s9788, 8
        %s9790 = scalar_lea.vmem %s23, %s9789
        // Predicated region
        $region137: #{block_forward.1} parent=111 // pred_check
          %p9791 = pneg %p546
        $region138: #{block_forward.1} parent=111 // pred_check_branch
          %9793 = sbr.rel (%p9791) target = $region140
        $region139: #{block_forward.1} parent=111 // pred_region
          _
        $region140: #{block_forward.1} parent=111 // pred_fallthru
          _
      $region112: #{block_forward.1} parent=5 // pred_fallthru
        _
      %p9794 = scmp.le.s32.totalorder 2, %s35
      // Predicated region
      $region141: #{block_forward.1} parent=5 // pred_check
        %p9795 = pneg %p9794
      $region142: #{block_forward.1} parent=5 // pred_check_branch
        %9797 = sbr.rel (%p9795) target = $region144
      $region143: #{block_forward.1} parent=5 // pred_region
        %s9798 = ssub.s32 %s35, 2
        // Predicated region
        $region145: #{block_forward.1} parent=143 // pred_check
          %p9799 = pneg %p552
        $region146: #{block_forward.1} parent=143 // pred_check_branch
          %9801 = sbr.rel (%p9799) target = $region148
        $region147: #{block_forward.1} parent=143 // pred_region
          %p9802 = scmp.lt.s32.totalorder %s41, 1
          %s9803 = scalar_select %p9802, %s41, 1
          %s9804 = smul.addr %s9803, 16
          %s9805 = smul.addr %s9804, 8
          %s9806 = scalar_lea.vmem %s23, %s9805
        $region148: #{block_forward.1} parent=143 // pred_fallthru
          _
      $region144: #{block_forward.1} parent=5 // pred_fallthru
        _
    $region6: #{block_forward.1} parent=1 // loop_footer
      %s39 = sadd.s32 1, %s35
    $region7: #{block_forward.1} parent=1 // loop_footer_branch
      %34 = sbr.rel target = $region3
    $region8: #{block_forward.1} parent=1 // loop_exit
      _
    %9807 = vsyncpa [#allocation5], 1
    %s9808 = scalar_lea.sflag [#allocation5], 1
    %9809 = vsyncpa %s9808, 1
    %9810 = vsyncpa [#allocation7], 1
    %9811 = vsyncpa [#allocation10], 1
    %9812 = vsyncpa [#allocation13], 1

</llo_original>
